<compile_context>
chip_gen: v7x
topology: tpu7x:2x2x1
jax: 0.10.0
libtpu: 0.0.40
codegen_flags: <defaults>
</compile_context>

<pallas_src>
import functools

import jax
import jax.numpy as jnp
from jax.experimental import pallas as pl
from jax.experimental.pallas import tpu as pltpu

_BN_EPS = 1e-5
_COMPUTE_DTYPE = jnp.bfloat16
_VMEM_LIMIT = 32 * 1024 * 1024

# STN / global-feature kernels: point-tile axis is a (max) reduction.
_FEAT_PARAMS = pltpu.CompilerParams(
    dimension_semantics=("parallel", "arbitrary"),
    vmem_limit_bytes=_VMEM_LIMIT,
)
# Dense head: no cross-tile dependency -> both axes parallel (v7x megacore).
_HEAD_PARAMS = pltpu.CompilerParams(
    dimension_semantics=("parallel", "parallel"),
    vmem_limit_bytes=_VMEM_LIMIT,
)


def _round_up(x, m):
    return -(-x // m) * m


def _relu(x):
    return jnp.maximum(x, 0.0)


def _mm(a, w_ref, b_ref=None):
    """bf16 matmul with f32 accumulation (+ optional f32 bias)."""
    acc = jnp.dot(a.astype(w_ref.dtype), w_ref[...],
                  preferred_element_type=jnp.float32)
    if b_ref is not None:
        acc = acc + b_ref[...]
    return acc


def _const_spec(arr):
    """Full-array block, constant index map (fetched once, stays in VMEM)."""
    return pl.BlockSpec(arr.shape, lambda b, t: (0,) * arr.ndim)


# ---------------------------------------------------------------------------
# Kernel 1: STN (point convs -> fused max-pool -> FC stack -> trans)
# ---------------------------------------------------------------------------

def _stn_kernel(x_ref, w1, b1, w2, b2, w3, b3,
                fw1, fb1, fw2, fb2, fw3, fb3,
                trans_ref, gmax_ref):
    t = pl.program_id(1)

    x = x_ref[0]                                   # (TN, k)
    h = _relu(_mm(x, w1, b1))                      # (TN, 64)
    h = _relu(_mm(h, w2, b2))                      # (TN, 128)
    h = _relu(_mm(h, w3, b3))                      # (TN, 1024)
    tmax = jnp.max(h, axis=0, keepdims=True)       # (1, 1024)

    @pl.when(t == 0)
    def _():
        gmax_ref[...] = tmax

    @pl.when(t > 0)
    def _():
        gmax_ref[...] = jnp.maximum(gmax_ref[...], tmax)

    # Last tile of this batch: run the (tiny) FC stack on the pooled feature.
    @pl.when(t == pl.num_programs(1) - 1)
    def _():
        g = gmax_ref[...]                          # (1, 1024)
        g = _relu(_mm(g, fw1, fb1))                # (1, 512)
        g = _relu(_mm(g, fw2, fb2))                # (1, 256)
        g = _mm(g, fw3, fb3)                       # (1, k*k)  (+identity in bias)
        trans_ref[0] = g.astype(trans_ref.dtype)


def stn_transform(x_pad, p, k, tn):
    B, Np, _ = x_pad.shape
    nt = Np // tn
    args = [x_pad,
            *p["s_c1"], *p["s_c2"], *p["s_c3"],
            *p["s_f1"], *p["s_f2"], *p["s_f3"]]
    in_specs = [pl.BlockSpec((1, tn, k), lambda b, t: (b, t, 0))]
    in_specs += [_const_spec(a) for a in args[1:]]
    out = pl.pallas_call(
        _stn_kernel,
        out_shape=jax.ShapeDtypeStruct((B, 1, k * k), jnp.float32),
        grid=(B, nt),
        in_specs=in_specs,
        out_specs=pl.BlockSpec((1, 1, k * k), lambda b, t: (b, 0, 0)),
        scratch_shapes=[pltpu.VMEM((1, 1024), jnp.float32)],
        compiler_params=_FEAT_PARAMS,
    )(*args)
    return out.reshape(B, k, k)


# ---------------------------------------------------------------------------
# Kernel 2: feature convs (trans folded into conv1) + fused global max-pool
# ---------------------------------------------------------------------------

def _global_feat_kernel(x_ref, w1e_ref, b1, w2, b2, w3, b3, gfeat_ref):
    t = pl.program_id(1)

    # conv1 with the STN transform already folded into the per-batch weight.
    h = _relu(jnp.dot(x_ref[0].astype(w1e_ref.dtype), w1e_ref[0],
                      preferred_element_type=jnp.float32) + b1[...])   # (TN, 64)
    h = _relu(_mm(h, w2, b2))                                          # (TN, 128)
    h = _mm(h, w3, b3)                                                 # (TN, 1024) (bn3, no relu)
    tmax = jnp.max(h, axis=0, keepdims=True)                           # (1, 1024)

    @pl.when(t == 0)
    def _():
        gfeat_ref[0] = tmax

    @pl.when(t > 0)
    def _():
        gfeat_ref[0] = jnp.maximum(gfeat_ref[0], tmax)


def global_feature(x_pad, w1e, p, k, tn):
    B, Np, _ = x_pad.shape
    nt = Np // tn
    args = [x_pad, w1e, p["f_c1"][1], *p["f_c2"], *p["f_c3"]]
    in_specs = [pl.BlockSpec((1, tn, k), lambda b, t: (b, t, 0)),
                pl.BlockSpec((1, k, 64), lambda b, t: (b, 0, 0))]
    in_specs += [_const_spec(a) for a in args[2:]]
    return pl.pallas_call(
        _global_feat_kernel,
        out_shape=jax.ShapeDtypeStruct((B, 1, 1024), jnp.float32),
        grid=(B, nt),
        in_specs=in_specs,
        out_specs=pl.BlockSpec((1, 1, 1024), lambda b, t: (b, 0, 0)),
        compiler_params=_FEAT_PARAMS,
    )(*args)


# ---------------------------------------------------------------------------
# Kernel 3: fused dense head (pointfeat recompute -> merged conv stacks
#           -> conv_add / log_softmax epilogues).  No cross-tile state.
# ---------------------------------------------------------------------------

def _head_kernel(x_ref, w1e_ref, gp_ref,
                 f1b, wp, d1b,
                 m1w, m1b, m2w, m2b, m3w, m3b,
                 daw, dab,
                 sem_ref, emb_ref):
    # pointfeat recomputed per tile (Cin = k, essentially free) instead of a
    # (B*N, 64) HBM round trip.
    h1 = _relu(jnp.dot(x_ref[0].astype(w1e_ref.dtype), w1e_ref[0],
                       preferred_element_type=jnp.float32) + f1b[...])  # (TN, 64)

    # conv1 on cat([global(1024), pointfeat(64)]) without materializing the
    # concat: the global part g_proj is precomputed per batch in the wrapper.
    hx = _relu(_mm(h1, wp) + gp_ref[0] + d1b[...])           # (TN, 512)

    # Merged sibling matmuls (share the same input); lane-aligned slices.
    m1 = _relu(_mm(hx, m1w, m1b))                            # (TN, 512) = [e1 | hx256]
    e_acc = m1[:, :256]
    hx = m1[:, 256:]                                         # (TN, 256)

    m2 = _relu(_mm(hx, m2w, m2b))                            # (TN, 384) = [e2 | hx128]
    e_acc = e_acc + m2[:, :256]
    hx = m2[:, 256:]                                         # (TN, 128)

    m3 = _mm(hx, m3w, m3b)                                   # (TN, 256+k) = [e3 | logits]
    e_acc = e_acc + _relu(m3[:, :256])
    logits = m3[:, 256:]                                     # (TN, k_cls), no relu

    emb = _relu(_mm(e_acc, daw, dab))                        # (TN, shape_embed)
    emb_ref[0] = emb.astype(emb_ref.dtype)                   # bf16 writeback

    # conv4 + fused numerically-stable log_softmax epilogue.
    m = jnp.max(logits, axis=-1, keepdims=True)
    z = logits - m
    lse = jnp.log(jnp.sum(jnp.exp(z), axis=-1, keepdims=True))
    sem_ref[0] = (z - lse).astype(sem_ref.dtype)


def dense_head(x_pad, w1e, g_proj, p, k, k_cls, shape_embed, tn):
    B, Np, _ = x_pad.shape
    nt = Np // tn
    args = [x_pad, w1e, g_proj,
            p["f_c1"][1], p["d_c1_p"], p["d_c1_b"],
            *p["d_m1"], *p["d_m2"], *p["d_m3"], *p["d_cadd"]]
    in_specs = [pl.BlockSpec((1, tn, k), lambda b, t: (b, t, 0)),
                pl.BlockSpec((1, k, 64), lambda b, t: (b, 0, 0)),
                pl.BlockSpec((1, 1, 512), lambda b, t: (b, 0, 0))]
    in_specs += [_const_spec(a) for a in args[3:]]
    sem, emb = pl.pallas_call(
        _head_kernel,
        out_shape=(jax.ShapeDtypeStruct((B, Np, k_cls), jnp.float32),
                   jax.ShapeDtypeStruct((B, Np, shape_embed), jnp.bfloat16)),
        grid=(B, nt),
        in_specs=in_specs,
        out_specs=(pl.BlockSpec((1, tn, k_cls), lambda b, t: (b, t, 0)),
                   pl.BlockSpec((1, tn, shape_embed), lambda b, t: (b, t, 0))),
        compiler_params=_HEAD_PARAMS,
    )(*args)
    return sem, emb


# ---------------------------------------------------------------------------
# Deterministic parameter initialization (synthetic weights, BN folded)
# ---------------------------------------------------------------------------

def _conv_bn_params(key, cin, cout):
    """Conv1d(cin, cout, 1) + BatchNorm1d(cout) folded to (W_eff, b_eff)."""
    k1, k2, k3, k4, k5, k6 = jax.random.split(key, 6)
    w = jax.random.normal(k1, (cout, cin), jnp.float32) / jnp.sqrt(float(cin))
    b = 0.01 * jax.random.normal(k2, (cout,), jnp.float32)
    gamma = 1.0 + 0.1 * jax.random.normal(k3, (cout,), jnp.float32)
    beta = 0.01 * jax.random.normal(k4, (cout,), jnp.float32)
    r_mean = 0.01 * jax.random.normal(k5, (cout,), jnp.float32)
    r_var = 1.0 + 0.1 * jax.random.uniform(k6, (cout,), jnp.float32)
    scale = gamma / jnp.sqrt(r_var + _BN_EPS)
    w_eff = (w * scale[:, None]).T                   # (cin, cout)
    b_eff = ((b - r_mean) * scale + beta)[None, :]   # (1, cout)
    return w_eff, b_eff


def _conv_params(key, cin, cout):
    """Plain Conv1d(cin, cout, 1) / Linear, no BN."""
    k1, k2 = jax.random.split(key)
    w = jax.random.normal(k1, (cout, cin), jnp.float32) / jnp.sqrt(float(cin))
    b = 0.01 * jax.random.normal(k2, (cout,), jnp.float32)
    return w.T, b[None, :]


def init_params(key, inp_size, k_cls=2, shape_embed=512):
    keys = jax.random.split(key, 20)
    p = {}
    # STNkd(k=inp_size)
    p["s_c1"] = _conv_bn_params(keys[0], inp_size, 64)
    p["s_c2"] = _conv_bn_params(keys[1], 64, 128)
    p["s_c3"] = _conv_bn_params(keys[2], 128, 1024)
    p["s_f1"] = _conv_bn_params(keys[3], 1024, 512)
    p["s_f2"] = _conv_bn_params(keys[4], 512, 256)
    p["s_f3"] = _conv_params(keys[5], 256, inp_size * inp_size)
    # PointNetfeat
    p["f_c1"] = _conv_bn_params(keys[6], inp_size, 64)
    p["f_c2"] = _conv_bn_params(keys[7], 64, 128)
    p["f_c3"] = _conv_bn_params(keys[8], 128, 1024)
    # PointNetDenseCls head
    p["d_c1"] = _conv_bn_params(keys[9], 1088, 512)
    p["d_c1a"] = _conv_bn_params(keys[10], 512, 256)
    p["d_c2"] = _conv_bn_params(keys[11], 512, 256)
    p["d_c2a"] = _conv_bn_params(keys[12], 256, 256)
    p["d_c3"] = _conv_bn_params(keys[13], 256, 128)
    p["d_c3a"] = _conv_bn_params(keys[14], 128, 256)
    p["d_cadd"] = _conv_bn_params(keys[15], 256, shape_embed)
    p["d_c4"] = _conv_params(keys[16], 128, k_cls)
    return p


def prepare_params(p, inp_size):
    """bf16 weights / f32 biases; split conv1(1088->512); fold STN +identity;
    merge sibling matmuls that share an input into wider weights."""
    def cast(wb):
        w, b = wb
        return (w.astype(_COMPUTE_DTYPE), b.astype(jnp.float32))

    q = {}
    for name in ("s_c1", "s_c2", "s_c3", "s_f1", "s_f2",
                 "f_c1", "f_c2", "f_c3", "d_cadd"):
        q[name] = cast(p[name])

    # STN fc3: fold the "+ identity" into the bias.
    w, b = p["s_f3"]
    iden = jnp.eye(inp_size, dtype=jnp.float32).reshape(1, inp_size * inp_size)
    q["s_f3"] = (w.astype(_COMPUTE_DTYPE), b + iden)

    # Head conv1 acts on cat([global(1024), pointfeat(64)]): split the weight.
    w, b = p["d_c1"]
    q["d_c1_g"] = w[:1024].astype(_COMPUTE_DTYPE)   # global-feature part (wrapper)
    q["d_c1_p"] = w[1024:].astype(_COMPUTE_DTYPE)   # pointfeat part (kernel)
    q["d_c1_b"] = b.astype(jnp.float32)

    # Merge sibling matmuls sharing an input (wider MXU tiles, fewer launches).
    def merge(a, bb):
        (wa, ba), (wb_, bb_) = a, bb
        return (jnp.concatenate([wa, wb_], axis=1).astype(_COMPUTE_DTYPE),
                jnp.concatenate([ba, bb_], axis=1).astype(jnp.float32))
    q["d_m1"] = merge(p["d_c1a"], p["d_c2"])   # (512, 512):  [e1 | hx256]
    q["d_m2"] = merge(p["d_c2a"], p["d_c3"])   # (256, 384):  [e2 | hx128]
    q["d_m3"] = merge(p["d_c3a"], p["d_c4"])   # (128, 256+k): [e3 | logits]
    return q


# ---------------------------------------------------------------------------
# Forward pass
# ---------------------------------------------------------------------------

def pointnet_dense_cls_forward(x_bcn, params, inp_size, k_cls, shape_embed,
                               tile_n_head=512, tile_n_feat=1024):
    """Full PointNetDenseCls forward.  Input is PyTorch NCW: (B, C, N)."""
    B, C, N = x_bcn.shape
    assert C == inp_size
    x = jnp.transpose(x_bcn, (0, 2, 1)).astype(jnp.float32)   # (B, N, C)

    # Point-tile sizes (multiples of 8); pad N by edge replication, which keeps
    # the global max-pool exact (duplicated rows never change a max) and the
    # padded head rows are sliced off below.
    n8 = _round_up(N, 8)
    tn_head = min(tile_n_head, n8)
    np_ = _round_up(N, tn_head)
    # Bigger point tiles for the compute-bound STN / feature kernels, only when
    # they still divide the padded point count (no extra padded work).
    if tile_n_feat >= 2 * tn_head and np_ % (2 * tn_head) == 0:
        tn_feat = 2 * tn_head
    else:
        tn_feat = tn_head

    if np_ != N:
        pad = jnp.broadcast_to(x[:, N - 1:N, :], (B, np_ - N, C))
        x = jnp.concatenate([x, pad], axis=1)

    # 1) STN -> per-batch transform.
    trans = stn_transform(x, params, inp_size, tn_feat)       # (B, k, k) f32

    # 2) Fold bmm(x, trans) into conv1: (x@trans)@W == x@(trans@W).
    w1e = jnp.einsum("bij,jo->bio", trans,
                     params["f_c1"][0].astype(jnp.float32)
                     ).astype(_COMPUTE_DTYPE)                 # (B, k, 64)

    # 3) Global feature (max-pool fused; the (N,1024) activation never hits HBM).
    gfeat = global_feature(x, w1e, params, inp_size, tn_feat)  # (B, 1, 1024)

    # 4) g_proj = global_feat @ W_g hoisted out of the head kernel (tiny), so
    #    the head's point-tile axis has no cross-tile state (v7x megacore).
    g_proj = jnp.einsum("bio,od->bid", gfeat.astype(_COMPUTE_DTYPE),
                        params["d_c1_g"],
                        preferred_element_type=jnp.float32)   # (B, 1, 512) f32

    # 5) Fused dense head (+ log_softmax epilogue), emb written back as bf16.
    sem, emb = dense_head(x, w1e, g_proj, params, inp_size, k_cls,
                          shape_embed, tn_head)

    sem = sem[:, :N, :]
    emb = emb[:, :N, :].astype(jnp.float32)
    trans_feat = None  # feature_transform=False
    return sem, emb, trans, trans_feat


# ---------------------------------------------------------------------------
# Main
# ---------------------------------------------------------------------------

if __name__ == "__main__":
    B, inp_size, N = 2, 4, 16
    k_cls, shape_embed = 2, 512

    key = jax.random.PRNGKey(0)
    pkey, xkey = jax.random.split(key)
    params = prepare_params(init_params(pkey, inp_size, k_cls, shape_embed),
                            inp_size)
    x = jax.random.normal(xkey, (B, inp_size, N), jnp.float32)  # NCW, as in PyTorch

    fwd = jax.jit(functools.partial(
        pointnet_dense_cls_forward, inp_size=inp_size, k_cls=k_cls,
        shape_embed=shape_embed))
    sem, emb, trans, trans_feat = fwd(x, params)
    jax.block_until_ready((sem, emb, trans))

    assert sem.shape == (B, N, k_cls)
    assert emb.shape == (B, N, shape_embed)
    assert trans.shape == (B, inp_size, inp_size)
    assert trans_feat is None
    # log_softmax rows must sum to 1 in probability space.
    assert bool(jnp.allclose(jnp.sum(jnp.exp(sem), axis=-1), 1.0, atol=1e-4))

    print("KERNEL_OK")
</pallas_src>

<mosaic_0001>
module attributes {stable_mosaic.version = 11 : i64} {
  func.func @_global_feat_kernel(%arg0: i32, %arg1: i32, %arg2: memref<1x16x4xf32, #tpu.memory_space<vmem>>, %arg3: memref<1x4x64xbf16, #tpu.memory_space<vmem>>, %arg4: memref<1x64xf32, #tpu.memory_space<vmem>>, %arg5: memref<64x128xbf16, #tpu.memory_space<vmem>>, %arg6: memref<1x128xf32, #tpu.memory_space<vmem>>, %arg7: memref<128x1024xbf16, #tpu.memory_space<vmem>>, %arg8: memref<1x1024xf32, #tpu.memory_space<vmem>>, %arg9: memref<1x1x1024xf32, #tpu.memory_space<vmem>>) attributes {dimension_semantics = [#tpu.dimension_semantics<parallel>, #tpu.dimension_semantics<arbitrary>], iteration_bounds = array<i64: 2, 1>, scalar_prefetch = 0 : i64, scratch_operands = 0 : i64, tpu.core_type = #tpu.core_type<tc>, window_params = [{transform_indices = @transform_0, window_bounds = array<i64: 1, 16, 4>}, {transform_indices = @transform_1, window_bounds = array<i64: 1, 4, 64>}, {pipeline_mode = #tpu.pipeline_mode<synchronous>, transform_indices = @transform_2, window_bounds = array<i64: 1, 64>}, {pipeline_mode = #tpu.pipeline_mode<synchronous>, transform_indices = @transform_3, window_bounds = array<i64: 64, 128>}, {pipeline_mode = #tpu.pipeline_mode<synchronous>, transform_indices = @transform_4, window_bounds = array<i64: 1, 128>}, {pipeline_mode = #tpu.pipeline_mode<synchronous>, transform_indices = @transform_5, window_bounds = array<i64: 128, 1024>}, {pipeline_mode = #tpu.pipeline_mode<synchronous>, transform_indices = @transform_6, window_bounds = array<i64: 1, 1024>}, {transform_indices = @transform_7, window_bounds = array<i64: 1, 1, 1024>}]} {
    %c0 = arith.constant 0 : index
    %c0_0 = arith.constant 0 : index
    %c0_1 = arith.constant 0 : index
    %0 = vector.load %arg2[%c0, %c0_0, %c0_1] : memref<1x16x4xf32, #tpu.memory_space<vmem>>, vector<1x16x4xf32>
    %1 = vector.shape_cast %0 : vector<1x16x4xf32> to vector<16x4xf32>
    %2 = arith.truncf %1 : vector<16x4xf32> to vector<16x4xbf16>
    %c0_2 = arith.constant 0 : index
    %c0_3 = arith.constant 0 : index
    %c0_4 = arith.constant 0 : index
    %3 = vector.load %arg3[%c0_2, %c0_3, %c0_4] : memref<1x4x64xbf16, #tpu.memory_space<vmem>>, vector<1x4x64xbf16>
    %4 = vector.shape_cast %3 : vector<1x4x64xbf16> to vector<4x64xbf16>
    %cst = arith.constant dense<0.000000e+00> : vector<16x64xf32>
    %5 = tpu.matmul %2, %4, %cst {dimension_numbers = #tpu.dot_dimension_numbers<[1], [0], [0], [1], [0, 0, 1, 1], [], []>} : vector<16x4xbf16>, vector<4x64xbf16>, vector<16x64xf32> -> vector<16x64xf32>
    %c0_5 = arith.constant 0 : index
    %c0_6 = arith.constant 0 : index
    %6 = vector.load %arg4[%c0_5, %c0_6] : memref<1x64xf32, #tpu.memory_space<vmem>>, vector<1x64xf32>
    %7 = vector.broadcast %6 : vector<1x64xf32> to vector<16x64xf32>
    %8 = arith.addf %5, %7 : vector<16x64xf32>
    %cst_7 = arith.constant 0.000000e+00 : f32
    %9 = vector.broadcast %cst_7 : f32 to vector<16x64xf32>
    %10 = arith.maximumf %8, %9 : vector<16x64xf32>
    %11 = arith.truncf %10 : vector<16x64xf32> to vector<16x64xbf16>
    %c0_8 = arith.constant 0 : index
    %c0_9 = arith.constant 0 : index
    %12 = vector.load %arg5[%c0_8, %c0_9] : memref<64x128xbf16, #tpu.memory_space<vmem>>, vector<64x128xbf16>
    %cst_10 = arith.constant dense<0.000000e+00> : vector<16x128xf32>
    %13 = tpu.matmul %11, %12, %cst_10 {dimension_numbers = #tpu.dot_dimension_numbers<[1], [0], [0], [1], [0, 0, 1, 1], [], []>} : vector<16x64xbf16>, vector<64x128xbf16>, vector<16x128xf32> -> vector<16x128xf32>
    %c0_11 = arith.constant 0 : index
    %c0_12 = arith.constant 0 : index
    %14 = vector.load %arg6[%c0_11, %c0_12] : memref<1x128xf32, #tpu.memory_space<vmem>>, vector<1x128xf32>
    %15 = vector.broadcast %14 : vector<1x128xf32> to vector<16x128xf32>
    %16 = arith.addf %13, %15 : vector<16x128xf32>
    %cst_13 = arith.constant 0.000000e+00 : f32
    %17 = vector.broadcast %cst_13 : f32 to vector<16x128xf32>
    %18 = arith.maximumf %16, %17 : vector<16x128xf32>
    %19 = arith.truncf %18 : vector<16x128xf32> to vector<16x128xbf16>
    %c0_14 = arith.constant 0 : index
    %c0_15 = arith.constant 0 : index
    %20 = vector.load %arg7[%c0_14, %c0_15] : memref<128x1024xbf16, #tpu.memory_space<vmem>>, vector<128x1024xbf16>
    %cst_16 = arith.constant dense<0.000000e+00> : vector<16x1024xf32>
    %21 = tpu.matmul %19, %20, %cst_16 {dimension_numbers = #tpu.dot_dimension_numbers<[1], [0], [0], [1], [0, 0, 1, 1], [], []>} : vector<16x128xbf16>, vector<128x1024xbf16>, vector<16x1024xf32> -> vector<16x1024xf32>
    %c0_17 = arith.constant 0 : index
    %c0_18 = arith.constant 0 : index
    %22 = vector.load %arg8[%c0_17, %c0_18] : memref<1x1024xf32, #tpu.memory_space<vmem>>, vector<1x1024xf32>
    %23 = vector.broadcast %22 : vector<1x1024xf32> to vector<16x1024xf32>
    %24 = arith.addf %21, %23 : vector<16x1024xf32>
    %cst_19 = arith.constant dense<0xFF800000> : vector<1024xf32>
    %25 = vector.multi_reduction <maximumf>, %24, %cst_19 [0] : vector<16x1024xf32> to vector<1024xf32>
    %26 = vector.shape_cast %25 : vector<1024xf32> to vector<1x1024xf32>
    %c0_i32 = arith.constant 0 : i32
    %27 = arith.cmpi eq, %arg1, %c0_i32 : i32
    %28 = arith.extui %27 : i1 to i32
    %c0_i32_20 = arith.constant 0 : i32
    %29 = arith.cmpi ne, %28, %c0_i32_20 : i32
    scf.if %29 {
      %c0_23 = arith.constant 0 : index
      %c0_24 = arith.constant 0 : index
      %c0_25 = arith.constant 0 : index
      %33 = vector.load %arg9[%c0_23, %c0_24, %c0_25] : memref<1x1x1024xf32, #tpu.memory_space<vmem>>, vector<1x1x1024xf32>
      %34 = vector.shape_cast %33 : vector<1x1x1024xf32> to vector<1x1024xf32>
      %35 = vector.shape_cast %26 : vector<1x1024xf32> to vector<1x1x1024xf32>
      tpu.vector_store %arg9[%c0_23, %c0_24, %c0_25], %35 {strides = array<i32>} : memref<1x1x1024xf32, #tpu.memory_space<vmem>>, vector<1x1x1024xf32>,
    } else {
    }
    %c0_i32_21 = arith.constant 0 : i32
    %30 = arith.cmpi sgt, %arg1, %c0_i32_21 : i32
    %31 = arith.extui %30 : i1 to i32
    %c0_i32_22 = arith.constant 0 : i32
    %32 = arith.cmpi ne, %31, %c0_i32_22 : i32
    scf.if %32 {
      %c0_23 = arith.constant 0 : index
      %c0_24 = arith.constant 0 : index
      %c0_25 = arith.constant 0 : index
      %33 = vector.load %arg9[%c0_23, %c0_24, %c0_25] : memref<1x1x1024xf32, #tpu.memory_space<vmem>>, vector<1x1x1024xf32>
      %34 = vector.shape_cast %33 : vector<1x1x1024xf32> to vector<1x1024xf32>
      %35 = arith.maximumf %34, %26 : vector<1x1024xf32>
      %c0_26 = arith.constant 0 : index
      %c0_27 = arith.constant 0 : index
      %c0_28 = arith.constant 0 : index
      %36 = vector.load %arg9[%c0_26, %c0_27, %c0_28] : memref<1x1x1024xf32, #tpu.memory_space<vmem>>, vector<1x1x1024xf32>
      %37 = vector.shape_cast %36 : vector<1x1x1024xf32> to vector<1x1024xf32>
      %38 = vector.shape_cast %35 : vector<1x1024xf32> to vector<1x1x1024xf32>
      tpu.vector_store %arg9[%c0_26, %c0_27, %c0_28], %38 {strides = array<i32>} : memref<1x1x1024xf32, #tpu.memory_space<vmem>>, vector<1x1x1024xf32>,
    } else {
    }
    return
  }
  func.func @transform_0(%arg0: i32, %arg1: i32) -> (i32, i32, i32) {
    %c0_i32 = arith.constant 0 : i32
    %c0_i32_0 = arith.constant 0 : i32
    return %arg0, %arg1, %c0_i32 : i32, i32, i32
  }
  func.func @transform_1(%arg0: i32, %arg1: i32) -> (i32, i32, i32) {
    %c0_i32 = arith.constant 0 : i32
    %c0_i32_0 = arith.constant 0 : i32
    %c0_i32_1 = arith.constant 0 : i32
    return %arg0, %c0_i32, %c0_i32_0 : i32, i32, i32
  }
  func.func @transform_2(%arg0: i32, %arg1: i32) -> (i32, i32) {
    %c0_i32 = arith.constant 0 : i32
    %c0_i32_0 = arith.constant 0 : i32
    %c0_i32_1 = arith.constant 0 : i32
    return %c0_i32, %c0_i32_0 : i32, i32
  }
  func.func @transform_3(%arg0: i32, %arg1: i32) -> (i32, i32) {
    %c0_i32 = arith.constant 0 : i32
    %c0_i32_0 = arith.constant 0 : i32
    %c0_i32_1 = arith.constant 0 : i32
    return %c0_i32, %c0_i32_0 : i32, i32
  }
  func.func @transform_4(%arg0: i32, %arg1: i32) -> (i32, i32) {
    %c0_i32 = arith.constant 0 : i32
    %c0_i32_0 = arith.constant 0 : i32
    %c0_i32_1 = arith.constant 0 : i32
    return %c0_i32, %c0_i32_0 : i32, i32
  }
  func.func @transform_5(%arg0: i32, %arg1: i32) -> (i32, i32) {
    %c0_i32 = arith.constant 0 : i32
    %c0_i32_0 = arith.constant 0 : i32
    %c0_i32_1 = arith.constant 0 : i32
    return %c0_i32, %c0_i32_0 : i32, i32
  }
  func.func @transform_6(%arg0: i32, %arg1: i32) -> (i32, i32) {
    %c0_i32 = arith.constant 0 : i32
    %c0_i32_0 = arith.constant 0 : i32
    %c0_i32_1 = arith.constant 0 : i32
    return %c0_i32, %c0_i32_0 : i32, i32
  }
  func.func @transform_7(%arg0: i32, %arg1: i32) -> (i32, i32, i32) {
    %c0_i32 = arith.constant 0 : i32
    %c0_i32_0 = arith.constant 0 : i32
    %c0_i32_1 = arith.constant 0 : i32
    return %arg0, %c0_i32, %c0_i32_0 : i32, i32, i32
  }
}

module attributes {stable_mosaic.version = 11 : i64} {
  func.func @_stn_kernel(%arg0: i32, %arg1: i32, %arg2: memref<1x16x4xf32, #tpu.memory_space<vmem>>, %arg3: memref<4x64xbf16, #tpu.memory_space<vmem>>, %arg4: memref<1x64xf32, #tpu.memory_space<vmem>>, %arg5: memref<64x128xbf16, #tpu.memory_space<vmem>>, %arg6: memref<1x128xf32, #tpu.memory_space<vmem>>, %arg7: memref<128x1024xbf16, #tpu.memory_space<vmem>>, %arg8: memref<1x1024xf32, #tpu.memory_space<vmem>>, %arg9: memref<1024x512xbf16, #tpu.memory_space<vmem>>, %arg10: memref<1x512xf32, #tpu.memory_space<vmem>>, %arg11: memref<512x256xbf16, #tpu.memory_space<vmem>>, %arg12: memref<1x256xf32, #tpu.memory_space<vmem>>, %arg13: memref<256x16xbf16, #tpu.memory_space<vmem>>, %arg14: memref<1x16xf32, #tpu.memory_space<vmem>>, %arg15: memref<1x1x16xf32, #tpu.memory_space<vmem>>, %arg16: memref<1x1024xf32, #tpu.memory_space<vmem>>) attributes {dimension_semantics = [#tpu.dimension_semantics<parallel>, #tpu.dimension_semantics<arbitrary>], iteration_bounds = array<i64: 2, 1>, scalar_prefetch = 0 : i64, scratch_operands = 1 : i64, tpu.core_type = #tpu.core_type<tc>, window_params = [{transform_indices = @transform_0, window_bounds = array<i64: 1, 16, 4>}, {pipeline_mode = #tpu.pipeline_mode<synchronous>, transform_indices = @transform_1, window_bounds = array<i64: 4, 64>}, {pipeline_mode = #tpu.pipeline_mode<synchronous>, transform_indices = @transform_2, window_bounds = array<i64: 1, 64>}, {pipeline_mode = #tpu.pipeline_mode<synchronous>, transform_indices = @transform_3, window_bounds = array<i64: 64, 128>}, {pipeline_mode = #tpu.pipeline_mode<synchronous>, transform_indices = @transform_4, window_bounds = array<i64: 1, 128>}, {pipeline_mode = #tpu.pipeline_mode<synchronous>, transform_indices = @transform_5, window_bounds = array<i64: 128, 1024>}, {pipeline_mode = #tpu.pipeline_mode<synchronous>, transform_indices = @transform_6, window_bounds = array<i64: 1, 1024>}, {pipeline_mode = #tpu.pipeline_mode<synchronous>, transform_indices = @transform_7, window_bounds = array<i64: 1024, 512>}, {pipeline_mode = #tpu.pipeline_mode<synchronous>, transform_indices = @transform_8, window_bounds = array<i64: 1, 512>}, {pipeline_mode = #tpu.pipeline_mode<synchronous>, transform_indices = @transform_9, window_bounds = array<i64: 512, 256>}, {pipeline_mode = #tpu.pipeline_mode<synchronous>, transform_indices = @transform_10, window_bounds = array<i64: 1, 256>}, {pipeline_mode = #tpu.pipeline_mode<synchronous>, transform_indices = @transform_11, window_bounds = array<i64: 256, 16>}, {pipeline_mode = #tpu.pipeline_mode<synchronous>, transform_indices = @transform_12, window_bounds = array<i64: 1, 16>}, {transform_indices = @transform_13, window_bounds = array<i64: 1, 1, 16>}]} {
    %c0 = arith.constant 0 : index
    %c0_0 = arith.constant 0 : index
    %c0_1 = arith.constant 0 : index
    %0 = vector.load %arg2[%c0, %c0_0, %c0_1] : memref<1x16x4xf32, #tpu.memory_space<vmem>>, vector<1x16x4xf32>
    %1 = vector.shape_cast %0 : vector<1x16x4xf32> to vector<16x4xf32>
    %2 = arith.truncf %1 : vector<16x4xf32> to vector<16x4xbf16>
    %c0_2 = arith.constant 0 : index
    %c0_3 = arith.constant 0 : index
    %3 = vector.load %arg3[%c0_2, %c0_3] : memref<4x64xbf16, #tpu.memory_space<vmem>>, vector<4x64xbf16>
    %cst = arith.constant dense<0.000000e+00> : vector<16x64xf32>
    %4 = tpu.matmul %2, %3, %cst {dimension_numbers = #tpu.dot_dimension_numbers<[1], [0], [0], [1], [0, 0, 1, 1], [], []>} : vector<16x4xbf16>, vector<4x64xbf16>, vector<16x64xf32> -> vector<16x64xf32>
    %c0_4 = arith.constant 0 : index
    %c0_5 = arith.constant 0 : index
    %5 = vector.load %arg4[%c0_4, %c0_5] : memref<1x64xf32, #tpu.memory_space<vmem>>, vector<1x64xf32>
    %6 = vector.broadcast %5 : vector<1x64xf32> to vector<16x64xf32>
    %7 = arith.addf %4, %6 : vector<16x64xf32>
    %cst_6 = arith.constant 0.000000e+00 : f32
    %8 = vector.broadcast %cst_6 : f32 to vector<16x64xf32>
    %9 = arith.maximumf %7, %8 : vector<16x64xf32>
    %10 = arith.truncf %9 : vector<16x64xf32> to vector<16x64xbf16>
    %c0_7 = arith.constant 0 : index
    %c0_8 = arith.constant 0 : index
    %11 = vector.load %arg5[%c0_7, %c0_8] : memref<64x128xbf16, #tpu.memory_space<vmem>>, vector<64x128xbf16>
    %cst_9 = arith.constant dense<0.000000e+00> : vector<16x128xf32>
    %12 = tpu.matmul %10, %11, %cst_9 {dimension_numbers = #tpu.dot_dimension_numbers<[1], [0], [0], [1], [0, 0, 1, 1], [], []>} : vector<16x64xbf16>, vector<64x128xbf16>, vector<16x128xf32> -> vector<16x128xf32>
    %c0_10 = arith.constant 0 : index
    %c0_11 = arith.constant 0 : index
    %13 = vector.load %arg6[%c0_10, %c0_11] : memref<1x128xf32, #tpu.memory_space<vmem>>, vector<1x128xf32>
    %14 = vector.broadcast %13 : vector<1x128xf32> to vector<16x128xf32>
    %15 = arith.addf %12, %14 : vector<16x128xf32>
    %cst_12 = arith.constant 0.000000e+00 : f32
    %16 = vector.broadcast %cst_12 : f32 to vector<16x128xf32>
    %17 = arith.maximumf %15, %16 : vector<16x128xf32>
    %18 = arith.truncf %17 : vector<16x128xf32> to vector<16x128xbf16>
    %c0_13 = arith.constant 0 : index
    %c0_14 = arith.constant 0 : index
    %19 = vector.load %arg7[%c0_13, %c0_14] : memref<128x1024xbf16, #tpu.memory_space<vmem>>, vector<128x1024xbf16>
    %cst_15 = arith.constant dense<0.000000e+00> : vector<16x1024xf32>
    %20 = tpu.matmul %18, %19, %cst_15 {dimension_numbers = #tpu.dot_dimension_numbers<[1], [0], [0], [1], [0, 0, 1, 1], [], []>} : vector<16x128xbf16>, vector<128x1024xbf16>, vector<16x1024xf32> -> vector<16x1024xf32>
    %c0_16 = arith.constant 0 : index
    %c0_17 = arith.constant 0 : index
    %21 = vector.load %arg8[%c0_16, %c0_17] : memref<1x1024xf32, #tpu.memory_space<vmem>>, vector<1x1024xf32>
    %22 = vector.broadcast %21 : vector<1x1024xf32> to vector<16x1024xf32>
    %23 = arith.addf %20, %22 : vector<16x1024xf32>
    %cst_18 = arith.constant 0.000000e+00 : f32
    %24 = vector.broadcast %cst_18 : f32 to vector<16x1024xf32>
    %25 = arith.maximumf %23, %24 : vector<16x1024xf32>
    %cst_19 = arith.constant dense<0xFF800000> : vector<1024xf32>
    %26 = vector.multi_reduction <maximumf>, %25, %cst_19 [0] : vector<16x1024xf32> to vector<1024xf32>
    %27 = vector.shape_cast %26 : vector<1024xf32> to vector<1x1024xf32>
    %c0_i32 = arith.constant 0 : i32
    %28 = arith.cmpi eq, %arg1, %c0_i32 : i32
    %29 = arith.extui %28 : i1 to i32
    %c0_i32_20 = arith.constant 0 : i32
    %30 = arith.cmpi ne, %29, %c0_i32_20 : i32
    scf.if %30 {
      %c0_25 = arith.constant 0 : index
      %c0_26 = arith.constant 0 : index
      %37 = vector.load %arg16[%c0_25, %c0_26] : memref<1x1024xf32, #tpu.memory_space<vmem>>, vector<1x1024xf32>
      tpu.vector_store %arg16[%c0_25, %c0_26], %27 {strides = array<i32>} : memref<1x1024xf32, #tpu.memory_space<vmem>>, vector<1x1024xf32>,
    } else {
    }
    %c0_i32_21 = arith.constant 0 : i32
    %31 = arith.cmpi sgt, %arg1, %c0_i32_21 : i32
    %32 = arith.extui %31 : i1 to i32
    %c0_i32_22 = arith.constant 0 : i32
    %33 = arith.cmpi ne, %32, %c0_i32_22 : i32
    scf.if %33 {
      %c0_25 = arith.constant 0 : index
      %c0_26 = arith.constant 0 : index
      %37 = vector.load %arg16[%c0_25, %c0_26] : memref<1x1024xf32, #tpu.memory_space<vmem>>, vector<1x1024xf32>
      %38 = arith.maximumf %37, %27 : vector<1x1024xf32>
      %c0_27 = arith.constant 0 : index
      %c0_28 = arith.constant 0 : index
      %39 = vector.load %arg16[%c0_27, %c0_28] : memref<1x1024xf32, #tpu.memory_space<vmem>>, vector<1x1024xf32>
      tpu.vector_store %arg16[%c0_27, %c0_28], %38 {strides = array<i32>} : memref<1x1024xf32, #tpu.memory_space<vmem>>, vector<1x1024xf32>,
    } else {
    }
    %c0_i32_23 = arith.constant 0 : i32
    %34 = arith.cmpi eq, %arg1, %c0_i32_23 : i32
    %35 = arith.extui %34 : i1 to i32
    %c0_i32_24 = arith.constant 0 : i32
    %36 = arith.cmpi ne, %35, %c0_i32_24 : i32
    scf.if %36 {
      %c0_25 = arith.constant 0 : index
      %c0_26 = arith.constant 0 : index
      %37 = vector.load %arg16[%c0_25, %c0_26] : memref<1x1024xf32, #tpu.memory_space<vmem>>, vector<1x1024xf32>
      %38 = arith.truncf %37 : vector<1x1024xf32> to vector<1x1024xbf16>
      %c0_27 = arith.constant 0 : index
      %c0_28 = arith.constant 0 : index
      %39 = vector.load %arg9[%c0_27, %c0_28] : memref<1024x512xbf16, #tpu.memory_space<vmem>>, vector<1024x512xbf16>
      %cst_29 = arith.constant dense<0.000000e+00> : vector<1x512xf32>
      %40 = tpu.matmul %38, %39, %cst_29 {dimension_numbers = #tpu.dot_dimension_numbers<[1], [0], [0], [1], [0, 0, 1, 1], [], []>} : vector<1x1024xbf16>, vector<1024x512xbf16>, vector<1x512xf32> -> vector<1x512xf32>
      %c0_30 = arith.constant 0 : index
      %c0_31 = arith.constant 0 : index
      %41 = vector.load %arg10[%c0_30, %c0_31] : memref<1x512xf32, #tpu.memory_space<vmem>>, vector<1x512xf32>
      %42 = arith.addf %40, %41 : vector<1x512xf32>
      %cst_32 = arith.constant 0.000000e+00 : f32
      %43 = vector.broadcast %cst_32 : f32 to vector<1x512xf32>
      %44 = arith.maximumf %42, %43 : vector<1x512xf32>
      %45 = arith.truncf %44 : vector<1x512xf32> to vector<1x512xbf16>
      %c0_33 = arith.constant 0 : index
      %c0_34 = arith.constant 0 : index
      %46 = vector.load %arg11[%c0_33, %c0_34] : memref<512x256xbf16, #tpu.memory_space<vmem>>, vector<512x256xbf16>
      %cst_35 = arith.constant dense<0.000000e+00> : vector<1x256xf32>
      %47 = tpu.matmul %45, %46, %cst_35 {dimension_numbers = #tpu.dot_dimension_numbers<[1], [0], [0], [1], [0, 0, 1, 1], [], []>} : vector<1x512xbf16>, vector<512x256xbf16>, vector<1x256xf32> -> vector<1x256xf32>
      %c0_36 = arith.constant 0 : index
      %c0_37 = arith.constant 0 : index
      %48 = vector.load %arg12[%c0_36, %c0_37] : memref<1x256xf32, #tpu.memory_space<vmem>>, vector<1x256xf32>
      %49 = arith.addf %47, %48 : vector<1x256xf32>
      %cst_38 = arith.constant 0.000000e+00 : f32
      %50 = vector.broadcast %cst_38 : f32 to vector<1x256xf32>
      %51 = arith.maximumf %49, %50 : vector<1x256xf32>
      %52 = arith.truncf %51 : vector<1x256xf32> to vector<1x256xbf16>
      %c0_39 = arith.constant 0 : index
      %c0_40 = arith.constant 0 : index
      %53 = vector.load %arg13[%c0_39, %c0_40] : memref<256x16xbf16, #tpu.memory_space<vmem>>, vector<256x16xbf16>
      %cst_41 = arith.constant dense<0.000000e+00> : vector<1x16xf32>
      %54 = tpu.matmul %52, %53, %cst_41 {dimension_numbers = #tpu.dot_dimension_numbers<[1], [0], [0], [1], [0, 0, 1, 1], [], []>} : vector<1x256xbf16>, vector<256x16xbf16>, vector<1x16xf32> -> vector<1x16xf32>
      %c0_42 = arith.constant 0 : index
      %c0_43 = arith.constant 0 : index
      %55 = vector.load %arg14[%c0_42, %c0_43] : memref<1x16xf32, #tpu.memory_space<vmem>>, vector<1x16xf32>
      %56 = arith.addf %54, %55 : vector<1x16xf32>
      %c0_44 = arith.constant 0 : index
      %c0_45 = arith.constant 0 : index
      %c0_46 = arith.constant 0 : index
      %57 = vector.load %arg15[%c0_44, %c0_45, %c0_46] : memref<1x1x16xf32, #tpu.memory_space<vmem>>, vector<1x1x16xf32>
      %58 = vector.shape_cast %57 : vector<1x1x16xf32> to vector<1x16xf32>
      %59 = vector.shape_cast %56 : vector<1x16xf32> to vector<1x1x16xf32>
      tpu.vector_store %arg15[%c0_44, %c0_45, %c0_46], %59 {strides = array<i32>} : memref<1x1x16xf32, #tpu.memory_space<vmem>>, vector<1x1x16xf32>,
    } else {
    }
    return
  }
  func.func @transform_0(%arg0: i32, %arg1: i32) -> (i32, i32, i32) {
    %c0_i32 = arith.constant 0 : i32
    %c0_i32_0 = arith.constant 0 : i32
    return %arg0, %arg1, %c0_i32 : i32, i32, i32
  }
  func.func @transform_1(%arg0: i32, %arg1: i32) -> (i32, i32) {
    %c0_i32 = arith.constant 0 : i32
    %c0_i32_0 = arith.constant 0 : i32
    %c0_i32_1 = arith.constant 0 : i32
    return %c0_i32, %c0_i32_0 : i32, i32
  }
  func.func @transform_2(%arg0: i32, %arg1: i32) -> (i32, i32) {
    %c0_i32 = arith.constant 0 : i32
    %c0_i32_0 = arith.constant 0 : i32
    %c0_i32_1 = arith.constant 0 : i32
    return %c0_i32, %c0_i32_0 : i32, i32
  }
  func.func @transform_3(%arg0: i32, %arg1: i32) -> (i32, i32) {
    %c0_i32 = arith.constant 0 : i32
    %c0_i32_0 = arith.constant 0 : i32
    %c0_i32_1 = arith.constant 0 : i32
    return %c0_i32, %c0_i32_0 : i32, i32
  }
  func.func @transform_4(%arg0: i32, %arg1: i32) -> (i32, i32) {
    %c0_i32 = arith.constant 0 : i32
    %c0_i32_0 = arith.constant 0 : i32
    %c0_i32_1 = arith.constant 0 : i32
    return %c0_i32, %c0_i32_0 : i32, i32
  }
  func.func @transform_5(%arg0: i32, %arg1: i32) -> (i32, i32) {
    %c0_i32 = arith.constant 0 : i32
    %c0_i32_0 = arith.constant 0 : i32
    %c0_i32_1 = arith.constant 0 : i32
    return %c0_i32, %c0_i32_0 : i32, i32
  }
  func.func @transform_6(%arg0: i32, %arg1: i32) -> (i32, i32) {
    %c0_i32 = arith.constant 0 : i32
    %c0_i32_0 = arith.constant 0 : i32
    %c0_i32_1 = arith.constant 0 : i32
    return %c0_i32, %c0_i32_0 : i32, i32
  }
  func.func @transform_7(%arg0: i32, %arg1: i32) -> (i32, i32) {
    %c0_i32 = arith.constant 0 : i32
    %c0_i32_0 = arith.constant 0 : i32
    %c0_i32_1 = arith.constant 0 : i32
    return %c0_i32, %c0_i32_0 : i32, i32
  }
  func.func @transform_8(%arg0: i32, %arg1: i32) -> (i32, i32) {
    %c0_i32 = arith.constant 0 : i32
    %c0_i32_0 = arith.constant 0 : i32
    %c0_i32_1 = arith.constant 0 : i32
    return %c0_i32, %c0_i32_0 : i32, i32
  }
  func.func @transform_9(%arg0: i32, %arg1: i32) -> (i32, i32) {
    %c0_i32 = arith.constant 0 : i32
    %c0_i32_0 = arith.constant 0 : i32
    %c0_i32_1 = arith.constant 0 : i32
    return %c0_i32, %c0_i32_0 : i32, i32
  }
  func.func @transform_10(%arg0: i32, %arg1: i32) -> (i32, i32) {
    %c0_i32 = arith.constant 0 : i32
    %c0_i32_0 = arith.constant 0 : i32
    %c0_i32_1 = arith.constant 0 : i32
    return %c0_i32, %c0_i32_0 : i32, i32
  }
  func.func @transform_11(%arg0: i32, %arg1: i32) -> (i32, i32) {
    %c0_i32 = arith.constant 0 : i32
    %c0_i32_0 = arith.constant 0 : i32
    %c0_i32_1 = arith.constant 0 : i32
    return %c0_i32, %c0_i32_0 : i32, i32
  }
  func.func @transform_12(%arg0: i32, %arg1: i32) -> (i32, i32) {
    %c0_i32 = arith.constant 0 : i32
    %c0_i32_0 = arith.constant 0 : i32
    %c0_i32_1 = arith.constant 0 : i32
    return %c0_i32, %c0_i32_0 : i32, i32
  }
  func.func @transform_13(%arg0: i32, %arg1: i32) -> (i32, i32, i32) {
    %c0_i32 = arith.constant 0 : i32
    %c0_i32_0 = arith.constant 0 : i32
    %c0_i32_1 = arith.constant 0 : i32
    return %arg0, %c0_i32, %c0_i32_0 : i32, i32, i32
  }
}

module attributes {stable_mosaic.version = 11 : i64} {
  func.func @_head_kernel(%arg0: i32, %arg1: i32, %arg2: memref<1x16x4xf32, #tpu.memory_space<vmem>>, %arg3: memref<1x4x64xbf16, #tpu.memory_space<vmem>>, %arg4: memref<1x1x512xf32, #tpu.memory_space<vmem>>, %arg5: memref<1x64xf32, #tpu.memory_space<vmem>>, %arg6: memref<64x512xbf16, #tpu.memory_space<vmem>>, %arg7: memref<1x512xf32, #tpu.memory_space<vmem>>, %arg8: memref<512x512xbf16, #tpu.memory_space<vmem>>, %arg9: memref<1x512xf32, #tpu.memory_space<vmem>>, %arg10: memref<256x384xbf16, #tpu.memory_space<vmem>>, %arg11: memref<1x384xf32, #tpu.memory_space<vmem>>, %arg12: memref<128x258xbf16, #tpu.memory_space<vmem>>, %arg13: memref<1x258xf32, #tpu.memory_space<vmem>>, %arg14: memref<256x512xbf16, #tpu.memory_space<vmem>>, %arg15: memref<1x512xf32, #tpu.memory_space<vmem>>, %arg16: memref<1x16x2xf32, #tpu.memory_space<vmem>>, %arg17: memref<1x16x512xbf16, #tpu.memory_space<vmem>>) attributes {dimension_semantics = [#tpu.dimension_semantics<parallel>, #tpu.dimension_semantics<parallel>], iteration_bounds = array<i64: 2, 1>, scalar_prefetch = 0 : i64, scratch_operands = 0 : i64, tpu.core_type = #tpu.core_type<tc>, window_params = [{transform_indices = @transform_0, window_bounds = array<i64: 1, 16, 4>}, {transform_indices = @transform_1, window_bounds = array<i64: 1, 4, 64>}, {transform_indices = @transform_2, window_bounds = array<i64: 1, 1, 512>}, {pipeline_mode = #tpu.pipeline_mode<synchronous>, transform_indices = @transform_3, window_bounds = array<i64: 1, 64>}, {pipeline_mode = #tpu.pipeline_mode<synchronous>, transform_indices = @transform_4, window_bounds = array<i64: 64, 512>}, {pipeline_mode = #tpu.pipeline_mode<synchronous>, transform_indices = @transform_5, window_bounds = array<i64: 1, 512>}, {pipeline_mode = #tpu.pipeline_mode<synchronous>, transform_indices = @transform_6, window_bounds = array<i64: 512, 512>}, {pipeline_mode = #tpu.pipeline_mode<synchronous>, transform_indices = @transform_7, window_bounds = array<i64: 1, 512>}, {pipeline_mode = #tpu.pipeline_mode<synchronous>, transform_indices = @transform_8, window_bounds = array<i64: 256, 384>}, {pipeline_mode = #tpu.pipeline_mode<synchronous>, transform_indices = @transform_9, window_bounds = array<i64: 1, 384>}, {pipeline_mode = #tpu.pipeline_mode<synchronous>, transform_indices = @transform_10, window_bounds = array<i64: 128, 258>}, {pipeline_mode = #tpu.pipeline_mode<synchronous>, transform_indices = @transform_11, window_bounds = array<i64: 1, 258>}, {pipeline_mode = #tpu.pipeline_mode<synchronous>, transform_indices = @transform_12, window_bounds = array<i64: 256, 512>}, {pipeline_mode = #tpu.pipeline_mode<synchronous>, transform_indices = @transform_13, window_bounds = array<i64: 1, 512>}, {transform_indices = @transform_14, window_bounds = array<i64: 1, 16, 2>}, {transform_indices = @transform_15, window_bounds = array<i64: 1, 16, 512>}]} {
    %c0 = arith.constant 0 : index
    %c0_0 = arith.constant 0 : index
    %c0_1 = arith.constant 0 : index
    %0 = vector.load %arg2[%c0, %c0_0, %c0_1] : memref<1x16x4xf32, #tpu.memory_space<vmem>>, vector<1x16x4xf32>
    %1 = vector.shape_cast %0 : vector<1x16x4xf32> to vector<16x4xf32>
    %2 = arith.truncf %1 : vector<16x4xf32> to vector<16x4xbf16>
    %c0_2 = arith.constant 0 : index
    %c0_3 = arith.constant 0 : index
    %c0_4 = arith.constant 0 : index
    %3 = vector.load %arg3[%c0_2, %c0_3, %c0_4] : memref<1x4x64xbf16, #tpu.memory_space<vmem>>, vector<1x4x64xbf16>
    %4 = vector.shape_cast %3 : vector<1x4x64xbf16> to vector<4x64xbf16>
    %cst = arith.constant dense<0.000000e+00> : vector<16x64xf32>
    %5 = tpu.matmul %2, %4, %cst {dimension_numbers = #tpu.dot_dimension_numbers<[1], [0], [0], [1], [0, 0, 1, 1], [], []>} : vector<16x4xbf16>, vector<4x64xbf16>, vector<16x64xf32> -> vector<16x64xf32>
    %c0_5 = arith.constant 0 : index
    %c0_6 = arith.constant 0 : index
    %6 = vector.load %arg5[%c0_5, %c0_6] : memref<1x64xf32, #tpu.memory_space<vmem>>, vector<1x64xf32>
    %7 = vector.broadcast %6 : vector<1x64xf32> to vector<16x64xf32>
    %8 = arith.addf %5, %7 : vector<16x64xf32>
    %cst_7 = arith.constant 0.000000e+00 : f32
    %9 = vector.broadcast %cst_7 : f32 to vector<16x64xf32>
    %10 = arith.maximumf %8, %9 : vector<16x64xf32>
    %11 = arith.truncf %10 : vector<16x64xf32> to vector<16x64xbf16>
    %c0_8 = arith.constant 0 : index
    %c0_9 = arith.constant 0 : index
    %12 = vector.load %arg6[%c0_8, %c0_9] : memref<64x512xbf16, #tpu.memory_space<vmem>>, vector<64x512xbf16>
    %cst_10 = arith.constant dense<0.000000e+00> : vector<16x512xf32>
    %13 = tpu.matmul %11, %12, %cst_10 {dimension_numbers = #tpu.dot_dimension_numbers<[1], [0], [0], [1], [0, 0, 1, 1], [], []>} : vector<16x64xbf16>, vector<64x512xbf16>, vector<16x512xf32> -> vector<16x512xf32>
    %c0_11 = arith.constant 0 : index
    %c0_12 = arith.constant 0 : index
    %c0_13 = arith.constant 0 : index
    %14 = vector.load %arg4[%c0_11, %c0_12, %c0_13] : memref<1x1x512xf32, #tpu.memory_space<vmem>>, vector<1x1x512xf32>
    %15 = vector.shape_cast %14 : vector<1x1x512xf32> to vector<1x512xf32>
    %16 = vector.broadcast %15 : vector<1x512xf32> to vector<16x512xf32>
    %17 = arith.addf %13, %16 : vector<16x512xf32>
    %c0_14 = arith.constant 0 : index
    %c0_15 = arith.constant 0 : index
    %18 = vector.load %arg7[%c0_14, %c0_15] : memref<1x512xf32, #tpu.memory_space<vmem>>, vector<1x512xf32>
    %19 = vector.broadcast %18 : vector<1x512xf32> to vector<16x512xf32>
    %20 = arith.addf %17, %19 : vector<16x512xf32>
    %cst_16 = arith.constant 0.000000e+00 : f32
    %21 = vector.broadcast %cst_16 : f32 to vector<16x512xf32>
    %22 = arith.maximumf %20, %21 : vector<16x512xf32>
    %23 = arith.truncf %22 : vector<16x512xf32> to vector<16x512xbf16>
    %c0_17 = arith.constant 0 : index
    %c0_18 = arith.constant 0 : index
    %24 = vector.load %arg8[%c0_17, %c0_18] : memref<512x512xbf16, #tpu.memory_space<vmem>>, vector<512x512xbf16>
    %cst_19 = arith.constant dense<0.000000e+00> : vector<16x512xf32>
    %25 = tpu.matmul %23, %24, %cst_19 {dimension_numbers = #tpu.dot_dimension_numbers<[1], [0], [0], [1], [0, 0, 1, 1], [], []>} : vector<16x512xbf16>, vector<512x512xbf16>, vector<16x512xf32> -> vector<16x512xf32>
    %c0_20 = arith.constant 0 : index
    %c0_21 = arith.constant 0 : index
    %26 = vector.load %arg9[%c0_20, %c0_21] : memref<1x512xf32, #tpu.memory_space<vmem>>, vector<1x512xf32>
    %27 = vector.broadcast %26 : vector<1x512xf32> to vector<16x512xf32>
    %28 = arith.addf %25, %27 : vector<16x512xf32>
    %cst_22 = arith.constant 0.000000e+00 : f32
    %29 = vector.broadcast %cst_22 : f32 to vector<16x512xf32>
    %30 = arith.maximumf %28, %29 : vector<16x512xf32>
    %31 = vector.extract_strided_slice %30 {offsets = [0, 0], sizes = [16, 256], strides = [1, 1]} : vector<16x512xf32> to vector<16x256xf32>
    %32 = vector.extract_strided_slice %30 {offsets = [0, 256], sizes = [16, 256], strides = [1, 1]} : vector<16x512xf32> to vector<16x256xf32>
    %33 = arith.truncf %32 : vector<16x256xf32> to vector<16x256xbf16>
    %c0_23 = arith.constant 0 : index
    %c0_24 = arith.constant 0 : index
    %34 = vector.load %arg10[%c0_23, %c0_24] : memref<256x384xbf16, #tpu.memory_space<vmem>>, vector<256x384xbf16>
    %cst_25 = arith.constant dense<0.000000e+00> : vector<16x384xf32>
    %35 = tpu.matmul %33, %34, %cst_25 {dimension_numbers = #tpu.dot_dimension_numbers<[1], [0], [0], [1], [0, 0, 1, 1], [], []>} : vector<16x256xbf16>, vector<256x384xbf16>, vector<16x384xf32> -> vector<16x384xf32>
    %c0_26 = arith.constant 0 : index
    %c0_27 = arith.constant 0 : index
    %36 = vector.load %arg11[%c0_26, %c0_27] : memref<1x384xf32, #tpu.memory_space<vmem>>, vector<1x384xf32>
    %37 = vector.broadcast %36 : vector<1x384xf32> to vector<16x384xf32>
    %38 = arith.addf %35, %37 : vector<16x384xf32>
    %cst_28 = arith.constant 0.000000e+00 : f32
    %39 = vector.broadcast %cst_28 : f32 to vector<16x384xf32>
    %40 = arith.maximumf %38, %39 : vector<16x384xf32>
    %41 = vector.extract_strided_slice %40 {offsets = [0, 0], sizes = [16, 256], strides = [1, 1]} : vector<16x384xf32> to vector<16x256xf32>
    %42 = arith.addf %31, %41 : vector<16x256xf32>
    %43 = vector.extract_strided_slice %40 {offsets = [0, 256], sizes = [16, 128], strides = [1, 1]} : vector<16x384xf32> to vector<16x128xf32>
    %44 = arith.truncf %43 : vector<16x128xf32> to vector<16x128xbf16>
    %c0_29 = arith.constant 0 : index
    %c0_30 = arith.constant 0 : index
    %45 = vector.load %arg12[%c0_29, %c0_30] : memref<128x258xbf16, #tpu.memory_space<vmem>>, vector<128x258xbf16>
    %cst_31 = arith.constant dense<0.000000e+00> : vector<16x258xf32>
    %46 = tpu.matmul %44, %45, %cst_31 {dimension_numbers = #tpu.dot_dimension_numbers<[1], [0], [0], [1], [0, 0, 1, 1], [], []>} : vector<16x128xbf16>, vector<128x258xbf16>, vector<16x258xf32> -> vector<16x258xf32>
    %c0_32 = arith.constant 0 : index
    %c0_33 = arith.constant 0 : index
    %47 = vector.load %arg13[%c0_32, %c0_33] : memref<1x258xf32, #tpu.memory_space<vmem>>, vector<1x258xf32>
    %48 = vector.broadcast %47 : vector<1x258xf32> to vector<16x258xf32>
    %49 = arith.addf %46, %48 : vector<16x258xf32>
    %50 = vector.extract_strided_slice %49 {offsets = [0, 0], sizes = [16, 256], strides = [1, 1]} : vector<16x258xf32> to vector<16x256xf32>
    %cst_34 = arith.constant 0.000000e+00 : f32
    %51 = vector.broadcast %cst_34 : f32 to vector<16x256xf32>
    %52 = arith.maximumf %50, %51 : vector<16x256xf32>
    %53 = arith.addf %42, %52 : vector<16x256xf32>
    %54 = vector.extract_strided_slice %49 {offsets = [0, 256], sizes = [16, 2], strides = [1, 1]} : vector<16x258xf32> to vector<16x2xf32>
    %55 = arith.truncf %53 : vector<16x256xf32> to vector<16x256xbf16>
    %c0_35 = arith.constant 0 : index
    %c0_36 = arith.constant 0 : index
    %56 = vector.load %arg14[%c0_35, %c0_36] : memref<256x512xbf16, #tpu.memory_space<vmem>>, vector<256x512xbf16>
    %cst_37 = arith.constant dense<0.000000e+00> : vector<16x512xf32>
    %57 = tpu.matmul %55, %56, %cst_37 {dimension_numbers = #tpu.dot_dimension_numbers<[1], [0], [0], [1], [0, 0, 1, 1], [], []>} : vector<16x256xbf16>, vector<256x512xbf16>, vector<16x512xf32> -> vector<16x512xf32>
    %c0_38 = arith.constant 0 : index
    %c0_39 = arith.constant 0 : index
    %58 = vector.load %arg15[%c0_38, %c0_39] : memref<1x512xf32, #tpu.memory_space<vmem>>, vector<1x512xf32>
    %59 = vector.broadcast %58 : vector<1x512xf32> to vector<16x512xf32>
    %60 = arith.addf %57, %59 : vector<16x512xf32>
    %cst_40 = arith.constant 0.000000e+00 : f32
    %61 = vector.broadcast %cst_40 : f32 to vector<16x512xf32>
    %62 = arith.maximumf %60, %61 : vector<16x512xf32>
    %63 = arith.truncf %62 : vector<16x512xf32> to vector<16x512xbf16>
    %c0_41 = arith.constant 0 : index
    %c0_42 = arith.constant 0 : index
    %c0_43 = arith.constant 0 : index
    %64 = vector.load %arg17[%c0_41, %c0_42, %c0_43] : memref<1x16x512xbf16, #tpu.memory_space<vmem>>, vector<1x16x512xbf16>
    %65 = vector.shape_cast %64 : vector<1x16x512xbf16> to vector<16x512xbf16>
    %66 = vector.shape_cast %63 : vector<16x512xbf16> to vector<1x16x512xbf16>
    tpu.vector_store %arg17[%c0_41, %c0_42, %c0_43], %66 {strides = array<i32>} : memref<1x16x512xbf16, #tpu.memory_space<vmem>>, vector<1x16x512xbf16>,
    %cst_44 = arith.constant dense<0xFF800000> : vector<16xf32>
    %67 = vector.multi_reduction <maximumf>, %54, %cst_44 [1] : vector<16x2xf32> to vector<16xf32>
    %68 = vector.shape_cast %67 : vector<16xf32> to vector<16x1xf32>
    %69 = vector.broadcast %68 : vector<16x1xf32> to vector<16x2xf32>
    %70 = arith.subf %54, %69 : vector<16x2xf32>
    %71 = math.exp %70 : vector<16x2xf32>
    %cst_45 = arith.constant dense<0.000000e+00> : vector<16xf32>
    %72 = vector.multi_reduction <add>, %71, %cst_45 [1] : vector<16x2xf32> to vector<16xf32>
    %73 = vector.shape_cast %72 : vector<16xf32> to vector<16x1xf32>
    %74 = math.log %73 : vector<16x1xf32>
    %75 = vector.broadcast %74 : vector<16x1xf32> to vector<16x2xf32>
    %76 = arith.subf %70, %75 : vector<16x2xf32>
    %c0_46 = arith.constant 0 : index
    %c0_47 = arith.constant 0 : index
    %c0_48 = arith.constant 0 : index
    %77 = vector.load %arg16[%c0_46, %c0_47, %c0_48] : memref<1x16x2xf32, #tpu.memory_space<vmem>>, vector<1x16x2xf32>
    %78 = vector.shape_cast %77 : vector<1x16x2xf32> to vector<16x2xf32>
    %79 = vector.shape_cast %76 : vector<16x2xf32> to vector<1x16x2xf32>
    tpu.vector_store %arg16[%c0_46, %c0_47, %c0_48], %79 {strides = array<i32>} : memref<1x16x2xf32, #tpu.memory_space<vmem>>, vector<1x16x2xf32>,
    return
  }
  func.func @transform_0(%arg0: i32, %arg1: i32) -> (i32, i32, i32) {
    %c0_i32 = arith.constant 0 : i32
    %c0_i32_0 = arith.constant 0 : i32
    return %arg0, %arg1, %c0_i32 : i32, i32, i32
  }
  func.func @transform_1(%arg0: i32, %arg1: i32) -> (i32, i32, i32) {
    %c0_i32 = arith.constant 0 : i32
    %c0_i32_0 = arith.constant 0 : i32
    %c0_i32_1 = arith.constant 0 : i32
    return %arg0, %c0_i32, %c0_i32_0 : i32, i32, i32
  }
  func.func @transform_2(%arg0: i32, %arg1: i32) -> (i32, i32, i32) {
    %c0_i32 = arith.constant 0 : i32
    %c0_i32_0 = arith.constant 0 : i32
    %c0_i32_1 = arith.constant 0 : i32
    return %arg0, %c0_i32, %c0_i32_0 : i32, i32, i32
  }
  func.func @transform_3(%arg0: i32, %arg1: i32) -> (i32, i32) {
    %c0_i32 = arith.constant 0 : i32
    %c0_i32_0 = arith.constant 0 : i32
    %c0_i32_1 = arith.constant 0 : i32
    return %c0_i32, %c0_i32_0 : i32, i32
  }
  func.func @transform_4(%arg0: i32, %arg1: i32) -> (i32, i32) {
    %c0_i32 = arith.constant 0 : i32
    %c0_i32_0 = arith.constant 0 : i32
    %c0_i32_1 = arith.constant 0 : i32
    return %c0_i32, %c0_i32_0 : i32, i32
  }
  func.func @transform_5(%arg0: i32, %arg1: i32) -> (i32, i32) {
    %c0_i32 = arith.constant 0 : i32
    %c0_i32_0 = arith.constant 0 : i32
    %c0_i32_1 = arith.constant 0 : i32
    return %c0_i32, %c0_i32_0 : i32, i32
  }
  func.func @transform_6(%arg0: i32, %arg1: i32) -> (i32, i32) {
    %c0_i32 = arith.constant 0 : i32
    %c0_i32_0 = arith.constant 0 : i32
    %c0_i32_1 = arith.constant 0 : i32
    return %c0_i32, %c0_i32_0 : i32, i32
  }
  func.func @transform_7(%arg0: i32, %arg1: i32) -> (i32, i32) {
    %c0_i32 = arith.constant 0 : i32
    %c0_i32_0 = arith.constant 0 : i32
    %c0_i32_1 = arith.constant 0 : i32
    return %c0_i32, %c0_i32_0 : i32, i32
  }
  func.func @transform_8(%arg0: i32, %arg1: i32) -> (i32, i32) {
    %c0_i32 = arith.constant 0 : i32
    %c0_i32_0 = arith.constant 0 : i32
    %c0_i32_1 = arith.constant 0 : i32
    return %c0_i32, %c0_i32_0 : i32, i32
  }
  func.func @transform_9(%arg0: i32, %arg1: i32) -> (i32, i32) {
    %c0_i32 = arith.constant 0 : i32
    %c0_i32_0 = arith.constant 0 : i32
    %c0_i32_1 = arith.constant 0 : i32
    return %c0_i32, %c0_i32_0 : i32, i32
  }
  func.func @transform_10(%arg0: i32, %arg1: i32) -> (i32, i32) {
    %c0_i32 = arith.constant 0 : i32
    %c0_i32_0 = arith.constant 0 : i32
    %c0_i32_1 = arith.constant 0 : i32
    return %c0_i32, %c0_i32_0 : i32, i32
  }
  func.func @transform_11(%arg0: i32, %arg1: i32) -> (i32, i32) {
    %c0_i32 = arith.constant 0 : i32
    %c0_i32_0 = arith.constant 0 : i32
    %c0_i32_1 = arith.constant 0 : i32
    return %c0_i32, %c0_i32_0 : i32, i32
  }
  func.func @transform_12(%arg0: i32, %arg1: i32) -> (i32, i32) {
    %c0_i32 = arith.constant 0 : i32
    %c0_i32_0 = arith.constant 0 : i32
    %c0_i32_1 = arith.constant 0 : i32
    return %c0_i32, %c0_i32_0 : i32, i32
  }
  func.func @transform_13(%arg0: i32, %arg1: i32) -> (i32, i32) {
    %c0_i32 = arith.constant 0 : i32
    %c0_i32_0 = arith.constant 0 : i32
    %c0_i32_1 = arith.constant 0 : i32
    return %c0_i32, %c0_i32_0 : i32, i32
  }
  func.func @transform_14(%arg0: i32, %arg1: i32) -> (i32, i32, i32) {
    %c0_i32 = arith.constant 0 : i32
    %c0_i32_0 = arith.constant 0 : i32
    return %arg0, %arg1, %c0_i32 : i32, i32, i32
  }
  func.func @transform_15(%arg0: i32, %arg1: i32) -> (i32, i32, i32) {
    %c0_i32 = arith.constant 0 : i32
    %c0_i32_0 = arith.constant 0 : i32
    return %arg0, %arg1, %c0_i32 : i32, i32, i32
  }
}

</mosaic_0001>

<llo_original>
// kernel: pointnet_dense_cls_forward.4
$region0: #{pointnet_dense_cls_forward.4}
  #allocation0 [shape = 'u32[]', space=smem, size = 0x4, offset = 0x4, fixed_abs, tag = 'smem constant byte address 0x4 - core index']
  #allocation1 [shape = 'u32[144,128]{1,0:T(1,128)}', space=vmem, size = 0x12000, scoped, tag = 'internal scratch']
  %s0 = inlined_call_operand.vmem [shape: f32[2,16,4], index: 0, kind: input, shape index: {}]
  %s1 = inlined_call_operand.vmem [shape: bf16[2,4,64], index: 1, kind: input, shape index: {}]
  %s2 = inlined_call_operand.vmem [shape: f32[1,64], index: 2, kind: input, shape index: {}]
  %s3 = inlined_call_operand.vmem [shape: bf16[64,128], index: 3, kind: input, shape index: {}]
  %s4 = inlined_call_operand.vmem [shape: f32[1,128], index: 4, kind: input, shape index: {}]
  %s5 = inlined_call_operand.vmem [shape: bf16[128,1024], index: 5, kind: input, shape index: {}]
  %s6 = inlined_call_operand.vmem [shape: f32[1,1024], index: 6, kind: input, shape index: {}]
  %s7 = inlined_call_operand.vmem [shape: f32[2,1,1024], index: 7, kind: output, shape index: {}]
  %s8 = sld [smem:[#allocation0]]
  $region69: #{pointnet_dense_cls_forward.4} parent=0
    _
  %s10 = ssub.s32 1, %s8
  %s11 = scalar_select 0, %s10, %s8
  loop: start=0, step=1, limit=4
  $region2: #{pointnet_dense_cls_forward.4} parent=0 // loop_pre_header
    _
  $region3: #{pointnet_dense_cls_forward.4} parent=0 // loop_header
    %s13 = sphi 0, %s17
    %p14 = scmp.ge.s32.totalorder %s13, 4
    %s20 = sphi 0, %s32
    %s21 = sphi 0, %s28
    %s22 = sphi 0, %s20
    %s23 = sphi 0, %s21
    %s24 = sphi 0, %s22
    %s25 = sphi 0, %s23
    %s37 = sphi 0, %s39
    %s40 = sphi 0, %s37
    %s41 = sphi 0, %s40
    %s57 = sphi 0, %s41
    %s63 = sphi 0, %s65
    %s66 = sphi 0, %s63
    %s67 = sphi 0, %s66
    %s83 = sphi 0, %s67
    %s87 = sphi 0, %s87
    %s89 = sphi 0, %s87
    %s90 = sphi 0, %s89
    %s104 = sphi 0, %s90
    %s108 = sphi 0, %s108
    %s110 = sphi 0, %s108
    %s111 = sphi 0, %s110
    %s125 = sphi 0, %s111
    %s129 = sphi 0, %s129
    %s131 = sphi 0, %s129
    %s132 = sphi 0, %s131
    %s146 = sphi 0, %s132
    %s150 = sphi 0, %s150
    %s152 = sphi 0, %s150
    %s153 = sphi 0, %s152
    %s167 = sphi 0, %s153
    %s171 = sphi 0, %s171
    %s173 = sphi 0, %s171
    %s174 = sphi 0, %s173
    %s188 = sphi 0, %s174
    %s194 = sphi 0, %s196
    %s197 = sphi 0, %s194
    %s198 = sphi 0, %s197
    %s214 = sphi 0, %s198
  $region4: #{pointnet_dense_cls_forward.4} parent=0 // loop_header_branch
    %16 = sbr.rel (%p14) target = $region8
  $region5: #{pointnet_dense_cls_forward.4} parent=0 // loop_body
    %s18 = ssub.s32 %s13, 1
    %s19 = ssub.s32 %s13, 2
    %s26 = sadd.s32 1, %s21
    %p27 = scmp.ge.s32.totalorder %s26, 1
    %s28 = scalar_select %p27, 0, %s26
    %s29 = sadd.s32 1, %s20
    %s30 = scalar_select %p27, %s29, %s20
    %p31 = scmp.ge.s32.totalorder %s30, 2
    %s32 = scalar_select %p31, 0, %s30
    %s33 = ssub.s32 %s20, %s32
    %s34 = ssub.s32 %s21, %s28
    %s35 = sor.u32 %s33, %s34
    %p36 = scmp.eq.s32.totalorder %s35, 0
    %s38 = sadd.s32 %s37, 1
    %s39 = scalar_select %p36, %s37, %s38
    %p42 = pneg %p36
    %p43 = scmp.eq.s32.totalorder %s13, 1
    %p44 = por %p42, %p43
    %p45 = scmp.ne.s32.totalorder %s37, %s40
    %p46 = scmp.eq.s32.totalorder %s13, 0
    %p47 = por %p45, %p46
    %p48 = scmp.ne.s32.totalorder %s37, %s40
    %p49 = scmp.eq.s32.totalorder %s18, 1
    %p50 = por %p48, %p49
    %p51 = scmp.ne.s32.totalorder %s40, %s41
    %p52 = scmp.eq.s32.totalorder %s18, 0
    %p53 = por %p51, %p52
    %p54 = scmp.ne.s32.totalorder %s40, %s41
    %p55 = scmp.eq.s32.totalorder %s19, 1
    %p56 = por %p54, %p55
    %p58 = scmp.ne.s32.totalorder %s41, %s57
    %p59 = scmp.eq.s32.totalorder %s19, 0
    %p60 = por %p58, %p59
    %s61 = ssub.s32 %s20, %s32
    %p62 = scmp.eq.s32.totalorder %s61, 0
    %s64 = sadd.s32 %s63, 1
    %s65 = scalar_select %p62, %s63, %s64
    %p68 = pneg %p62
    %p69 = scmp.eq.s32.totalorder %s13, 1
    %p70 = por %p68, %p69
    %p71 = scmp.ne.s32.totalorder %s63, %s66
    %p72 = scmp.eq.s32.totalorder %s13, 0
    %p73 = por %p71, %p72
    %p74 = scmp.ne.s32.totalorder %s63, %s66
    %p75 = scmp.eq.s32.totalorder %s18, 1
    %p76 = por %p74, %p75
    %p77 = scmp.ne.s32.totalorder %s66, %s67
    %p78 = scmp.eq.s32.totalorder %s18, 0
    %p79 = por %p77, %p78
    %p80 = scmp.ne.s32.totalorder %s66, %s67
    %p81 = scmp.eq.s32.totalorder %s19, 1
    %p82 = por %p80, %p81
    %p84 = scmp.ne.s32.totalorder %s67, %s83
    %p85 = scmp.eq.s32.totalorder %s19, 0
    %p86 = por %p84, %p85
    %s88 = sadd.s32 %s87, 1
    %p91 = scmp.eq.s32.totalorder %s13, 1
    %p92 = scmp.ne.s32.totalorder %s87, %s89
    %p93 = scmp.eq.s32.totalorder %s13, 0
    %p94 = por %p92, %p93
    %p95 = scmp.ne.s32.totalorder %s87, %s89
    %p96 = scmp.eq.s32.totalorder %s18, 1
    %p97 = por %p95, %p96
    %p98 = scmp.ne.s32.totalorder %s89, %s90
    %p99 = scmp.eq.s32.totalorder %s18, 0
    %p100 = por %p98, %p99
    %p101 = scmp.ne.s32.totalorder %s89, %s90
    %p102 = scmp.eq.s32.totalorder %s19, 1
    %p103 = por %p101, %p102
    %p105 = scmp.ne.s32.totalorder %s90, %s104
    %p106 = scmp.eq.s32.totalorder %s19, 0
    %p107 = por %p105, %p106
    %s109 = sadd.s32 %s108, 1
    %p112 = scmp.eq.s32.totalorder %s13, 1
    %p113 = scmp.ne.s32.totalorder %s108, %s110
    %p114 = scmp.eq.s32.totalorder %s13, 0
    %p115 = por %p113, %p114
    %p116 = scmp.ne.s32.totalorder %s108, %s110
    %p117 = scmp.eq.s32.totalorder %s18, 1
    %p118 = por %p116, %p117
    %p119 = scmp.ne.s32.totalorder %s110, %s111
    %p120 = scmp.eq.s32.totalorder %s18, 0
    %p121 = por %p119, %p120
    %p122 = scmp.ne.s32.totalorder %s110, %s111
    %p123 = scmp.eq.s32.totalorder %s19, 1
    %p124 = por %p122, %p123
    %p126 = scmp.ne.s32.totalorder %s111, %s125
    %p127 = scmp.eq.s32.totalorder %s19, 0
    %p128 = por %p126, %p127
    %s130 = sadd.s32 %s129, 1
    %p133 = scmp.eq.s32.totalorder %s13, 1
    %p134 = scmp.ne.s32.totalorder %s129, %s131
    %p135 = scmp.eq.s32.totalorder %s13, 0
    %p136 = por %p134, %p135
    %p137 = scmp.ne.s32.totalorder %s129, %s131
    %p138 = scmp.eq.s32.totalorder %s18, 1
    %p139 = por %p137, %p138
    %p140 = scmp.ne.s32.totalorder %s131, %s132
    %p141 = scmp.eq.s32.totalorder %s18, 0
    %p142 = por %p140, %p141
    %p143 = scmp.ne.s32.totalorder %s131, %s132
    %p144 = scmp.eq.s32.totalorder %s19, 1
    %p145 = por %p143, %p144
    %p147 = scmp.ne.s32.totalorder %s132, %s146
    %p148 = scmp.eq.s32.totalorder %s19, 0
    %p149 = por %p147, %p148
    %s151 = sadd.s32 %s150, 1
    %p154 = scmp.eq.s32.totalorder %s13, 1
    %p155 = scmp.ne.s32.totalorder %s150, %s152
    %p156 = scmp.eq.s32.totalorder %s13, 0
    %p157 = por %p155, %p156
    %p158 = scmp.ne.s32.totalorder %s150, %s152
    %p159 = scmp.eq.s32.totalorder %s18, 1
    %p160 = por %p158, %p159
    %p161 = scmp.ne.s32.totalorder %s152, %s153
    %p162 = scmp.eq.s32.totalorder %s18, 0
    %p163 = por %p161, %p162
    %p164 = scmp.ne.s32.totalorder %s152, %s153
    %p165 = scmp.eq.s32.totalorder %s19, 1
    %p166 = por %p164, %p165
    %p168 = scmp.ne.s32.totalorder %s153, %s167
    %p169 = scmp.eq.s32.totalorder %s19, 0
    %p170 = por %p168, %p169
    %s172 = sadd.s32 %s171, 1
    %p175 = scmp.eq.s32.totalorder %s13, 1
    %p176 = scmp.ne.s32.totalorder %s171, %s173
    %p177 = scmp.eq.s32.totalorder %s13, 0
    %p178 = por %p176, %p177
    %p179 = scmp.ne.s32.totalorder %s171, %s173
    %p180 = scmp.eq.s32.totalorder %s18, 1
    %p181 = por %p179, %p180
    %p182 = scmp.ne.s32.totalorder %s173, %s174
    %p183 = scmp.eq.s32.totalorder %s18, 0
    %p184 = por %p182, %p183
    %p185 = scmp.ne.s32.totalorder %s173, %s174
    %p186 = scmp.eq.s32.totalorder %s19, 1
    %p187 = por %p185, %p186
    %p189 = scmp.ne.s32.totalorder %s174, %s188
    %p190 = scmp.eq.s32.totalorder %s19, 0
    %p191 = por %p189, %p190
    %s192 = ssub.s32 %s20, %s32
    %p193 = scmp.eq.s32.totalorder %s192, 0
    %s195 = sadd.s32 %s194, 1
    %s196 = scalar_select %p193, %s194, %s195
    %p199 = pneg %p193
    %p200 = scmp.eq.s32.totalorder %s13, 1
    %p201 = por %p199, %p200
    %p202 = scmp.ne.s32.totalorder %s194, %s197
    %p203 = scmp.eq.s32.totalorder %s13, 0
    %p204 = por %p202, %p203
    %p205 = scmp.ne.s32.totalorder %s194, %s197
    %p206 = scmp.eq.s32.totalorder %s18, 1
    %p207 = por %p205, %p206
    %p208 = scmp.ne.s32.totalorder %s197, %s198
    %p209 = scmp.eq.s32.totalorder %s18, 0
    %p210 = por %p208, %p209
    %p211 = scmp.ne.s32.totalorder %s197, %s198
    %p212 = scmp.eq.s32.totalorder %s19, 1
    %p213 = por %p211, %p212
    %p215 = scmp.ne.s32.totalorder %s198, %s214
    %p216 = scmp.eq.s32.totalorder %s19, 0
    %p217 = por %p215, %p216
    %p218 = scmp.le.s32.totalorder 1, %s13
    %p219 = scmp.lt.s32.totalorder %s13, 3
    %p220 = pnand %p218, %p219
    %p221 = pneg %p220
    // Predicated region
    $region9: #{pointnet_dense_cls_forward.4} parent=5 // pred_check
      _
    $region10: #{pointnet_dense_cls_forward.4} parent=5 // pred_check_branch
      %223 = sbr.rel (%p220) target = $region12
    $region11: #{pointnet_dense_cls_forward.4} parent=5 // pred_region
      %s224 = ssub.s32 %s13, 1
      // Predicated region
      $region13: #{pointnet_dense_cls_forward.4} parent=11 // pred_check
        %p225 = pneg %p100
      $region14: #{pointnet_dense_cls_forward.4} parent=11 // pred_check_branch
        %227 = sbr.rel (%p225) target = $region16
      $region15: #{pointnet_dense_cls_forward.4} parent=11 // pred_region
        _
      $region16: #{pointnet_dense_cls_forward.4} parent=11 // pred_fallthru
        _
      // Predicated region
      $region17: #{pointnet_dense_cls_forward.4} parent=11 // pred_check
        %p228 = pneg %p121
      $region18: #{pointnet_dense_cls_forward.4} parent=11 // pred_check_branch
        %230 = sbr.rel (%p228) target = $region20
      $region19: #{pointnet_dense_cls_forward.4} parent=11 // pred_region
        _
      $region20: #{pointnet_dense_cls_forward.4} parent=11 // pred_fallthru
        _
      // Predicated region
      $region21: #{pointnet_dense_cls_forward.4} parent=11 // pred_check
        %p231 = pneg %p142
      $region22: #{pointnet_dense_cls_forward.4} parent=11 // pred_check_branch
        %233 = sbr.rel (%p231) target = $region24
      $region23: #{pointnet_dense_cls_forward.4} parent=11 // pred_region
        _
      $region24: #{pointnet_dense_cls_forward.4} parent=11 // pred_fallthru
        _
      // Predicated region
      $region25: #{pointnet_dense_cls_forward.4} parent=11 // pred_check
        %p234 = pneg %p163
      $region26: #{pointnet_dense_cls_forward.4} parent=11 // pred_check_branch
        %236 = sbr.rel (%p234) target = $region28
      $region27: #{pointnet_dense_cls_forward.4} parent=11 // pred_region
        _
      $region28: #{pointnet_dense_cls_forward.4} parent=11 // pred_fallthru
        _
      // Predicated region
      $region29: #{pointnet_dense_cls_forward.4} parent=11 // pred_check
        %p237 = pneg %p184
      $region30: #{pointnet_dense_cls_forward.4} parent=11 // pred_check_branch
        %239 = sbr.rel (%p237) target = $region32
      $region31: #{pointnet_dense_cls_forward.4} parent=11 // pred_region
        _
      $region32: #{pointnet_dense_cls_forward.4} parent=11 // pred_fallthru
        _
    $region12: #{pointnet_dense_cls_forward.4} parent=5 // pred_fallthru
      _
    %p240 = scmp.lt.s32.totalorder %s13, 2
    // Predicated region
    $region33: #{pointnet_dense_cls_forward.4} parent=5 // pred_check
      %p241 = pneg %p240
    $region34: #{pointnet_dense_cls_forward.4} parent=5 // pred_check_branch
      %243 = sbr.rel (%p241) target = $region36
    $region35: #{pointnet_dense_cls_forward.4} parent=5 // pred_region
      // Predicated region
      $region37: #{pointnet_dense_cls_forward.4} parent=35 // pred_check
        %p244 = pneg %p47
      $region38: #{pointnet_dense_cls_forward.4} parent=35 // pred_check_branch
        %246 = sbr.rel (%p244) target = $region40
      $region39: #{pointnet_dense_cls_forward.4} parent=35 // pred_region
        %s247 = smul.u32 2, %s21
        %p248 = scmp.lt.s32.totalorder %s20, 1
        %s249 = scalar_select %p248, %s20, 1
        %p250 = scmp.lt.s32.totalorder %s247, 1
        %s251 = scalar_select %p250, %s247, 1
        %s252 = smul.addr %s249, 2
        %s253 = sadd.s32 %s251, %s252
        %s254 = smul.addr %s253, 8
        %s255 = scalar_lea.vmem %s0, %s254
        %s256 = smul.u32 2, %s21
      $region40: #{pointnet_dense_cls_forward.4} parent=35 // pred_fallthru
        _
      // Predicated region
      $region41: #{pointnet_dense_cls_forward.4} parent=35 // pred_check
        %p257 = pneg %p73
      $region42: #{pointnet_dense_cls_forward.4} parent=35 // pred_check_branch
        %259 = sbr.rel (%p257) target = $region44
      $region43: #{pointnet_dense_cls_forward.4} parent=35 // pred_region
        %p260 = scmp.lt.s32.totalorder %s20, 1
        %s261 = scalar_select %p260, %s20, 1
        %s262 = smul.addr %s261, 2
        %s263 = scalar_lea.vmem %s1, %s262
      $region44: #{pointnet_dense_cls_forward.4} parent=35 // pred_fallthru
        _
    $region36: #{pointnet_dense_cls_forward.4} parent=5 // pred_fallthru
      _
    %p264 = scmp.le.s32.totalorder 1, %s13
    %p265 = scmp.lt.s32.totalorder %s13, 3
    %p266 = pnand %p264, %p265
    %p267 = pneg %p266
    // Predicated region
    $region45: #{pointnet_dense_cls_forward.4} parent=5 // pred_check
      _
    $region46: #{pointnet_dense_cls_forward.4} parent=5 // pred_check_branch
      %269 = sbr.rel (%p266) target = $region48
    $region47: #{pointnet_dense_cls_forward.4} parent=5 // pred_region
      %s270 = ssub.s32 %s13, 1
      %s271 = smul.u32 2, %s23
      %p272 = scmp.lt.s32.totalorder %s22, 1
      %s273 = scalar_select %p272, %s22, 1
      %p274 = scmp.lt.s32.totalorder %s271, 1
      %s275 = scalar_select %p274, %s271, 1
      %s276 = smul.addr %s273, 2
      %s277 = sadd.s32 %s275, %s276
      %s278 = smul.addr %s277, 8
      %s279 = scalar_lea.vmem %s0, %s278
      %p280 = pneg %p53
      %p281 = pneg %p50
      %p282 = scmp.lt.s32.totalorder %s22, 1
      %s283 = scalar_select %p282, %s22, 1
      %s284 = smul.addr %s283, 2
      %s285 = scalar_lea.vmem %s1, %s284
      %p286 = pneg %p79
      %p287 = pneg %p76
      %p288 = pneg %p100
      %p289 = pneg %p97
      %p290 = pneg %p121
      %p291 = pneg %p118
      %p292 = pneg %p142
      %p293 = pneg %p139
      %p294 = pneg %p163
      %p295 = pneg %p160
      %p296 = pneg %p184
      %p297 = pneg %p181
      %p298 = pneg %p210
      %p299 = pneg %p207
      %p300 = scmp.lt.s32.totalorder %s22, 1
      %s301 = scalar_select %p300, %s22, 1
      %s302 = smul.addr %s301, 8
      %s303 = scalar_lea.vmem %s7, %s302
      %s304 = smul.u32 2, %s23
      %p305 = scmp.lt.s32.totalorder %s22, 1
      %s306 = scalar_select %p305, %s22, 1
      %p307 = scmp.lt.s32.totalorder %s304, 1
      %s308 = scalar_select %p307, %s304, 1
      %s309 = smul.addr %s306, 2
      %s310 = sadd.s32 %s308, %s309
      %s311 = smul.addr %s310, 8
      %s312 = scalar_lea.vmem %s0, %s311
      %s313 = smul.u32 2, %s23
      %p314 = scmp.lt.s32.totalorder %s22, 1
      %s315 = scalar_select %p314, %s22, 1
      %s316 = smul.addr %s315, 2
      %s317 = scalar_lea.vmem %s1, %s316
      %p318 = scmp.lt.s32.totalorder %s22, 1
      %s319 = scalar_select %p318, %s22, 1
      %s320 = smul.addr %s319, 8
      %s321 = scalar_lea.vmem %s7, %s320
      %v323 = vld [vmem:[%s312] sm:$0xff]
      %v324 = vld [vmem:[%s312 + $0x8] sm:$0xff]
      %v325 = vpack.c.bf16 %v324, %v323
      %v326 = vld [vmem:[%s317] sm:$0x3]
      %v327 = vld [vmem:[%s2] sm:$0x1]
      %v329 = vlaneseq
      %v330 = vshrl.u32 %v329, 7
      %v331 = vsub.s32 0, %v330
      %v332 = vrot.slane %v327, %v331
      %vm334 = vcmask 31744
      %v336 = vsel %vm334, %v325, 0
      %vm338 = vcmask 1041408
      %v340 = vsel %vm338, %v326, 0
      %342 = vmatprep.subr.bf16.mxu0 0
      %343 = vmatpush1.bf16.msra.mxu0 %v340
      %344 = vmatprep.subr.bf16.mxu0 0
      %345 = vmatpush1.bf16.msra.mxu0 0
      %346 = vmatprep.subr.bf16.mxu0 0
      %347 = vmatpush1.bf16.msra.mxu0 0
      %348 = vmatprep.subr.bf16.mxu0 0
      %349 = vmatpush1.bf16.msra.mxu0 0
      %350 = vmatprep.subr.bf16.mxu0 0
      %351 = vmatpush1.bf16.msra.mxu0 0
      %352 = vmatprep.subr.bf16.mxu0 0
      %353 = vmatpush1.bf16.msra.mxu0 0
      %354 = vmatprep.subr.bf16.mxu0 0
      %355 = vmatpush1.bf16.msra.mxu0 0
      %356 = vmatprep.subr.bf16.mxu0 0
      %357 = vmatpush1.bf16.msra.mxu0 0
      %358 = vmatprep.subr.bf16.mxu0 0
      %359 = vmatpush1.bf16.msra.mxu0 0
      %360 = vmatprep.subr.bf16.mxu0 0
      %361 = vmatpush1.bf16.msra.mxu0 0
      %362 = vmatprep.subr.bf16.mxu0 0
      %363 = vmatpush1.bf16.msra.mxu0 0
      %364 = vmatprep.subr.bf16.mxu0 0
      %365 = vmatpush1.bf16.msra.mxu0 0
      %366 = vmatprep.subr.bf16.mxu0 0
      %367 = vmatpush1.bf16.msra.mxu0 0
      %368 = vmatprep.subr.bf16.mxu0 0
      %369 = vmatpush1.bf16.msra.mxu0 0
      %370 = vmatprep.subr.bf16.mxu0 0
      %371 = vmatpush1.bf16.msra.mxu0 0
      %372 = vmatprep.subr.bf16.mxu0 0
      %373 = vmatpush1.bf16.msra.mxu0 0
      %374 = vmatprep.mubr.bf16.mxu0 0
      %375 = vmatmul.mubr.bf16.gmra.mrb[0].mxu0 %v336
      %v376 = vpop.f32.mrb[0].mxu0
      %v377 = vadd.f32 %v332, %v376
      %v378 = vpop.f32.mrb[0].mxu0
      %v379 = vpop.f32.mrb[0].mxu0
      %v380 = vadd.f32 %v332, %v379
      %v381 = vpop.f32.mrb[0].mxu0
      %382 = vdwg.mxu0
      %v383 = vmax.f32 %v377, 0.0
      %v384 = vmax.f32 %v380, 0.0
      %v385 = vpack.c.bf16 %v384, %v383
      %v386 = vld [vmem:[%s3] sm:$0xf]
      %v387 = vld [vmem:[%s3 + $0x4] sm:$0xf]
      %v388 = vld [vmem:[%s3 + $0x8] sm:$0xf]
      %v389 = vld [vmem:[%s3 + $0xc] sm:$0xf]
      %v390 = vld [vmem:[%s3 + $0x10] sm:$0xf]
      %v391 = vld [vmem:[%s3 + $0x14] sm:$0xf]
      %v392 = vld [vmem:[%s3 + $0x18] sm:$0xf]
      %v393 = vld [vmem:[%s3 + $0x1c] sm:$0xf]
      %v394 = vld [vmem:[%s4] sm:$0x1]
      %v396 = vlaneseq
      %v397 = vshrl.u32 %v396, 7
      %v398 = vsub.s32 0, %v397
      %v399 = vrot.slane %v394, %v398
      %v409 = vunpack.c.l.b16 %v386
      %v410 = vunpack.c.l.b16 %v387
      %v411 = vunpack.c.l.b16 %v388
      %v412 = vunpack.c.l.b16 %v389
      %v413 = vunpack.c.l.b16 %v390
      %v414 = vunpack.c.l.b16 %v391
      %v415 = vunpack.c.l.b16 %v392
      %v416 = vunpack.c.l.b16 %v393
      %v417 = vpack.c.b16 %v410, %v409
      %v418 = vpack.c.b16 %v412, %v411
      %v419 = vpack.c.b16 %v414, %v413
      %v420 = vpack.c.b16 %v416, %v415
      %vm425 = vcmask 523264
      %v427 = vsel %vm425, %v385, 0
      %429 = vmatprep.subr.bf16.mxu0 0
      %430 = vmatpush1.bf16.msra.mxu0 %v417
      %431 = vmatprep.subr.bf16.mxu0 0
      %432 = vmatpush1.bf16.msra.mxu0 %v418
      %433 = vmatprep.subr.bf16.mxu0 0
      %434 = vmatpush1.bf16.msra.mxu0 %v419
      %435 = vmatprep.subr.bf16.mxu0 0
      %436 = vmatpush1.bf16.msra.mxu0 %v420
      %437 = vmatprep.subr.bf16.mxu0 0
      %438 = vmatpush1.bf16.msra.mxu0 0
      %439 = vmatprep.subr.bf16.mxu0 0
      %440 = vmatpush1.bf16.msra.mxu0 0
      %441 = vmatprep.subr.bf16.mxu0 0
      %442 = vmatpush1.bf16.msra.mxu0 0
      %443 = vmatprep.subr.bf16.mxu0 0
      %444 = vmatpush1.bf16.msra.mxu0 0
      %445 = vmatprep.subr.bf16.mxu0 0
      %446 = vmatpush1.bf16.msra.mxu0 0
      %447 = vmatprep.subr.bf16.mxu0 0
      %448 = vmatpush1.bf16.msra.mxu0 0
      %449 = vmatprep.subr.bf16.mxu0 0
      %450 = vmatpush1.bf16.msra.mxu0 0
      %451 = vmatprep.subr.bf16.mxu0 0
      %452 = vmatpush1.bf16.msra.mxu0 0
      %453 = vmatprep.subr.bf16.mxu0 0
      %454 = vmatpush1.bf16.msra.mxu0 0
      %455 = vmatprep.subr.bf16.mxu0 0
      %456 = vmatpush1.bf16.msra.mxu0 0
      %457 = vmatprep.subr.bf16.mxu0 0
      %458 = vmatpush1.bf16.msra.mxu0 0
      %459 = vmatprep.subr.bf16.mxu0 0
      %460 = vmatpush1.bf16.msra.mxu0 0
      %461 = vmatprep.mubr.bf16.mxu0 0
      %462 = vmatmul.mubr.bf16.gmra.mrb[0].mxu0 %v427
      %v463 = vpop.f32.mrb[0].mxu0
      %v464 = vadd.f32 %v399, %v463
      %v465 = vpop.f32.mrb[0].mxu0
      %v466 = vpop.f32.mrb[0].mxu0
      %v467 = vadd.f32 %v399, %v466
      %v468 = vpop.f32.mrb[0].mxu0
      %469 = vdwg.mxu0
      %v470 = vmax.f32 %v464, 0.0
      %v471 = vmax.f32 %v467, 0.0
      %v472 = vpack.c.bf16 %v471, %v470
      %v473 = vld [vmem:[%s5] sm:$0xff]
      %v474 = vld [vmem:[%s5 + $0x8] sm:$0xff]
      %v475 = vld [vmem:[%s5 + $0x10] sm:$0xff]
      %v476 = vld [vmem:[%s5 + $0x18] sm:$0xff]
      %v477 = vld [vmem:[%s5 + $0x20] sm:$0xff]
      %v478 = vld [vmem:[%s5 + $0x28] sm:$0xff]
      %v479 = vld [vmem:[%s5 + $0x30] sm:$0xff]
      %v480 = vld [vmem:[%s5 + $0x38] sm:$0xff]
      %v481 = vld [vmem:[%s5 + $0x40] sm:$0xff]
      %v482 = vld [vmem:[%s5 + $0x48] sm:$0xff]
      %v483 = vld [vmem:[%s5 + $0x50] sm:$0xff]
      %v484 = vld [vmem:[%s5 + $0x58] sm:$0xff]
      %v485 = vld [vmem:[%s5 + $0x60] sm:$0xff]
      %v486 = vld [vmem:[%s5 + $0x68] sm:$0xff]
      %v487 = vld [vmem:[%s5 + $0x70] sm:$0xff]
      %v488 = vld [vmem:[%s5 + $0x78] sm:$0xff]
      %v489 = vld [vmem:[%s5 + $0x80] sm:$0xff]
      %v490 = vld [vmem:[%s5 + $0x88] sm:$0xff]
      %v491 = vld [vmem:[%s5 + $0x90] sm:$0xff]
      %v492 = vld [vmem:[%s5 + $0x98] sm:$0xff]
      %v493 = vld [vmem:[%s5 + $0xa0] sm:$0xff]
      %v494 = vld [vmem:[%s5 + $0xa8] sm:$0xff]
      %v495 = vld [vmem:[%s5 + $0xb0] sm:$0xff]
      %v496 = vld [vmem:[%s5 + $0xb8] sm:$0xff]
      %v497 = vld [vmem:[%s5 + $0xc0] sm:$0xff]
      %v498 = vld [vmem:[%s5 + $0xc8] sm:$0xff]
      %v499 = vld [vmem:[%s5 + $0xd0] sm:$0xff]
      %v500 = vld [vmem:[%s5 + $0xd8] sm:$0xff]
      %v501 = vld [vmem:[%s5 + $0xe0] sm:$0xff]
      %v502 = vld [vmem:[%s5 + $0xe8] sm:$0xff]
      %v503 = vld [vmem:[%s5 + $0xf0] sm:$0xff]
      %v504 = vld [vmem:[%s5 + $0xf8] sm:$0xff]
      %v505 = vld [vmem:[%s5 + $0x100] sm:$0xff]
      %v506 = vld [vmem:[%s5 + $0x108] sm:$0xff]
      %v507 = vld [vmem:[%s5 + $0x110] sm:$0xff]
      %v508 = vld [vmem:[%s5 + $0x118] sm:$0xff]
      %v509 = vld [vmem:[%s5 + $0x120] sm:$0xff]
      %v510 = vld [vmem:[%s5 + $0x128] sm:$0xff]
      %v511 = vld [vmem:[%s5 + $0x130] sm:$0xff]
      %v512 = vld [vmem:[%s5 + $0x138] sm:$0xff]
      %v513 = vld [vmem:[%s5 + $0x140] sm:$0xff]
      %v514 = vld [vmem:[%s5 + $0x148] sm:$0xff]
      %v515 = vld [vmem:[%s5 + $0x150] sm:$0xff]
      %v516 = vld [vmem:[%s5 + $0x158] sm:$0xff]
      %v517 = vld [vmem:[%s5 + $0x160] sm:$0xff]
      %v518 = vld [vmem:[%s5 + $0x168] sm:$0xff]
      %v519 = vld [vmem:[%s5 + $0x170] sm:$0xff]
      %v520 = vld [vmem:[%s5 + $0x178] sm:$0xff]
      %v521 = vld [vmem:[%s5 + $0x180] sm:$0xff]
      %v522 = vld [vmem:[%s5 + $0x188] sm:$0xff]
      %v523 = vld [vmem:[%s5 + $0x190] sm:$0xff]
      %v524 = vld [vmem:[%s5 + $0x198] sm:$0xff]
      %v525 = vld [vmem:[%s5 + $0x1a0] sm:$0xff]
      %v526 = vld [vmem:[%s5 + $0x1a8] sm:$0xff]
      %v527 = vld [vmem:[%s5 + $0x1b0] sm:$0xff]
      %v528 = vld [vmem:[%s5 + $0x1b8] sm:$0xff]
      %v529 = vld [vmem:[%s5 + $0x1c0] sm:$0xff]
      %v530 = vld [vmem:[%s5 + $0x1c8] sm:$0xff]
      %v531 = vld [vmem:[%s5 + $0x1d0] sm:$0xff]
      %v532 = vld [vmem:[%s5 + $0x1d8] sm:$0xff]
      %v533 = vld [vmem:[%s5 + $0x1e0] sm:$0xff]
      %v534 = vld [vmem:[%s5 + $0x1e8] sm:$0xff]
      %v535 = vld [vmem:[%s5 + $0x1f0] sm:$0xff]
      %v536 = vld [vmem:[%s5 + $0x1f8] sm:$0xff]
      %v537 = vld [vmem:[%s6] sm:$0xff]
      %v539 = vlaneseq
      %v540 = vshrl.u32 %v539, 7
      %v541 = vsub.s32 0, %v540
      %v542 = vrot.slane %v537, %v541
      %v543 = vlaneseq
      %v544 = vshrl.u32 %v543, 7
      %v545 = vsub.s32 1, %v544
      %v546 = vrot.slane %v537, %v545
      %v547 = vlaneseq
      %v548 = vshrl.u32 %v547, 7
      %v549 = vsub.s32 2, %v548
      %v550 = vrot.slane %v537, %v549
      %v551 = vlaneseq
      %v552 = vshrl.u32 %v551, 7
      %v553 = vsub.s32 3, %v552
      %v554 = vrot.slane %v537, %v553
      %v555 = vlaneseq
      %v556 = vshrl.u32 %v555, 7
      %v557 = vsub.s32 4, %v556
      %v558 = vrot.slane %v537, %v557
      %v559 = vlaneseq
      %v560 = vshrl.u32 %v559, 7
      %v561 = vsub.s32 5, %v560
      %v562 = vrot.slane %v537, %v561
      %v563 = vlaneseq
      %v564 = vshrl.u32 %v563, 7
      %v565 = vsub.s32 6, %v564
      %v566 = vrot.slane %v537, %v565
      %v567 = vlaneseq
      %v568 = vshrl.u32 %v567, 7
      %v569 = vsub.s32 7, %v568
      %v570 = vrot.slane %v537, %v569
      %v643 = vunpack.c.l.b16 %v473
      %v644 = vunpack.c.h.b16 %v473
      %v645 = vunpack.c.l.b16 %v474
      %v646 = vunpack.c.h.b16 %v474
      %v647 = vunpack.c.l.b16 %v475
      %v648 = vunpack.c.h.b16 %v475
      %v649 = vunpack.c.l.b16 %v476
      %v650 = vunpack.c.h.b16 %v476
      %v651 = vunpack.c.l.b16 %v477
      %v652 = vunpack.c.h.b16 %v477
      %v653 = vunpack.c.l.b16 %v478
      %v654 = vunpack.c.h.b16 %v478
      %v655 = vunpack.c.l.b16 %v479
      %v656 = vunpack.c.h.b16 %v479
      %v657 = vunpack.c.l.b16 %v480
      %v658 = vunpack.c.h.b16 %v480
      %v659 = vunpack.c.l.b16 %v481
      %v660 = vunpack.c.h.b16 %v481
      %v661 = vunpack.c.l.b16 %v482
      %v662 = vunpack.c.h.b16 %v482
      %v663 = vunpack.c.l.b16 %v483
      %v664 = vunpack.c.h.b16 %v483
      %v665 = vunpack.c.l.b16 %v484
      %v666 = vunpack.c.h.b16 %v484
      %v667 = vunpack.c.l.b16 %v485
      %v668 = vunpack.c.h.b16 %v485
      %v669 = vunpack.c.l.b16 %v486
      %v670 = vunpack.c.h.b16 %v486
      %v671 = vunpack.c.l.b16 %v487
      %v672 = vunpack.c.h.b16 %v487
      %v673 = vunpack.c.l.b16 %v488
      %v674 = vunpack.c.h.b16 %v488
      %v675 = vunpack.c.l.b16 %v489
      %v676 = vunpack.c.h.b16 %v489
      %v677 = vunpack.c.l.b16 %v490
      %v678 = vunpack.c.h.b16 %v490
      %v679 = vunpack.c.l.b16 %v491
      %v680 = vunpack.c.h.b16 %v491
      %v681 = vunpack.c.l.b16 %v492
      %v682 = vunpack.c.h.b16 %v492
      %v683 = vunpack.c.l.b16 %v493
      %v684 = vunpack.c.h.b16 %v493
      %v685 = vunpack.c.l.b16 %v494
      %v686 = vunpack.c.h.b16 %v494
      %v687 = vunpack.c.l.b16 %v495
      %v688 = vunpack.c.h.b16 %v495
      %v689 = vunpack.c.l.b16 %v496
      %v690 = vunpack.c.h.b16 %v496
      %v691 = vunpack.c.l.b16 %v497
      %v692 = vunpack.c.h.b16 %v497
      %v693 = vunpack.c.l.b16 %v498
      %v694 = vunpack.c.h.b16 %v498
      %v695 = vunpack.c.l.b16 %v499
      %v696 = vunpack.c.h.b16 %v499
      %v697 = vunpack.c.l.b16 %v500
      %v698 = vunpack.c.h.b16 %v500
      %v699 = vunpack.c.l.b16 %v501
      %v700 = vunpack.c.h.b16 %v501
      %v701 = vunpack.c.l.b16 %v502
      %v702 = vunpack.c.h.b16 %v502
      %v703 = vunpack.c.l.b16 %v503
      %v704 = vunpack.c.h.b16 %v503
      %v705 = vunpack.c.l.b16 %v504
      %v706 = vunpack.c.h.b16 %v504
      %v707 = vunpack.c.l.b16 %v505
      %v708 = vunpack.c.h.b16 %v505
      %v709 = vunpack.c.l.b16 %v506
      %v710 = vunpack.c.h.b16 %v506
      %v711 = vunpack.c.l.b16 %v507
      %v712 = vunpack.c.h.b16 %v507
      %v713 = vunpack.c.l.b16 %v508
      %v714 = vunpack.c.h.b16 %v508
      %v715 = vunpack.c.l.b16 %v509
      %v716 = vunpack.c.h.b16 %v509
      %v717 = vunpack.c.l.b16 %v510
      %v718 = vunpack.c.h.b16 %v510
      %v719 = vunpack.c.l.b16 %v511
      %v720 = vunpack.c.h.b16 %v511
      %v721 = vunpack.c.l.b16 %v512
      %v722 = vunpack.c.h.b16 %v512
      %v723 = vunpack.c.l.b16 %v513
      %v724 = vunpack.c.h.b16 %v513
      %v725 = vunpack.c.l.b16 %v514
      %v726 = vunpack.c.h.b16 %v514
      %v727 = vunpack.c.l.b16 %v515
      %v728 = vunpack.c.h.b16 %v515
      %v729 = vunpack.c.l.b16 %v516
      %v730 = vunpack.c.h.b16 %v516
      %v731 = vunpack.c.l.b16 %v517
      %v732 = vunpack.c.h.b16 %v517
      %v733 = vunpack.c.l.b16 %v518
      %v734 = vunpack.c.h.b16 %v518
      %v735 = vunpack.c.l.b16 %v519
      %v736 = vunpack.c.h.b16 %v519
      %v737 = vunpack.c.l.b16 %v520
      %v738 = vunpack.c.h.b16 %v520
      %v739 = vunpack.c.l.b16 %v521
      %v740 = vunpack.c.h.b16 %v521
      %v741 = vunpack.c.l.b16 %v522
      %v742 = vunpack.c.h.b16 %v522
      %v743 = vunpack.c.l.b16 %v523
      %v744 = vunpack.c.h.b16 %v523
      %v745 = vunpack.c.l.b16 %v524
      %v746 = vunpack.c.h.b16 %v524
      %v747 = vunpack.c.l.b16 %v525
      %v748 = vunpack.c.h.b16 %v525
      %v749 = vunpack.c.l.b16 %v526
      %v750 = vunpack.c.h.b16 %v526
      %v751 = vunpack.c.l.b16 %v527
      %v752 = vunpack.c.h.b16 %v527
      %v753 = vunpack.c.l.b16 %v528
      %v754 = vunpack.c.h.b16 %v528
      %v755 = vunpack.c.l.b16 %v529
      %v756 = vunpack.c.h.b16 %v529
      %v757 = vunpack.c.l.b16 %v530
      %v758 = vunpack.c.h.b16 %v530
      %v759 = vunpack.c.l.b16 %v531
      %v760 = vunpack.c.h.b16 %v531
      %v761 = vunpack.c.l.b16 %v532
      %v762 = vunpack.c.h.b16 %v532
      %v763 = vunpack.c.l.b16 %v533
      %v764 = vunpack.c.h.b16 %v533
      %v765 = vunpack.c.l.b16 %v534
      %v766 = vunpack.c.h.b16 %v534
      %v767 = vunpack.c.l.b16 %v535
      %v768 = vunpack.c.h.b16 %v535
      %v769 = vunpack.c.l.b16 %v536
      %v770 = vunpack.c.h.b16 %v536
      %v771 = vpack.c.b16 %v651, %v643
      %v772 = vpack.c.b16 %v652, %v644
      %v773 = vpack.c.b16 %v653, %v645
      %v774 = vpack.c.b16 %v654, %v646
      %v775 = vpack.c.b16 %v655, %v647
      %v776 = vpack.c.b16 %v656, %v648
      %v777 = vpack.c.b16 %v657, %v649
      %v778 = vpack.c.b16 %v658, %v650
      %v779 = vpack.c.b16 %v667, %v659
      %v780 = vpack.c.b16 %v668, %v660
      %v781 = vpack.c.b16 %v669, %v661
      %v782 = vpack.c.b16 %v670, %v662
      %v783 = vpack.c.b16 %v671, %v663
      %v784 = vpack.c.b16 %v672, %v664
      %v785 = vpack.c.b16 %v673, %v665
      %v786 = vpack.c.b16 %v674, %v666
      %v787 = vpack.c.b16 %v683, %v675
      %v788 = vpack.c.b16 %v684, %v676
      %v789 = vpack.c.b16 %v685, %v677
      %v790 = vpack.c.b16 %v686, %v678
      %v791 = vpack.c.b16 %v687, %v679
      %v792 = vpack.c.b16 %v688, %v680
      %v793 = vpack.c.b16 %v689, %v681
      %v794 = vpack.c.b16 %v690, %v682
      %v795 = vpack.c.b16 %v699, %v691
      %v796 = vpack.c.b16 %v700, %v692
      %v797 = vpack.c.b16 %v701, %v693
      %v798 = vpack.c.b16 %v702, %v694
      %v799 = vpack.c.b16 %v703, %v695
      %v800 = vpack.c.b16 %v704, %v696
      %v801 = vpack.c.b16 %v705, %v697
      %v802 = vpack.c.b16 %v706, %v698
      %v803 = vpack.c.b16 %v715, %v707
      %v804 = vpack.c.b16 %v716, %v708
      %v805 = vpack.c.b16 %v717, %v709
      %v806 = vpack.c.b16 %v718, %v710
      %v807 = vpack.c.b16 %v719, %v711
      %v808 = vpack.c.b16 %v720, %v712
      %v809 = vpack.c.b16 %v721, %v713
      %v810 = vpack.c.b16 %v722, %v714
      %v811 = vpack.c.b16 %v731, %v723
      %v812 = vpack.c.b16 %v732, %v724
      %v813 = vpack.c.b16 %v733, %v725
      %v814 = vpack.c.b16 %v734, %v726
      %v815 = vpack.c.b16 %v735, %v727
      %v816 = vpack.c.b16 %v736, %v728
      %v817 = vpack.c.b16 %v737, %v729
      %v818 = vpack.c.b16 %v738, %v730
      %v819 = vpack.c.b16 %v747, %v739
      %v820 = vpack.c.b16 %v748, %v740
      %v821 = vpack.c.b16 %v749, %v741
      %v822 = vpack.c.b16 %v750, %v742
      %v823 = vpack.c.b16 %v751, %v743
      %v824 = vpack.c.b16 %v752, %v744
      %v825 = vpack.c.b16 %v753, %v745
      %v826 = vpack.c.b16 %v754, %v746
      %v827 = vpack.c.b16 %v763, %v755
      %v828 = vpack.c.b16 %v764, %v756
      %v829 = vpack.c.b16 %v765, %v757
      %v830 = vpack.c.b16 %v766, %v758
      %v831 = vpack.c.b16 %v767, %v759
      %v832 = vpack.c.b16 %v768, %v760
      %v833 = vpack.c.b16 %v769, %v761
      %v834 = vpack.c.b16 %v770, %v762
      %899 = vmatprep.subr.bf16.mxu0 %v772
      %900 = vmatpush1.bf16.msra.mxu0 %v771
      %901 = vmatprep.subr.bf16.mxu0 %v780
      %902 = vmatpush1.bf16.msra.mxu0 %v779
      %903 = vmatprep.subr.bf16.mxu0 %v788
      %904 = vmatpush1.bf16.msra.mxu0 %v787
      %905 = vmatprep.subr.bf16.mxu0 %v796
      %906 = vmatpush1.bf16.msra.mxu0 %v795
      %907 = vmatprep.subr.bf16.mxu0 %v804
      %908 = vmatpush1.bf16.msra.mxu0 %v803
      %909 = vmatprep.subr.bf16.mxu0 %v812
      %910 = vmatpush1.bf16.msra.mxu0 %v811
      %911 = vmatprep.subr.bf16.mxu0 %v820
      %912 = vmatpush1.bf16.msra.mxu0 %v819
      %913 = vmatprep.subr.bf16.mxu0 %v828
      %914 = vmatpush1.bf16.msra.mxu0 %v827
      %915 = vmatprep.subr.bf16.mxu0 0
      %916 = vmatpush1.bf16.msra.mxu0 0
      %917 = vmatprep.subr.bf16.mxu0 0
      %918 = vmatpush1.bf16.msra.mxu0 0
      %919 = vmatprep.subr.bf16.mxu0 0
      %920 = vmatpush1.bf16.msra.mxu0 0
      %921 = vmatprep.subr.bf16.mxu0 0
      %922 = vmatpush1.bf16.msra.mxu0 0
      %923 = vmatprep.subr.bf16.mxu0 0
      %924 = vmatpush1.bf16.msra.mxu0 0
      %925 = vmatprep.subr.bf16.mxu0 0
      %926 = vmatpush1.bf16.msra.mxu0 0
      %927 = vmatprep.subr.bf16.mxu0 0
      %928 = vmatpush1.bf16.msra.mxu0 0
      %929 = vmatprep.subr.bf16.mxu0 0
      %930 = vmatpush1.bf16.msra.mxu0 0
      %931 = vmatprep.mubr.bf16.mxu0 0
      %932 = vmatmul.mubr.bf16.gmra.mrb[0].mxu0 %v472
      %v933 = vpop.f32.mrb[0].mxu0
      %v934 = vadd.f32 %v542, %v933
      %v935 = vpop.f32.mrb[0].mxu0
      %v936 = vadd.f32 %v546, %v935
      %v937 = vpop.f32.mrb[0].mxu0
      %v938 = vadd.f32 %v542, %v937
      %v939 = vpop.f32.mrb[0].mxu0
      %v940 = vadd.f32 %v546, %v939
      %941 = vdwg.mxu0
      %942 = vmatprep.subr.bf16.mxu0 %v774
      %943 = vmatpush1.bf16.msra.mxu0 %v773
      %944 = vmatprep.subr.bf16.mxu0 %v782
      %945 = vmatpush1.bf16.msra.mxu0 %v781
      %946 = vmatprep.subr.bf16.mxu0 %v790
      %947 = vmatpush1.bf16.msra.mxu0 %v789
      %948 = vmatprep.subr.bf16.mxu0 %v798
      %949 = vmatpush1.bf16.msra.mxu0 %v797
      %950 = vmatprep.subr.bf16.mxu0 %v806
      %951 = vmatpush1.bf16.msra.mxu0 %v805
      %952 = vmatprep.subr.bf16.mxu0 %v814
      %953 = vmatpush1.bf16.msra.mxu0 %v813
      %954 = vmatprep.subr.bf16.mxu0 %v822
      %955 = vmatpush1.bf16.msra.mxu0 %v821
      %956 = vmatprep.subr.bf16.mxu0 %v830
      %957 = vmatpush1.bf16.msra.mxu0 %v829
      %958 = vmatprep.subr.bf16.mxu0 0
      %959 = vmatpush1.bf16.msra.mxu0 0
      %960 = vmatprep.subr.bf16.mxu0 0
      %961 = vmatpush1.bf16.msra.mxu0 0
      %962 = vmatprep.subr.bf16.mxu0 0
      %963 = vmatpush1.bf16.msra.mxu0 0
      %964 = vmatprep.subr.bf16.mxu0 0
      %965 = vmatpush1.bf16.msra.mxu0 0
      %966 = vmatprep.subr.bf16.mxu0 0
      %967 = vmatpush1.bf16.msra.mxu0 0
      %968 = vmatprep.subr.bf16.mxu0 0
      %969 = vmatpush1.bf16.msra.mxu0 0
      %970 = vmatprep.subr.bf16.mxu0 0
      %971 = vmatpush1.bf16.msra.mxu0 0
      %972 = vmatprep.subr.bf16.mxu0 0
      %973 = vmatpush1.bf16.msra.mxu0 0
      %974 = vmatprep.mubr.bf16.mxu0 0
      %975 = vmatmul.mubr.bf16.gmra.mrb[0].mxu0 %v472
      %v976 = vpop.f32.mrb[0].mxu0
      %v977 = vadd.f32 %v550, %v976
      %v978 = vpop.f32.mrb[0].mxu0
      %v979 = vadd.f32 %v554, %v978
      %v980 = vpop.f32.mrb[0].mxu0
      %v981 = vadd.f32 %v550, %v980
      %v982 = vpop.f32.mrb[0].mxu0
      %v983 = vadd.f32 %v554, %v982
      %984 = vdwg.mxu0
      %985 = vmatprep.subr.bf16.mxu0 %v776
      %986 = vmatpush1.bf16.msra.mxu0 %v775
      %987 = vmatprep.subr.bf16.mxu0 %v784
      %988 = vmatpush1.bf16.msra.mxu0 %v783
      %989 = vmatprep.subr.bf16.mxu0 %v792
      %990 = vmatpush1.bf16.msra.mxu0 %v791
      %991 = vmatprep.subr.bf16.mxu0 %v800
      %992 = vmatpush1.bf16.msra.mxu0 %v799
      %993 = vmatprep.subr.bf16.mxu0 %v808
      %994 = vmatpush1.bf16.msra.mxu0 %v807
      %995 = vmatprep.subr.bf16.mxu0 %v816
      %996 = vmatpush1.bf16.msra.mxu0 %v815
      %997 = vmatprep.subr.bf16.mxu0 %v824
      %998 = vmatpush1.bf16.msra.mxu0 %v823
      %999 = vmatprep.subr.bf16.mxu0 %v832
      %1000 = vmatpush1.bf16.msra.mxu0 %v831
      %1001 = vmatprep.subr.bf16.mxu0 0
      %1002 = vmatpush1.bf16.msra.mxu0 0
      %1003 = vmatprep.subr.bf16.mxu0 0
      %1004 = vmatpush1.bf16.msra.mxu0 0
      %1005 = vmatprep.subr.bf16.mxu0 0
      %1006 = vmatpush1.bf16.msra.mxu0 0
      %1007 = vmatprep.subr.bf16.mxu0 0
      %1008 = vmatpush1.bf16.msra.mxu0 0
      %1009 = vmatprep.subr.bf16.mxu0 0
      %1010 = vmatpush1.bf16.msra.mxu0 0
      %1011 = vmatprep.subr.bf16.mxu0 0
      %1012 = vmatpush1.bf16.msra.mxu0 0
      %1013 = vmatprep.subr.bf16.mxu0 0
      %1014 = vmatpush1.bf16.msra.mxu0 0
      %1015 = vmatprep.subr.bf16.mxu0 0
      %1016 = vmatpush1.bf16.msra.mxu0 0
      %1017 = vmatprep.mubr.bf16.mxu0 0
      %1018 = vmatmul.mubr.bf16.gmra.mrb[0].mxu0 %v472
      %v1019 = vpop.f32.mrb[0].mxu0
      %v1020 = vadd.f32 %v558, %v1019
      %v1021 = vpop.f32.mrb[0].mxu0
      %v1022 = vadd.f32 %v562, %v1021
      %v1023 = vpop.f32.mrb[0].mxu0
      %v1024 = vadd.f32 %v558, %v1023
      %v1025 = vpop.f32.mrb[0].mxu0
      %v1026 = vadd.f32 %v562, %v1025
      %1027 = vdwg.mxu0
      %1028 = vmatprep.subr.bf16.mxu0 %v778
      %1029 = vmatpush1.bf16.msra.mxu0 %v777
      %1030 = vmatprep.subr.bf16.mxu0 %v786
      %1031 = vmatpush1.bf16.msra.mxu0 %v785
      %1032 = vmatprep.subr.bf16.mxu0 %v794
      %1033 = vmatpush1.bf16.msra.mxu0 %v793
      %1034 = vmatprep.subr.bf16.mxu0 %v802
      %1035 = vmatpush1.bf16.msra.mxu0 %v801
      %1036 = vmatprep.subr.bf16.mxu0 %v810
      %1037 = vmatpush1.bf16.msra.mxu0 %v809
      %1038 = vmatprep.subr.bf16.mxu0 %v818
      %1039 = vmatpush1.bf16.msra.mxu0 %v817
      %1040 = vmatprep.subr.bf16.mxu0 %v826
      %1041 = vmatpush1.bf16.msra.mxu0 %v825
      %1042 = vmatprep.subr.bf16.mxu0 %v834
      %1043 = vmatpush1.bf16.msra.mxu0 %v833
      %1044 = vmatprep.subr.bf16.mxu0 0
      %1045 = vmatpush1.bf16.msra.mxu0 0
      %1046 = vmatprep.subr.bf16.mxu0 0
      %1047 = vmatpush1.bf16.msra.mxu0 0
      %1048 = vmatprep.subr.bf16.mxu0 0
      %1049 = vmatpush1.bf16.msra.mxu0 0
      %1050 = vmatprep.subr.bf16.mxu0 0
      %1051 = vmatpush1.bf16.msra.mxu0 0
      %1052 = vmatprep.subr.bf16.mxu0 0
      %1053 = vmatpush1.bf16.msra.mxu0 0
      %1054 = vmatprep.subr.bf16.mxu0 0
      %1055 = vmatpush1.bf16.msra.mxu0 0
      %1056 = vmatprep.subr.bf16.mxu0 0
      %1057 = vmatpush1.bf16.msra.mxu0 0
      %1058 = vmatprep.subr.bf16.mxu0 0
      %1059 = vmatpush1.bf16.msra.mxu0 0
      %1060 = vmatprep.mubr.bf16.mxu0 0
      %1061 = vmatmul.mubr.bf16.gmra.mrb[0].mxu0 %v472
      %v1062 = vpop.f32.mrb[0].mxu0
      %v1063 = vadd.f32 %v566, %v1062
      %v1064 = vpop.f32.mrb[0].mxu0
      %v1065 = vadd.f32 %v570, %v1064
      %v1066 = vpop.f32.mrb[0].mxu0
      %v1067 = vadd.f32 %v566, %v1066
      %v1068 = vpop.f32.mrb[0].mxu0
      %v1069 = vadd.f32 %v570, %v1068
      %1070 = vdwg.mxu0
      %v1071 = vmax.f32 %v934, %v938
      %v1072 = vrot.slane %v1071, 4
      %v1073 = vmax.f32 %v1071, %v1072
      %v1074 = vrot.slane %v1073, 2
      %v1075 = vmax.f32 %v1073, %v1074
      %v1076 = vrot.slane %v1075, 1
      %v1077 = vmax.f32 %v1075, %v1076
      %v1078 = vmax.f32 %v936, %v940
      %v1079 = vrot.slane %v1078, 4
      %v1080 = vmax.f32 %v1078, %v1079
      %v1081 = vrot.slane %v1080, 2
      %v1082 = vmax.f32 %v1080, %v1081
      %v1083 = vrot.slane %v1082, 1
      %v1084 = vmax.f32 %v1082, %v1083
      %v1085 = vmax.f32 %v977, %v981
      %v1086 = vrot.slane %v1085, 4
      %v1087 = vmax.f32 %v1085, %v1086
      %v1088 = vrot.slane %v1087, 2
      %v1089 = vmax.f32 %v1087, %v1088
      %v1090 = vrot.slane %v1089, 1
      %v1091 = vmax.f32 %v1089, %v1090
      %v1092 = vmax.f32 %v979, %v983
      %v1093 = vrot.slane %v1092, 4
      %v1094 = vmax.f32 %v1092, %v1093
      %v1095 = vrot.slane %v1094, 2
      %v1096 = vmax.f32 %v1094, %v1095
      %v1097 = vrot.slane %v1096, 1
      %v1098 = vmax.f32 %v1096, %v1097
      %v1099 = vmax.f32 %v1020, %v1024
      %v1100 = vrot.slane %v1099, 4
      %v1101 = vmax.f32 %v1099, %v1100
      %v1102 = vrot.slane %v1101, 2
      %v1103 = vmax.f32 %v1101, %v1102
      %v1104 = vrot.slane %v1103, 1
      %v1105 = vmax.f32 %v1103, %v1104
      %v1106 = vmax.f32 %v1022, %v1026
      %v1107 = vrot.slane %v1106, 4
      %v1108 = vmax.f32 %v1106, %v1107
      %v1109 = vrot.slane %v1108, 2
      %v1110 = vmax.f32 %v1108, %v1109
      %v1111 = vrot.slane %v1110, 1
      %v1112 = vmax.f32 %v1110, %v1111
      %v1113 = vmax.f32 %v1063, %v1067
      %v1114 = vrot.slane %v1113, 4
      %v1115 = vmax.f32 %v1113, %v1114
      %v1116 = vrot.slane %v1115, 2
      %v1117 = vmax.f32 %v1115, %v1116
      %v1118 = vrot.slane %v1117, 1
      %v1119 = vmax.f32 %v1117, %v1118
      %v1120 = vmax.f32 %v1065, %v1069
      %v1121 = vrot.slane %v1120, 4
      %v1122 = vmax.f32 %v1120, %v1121
      %v1123 = vrot.slane %v1122, 2
      %v1124 = vmax.f32 %v1122, %v1123
      %v1125 = vrot.slane %v1124, 1
      %v1126 = vmax.f32 %v1124, %v1125
      %p1127 = scmp.eq.s32.totalorder %s23, 0
      // Predicated region
      $region49: #{pointnet_dense_cls_forward.4} parent=47 // pred_check
        %p1128 = pneg %p1127
      $region50: #{pointnet_dense_cls_forward.4} parent=47 // pred_check_branch
        %1130 = sbr.rel (%p1128) target = $region52
      $region51: #{pointnet_dense_cls_forward.4} parent=47 // pred_region
        %v1139 = vcombine.low %v1077, %v1084
        %v1140 = vcombine.low %v1091, %v1098
        %v1141 = vcombine.low %v1105, %v1112
        %v1142 = vcombine.low %v1119, %v1126
        %v1144 = vunpack.c.l.s4 1966171168
        %v1145 = vunpack.c.0.s8 %v1144
        %v1146 = vlaneseq
        %v1147 = vshrl.u32 %v1146, 7
        %v1148 = vsub.s32 %v1145, %v1147
        %v1149 = vrot.slane %v1139, %v1148
        %v1151 = vunpack.c.l.s4 1966171168
        %v1152 = vunpack.c.0.s8 %v1151
        %v1153 = vlaneseq
        %v1154 = vshrl.u32 %v1153, 7
        %v1155 = vsub.s32 %v1152, %v1154
        %v1156 = vrot.slane %v1140, %v1155
        %v1158 = vunpack.c.l.s4 1966171168
        %v1159 = vunpack.c.0.s8 %v1158
        %v1160 = vlaneseq
        %v1161 = vshrl.u32 %v1160, 7
        %v1162 = vsub.s32 %v1159, %v1161
        %v1163 = vrot.slane %v1141, %v1162
        %v1165 = vunpack.c.l.s4 1966171168
        %v1166 = vunpack.c.0.s8 %v1165
        %v1167 = vlaneseq
        %v1168 = vshrl.u32 %v1167, 7
        %v1169 = vsub.s32 %v1166, %v1168
        %v1170 = vrot.slane %v1142, %v1169
        %v1171 = vcombine.low %v1149, %v1156
        %v1172 = vcombine.low %v1163, %v1170
        %v1174 = vunpack.c.l.s4 1966171168
        %v1175 = vunpack.c.0.s8 %v1174
        %v1176 = vlaneseq
        %v1177 = vshrl.u32 %v1176, 7
        %v1178 = vsub.s32 %v1175, %v1177
        %v1179 = vrot.slane %v1171, %v1178
        %v1181 = vunpack.c.l.s4 1966171168
        %v1182 = vunpack.c.0.s8 %v1181
        %v1183 = vlaneseq
        %v1184 = vshrl.u32 %v1183, 7
        %v1185 = vsub.s32 %v1182, %v1184
        %v1186 = vrot.slane %v1172, %v1185
        %v1187 = vcombine.low %v1179, %v1186
        %1189 = vst [vmem:[%s321] sm:$0xff] %v1187
      $region52: #{pointnet_dense_cls_forward.4} parent=47 // pred_fallthru
        _
      %p1190 = scmp.gt.s32.totalorder %s23, 0
      // Predicated region
      $region53: #{pointnet_dense_cls_forward.4} parent=47 // pred_check
        %p1191 = pneg %p1190
      $region54: #{pointnet_dense_cls_forward.4} parent=47 // pred_check_branch
        %1193 = sbr.rel (%p1191) target = $region56
      $region55: #{pointnet_dense_cls_forward.4} parent=47 // pred_region
        %v1194 = vld [vmem:[%s321] sm:$0xff]
        %v1203 = vcombine.low %v1077, %v1084
        %v1204 = vcombine.low %v1091, %v1098
        %v1205 = vcombine.low %v1105, %v1112
        %v1206 = vcombine.low %v1119, %v1126
        %v1208 = vunpack.c.l.s4 1966171168
        %v1209 = vunpack.c.0.s8 %v1208
        %v1210 = vlaneseq
        %v1211 = vshrl.u32 %v1210, 7
        %v1212 = vsub.s32 %v1209, %v1211
        %v1213 = vrot.slane %v1203, %v1212
        %v1215 = vunpack.c.l.s4 1966171168
        %v1216 = vunpack.c.0.s8 %v1215
        %v1217 = vlaneseq
        %v1218 = vshrl.u32 %v1217, 7
        %v1219 = vsub.s32 %v1216, %v1218
        %v1220 = vrot.slane %v1204, %v1219
        %v1222 = vunpack.c.l.s4 1966171168
        %v1223 = vunpack.c.0.s8 %v1222
        %v1224 = vlaneseq
        %v1225 = vshrl.u32 %v1224, 7
        %v1226 = vsub.s32 %v1223, %v1225
        %v1227 = vrot.slane %v1205, %v1226
        %v1229 = vunpack.c.l.s4 1966171168
        %v1230 = vunpack.c.0.s8 %v1229
        %v1231 = vlaneseq
        %v1232 = vshrl.u32 %v1231, 7
        %v1233 = vsub.s32 %v1230, %v1232
        %v1234 = vrot.slane %v1206, %v1233
        %v1235 = vcombine.low %v1213, %v1220
        %v1236 = vcombine.low %v1227, %v1234
        %v1238 = vunpack.c.l.s4 1966171168
        %v1239 = vunpack.c.0.s8 %v1238
        %v1240 = vlaneseq
        %v1241 = vshrl.u32 %v1240, 7
        %v1242 = vsub.s32 %v1239, %v1241
        %v1243 = vrot.slane %v1235, %v1242
        %v1245 = vunpack.c.l.s4 1966171168
        %v1246 = vunpack.c.0.s8 %v1245
        %v1247 = vlaneseq
        %v1248 = vshrl.u32 %v1247, 7
        %v1249 = vsub.s32 %v1246, %v1248
        %v1250 = vrot.slane %v1236, %v1249
        %v1251 = vcombine.low %v1243, %v1250
        %v1253 = vmax.f32 %v1194, %v1251
        %1254 = vst [vmem:[%s321] sm:$0xff] %v1253
      $region56: #{pointnet_dense_cls_forward.4} parent=47 // pred_fallthru
        _
      %p1255 = scmp.lt.s32.totalorder %s22, 1
      %s1256 = scalar_select %p1255, %s22, 1
      %s1257 = smul.addr %s1256, 8
      %s1258 = scalar_lea.vmem %s7, %s1257
      // Predicated region
      $region57: #{pointnet_dense_cls_forward.4} parent=47 // pred_check
        %p1259 = pneg %p207
      $region58: #{pointnet_dense_cls_forward.4} parent=47 // pred_check_branch
        %1261 = sbr.rel (%p1259) target = $region60
      $region59: #{pointnet_dense_cls_forward.4} parent=47 // pred_region
        _
      $region60: #{pointnet_dense_cls_forward.4} parent=47 // pred_fallthru
        _
    $region48: #{pointnet_dense_cls_forward.4} parent=5 // pred_fallthru
      _
    %p1262 = scmp.le.s32.totalorder 2, %s13
    // Predicated region
    $region61: #{pointnet_dense_cls_forward.4} parent=5 // pred_check
      %p1263 = pneg %p1262
    $region62: #{pointnet_dense_cls_forward.4} parent=5 // pred_check_branch
      %1265 = sbr.rel (%p1263) target = $region64
    $region63: #{pointnet_dense_cls_forward.4} parent=5 // pred_region
      %s1266 = ssub.s32 %s13, 2
      // Predicated region
      $region65: #{pointnet_dense_cls_forward.4} parent=63 // pred_check
        %p1267 = pneg %p213
      $region66: #{pointnet_dense_cls_forward.4} parent=63 // pred_check_branch
        %1269 = sbr.rel (%p1267) target = $region68
      $region67: #{pointnet_dense_cls_forward.4} parent=63 // pred_region
        %p1270 = scmp.lt.s32.totalorder %s24, 1
        %s1271 = scalar_select %p1270, %s24, 1
        %s1272 = smul.addr %s1271, 8
        %s1273 = scalar_lea.vmem %s7, %s1272
      $region68: #{pointnet_dense_cls_forward.4} parent=63 // pred_fallthru
        _
    $region64: #{pointnet_dense_cls_forward.4} parent=5 // pred_fallthru
      _
  $region6: #{pointnet_dense_cls_forward.4} parent=0 // loop_footer
    %s17 = sadd.s32 1, %s13
  $region7: #{pointnet_dense_cls_forward.4} parent=0 // loop_footer_branch
    %12 = sbr.rel target = $region3
  $region8: #{pointnet_dense_cls_forward.4} parent=0 // loop_exit
    _

// kernel: pointnet_dense_cls_forward.3
$region0: #{pointnet_dense_cls_forward.3}
  #allocation0 [shape = 'u32[]', space=smem, size = 0x4, offset = 0x4, fixed_abs, tag = 'smem constant byte address 0x4 - core index']
  #allocation1 [shape = 'u32[144,128]{1,0:T(1,128)}', space=vmem, size = 0x12000, scoped, tag = 'internal scratch']
  #allocation2 [shape = 'f32[1,1024]{1,0:T(1,128)}', space=vmem, size = 0x1000, scoped, tag = 'scratch operand']
  %s0 = inlined_call_operand.vmem [shape: f32[2,16,4], index: 0, kind: input, shape index: {}]
  %s1 = inlined_call_operand.vmem [shape: bf16[4,64], index: 1, kind: input, shape index: {}]
  %s2 = inlined_call_operand.vmem [shape: f32[1,64], index: 2, kind: input, shape index: {}]
  %s3 = inlined_call_operand.vmem [shape: bf16[64,128], index: 3, kind: input, shape index: {}]
  %s4 = inlined_call_operand.vmem [shape: f32[1,128], index: 4, kind: input, shape index: {}]
  %s5 = inlined_call_operand.hbm [shape: bf16[128,1024], index: 5, kind: input, shape index: {}]
  %s6 = inlined_call_operand.vmem [shape: f32[1,1024], index: 6, kind: input, shape index: {}]
  %s7 = inlined_call_operand.hbm [shape: bf16[1024,512], index: 7, kind: input, shape index: {}]
  %s8 = inlined_call_operand.vmem [shape: f32[1,512], index: 8, kind: input, shape index: {}]
  %s9 = inlined_call_operand.hbm [shape: bf16[512,256], index: 9, kind: input, shape index: {}]
  %s10 = inlined_call_operand.vmem [shape: f32[1,256], index: 10, kind: input, shape index: {}]
  %s11 = inlined_call_operand.vmem [shape: bf16[256,16], index: 11, kind: input, shape index: {}]
  %s12 = inlined_call_operand.vmem [shape: f32[1,16], index: 12, kind: input, shape index: {}]
  %s13 = inlined_call_operand.vmem [shape: f32[2,1,16], index: 13, kind: output, shape index: {}]
  %s14 = sld [smem:[#allocation0]]
  $region109: #{pointnet_dense_cls_forward.3} parent=0
    _
  %s16 = ssub.s32 1, %s14
  %s17 = scalar_select 0, %s16, %s14
  $region1: #{pointnet_dense_cls_forward.3} parent=0
    #allocation3 [shape = 'u8[262144]{0}', space=vmem, size = 0x40000, scoped, tag = 'input window, operand 5, single buffered']
    #allocation4 [shape = 's32[2]{0}', space=sflag, size = 0x8, scoped, tag = 'scoped memory for pointnet_dense_cls_forward.3']
    #allocation5 [shape = 'u8[1048576]{0}', space=vmem, size = 0x100000, scoped, tag = 'input window, operand 7, single buffered']
    #allocation6 [shape = 's32[1]{0}', space=sflag, size = 0x4, scoped, tag = 'scoped memory for pointnet_dense_cls_forward.3']
    #allocation7 [shape = 'u8[262144]{0}', space=vmem, size = 0x40000, scoped, tag = 'input window, operand 9, single buffered']
    %18 = vsyncpa [#allocation4], 0
    %19 = vsyncpa [#allocation6], 0
    loop: start=0, step=1, limit=4
    $region2: #{pointnet_dense_cls_forward.3} parent=1 // loop_pre_header
      _
    $region3: #{pointnet_dense_cls_forward.3} parent=1 // loop_header
      %s21 = sphi 0, %s25
      %p22 = scmp.ge.s32.totalorder %s21, 4
      %s28 = sphi 0, %s40
      %s29 = sphi 0, %s36
      %s30 = sphi 0, %s28
      %s31 = sphi 0, %s29
      %s32 = sphi 0, %s30
      %s33 = sphi 0, %s31
      %s45 = sphi 0, %s47
      %s48 = sphi 0, %s45
      %s49 = sphi 0, %s48
      %s65 = sphi 0, %s49
      %s69 = sphi 0, %s69
      %s71 = sphi 0, %s69
      %s72 = sphi 0, %s71
      %s86 = sphi 0, %s72
      %s90 = sphi 0, %s90
      %s92 = sphi 0, %s90
      %s93 = sphi 0, %s92
      %s107 = sphi 0, %s93
      %s111 = sphi 0, %s111
      %s113 = sphi 0, %s111
      %s114 = sphi 0, %s113
      %s128 = sphi 0, %s114
      %s132 = sphi 0, %s132
      %s134 = sphi 0, %s132
      %s135 = sphi 0, %s134
      %s149 = sphi 0, %s135
      %s153 = sphi 0, %s153
      %s155 = sphi 0, %s153
      %s156 = sphi 0, %s155
      %s170 = sphi 0, %s156
      %s174 = sphi 0, %s174
      %s176 = sphi 0, %s174
      %s177 = sphi 0, %s176
      %s191 = sphi 0, %s177
      %s195 = sphi 0, %s195
      %s197 = sphi 0, %s195
      %s198 = sphi 0, %s197
      %s212 = sphi 0, %s198
      %s216 = sphi 0, %s216
      %s218 = sphi 0, %s216
      %s219 = sphi 0, %s218
      %s233 = sphi 0, %s219
      %s237 = sphi 0, %s237
      %s239 = sphi 0, %s237
      %s240 = sphi 0, %s239
      %s254 = sphi 0, %s240
      %s258 = sphi 0, %s258
      %s260 = sphi 0, %s258
      %s261 = sphi 0, %s260
      %s275 = sphi 0, %s261
      %s279 = sphi 0, %s279
      %s281 = sphi 0, %s279
      %s282 = sphi 0, %s281
      %s296 = sphi 0, %s282
      %s300 = sphi 0, %s300
      %s302 = sphi 0, %s300
      %s303 = sphi 0, %s302
      %s317 = sphi 0, %s303
      %s323 = sphi 0, %s325
      %s326 = sphi 0, %s323
      %s327 = sphi 0, %s326
      %s343 = sphi 0, %s327
    $region4: #{pointnet_dense_cls_forward.3} parent=1 // loop_header_branch
      %24 = sbr.rel (%p22) target = $region8
    $region5: #{pointnet_dense_cls_forward.3} parent=1 // loop_body
      %s26 = ssub.s32 %s21, 1
      %s27 = ssub.s32 %s21, 2
      %s34 = sadd.s32 1, %s29
      %p35 = scmp.ge.s32.totalorder %s34, 1
      %s36 = scalar_select %p35, 0, %s34
      %s37 = sadd.s32 1, %s28
      %s38 = scalar_select %p35, %s37, %s28
      %p39 = scmp.ge.s32.totalorder %s38, 2
      %s40 = scalar_select %p39, 0, %s38
      %s41 = ssub.s32 %s28, %s40
      %s42 = ssub.s32 %s29, %s36
      %s43 = sor.u32 %s41, %s42
      %p44 = scmp.eq.s32.totalorder %s43, 0
      %s46 = sadd.s32 %s45, 1
      %s47 = scalar_select %p44, %s45, %s46
      %p50 = pneg %p44
      %p51 = scmp.eq.s32.totalorder %s21, 1
      %p52 = por %p50, %p51
      %p53 = scmp.ne.s32.totalorder %s45, %s48
      %p54 = scmp.eq.s32.totalorder %s21, 0
      %p55 = por %p53, %p54
      %p56 = scmp.ne.s32.totalorder %s45, %s48
      %p57 = scmp.eq.s32.totalorder %s26, 1
      %p58 = por %p56, %p57
      %p59 = scmp.ne.s32.totalorder %s48, %s49
      %p60 = scmp.eq.s32.totalorder %s26, 0
      %p61 = por %p59, %p60
      %p62 = scmp.ne.s32.totalorder %s48, %s49
      %p63 = scmp.eq.s32.totalorder %s27, 1
      %p64 = por %p62, %p63
      %p66 = scmp.ne.s32.totalorder %s49, %s65
      %p67 = scmp.eq.s32.totalorder %s27, 0
      %p68 = por %p66, %p67
      %s70 = sadd.s32 %s69, 1
      %p73 = scmp.eq.s32.totalorder %s21, 1
      %p74 = scmp.ne.s32.totalorder %s69, %s71
      %p75 = scmp.eq.s32.totalorder %s21, 0
      %p76 = por %p74, %p75
      %p77 = scmp.ne.s32.totalorder %s69, %s71
      %p78 = scmp.eq.s32.totalorder %s26, 1
      %p79 = por %p77, %p78
      %p80 = scmp.ne.s32.totalorder %s71, %s72
      %p81 = scmp.eq.s32.totalorder %s26, 0
      %p82 = por %p80, %p81
      %p83 = scmp.ne.s32.totalorder %s71, %s72
      %p84 = scmp.eq.s32.totalorder %s27, 1
      %p85 = por %p83, %p84
      %p87 = scmp.ne.s32.totalorder %s72, %s86
      %p88 = scmp.eq.s32.totalorder %s27, 0
      %p89 = por %p87, %p88
      %s91 = sadd.s32 %s90, 1
      %p94 = scmp.eq.s32.totalorder %s21, 1
      %p95 = scmp.ne.s32.totalorder %s90, %s92
      %p96 = scmp.eq.s32.totalorder %s21, 0
      %p97 = por %p95, %p96
      %p98 = scmp.ne.s32.totalorder %s90, %s92
      %p99 = scmp.eq.s32.totalorder %s26, 1
      %p100 = por %p98, %p99
      %p101 = scmp.ne.s32.totalorder %s92, %s93
      %p102 = scmp.eq.s32.totalorder %s26, 0
      %p103 = por %p101, %p102
      %p104 = scmp.ne.s32.totalorder %s92, %s93
      %p105 = scmp.eq.s32.totalorder %s27, 1
      %p106 = por %p104, %p105
      %p108 = scmp.ne.s32.totalorder %s93, %s107
      %p109 = scmp.eq.s32.totalorder %s27, 0
      %p110 = por %p108, %p109
      %s112 = sadd.s32 %s111, 1
      %p115 = scmp.eq.s32.totalorder %s21, 1
      %p116 = scmp.ne.s32.totalorder %s111, %s113
      %p117 = scmp.eq.s32.totalorder %s21, 0
      %p118 = por %p116, %p117
      %p119 = scmp.ne.s32.totalorder %s111, %s113
      %p120 = scmp.eq.s32.totalorder %s26, 1
      %p121 = por %p119, %p120
      %p122 = scmp.ne.s32.totalorder %s113, %s114
      %p123 = scmp.eq.s32.totalorder %s26, 0
      %p124 = por %p122, %p123
      %p125 = scmp.ne.s32.totalorder %s113, %s114
      %p126 = scmp.eq.s32.totalorder %s27, 1
      %p127 = por %p125, %p126
      %p129 = scmp.ne.s32.totalorder %s114, %s128
      %p130 = scmp.eq.s32.totalorder %s27, 0
      %p131 = por %p129, %p130
      %s133 = sadd.s32 %s132, 1
      %p136 = scmp.eq.s32.totalorder %s21, 1
      %p137 = scmp.ne.s32.totalorder %s132, %s134
      %p138 = scmp.eq.s32.totalorder %s21, 0
      %p139 = por %p137, %p138
      %p140 = scmp.ne.s32.totalorder %s132, %s134
      %p141 = scmp.eq.s32.totalorder %s26, 1
      %p142 = por %p140, %p141
      %p143 = scmp.ne.s32.totalorder %s134, %s135
      %p144 = scmp.eq.s32.totalorder %s26, 0
      %p145 = por %p143, %p144
      %p146 = scmp.ne.s32.totalorder %s134, %s135
      %p147 = scmp.eq.s32.totalorder %s27, 1
      %p148 = por %p146, %p147
      %p150 = scmp.ne.s32.totalorder %s135, %s149
      %p151 = scmp.eq.s32.totalorder %s27, 0
      %p152 = por %p150, %p151
      %s154 = sadd.s32 %s153, 1
      %p157 = scmp.eq.s32.totalorder %s21, 1
      %p158 = scmp.ne.s32.totalorder %s153, %s155
      %p159 = scmp.eq.s32.totalorder %s21, 0
      %p160 = por %p158, %p159
      %p161 = scmp.ne.s32.totalorder %s153, %s155
      %p162 = scmp.eq.s32.totalorder %s26, 1
      %p163 = por %p161, %p162
      %p164 = scmp.ne.s32.totalorder %s155, %s156
      %p165 = scmp.eq.s32.totalorder %s26, 0
      %p166 = por %p164, %p165
      %p167 = scmp.ne.s32.totalorder %s155, %s156
      %p168 = scmp.eq.s32.totalorder %s27, 1
      %p169 = por %p167, %p168
      %p171 = scmp.ne.s32.totalorder %s156, %s170
      %p172 = scmp.eq.s32.totalorder %s27, 0
      %p173 = por %p171, %p172
      %s175 = sadd.s32 %s174, 1
      %p178 = scmp.eq.s32.totalorder %s21, 1
      %p179 = scmp.ne.s32.totalorder %s174, %s176
      %p180 = scmp.eq.s32.totalorder %s21, 0
      %p181 = por %p179, %p180
      %p182 = scmp.ne.s32.totalorder %s174, %s176
      %p183 = scmp.eq.s32.totalorder %s26, 1
      %p184 = por %p182, %p183
      %p185 = scmp.ne.s32.totalorder %s176, %s177
      %p186 = scmp.eq.s32.totalorder %s26, 0
      %p187 = por %p185, %p186
      %p188 = scmp.ne.s32.totalorder %s176, %s177
      %p189 = scmp.eq.s32.totalorder %s27, 1
      %p190 = por %p188, %p189
      %p192 = scmp.ne.s32.totalorder %s177, %s191
      %p193 = scmp.eq.s32.totalorder %s27, 0
      %p194 = por %p192, %p193
      %s196 = sadd.s32 %s195, 1
      %p199 = scmp.eq.s32.totalorder %s21, 1
      %p200 = scmp.ne.s32.totalorder %s195, %s197
      %p201 = scmp.eq.s32.totalorder %s21, 0
      %p202 = por %p200, %p201
      %p203 = scmp.ne.s32.totalorder %s195, %s197
      %p204 = scmp.eq.s32.totalorder %s26, 1
      %p205 = por %p203, %p204
      %p206 = scmp.ne.s32.totalorder %s197, %s198
      %p207 = scmp.eq.s32.totalorder %s26, 0
      %p208 = por %p206, %p207
      %p209 = scmp.ne.s32.totalorder %s197, %s198
      %p210 = scmp.eq.s32.totalorder %s27, 1
      %p211 = por %p209, %p210
      %p213 = scmp.ne.s32.totalorder %s198, %s212
      %p214 = scmp.eq.s32.totalorder %s27, 0
      %p215 = por %p213, %p214
      %s217 = sadd.s32 %s216, 1
      %p220 = scmp.eq.s32.totalorder %s21, 1
      %p221 = scmp.ne.s32.totalorder %s216, %s218
      %p222 = scmp.eq.s32.totalorder %s21, 0
      %p223 = por %p221, %p222
      %p224 = scmp.ne.s32.totalorder %s216, %s218
      %p225 = scmp.eq.s32.totalorder %s26, 1
      %p226 = por %p224, %p225
      %p227 = scmp.ne.s32.totalorder %s218, %s219
      %p228 = scmp.eq.s32.totalorder %s26, 0
      %p229 = por %p227, %p228
      %p230 = scmp.ne.s32.totalorder %s218, %s219
      %p231 = scmp.eq.s32.totalorder %s27, 1
      %p232 = por %p230, %p231
      %p234 = scmp.ne.s32.totalorder %s219, %s233
      %p235 = scmp.eq.s32.totalorder %s27, 0
      %p236 = por %p234, %p235
      %s238 = sadd.s32 %s237, 1
      %p241 = scmp.eq.s32.totalorder %s21, 1
      %p242 = scmp.ne.s32.totalorder %s237, %s239
      %p243 = scmp.eq.s32.totalorder %s21, 0
      %p244 = por %p242, %p243
      %p245 = scmp.ne.s32.totalorder %s237, %s239
      %p246 = scmp.eq.s32.totalorder %s26, 1
      %p247 = por %p245, %p246
      %p248 = scmp.ne.s32.totalorder %s239, %s240
      %p249 = scmp.eq.s32.totalorder %s26, 0
      %p250 = por %p248, %p249
      %p251 = scmp.ne.s32.totalorder %s239, %s240
      %p252 = scmp.eq.s32.totalorder %s27, 1
      %p253 = por %p251, %p252
      %p255 = scmp.ne.s32.totalorder %s240, %s254
      %p256 = scmp.eq.s32.totalorder %s27, 0
      %p257 = por %p255, %p256
      %s259 = sadd.s32 %s258, 1
      %p262 = scmp.eq.s32.totalorder %s21, 1
      %p263 = scmp.ne.s32.totalorder %s258, %s260
      %p264 = scmp.eq.s32.totalorder %s21, 0
      %p265 = por %p263, %p264
      %p266 = scmp.ne.s32.totalorder %s258, %s260
      %p267 = scmp.eq.s32.totalorder %s26, 1
      %p268 = por %p266, %p267
      %p269 = scmp.ne.s32.totalorder %s260, %s261
      %p270 = scmp.eq.s32.totalorder %s26, 0
      %p271 = por %p269, %p270
      %p272 = scmp.ne.s32.totalorder %s260, %s261
      %p273 = scmp.eq.s32.totalorder %s27, 1
      %p274 = por %p272, %p273
      %p276 = scmp.ne.s32.totalorder %s261, %s275
      %p277 = scmp.eq.s32.totalorder %s27, 0
      %p278 = por %p276, %p277
      %s280 = sadd.s32 %s279, 1
      %p283 = scmp.eq.s32.totalorder %s21, 1
      %p284 = scmp.ne.s32.totalorder %s279, %s281
      %p285 = scmp.eq.s32.totalorder %s21, 0
      %p286 = por %p284, %p285
      %p287 = scmp.ne.s32.totalorder %s279, %s281
      %p288 = scmp.eq.s32.totalorder %s26, 1
      %p289 = por %p287, %p288
      %p290 = scmp.ne.s32.totalorder %s281, %s282
      %p291 = scmp.eq.s32.totalorder %s26, 0
      %p292 = por %p290, %p291
      %p293 = scmp.ne.s32.totalorder %s281, %s282
      %p294 = scmp.eq.s32.totalorder %s27, 1
      %p295 = por %p293, %p294
      %p297 = scmp.ne.s32.totalorder %s282, %s296
      %p298 = scmp.eq.s32.totalorder %s27, 0
      %p299 = por %p297, %p298
      %s301 = sadd.s32 %s300, 1
      %p304 = scmp.eq.s32.totalorder %s21, 1
      %p305 = scmp.ne.s32.totalorder %s300, %s302
      %p306 = scmp.eq.s32.totalorder %s21, 0
      %p307 = por %p305, %p306
      %p308 = scmp.ne.s32.totalorder %s300, %s302
      %p309 = scmp.eq.s32.totalorder %s26, 1
      %p310 = por %p308, %p309
      %p311 = scmp.ne.s32.totalorder %s302, %s303
      %p312 = scmp.eq.s32.totalorder %s26, 0
      %p313 = por %p311, %p312
      %p314 = scmp.ne.s32.totalorder %s302, %s303
      %p315 = scmp.eq.s32.totalorder %s27, 1
      %p316 = por %p314, %p315
      %p318 = scmp.ne.s32.totalorder %s303, %s317
      %p319 = scmp.eq.s32.totalorder %s27, 0
      %p320 = por %p318, %p319
      %s321 = ssub.s32 %s28, %s40
      %p322 = scmp.eq.s32.totalorder %s321, 0
      %s324 = sadd.s32 %s323, 1
      %s325 = scalar_select %p322, %s323, %s324
      %p328 = pneg %p322
      %p329 = scmp.eq.s32.totalorder %s21, 1
      %p330 = por %p328, %p329
      %p331 = scmp.ne.s32.totalorder %s323, %s326
      %p332 = scmp.eq.s32.totalorder %s21, 0
      %p333 = por %p331, %p332
      %p334 = scmp.ne.s32.totalorder %s323, %s326
      %p335 = scmp.eq.s32.totalorder %s26, 1
      %p336 = por %p334, %p335
      %p337 = scmp.ne.s32.totalorder %s326, %s327
      %p338 = scmp.eq.s32.totalorder %s26, 0
      %p339 = por %p337, %p338
      %p340 = scmp.ne.s32.totalorder %s326, %s327
      %p341 = scmp.eq.s32.totalorder %s27, 1
      %p342 = por %p340, %p341
      %p344 = scmp.ne.s32.totalorder %s327, %s343
      %p345 = scmp.eq.s32.totalorder %s27, 0
      %p346 = por %p344, %p345
      %p347 = scmp.le.s32.totalorder 1, %s21
      %p348 = scmp.lt.s32.totalorder %s21, 3
      %p349 = pnand %p347, %p348
      %p350 = pneg %p349
      // Predicated region
      $region9: #{pointnet_dense_cls_forward.3} parent=5 // pred_check
        _
      $region10: #{pointnet_dense_cls_forward.3} parent=5 // pred_check_branch
        %352 = sbr.rel (%p349) target = $region12
      $region11: #{pointnet_dense_cls_forward.3} parent=5 // pred_region
        %s353 = ssub.s32 %s21, 1
        // Predicated region
        $region13: #{pointnet_dense_cls_forward.3} parent=11 // pred_check
          %p354 = pneg %p82
        $region14: #{pointnet_dense_cls_forward.3} parent=11 // pred_check_branch
          %356 = sbr.rel (%p354) target = $region16
        $region15: #{pointnet_dense_cls_forward.3} parent=11 // pred_region
          _
        $region16: #{pointnet_dense_cls_forward.3} parent=11 // pred_fallthru
          _
        // Predicated region
        $region17: #{pointnet_dense_cls_forward.3} parent=11 // pred_check
          %p357 = pneg %p103
        $region18: #{pointnet_dense_cls_forward.3} parent=11 // pred_check_branch
          %359 = sbr.rel (%p357) target = $region20
        $region19: #{pointnet_dense_cls_forward.3} parent=11 // pred_region
          _
        $region20: #{pointnet_dense_cls_forward.3} parent=11 // pred_fallthru
          _
        // Predicated region
        $region21: #{pointnet_dense_cls_forward.3} parent=11 // pred_check
          %p360 = pneg %p124
        $region22: #{pointnet_dense_cls_forward.3} parent=11 // pred_check_branch
          %362 = sbr.rel (%p360) target = $region24
        $region23: #{pointnet_dense_cls_forward.3} parent=11 // pred_region
          _
        $region24: #{pointnet_dense_cls_forward.3} parent=11 // pred_fallthru
          _
        // Predicated region
        $region25: #{pointnet_dense_cls_forward.3} parent=11 // pred_check
          %p363 = pneg %p145
        $region26: #{pointnet_dense_cls_forward.3} parent=11 // pred_check_branch
          %365 = sbr.rel (%p363) target = $region28
        $region27: #{pointnet_dense_cls_forward.3} parent=11 // pred_region
          _
        $region28: #{pointnet_dense_cls_forward.3} parent=11 // pred_fallthru
          _
        // Predicated region
        $region29: #{pointnet_dense_cls_forward.3} parent=11 // pred_check
          %p366 = pneg %p166
        $region30: #{pointnet_dense_cls_forward.3} parent=11 // pred_check_branch
          %368 = sbr.rel (%p366) target = $region32
        $region31: #{pointnet_dense_cls_forward.3} parent=11 // pred_region
          %s370 = ssub.s32 8192, 8192
          %371 = vsyncadd [#allocation4], %s370
          %s372 = sshll.u32 [#allocation3], 4
          %s373 = int_to_ptr.vmem [resolvable:$true] %s372
          %378 = dma.hbm_to_vmem [thread:$0]  %s5, 8192, %s373, [#allocation4], 512, 512, 32
        $region32: #{pointnet_dense_cls_forward.3} parent=11 // pred_fallthru
          _
        // Predicated region
        $region33: #{pointnet_dense_cls_forward.3} parent=11 // pred_check
          %p379 = pneg %p187
        $region34: #{pointnet_dense_cls_forward.3} parent=11 // pred_check_branch
          %381 = sbr.rel (%p379) target = $region36
        $region35: #{pointnet_dense_cls_forward.3} parent=11 // pred_region
          _
        $region36: #{pointnet_dense_cls_forward.3} parent=11 // pred_fallthru
          _
        // Predicated region
        $region37: #{pointnet_dense_cls_forward.3} parent=11 // pred_check
          %p382 = pneg %p208
        $region38: #{pointnet_dense_cls_forward.3} parent=11 // pred_check_branch
          %384 = sbr.rel (%p382) target = $region40
        $region39: #{pointnet_dense_cls_forward.3} parent=11 // pred_region
          %s386 = ssub.s32 32768, 32768
          %387 = vsyncadd [#allocation6], %s386
          %s388 = sshll.u32 [#allocation5], 4
          %s389 = int_to_ptr.vmem [resolvable:$true] %s388
          %394 = dma.hbm_to_vmem [thread:$0]  %s7, 32768, %s389, [#allocation6], 256, 256, 16
        $region40: #{pointnet_dense_cls_forward.3} parent=11 // pred_fallthru
          _
        // Predicated region
        $region41: #{pointnet_dense_cls_forward.3} parent=11 // pred_check
          %p395 = pneg %p229
        $region42: #{pointnet_dense_cls_forward.3} parent=11 // pred_check_branch
          %397 = sbr.rel (%p395) target = $region44
        $region43: #{pointnet_dense_cls_forward.3} parent=11 // pred_region
          _
        $region44: #{pointnet_dense_cls_forward.3} parent=11 // pred_fallthru
          _
        // Predicated region
        $region45: #{pointnet_dense_cls_forward.3} parent=11 // pred_check
          %p398 = pneg %p250
        $region46: #{pointnet_dense_cls_forward.3} parent=11 // pred_check_branch
          %400 = sbr.rel (%p398) target = $region48
        $region47: #{pointnet_dense_cls_forward.3} parent=11 // pred_region
          %s402 = ssub.s32 8192, 8192
          %403 = vsyncadd [#allocation6], %s402
          %s404 = sshll.u32 [#allocation7], 4
          %s405 = int_to_ptr.vmem [resolvable:$true] %s404
          %410 = dma.hbm_to_vmem [thread:$0]  %s9, 8192, %s405, [#allocation6], 128, 128, 8
        $region48: #{pointnet_dense_cls_forward.3} parent=11 // pred_fallthru
          _
        // Predicated region
        $region49: #{pointnet_dense_cls_forward.3} parent=11 // pred_check
          %p411 = pneg %p271
        $region50: #{pointnet_dense_cls_forward.3} parent=11 // pred_check_branch
          %413 = sbr.rel (%p411) target = $region52
        $region51: #{pointnet_dense_cls_forward.3} parent=11 // pred_region
          _
        $region52: #{pointnet_dense_cls_forward.3} parent=11 // pred_fallthru
          _
        // Predicated region
        $region53: #{pointnet_dense_cls_forward.3} parent=11 // pred_check
          %p414 = pneg %p292
        $region54: #{pointnet_dense_cls_forward.3} parent=11 // pred_check_branch
          %416 = sbr.rel (%p414) target = $region56
        $region55: #{pointnet_dense_cls_forward.3} parent=11 // pred_region
          _
        $region56: #{pointnet_dense_cls_forward.3} parent=11 // pred_fallthru
          _
        // Predicated region
        $region57: #{pointnet_dense_cls_forward.3} parent=11 // pred_check
          %p417 = pneg %p313
        $region58: #{pointnet_dense_cls_forward.3} parent=11 // pred_check_branch
          %419 = sbr.rel (%p417) target = $region60
        $region59: #{pointnet_dense_cls_forward.3} parent=11 // pred_region
          _
        $region60: #{pointnet_dense_cls_forward.3} parent=11 // pred_fallthru
          _
      $region12: #{pointnet_dense_cls_forward.3} parent=5 // pred_fallthru
        _
      %p420 = scmp.lt.s32.totalorder %s21, 2
      // Predicated region
      $region61: #{pointnet_dense_cls_forward.3} parent=5 // pred_check
        %p421 = pneg %p420
      $region62: #{pointnet_dense_cls_forward.3} parent=5 // pred_check_branch
        %423 = sbr.rel (%p421) target = $region64
      $region63: #{pointnet_dense_cls_forward.3} parent=5 // pred_region
        // Predicated region
        $region65: #{pointnet_dense_cls_forward.3} parent=63 // pred_check
          %p424 = pneg %p55
        $region66: #{pointnet_dense_cls_forward.3} parent=63 // pred_check_branch
          %426 = sbr.rel (%p424) target = $region68
        $region67: #{pointnet_dense_cls_forward.3} parent=63 // pred_region
          %s427 = smul.u32 2, %s29
          %p428 = scmp.lt.s32.totalorder %s28, 1
          %s429 = scalar_select %p428, %s28, 1
          %p430 = scmp.lt.s32.totalorder %s427, 1
          %s431 = scalar_select %p430, %s427, 1
          %s432 = smul.addr %s429, 2
          %s433 = sadd.s32 %s431, %s432
          %s434 = smul.addr %s433, 8
          %s435 = scalar_lea.vmem %s0, %s434
          %s436 = smul.u32 2, %s29
        $region68: #{pointnet_dense_cls_forward.3} parent=63 // pred_fallthru
          _
      $region64: #{pointnet_dense_cls_forward.3} parent=5 // pred_fallthru
        _
      %p437 = scmp.le.s32.totalorder 1, %s21
      %p438 = scmp.lt.s32.totalorder %s21, 3
      %p439 = pnand %p437, %p438
      %p440 = pneg %p439
      // Predicated region
      $region69: #{pointnet_dense_cls_forward.3} parent=5 // pred_check
        _
      $region70: #{pointnet_dense_cls_forward.3} parent=5 // pred_check_branch
        %442 = sbr.rel (%p439) target = $region72
      $region71: #{pointnet_dense_cls_forward.3} parent=5 // pred_region
        %s443 = ssub.s32 %s21, 1
        // Predicated region
        $region73: #{pointnet_dense_cls_forward.3} parent=71 // pred_check
          %p444 = pneg %p166
        $region74: #{pointnet_dense_cls_forward.3} parent=71 // pred_check_branch
          %446 = sbr.rel (%p444) target = $region76
        $region75: #{pointnet_dense_cls_forward.3} parent=71 // pred_region
          %447 = dma.done [#allocation4], 8192
        $region76: #{pointnet_dense_cls_forward.3} parent=71 // pred_fallthru
          _
        // Predicated region
        $region77: #{pointnet_dense_cls_forward.3} parent=71 // pred_check
          %p448 = pneg %p208
        $region78: #{pointnet_dense_cls_forward.3} parent=71 // pred_check_branch
          %450 = sbr.rel (%p448) target = $region80
        $region79: #{pointnet_dense_cls_forward.3} parent=71 // pred_region
          %451 = dma.done [#allocation6], 32768
        $region80: #{pointnet_dense_cls_forward.3} parent=71 // pred_fallthru
          _
        // Predicated region
        $region81: #{pointnet_dense_cls_forward.3} parent=71 // pred_check
          %p452 = pneg %p250
        $region82: #{pointnet_dense_cls_forward.3} parent=71 // pred_check_branch
          %454 = sbr.rel (%p452) target = $region84
        $region83: #{pointnet_dense_cls_forward.3} parent=71 // pred_region
          %455 = dma.done [#allocation6], 8192
        $region84: #{pointnet_dense_cls_forward.3} parent=71 // pred_fallthru
          _
        %s456 = smul.u32 2, %s31
        %p457 = scmp.lt.s32.totalorder %s30, 1
        %s458 = scalar_select %p457, %s30, 1
        %p459 = scmp.lt.s32.totalorder %s456, 1
        %s460 = scalar_select %p459, %s456, 1
        %s461 = smul.addr %s458, 2
        %s462 = sadd.s32 %s460, %s461
        %s463 = smul.addr %s462, 8
        %s464 = scalar_lea.vmem %s0, %s463
        %p465 = pneg %p61
        %p466 = pneg %p58
        %p467 = pneg %p82
        %p468 = pneg %p79
        %p469 = pneg %p103
        %p470 = pneg %p100
        %p471 = pneg %p124
        %p472 = pneg %p121
        %p473 = pneg %p145
        %p474 = pneg %p142
        %p475 = pneg %p166
        %p476 = pneg %p163
        %p477 = pneg %p187
        %p478 = pneg %p184
        %p479 = pneg %p208
        %p480 = pneg %p205
        %p481 = pneg %p229
        %p482 = pneg %p226
        %p483 = pneg %p250
        %p484 = pneg %p247
        %p485 = pneg %p271
        %p486 = pneg %p268
        %p487 = pneg %p292
        %p488 = pneg %p289
        %p489 = pneg %p313
        %p490 = pneg %p310
        %p491 = pneg %p339
        %p492 = pneg %p336
        %p493 = scmp.lt.s32.totalorder %s30, 1
        %s494 = scalar_select %p493, %s30, 1
        %s495 = scalar_lea.vmem %s13, %s494
        %s496 = smul.u32 2, %s31
        %p497 = scmp.lt.s32.totalorder %s30, 1
        %s498 = scalar_select %p497, %s30, 1
        %p499 = scmp.lt.s32.totalorder %s496, 1
        %s500 = scalar_select %p499, %s496, 1
        %s501 = smul.addr %s498, 2
        %s502 = sadd.s32 %s500, %s501
        %s503 = smul.addr %s502, 8
        %s504 = scalar_lea.vmem %s0, %s503
        %s505 = smul.u32 2, %s31
        %p506 = scmp.lt.s32.totalorder %s30, 1
        %s507 = scalar_select %p506, %s30, 1
        %s508 = scalar_lea.vmem %s13, %s507
        %v510 = vld [vmem:[%s504] sm:$0xff]
        %v511 = vld [vmem:[%s504 + $0x8] sm:$0xff]
        %v512 = vpack.c.bf16 %v511, %v510
        %v513 = vld [vmem:[%s1] sm:$0x3]
        %v514 = vld [vmem:[%s2] sm:$0x1]
        %v516 = vlaneseq
        %v517 = vshrl.u32 %v516, 7
        %v518 = vsub.s32 0, %v517
        %v519 = vrot.slane %v514, %v518
        %vm521 = vcmask 31744
        %v523 = vsel %vm521, %v512, 0
        %vm525 = vcmask 1041408
        %v527 = vsel %vm525, %v513, 0
        %529 = vmatprep.subr.bf16.mxu0 0
        %530 = vmatpush1.bf16.msra.mxu0 %v527
        %531 = vmatprep.subr.bf16.mxu0 0
        %532 = vmatpush1.bf16.msra.mxu0 0
        %533 = vmatprep.subr.bf16.mxu0 0
        %534 = vmatpush1.bf16.msra.mxu0 0
        %535 = vmatprep.subr.bf16.mxu0 0
        %536 = vmatpush1.bf16.msra.mxu0 0
        %537 = vmatprep.subr.bf16.mxu0 0
        %538 = vmatpush1.bf16.msra.mxu0 0
        %539 = vmatprep.subr.bf16.mxu0 0
        %540 = vmatpush1.bf16.msra.mxu0 0
        %541 = vmatprep.subr.bf16.mxu0 0
        %542 = vmatpush1.bf16.msra.mxu0 0
        %543 = vmatprep.subr.bf16.mxu0 0
        %544 = vmatpush1.bf16.msra.mxu0 0
        %545 = vmatprep.subr.bf16.mxu0 0
        %546 = vmatpush1.bf16.msra.mxu0 0
        %547 = vmatprep.subr.bf16.mxu0 0
        %548 = vmatpush1.bf16.msra.mxu0 0
        %549 = vmatprep.subr.bf16.mxu0 0
        %550 = vmatpush1.bf16.msra.mxu0 0
        %551 = vmatprep.subr.bf16.mxu0 0
        %552 = vmatpush1.bf16.msra.mxu0 0
        %553 = vmatprep.subr.bf16.mxu0 0
        %554 = vmatpush1.bf16.msra.mxu0 0
        %555 = vmatprep.subr.bf16.mxu0 0
        %556 = vmatpush1.bf16.msra.mxu0 0
        %557 = vmatprep.subr.bf16.mxu0 0
        %558 = vmatpush1.bf16.msra.mxu0 0
        %559 = vmatprep.subr.bf16.mxu0 0
        %560 = vmatpush1.bf16.msra.mxu0 0
        %561 = vmatprep.mubr.bf16.mxu0 0
        %562 = vmatmul.mubr.bf16.gmra.mrb[0].mxu0 %v523
        %v563 = vpop.f32.mrb[0].mxu0
        %v564 = vadd.f32 %v519, %v563
        %v565 = vpop.f32.mrb[0].mxu0
        %v566 = vpop.f32.mrb[0].mxu0
        %v567 = vadd.f32 %v519, %v566
        %v568 = vpop.f32.mrb[0].mxu0
        %569 = vdwg.mxu0
        %v570 = vmax.f32 %v564, 0.0
        %v571 = vmax.f32 %v567, 0.0
        %v572 = vpack.c.bf16 %v571, %v570
        %v573 = vld [vmem:[%s3] sm:$0xf]
        %v574 = vld [vmem:[%s3 + $0x4] sm:$0xf]
        %v575 = vld [vmem:[%s3 + $0x8] sm:$0xf]
        %v576 = vld [vmem:[%s3 + $0xc] sm:$0xf]
        %v577 = vld [vmem:[%s3 + $0x10] sm:$0xf]
        %v578 = vld [vmem:[%s3 + $0x14] sm:$0xf]
        %v579 = vld [vmem:[%s3 + $0x18] sm:$0xf]
        %v580 = vld [vmem:[%s3 + $0x1c] sm:$0xf]
        %v581 = vld [vmem:[%s4] sm:$0x1]
        %v583 = vlaneseq
        %v584 = vshrl.u32 %v583, 7
        %v585 = vsub.s32 0, %v584
        %v586 = vrot.slane %v581, %v585
        %v596 = vunpack.c.l.b16 %v573
        %v597 = vunpack.c.l.b16 %v574
        %v598 = vunpack.c.l.b16 %v575
        %v599 = vunpack.c.l.b16 %v576
        %v600 = vunpack.c.l.b16 %v577
        %v601 = vunpack.c.l.b16 %v578
        %v602 = vunpack.c.l.b16 %v579
        %v603 = vunpack.c.l.b16 %v580
        %v604 = vpack.c.b16 %v597, %v596
        %v605 = vpack.c.b16 %v599, %v598
        %v606 = vpack.c.b16 %v601, %v600
        %v607 = vpack.c.b16 %v603, %v602
        %vm612 = vcmask 523264
        %v614 = vsel %vm612, %v572, 0
        %616 = vmatprep.subr.bf16.mxu0 0
        %617 = vmatpush1.bf16.msra.mxu0 %v604
        %618 = vmatprep.subr.bf16.mxu0 0
        %619 = vmatpush1.bf16.msra.mxu0 %v605
        %620 = vmatprep.subr.bf16.mxu0 0
        %621 = vmatpush1.bf16.msra.mxu0 %v606
        %622 = vmatprep.subr.bf16.mxu0 0
        %623 = vmatpush1.bf16.msra.mxu0 %v607
        %624 = vmatprep.subr.bf16.mxu0 0
        %625 = vmatpush1.bf16.msra.mxu0 0
        %626 = vmatprep.subr.bf16.mxu0 0
        %627 = vmatpush1.bf16.msra.mxu0 0
        %628 = vmatprep.subr.bf16.mxu0 0
        %629 = vmatpush1.bf16.msra.mxu0 0
        %630 = vmatprep.subr.bf16.mxu0 0
        %631 = vmatpush1.bf16.msra.mxu0 0
        %632 = vmatprep.subr.bf16.mxu0 0
        %633 = vmatpush1.bf16.msra.mxu0 0
        %634 = vmatprep.subr.bf16.mxu0 0
        %635 = vmatpush1.bf16.msra.mxu0 0
        %636 = vmatprep.subr.bf16.mxu0 0
        %637 = vmatpush1.bf16.msra.mxu0 0
        %638 = vmatprep.subr.bf16.mxu0 0
        %639 = vmatpush1.bf16.msra.mxu0 0
        %640 = vmatprep.subr.bf16.mxu0 0
        %641 = vmatpush1.bf16.msra.mxu0 0
        %642 = vmatprep.subr.bf16.mxu0 0
        %643 = vmatpush1.bf16.msra.mxu0 0
        %644 = vmatprep.subr.bf16.mxu0 0
        %645 = vmatpush1.bf16.msra.mxu0 0
        %646 = vmatprep.subr.bf16.mxu0 0
        %647 = vmatpush1.bf16.msra.mxu0 0
        %648 = vmatprep.mubr.bf16.mxu0 0
        %649 = vmatmul.mubr.bf16.gmra.mrb[0].mxu0 %v614
        %v650 = vpop.f32.mrb[0].mxu0
        %v651 = vadd.f32 %v586, %v650
        %v652 = vpop.f32.mrb[0].mxu0
        %v653 = vpop.f32.mrb[0].mxu0
        %v654 = vadd.f32 %v586, %v653
        %v655 = vpop.f32.mrb[0].mxu0
        %656 = vdwg.mxu0
        %v657 = vmax.f32 %v651, 0.0
        %v658 = vmax.f32 %v654, 0.0
        %v659 = vpack.c.bf16 %v658, %v657
        %v660 = vld [vmem:[#allocation3] sm:$0xff]
        %v661 = vld [vmem:[#allocation3 + $0x8] sm:$0xff]
        %v662 = vld [vmem:[#allocation3 + $0x10] sm:$0xff]
        %v663 = vld [vmem:[#allocation3 + $0x18] sm:$0xff]
        %v664 = vld [vmem:[#allocation3 + $0x20] sm:$0xff]
        %v665 = vld [vmem:[#allocation3 + $0x28] sm:$0xff]
        %v666 = vld [vmem:[#allocation3 + $0x30] sm:$0xff]
        %v667 = vld [vmem:[#allocation3 + $0x38] sm:$0xff]
        %v668 = vld [vmem:[#allocation3 + $0x40] sm:$0xff]
        %v669 = vld [vmem:[#allocation3 + $0x48] sm:$0xff]
        %v670 = vld [vmem:[#allocation3 + $0x50] sm:$0xff]
        %v671 = vld [vmem:[#allocation3 + $0x58] sm:$0xff]
        %v672 = vld [vmem:[#allocation3 + $0x60] sm:$0xff]
        %v673 = vld [vmem:[#allocation3 + $0x68] sm:$0xff]
        %v674 = vld [vmem:[#allocation3 + $0x70] sm:$0xff]
        %v675 = vld [vmem:[#allocation3 + $0x78] sm:$0xff]
        %v676 = vld [vmem:[#allocation3 + $0x80] sm:$0xff]
        %v677 = vld [vmem:[#allocation3 + $0x88] sm:$0xff]
        %v678 = vld [vmem:[#allocation3 + $0x90] sm:$0xff]
        %v679 = vld [vmem:[#allocation3 + $0x98] sm:$0xff]
        %v680 = vld [vmem:[#allocation3 + $0xa0] sm:$0xff]
        %v681 = vld [vmem:[#allocation3 + $0xa8] sm:$0xff]
        %v682 = vld [vmem:[#allocation3 + $0xb0] sm:$0xff]
        %v683 = vld [vmem:[#allocation3 + $0xb8] sm:$0xff]
        %v684 = vld [vmem:[#allocation3 + $0xc0] sm:$0xff]
        %v685 = vld [vmem:[#allocation3 + $0xc8] sm:$0xff]
        %v686 = vld [vmem:[#allocation3 + $0xd0] sm:$0xff]
        %v687 = vld [vmem:[#allocation3 + $0xd8] sm:$0xff]
        %v688 = vld [vmem:[#allocation3 + $0xe0] sm:$0xff]
        %v689 = vld [vmem:[#allocation3 + $0xe8] sm:$0xff]
        %v690 = vld [vmem:[#allocation3 + $0xf0] sm:$0xff]
        %v691 = vld [vmem:[#allocation3 + $0xf8] sm:$0xff]
        %v692 = vld [vmem:[#allocation3 + $0x100] sm:$0xff]
        %v693 = vld [vmem:[#allocation3 + $0x108] sm:$0xff]
        %v694 = vld [vmem:[#allocation3 + $0x110] sm:$0xff]
        %v695 = vld [vmem:[#allocation3 + $0x118] sm:$0xff]
        %v696 = vld [vmem:[#allocation3 + $0x120] sm:$0xff]
        %v697 = vld [vmem:[#allocation3 + $0x128] sm:$0xff]
        %v698 = vld [vmem:[#allocation3 + $0x130] sm:$0xff]
        %v699 = vld [vmem:[#allocation3 + $0x138] sm:$0xff]
        %v700 = vld [vmem:[#allocation3 + $0x140] sm:$0xff]
        %v701 = vld [vmem:[#allocation3 + $0x148] sm:$0xff]
        %v702 = vld [vmem:[#allocation3 + $0x150] sm:$0xff]
        %v703 = vld [vmem:[#allocation3 + $0x158] sm:$0xff]
        %v704 = vld [vmem:[#allocation3 + $0x160] sm:$0xff]
        %v705 = vld [vmem:[#allocation3 + $0x168] sm:$0xff]
        %v706 = vld [vmem:[#allocation3 + $0x170] sm:$0xff]
        %v707 = vld [vmem:[#allocation3 + $0x178] sm:$0xff]
        %v708 = vld [vmem:[#allocation3 + $0x180] sm:$0xff]
        %v709 = vld [vmem:[#allocation3 + $0x188] sm:$0xff]
        %v710 = vld [vmem:[#allocation3 + $0x190] sm:$0xff]
        %v711 = vld [vmem:[#allocation3 + $0x198] sm:$0xff]
        %v712 = vld [vmem:[#allocation3 + $0x1a0] sm:$0xff]
        %v713 = vld [vmem:[#allocation3 + $0x1a8] sm:$0xff]
        %v714 = vld [vmem:[#allocation3 + $0x1b0] sm:$0xff]
        %v715 = vld [vmem:[#allocation3 + $0x1b8] sm:$0xff]
        %v716 = vld [vmem:[#allocation3 + $0x1c0] sm:$0xff]
        %v717 = vld [vmem:[#allocation3 + $0x1c8] sm:$0xff]
        %v718 = vld [vmem:[#allocation3 + $0x1d0] sm:$0xff]
        %v719 = vld [vmem:[#allocation3 + $0x1d8] sm:$0xff]
        %v720 = vld [vmem:[#allocation3 + $0x1e0] sm:$0xff]
        %v721 = vld [vmem:[#allocation3 + $0x1e8] sm:$0xff]
        %v722 = vld [vmem:[#allocation3 + $0x1f0] sm:$0xff]
        %v723 = vld [vmem:[#allocation3 + $0x1f8] sm:$0xff]
        %v724 = vld [vmem:[%s6] sm:$0xff]
        %v726 = vlaneseq
        %v727 = vshrl.u32 %v726, 7
        %v728 = vsub.s32 0, %v727
        %v729 = vrot.slane %v724, %v728
        %v730 = vlaneseq
        %v731 = vshrl.u32 %v730, 7
        %v732 = vsub.s32 1, %v731
        %v733 = vrot.slane %v724, %v732
        %v734 = vlaneseq
        %v735 = vshrl.u32 %v734, 7
        %v736 = vsub.s32 2, %v735
        %v737 = vrot.slane %v724, %v736
        %v738 = vlaneseq
        %v739 = vshrl.u32 %v738, 7
        %v740 = vsub.s32 3, %v739
        %v741 = vrot.slane %v724, %v740
        %v742 = vlaneseq
        %v743 = vshrl.u32 %v742, 7
        %v744 = vsub.s32 4, %v743
        %v745 = vrot.slane %v724, %v744
        %v746 = vlaneseq
        %v747 = vshrl.u32 %v746, 7
        %v748 = vsub.s32 5, %v747
        %v749 = vrot.slane %v724, %v748
        %v750 = vlaneseq
        %v751 = vshrl.u32 %v750, 7
        %v752 = vsub.s32 6, %v751
        %v753 = vrot.slane %v724, %v752
        %v754 = vlaneseq
        %v755 = vshrl.u32 %v754, 7
        %v756 = vsub.s32 7, %v755
        %v757 = vrot.slane %v724, %v756
        %v830 = vunpack.c.l.b16 %v660
        %v831 = vunpack.c.h.b16 %v660
        %v832 = vunpack.c.l.b16 %v661
        %v833 = vunpack.c.h.b16 %v661
        %v834 = vunpack.c.l.b16 %v662
        %v835 = vunpack.c.h.b16 %v662
        %v836 = vunpack.c.l.b16 %v663
        %v837 = vunpack.c.h.b16 %v663
        %v838 = vunpack.c.l.b16 %v664
        %v839 = vunpack.c.h.b16 %v664
        %v840 = vunpack.c.l.b16 %v665
        %v841 = vunpack.c.h.b16 %v665
        %v842 = vunpack.c.l.b16 %v666
        %v843 = vunpack.c.h.b16 %v666
        %v844 = vunpack.c.l.b16 %v667
        %v845 = vunpack.c.h.b16 %v667
        %v846 = vunpack.c.l.b16 %v668
        %v847 = vunpack.c.h.b16 %v668
        %v848 = vunpack.c.l.b16 %v669
        %v849 = vunpack.c.h.b16 %v669
        %v850 = vunpack.c.l.b16 %v670
        %v851 = vunpack.c.h.b16 %v670
        %v852 = vunpack.c.l.b16 %v671
        %v853 = vunpack.c.h.b16 %v671
        %v854 = vunpack.c.l.b16 %v672
        %v855 = vunpack.c.h.b16 %v672
        %v856 = vunpack.c.l.b16 %v673
        %v857 = vunpack.c.h.b16 %v673
        %v858 = vunpack.c.l.b16 %v674
        %v859 = vunpack.c.h.b16 %v674
        %v860 = vunpack.c.l.b16 %v675
        %v861 = vunpack.c.h.b16 %v675
        %v862 = vunpack.c.l.b16 %v676
        %v863 = vunpack.c.h.b16 %v676
        %v864 = vunpack.c.l.b16 %v677
        %v865 = vunpack.c.h.b16 %v677
        %v866 = vunpack.c.l.b16 %v678
        %v867 = vunpack.c.h.b16 %v678
        %v868 = vunpack.c.l.b16 %v679
        %v869 = vunpack.c.h.b16 %v679
        %v870 = vunpack.c.l.b16 %v680
        %v871 = vunpack.c.h.b16 %v680
        %v872 = vunpack.c.l.b16 %v681
        %v873 = vunpack.c.h.b16 %v681
        %v874 = vunpack.c.l.b16 %v682
        %v875 = vunpack.c.h.b16 %v682
        %v876 = vunpack.c.l.b16 %v683
        %v877 = vunpack.c.h.b16 %v683
        %v878 = vunpack.c.l.b16 %v684
        %v879 = vunpack.c.h.b16 %v684
        %v880 = vunpack.c.l.b16 %v685
        %v881 = vunpack.c.h.b16 %v685
        %v882 = vunpack.c.l.b16 %v686
        %v883 = vunpack.c.h.b16 %v686
        %v884 = vunpack.c.l.b16 %v687
        %v885 = vunpack.c.h.b16 %v687
        %v886 = vunpack.c.l.b16 %v688
        %v887 = vunpack.c.h.b16 %v688
        %v888 = vunpack.c.l.b16 %v689
        %v889 = vunpack.c.h.b16 %v689
        %v890 = vunpack.c.l.b16 %v690
        %v891 = vunpack.c.h.b16 %v690
        %v892 = vunpack.c.l.b16 %v691
        %v893 = vunpack.c.h.b16 %v691
        %v894 = vunpack.c.l.b16 %v692
        %v895 = vunpack.c.h.b16 %v692
        %v896 = vunpack.c.l.b16 %v693
        %v897 = vunpack.c.h.b16 %v693
        %v898 = vunpack.c.l.b16 %v694
        %v899 = vunpack.c.h.b16 %v694
        %v900 = vunpack.c.l.b16 %v695
        %v901 = vunpack.c.h.b16 %v695
        %v902 = vunpack.c.l.b16 %v696
        %v903 = vunpack.c.h.b16 %v696
        %v904 = vunpack.c.l.b16 %v697
        %v905 = vunpack.c.h.b16 %v697
        %v906 = vunpack.c.l.b16 %v698
        %v907 = vunpack.c.h.b16 %v698
        %v908 = vunpack.c.l.b16 %v699
        %v909 = vunpack.c.h.b16 %v699
        %v910 = vunpack.c.l.b16 %v700
        %v911 = vunpack.c.h.b16 %v700
        %v912 = vunpack.c.l.b16 %v701
        %v913 = vunpack.c.h.b16 %v701
        %v914 = vunpack.c.l.b16 %v702
        %v915 = vunpack.c.h.b16 %v702
        %v916 = vunpack.c.l.b16 %v703
        %v917 = vunpack.c.h.b16 %v703
        %v918 = vunpack.c.l.b16 %v704
        %v919 = vunpack.c.h.b16 %v704
        %v920 = vunpack.c.l.b16 %v705
        %v921 = vunpack.c.h.b16 %v705
        %v922 = vunpack.c.l.b16 %v706
        %v923 = vunpack.c.h.b16 %v706
        %v924 = vunpack.c.l.b16 %v707
        %v925 = vunpack.c.h.b16 %v707
        %v926 = vunpack.c.l.b16 %v708
        %v927 = vunpack.c.h.b16 %v708
        %v928 = vunpack.c.l.b16 %v709
        %v929 = vunpack.c.h.b16 %v709
        %v930 = vunpack.c.l.b16 %v710
        %v931 = vunpack.c.h.b16 %v710
        %v932 = vunpack.c.l.b16 %v711
        %v933 = vunpack.c.h.b16 %v711
        %v934 = vunpack.c.l.b16 %v712
        %v935 = vunpack.c.h.b16 %v712
        %v936 = vunpack.c.l.b16 %v713
        %v937 = vunpack.c.h.b16 %v713
        %v938 = vunpack.c.l.b16 %v714
        %v939 = vunpack.c.h.b16 %v714
        %v940 = vunpack.c.l.b16 %v715
        %v941 = vunpack.c.h.b16 %v715
        %v942 = vunpack.c.l.b16 %v716
        %v943 = vunpack.c.h.b16 %v716
        %v944 = vunpack.c.l.b16 %v717
        %v945 = vunpack.c.h.b16 %v717
        %v946 = vunpack.c.l.b16 %v718
        %v947 = vunpack.c.h.b16 %v718
        %v948 = vunpack.c.l.b16 %v719
        %v949 = vunpack.c.h.b16 %v719
        %v950 = vunpack.c.l.b16 %v720
        %v951 = vunpack.c.h.b16 %v720
        %v952 = vunpack.c.l.b16 %v721
        %v953 = vunpack.c.h.b16 %v721
        %v954 = vunpack.c.l.b16 %v722
        %v955 = vunpack.c.h.b16 %v722
        %v956 = vunpack.c.l.b16 %v723
        %v957 = vunpack.c.h.b16 %v723
        %v958 = vpack.c.b16 %v838, %v830
        %v959 = vpack.c.b16 %v839, %v831
        %v960 = vpack.c.b16 %v840, %v832
        %v961 = vpack.c.b16 %v841, %v833
        %v962 = vpack.c.b16 %v842, %v834
        %v963 = vpack.c.b16 %v843, %v835
        %v964 = vpack.c.b16 %v844, %v836
        %v965 = vpack.c.b16 %v845, %v837
        %v966 = vpack.c.b16 %v854, %v846
        %v967 = vpack.c.b16 %v855, %v847
        %v968 = vpack.c.b16 %v856, %v848
        %v969 = vpack.c.b16 %v857, %v849
        %v970 = vpack.c.b16 %v858, %v850
        %v971 = vpack.c.b16 %v859, %v851
        %v972 = vpack.c.b16 %v860, %v852
        %v973 = vpack.c.b16 %v861, %v853
        %v974 = vpack.c.b16 %v870, %v862
        %v975 = vpack.c.b16 %v871, %v863
        %v976 = vpack.c.b16 %v872, %v864
        %v977 = vpack.c.b16 %v873, %v865
        %v978 = vpack.c.b16 %v874, %v866
        %v979 = vpack.c.b16 %v875, %v867
        %v980 = vpack.c.b16 %v876, %v868
        %v981 = vpack.c.b16 %v877, %v869
        %v982 = vpack.c.b16 %v886, %v878
        %v983 = vpack.c.b16 %v887, %v879
        %v984 = vpack.c.b16 %v888, %v880
        %v985 = vpack.c.b16 %v889, %v881
        %v986 = vpack.c.b16 %v890, %v882
        %v987 = vpack.c.b16 %v891, %v883
        %v988 = vpack.c.b16 %v892, %v884
        %v989 = vpack.c.b16 %v893, %v885
        %v990 = vpack.c.b16 %v902, %v894
        %v991 = vpack.c.b16 %v903, %v895
        %v992 = vpack.c.b16 %v904, %v896
        %v993 = vpack.c.b16 %v905, %v897
        %v994 = vpack.c.b16 %v906, %v898
        %v995 = vpack.c.b16 %v907, %v899
        %v996 = vpack.c.b16 %v908, %v900
        %v997 = vpack.c.b16 %v909, %v901
        %v998 = vpack.c.b16 %v918, %v910
        %v999 = vpack.c.b16 %v919, %v911
        %v1000 = vpack.c.b16 %v920, %v912
        %v1001 = vpack.c.b16 %v921, %v913
        %v1002 = vpack.c.b16 %v922, %v914
        %v1003 = vpack.c.b16 %v923, %v915
        %v1004 = vpack.c.b16 %v924, %v916
        %v1005 = vpack.c.b16 %v925, %v917
        %v1006 = vpack.c.b16 %v934, %v926
        %v1007 = vpack.c.b16 %v935, %v927
        %v1008 = vpack.c.b16 %v936, %v928
        %v1009 = vpack.c.b16 %v937, %v929
        %v1010 = vpack.c.b16 %v938, %v930
        %v1011 = vpack.c.b16 %v939, %v931
        %v1012 = vpack.c.b16 %v940, %v932
        %v1013 = vpack.c.b16 %v941, %v933
        %v1014 = vpack.c.b16 %v950, %v942
        %v1015 = vpack.c.b16 %v951, %v943
        %v1016 = vpack.c.b16 %v952, %v944
        %v1017 = vpack.c.b16 %v953, %v945
        %v1018 = vpack.c.b16 %v954, %v946
        %v1019 = vpack.c.b16 %v955, %v947
        %v1020 = vpack.c.b16 %v956, %v948
        %v1021 = vpack.c.b16 %v957, %v949
        %1086 = vmatprep.subr.bf16.mxu0 %v959
        %1087 = vmatpush1.bf16.msra.mxu0 %v958
        %1088 = vmatprep.subr.bf16.mxu0 %v967
        %1089 = vmatpush1.bf16.msra.mxu0 %v966
        %1090 = vmatprep.subr.bf16.mxu0 %v975
        %1091 = vmatpush1.bf16.msra.mxu0 %v974
        %1092 = vmatprep.subr.bf16.mxu0 %v983
        %1093 = vmatpush1.bf16.msra.mxu0 %v982
        %1094 = vmatprep.subr.bf16.mxu0 %v991
        %1095 = vmatpush1.bf16.msra.mxu0 %v990
        %1096 = vmatprep.subr.bf16.mxu0 %v999
        %1097 = vmatpush1.bf16.msra.mxu0 %v998
        %1098 = vmatprep.subr.bf16.mxu0 %v1007
        %1099 = vmatpush1.bf16.msra.mxu0 %v1006
        %1100 = vmatprep.subr.bf16.mxu0 %v1015
        %1101 = vmatpush1.bf16.msra.mxu0 %v1014
        %1102 = vmatprep.subr.bf16.mxu0 0
        %1103 = vmatpush1.bf16.msra.mxu0 0
        %1104 = vmatprep.subr.bf16.mxu0 0
        %1105 = vmatpush1.bf16.msra.mxu0 0
        %1106 = vmatprep.subr.bf16.mxu0 0
        %1107 = vmatpush1.bf16.msra.mxu0 0
        %1108 = vmatprep.subr.bf16.mxu0 0
        %1109 = vmatpush1.bf16.msra.mxu0 0
        %1110 = vmatprep.subr.bf16.mxu0 0
        %1111 = vmatpush1.bf16.msra.mxu0 0
        %1112 = vmatprep.subr.bf16.mxu0 0
        %1113 = vmatpush1.bf16.msra.mxu0 0
        %1114 = vmatprep.subr.bf16.mxu0 0
        %1115 = vmatpush1.bf16.msra.mxu0 0
        %1116 = vmatprep.subr.bf16.mxu0 0
        %1117 = vmatpush1.bf16.msra.mxu0 0
        %1118 = vmatprep.mubr.bf16.mxu0 0
        %1119 = vmatmul.mubr.bf16.gmra.mrb[0].mxu0 %v659
        %v1120 = vpop.f32.mrb[0].mxu0
        %v1121 = vadd.f32 %v729, %v1120
        %v1122 = vpop.f32.mrb[0].mxu0
        %v1123 = vadd.f32 %v733, %v1122
        %v1124 = vpop.f32.mrb[0].mxu0
        %v1125 = vadd.f32 %v729, %v1124
        %v1126 = vpop.f32.mrb[0].mxu0
        %v1127 = vadd.f32 %v733, %v1126
        %1128 = vdwg.mxu0
        %1129 = vmatprep.subr.bf16.mxu0 %v961
        %1130 = vmatpush1.bf16.msra.mxu0 %v960
        %1131 = vmatprep.subr.bf16.mxu0 %v969
        %1132 = vmatpush1.bf16.msra.mxu0 %v968
        %1133 = vmatprep.subr.bf16.mxu0 %v977
        %1134 = vmatpush1.bf16.msra.mxu0 %v976
        %1135 = vmatprep.subr.bf16.mxu0 %v985
        %1136 = vmatpush1.bf16.msra.mxu0 %v984
        %1137 = vmatprep.subr.bf16.mxu0 %v993
        %1138 = vmatpush1.bf16.msra.mxu0 %v992
        %1139 = vmatprep.subr.bf16.mxu0 %v1001
        %1140 = vmatpush1.bf16.msra.mxu0 %v1000
        %1141 = vmatprep.subr.bf16.mxu0 %v1009
        %1142 = vmatpush1.bf16.msra.mxu0 %v1008
        %1143 = vmatprep.subr.bf16.mxu0 %v1017
        %1144 = vmatpush1.bf16.msra.mxu0 %v1016
        %1145 = vmatprep.subr.bf16.mxu0 0
        %1146 = vmatpush1.bf16.msra.mxu0 0
        %1147 = vmatprep.subr.bf16.mxu0 0
        %1148 = vmatpush1.bf16.msra.mxu0 0
        %1149 = vmatprep.subr.bf16.mxu0 0
        %1150 = vmatpush1.bf16.msra.mxu0 0
        %1151 = vmatprep.subr.bf16.mxu0 0
        %1152 = vmatpush1.bf16.msra.mxu0 0
        %1153 = vmatprep.subr.bf16.mxu0 0
        %1154 = vmatpush1.bf16.msra.mxu0 0
        %1155 = vmatprep.subr.bf16.mxu0 0
        %1156 = vmatpush1.bf16.msra.mxu0 0
        %1157 = vmatprep.subr.bf16.mxu0 0
        %1158 = vmatpush1.bf16.msra.mxu0 0
        %1159 = vmatprep.subr.bf16.mxu0 0
        %1160 = vmatpush1.bf16.msra.mxu0 0
        %1161 = vmatprep.mubr.bf16.mxu0 0
        %1162 = vmatmul.mubr.bf16.gmra.mrb[0].mxu0 %v659
        %v1163 = vpop.f32.mrb[0].mxu0
        %v1164 = vadd.f32 %v737, %v1163
        %v1165 = vpop.f32.mrb[0].mxu0
        %v1166 = vadd.f32 %v741, %v1165
        %v1167 = vpop.f32.mrb[0].mxu0
        %v1168 = vadd.f32 %v737, %v1167
        %v1169 = vpop.f32.mrb[0].mxu0
        %v1170 = vadd.f32 %v741, %v1169
        %1171 = vdwg.mxu0
        %1172 = vmatprep.subr.bf16.mxu0 %v963
        %1173 = vmatpush1.bf16.msra.mxu0 %v962
        %1174 = vmatprep.subr.bf16.mxu0 %v971
        %1175 = vmatpush1.bf16.msra.mxu0 %v970
        %1176 = vmatprep.subr.bf16.mxu0 %v979
        %1177 = vmatpush1.bf16.msra.mxu0 %v978
        %1178 = vmatprep.subr.bf16.mxu0 %v987
        %1179 = vmatpush1.bf16.msra.mxu0 %v986
        %1180 = vmatprep.subr.bf16.mxu0 %v995
        %1181 = vmatpush1.bf16.msra.mxu0 %v994
        %1182 = vmatprep.subr.bf16.mxu0 %v1003
        %1183 = vmatpush1.bf16.msra.mxu0 %v1002
        %1184 = vmatprep.subr.bf16.mxu0 %v1011
        %1185 = vmatpush1.bf16.msra.mxu0 %v1010
        %1186 = vmatprep.subr.bf16.mxu0 %v1019
        %1187 = vmatpush1.bf16.msra.mxu0 %v1018
        %1188 = vmatprep.subr.bf16.mxu0 0
        %1189 = vmatpush1.bf16.msra.mxu0 0
        %1190 = vmatprep.subr.bf16.mxu0 0
        %1191 = vmatpush1.bf16.msra.mxu0 0
        %1192 = vmatprep.subr.bf16.mxu0 0
        %1193 = vmatpush1.bf16.msra.mxu0 0
        %1194 = vmatprep.subr.bf16.mxu0 0
        %1195 = vmatpush1.bf16.msra.mxu0 0
        %1196 = vmatprep.subr.bf16.mxu0 0
        %1197 = vmatpush1.bf16.msra.mxu0 0
        %1198 = vmatprep.subr.bf16.mxu0 0
        %1199 = vmatpush1.bf16.msra.mxu0 0
        %1200 = vmatprep.subr.bf16.mxu0 0
        %1201 = vmatpush1.bf16.msra.mxu0 0
        %1202 = vmatprep.subr.bf16.mxu0 0
        %1203 = vmatpush1.bf16.msra.mxu0 0
        %1204 = vmatprep.mubr.bf16.mxu0 0
        %1205 = vmatmul.mubr.bf16.gmra.mrb[0].mxu0 %v659
        %v1206 = vpop.f32.mrb[0].mxu0
        %v1207 = vadd.f32 %v745, %v1206
        %v1208 = vpop.f32.mrb[0].mxu0
        %v1209 = vadd.f32 %v749, %v1208
        %v1210 = vpop.f32.mrb[0].mxu0
        %v1211 = vadd.f32 %v745, %v1210
        %v1212 = vpop.f32.mrb[0].mxu0
        %v1213 = vadd.f32 %v749, %v1212
        %1214 = vdwg.mxu0
        %1215 = vmatprep.subr.bf16.mxu0 %v965
        %1216 = vmatpush1.bf16.msra.mxu0 %v964
        %1217 = vmatprep.subr.bf16.mxu0 %v973
        %1218 = vmatpush1.bf16.msra.mxu0 %v972
        %1219 = vmatprep.subr.bf16.mxu0 %v981
        %1220 = vmatpush1.bf16.msra.mxu0 %v980
        %1221 = vmatprep.subr.bf16.mxu0 %v989
        %1222 = vmatpush1.bf16.msra.mxu0 %v988
        %1223 = vmatprep.subr.bf16.mxu0 %v997
        %1224 = vmatpush1.bf16.msra.mxu0 %v996
        %1225 = vmatprep.subr.bf16.mxu0 %v1005
        %1226 = vmatpush1.bf16.msra.mxu0 %v1004
        %1227 = vmatprep.subr.bf16.mxu0 %v1013
        %1228 = vmatpush1.bf16.msra.mxu0 %v1012
        %1229 = vmatprep.subr.bf16.mxu0 %v1021
        %1230 = vmatpush1.bf16.msra.mxu0 %v1020
        %1231 = vmatprep.subr.bf16.mxu0 0
        %1232 = vmatpush1.bf16.msra.mxu0 0
        %1233 = vmatprep.subr.bf16.mxu0 0
        %1234 = vmatpush1.bf16.msra.mxu0 0
        %1235 = vmatprep.subr.bf16.mxu0 0
        %1236 = vmatpush1.bf16.msra.mxu0 0
        %1237 = vmatprep.subr.bf16.mxu0 0
        %1238 = vmatpush1.bf16.msra.mxu0 0
        %1239 = vmatprep.subr.bf16.mxu0 0
        %1240 = vmatpush1.bf16.msra.mxu0 0
        %1241 = vmatprep.subr.bf16.mxu0 0
        %1242 = vmatpush1.bf16.msra.mxu0 0
        %1243 = vmatprep.subr.bf16.mxu0 0
        %1244 = vmatpush1.bf16.msra.mxu0 0
        %1245 = vmatprep.subr.bf16.mxu0 0
        %1246 = vmatpush1.bf16.msra.mxu0 0
        %1247 = vmatprep.mubr.bf16.mxu0 0
        %1248 = vmatmul.mubr.bf16.gmra.mrb[0].mxu0 %v659
        %v1249 = vpop.f32.mrb[0].mxu0
        %v1250 = vadd.f32 %v753, %v1249
        %v1251 = vpop.f32.mrb[0].mxu0
        %v1252 = vadd.f32 %v757, %v1251
        %v1253 = vpop.f32.mrb[0].mxu0
        %v1254 = vadd.f32 %v753, %v1253
        %v1255 = vpop.f32.mrb[0].mxu0
        %v1256 = vadd.f32 %v757, %v1255
        %1257 = vdwg.mxu0
        %v1258 = vmax.f32 %v1121, 0.0
        %v1259 = vmax.f32 %v1123, 0.0
        %v1260 = vmax.f32 %v1164, 0.0
        %v1261 = vmax.f32 %v1166, 0.0
        %v1262 = vmax.f32 %v1207, 0.0
        %v1263 = vmax.f32 %v1209, 0.0
        %v1264 = vmax.f32 %v1250, 0.0
        %v1265 = vmax.f32 %v1252, 0.0
        %v1266 = vmax.f32 %v1125, 0.0
        %v1267 = vmax.f32 %v1127, 0.0
        %v1268 = vmax.f32 %v1168, 0.0
        %v1269 = vmax.f32 %v1170, 0.0
        %v1270 = vmax.f32 %v1211, 0.0
        %v1271 = vmax.f32 %v1213, 0.0
        %v1272 = vmax.f32 %v1254, 0.0
        %v1273 = vmax.f32 %v1256, 0.0
        %v1274 = vmax.f32 %v1258, %v1266
        %v1275 = vrot.slane %v1274, 4
        %v1276 = vmax.f32 %v1274, %v1275
        %v1277 = vrot.slane %v1276, 2
        %v1278 = vmax.f32 %v1276, %v1277
        %v1279 = vrot.slane %v1278, 1
        %v1280 = vmax.f32 %v1278, %v1279
        %v1281 = vmax.f32 %v1259, %v1267
        %v1282 = vrot.slane %v1281, 4
        %v1283 = vmax.f32 %v1281, %v1282
        %v1284 = vrot.slane %v1283, 2
        %v1285 = vmax.f32 %v1283, %v1284
        %v1286 = vrot.slane %v1285, 1
        %v1287 = vmax.f32 %v1285, %v1286
        %v1288 = vmax.f32 %v1260, %v1268
        %v1289 = vrot.slane %v1288, 4
        %v1290 = vmax.f32 %v1288, %v1289
        %v1291 = vrot.slane %v1290, 2
        %v1292 = vmax.f32 %v1290, %v1291
        %v1293 = vrot.slane %v1292, 1
        %v1294 = vmax.f32 %v1292, %v1293
        %v1295 = vmax.f32 %v1261, %v1269
        %v1296 = vrot.slane %v1295, 4
        %v1297 = vmax.f32 %v1295, %v1296
        %v1298 = vrot.slane %v1297, 2
        %v1299 = vmax.f32 %v1297, %v1298
        %v1300 = vrot.slane %v1299, 1
        %v1301 = vmax.f32 %v1299, %v1300
        %v1302 = vmax.f32 %v1262, %v1270
        %v1303 = vrot.slane %v1302, 4
        %v1304 = vmax.f32 %v1302, %v1303
        %v1305 = vrot.slane %v1304, 2
        %v1306 = vmax.f32 %v1304, %v1305
        %v1307 = vrot.slane %v1306, 1
        %v1308 = vmax.f32 %v1306, %v1307
        %v1309 = vmax.f32 %v1263, %v1271
        %v1310 = vrot.slane %v1309, 4
        %v1311 = vmax.f32 %v1309, %v1310
        %v1312 = vrot.slane %v1311, 2
        %v1313 = vmax.f32 %v1311, %v1312
        %v1314 = vrot.slane %v1313, 1
        %v1315 = vmax.f32 %v1313, %v1314
        %v1316 = vmax.f32 %v1264, %v1272
        %v1317 = vrot.slane %v1316, 4
        %v1318 = vmax.f32 %v1316, %v1317
        %v1319 = vrot.slane %v1318, 2
        %v1320 = vmax.f32 %v1318, %v1319
        %v1321 = vrot.slane %v1320, 1
        %v1322 = vmax.f32 %v1320, %v1321
        %v1323 = vmax.f32 %v1265, %v1273
        %v1324 = vrot.slane %v1323, 4
        %v1325 = vmax.f32 %v1323, %v1324
        %v1326 = vrot.slane %v1325, 2
        %v1327 = vmax.f32 %v1325, %v1326
        %v1328 = vrot.slane %v1327, 1
        %v1329 = vmax.f32 %v1327, %v1328
        %p1330 = scmp.eq.s32.totalorder %s31, 0
        // Predicated region
        $region85: #{pointnet_dense_cls_forward.3} parent=71 // pred_check
          %p1331 = pneg %p1330
        $region86: #{pointnet_dense_cls_forward.3} parent=71 // pred_check_branch
          %1333 = sbr.rel (%p1331) target = $region88
        $region87: #{pointnet_dense_cls_forward.3} parent=71 // pred_region
          %v1342 = vcombine.low %v1280, %v1287
          %v1343 = vcombine.low %v1294, %v1301
          %v1344 = vcombine.low %v1308, %v1315
          %v1345 = vcombine.low %v1322, %v1329
          %v1347 = vunpack.c.l.s4 1966171168
          %v1348 = vunpack.c.0.s8 %v1347
          %v1349 = vlaneseq
          %v1350 = vshrl.u32 %v1349, 7
          %v1351 = vsub.s32 %v1348, %v1350
          %v1352 = vrot.slane %v1342, %v1351
          %v1354 = vunpack.c.l.s4 1966171168
          %v1355 = vunpack.c.0.s8 %v1354
          %v1356 = vlaneseq
          %v1357 = vshrl.u32 %v1356, 7
          %v1358 = vsub.s32 %v1355, %v1357
          %v1359 = vrot.slane %v1343, %v1358
          %v1361 = vunpack.c.l.s4 1966171168
          %v1362 = vunpack.c.0.s8 %v1361
          %v1363 = vlaneseq
          %v1364 = vshrl.u32 %v1363, 7
          %v1365 = vsub.s32 %v1362, %v1364
          %v1366 = vrot.slane %v1344, %v1365
          %v1368 = vunpack.c.l.s4 1966171168
          %v1369 = vunpack.c.0.s8 %v1368
          %v1370 = vlaneseq
          %v1371 = vshrl.u32 %v1370, 7
          %v1372 = vsub.s32 %v1369, %v1371
          %v1373 = vrot.slane %v1345, %v1372
          %v1374 = vcombine.low %v1352, %v1359
          %v1375 = vcombine.low %v1366, %v1373
          %v1377 = vunpack.c.l.s4 1966171168
          %v1378 = vunpack.c.0.s8 %v1377
          %v1379 = vlaneseq
          %v1380 = vshrl.u32 %v1379, 7
          %v1381 = vsub.s32 %v1378, %v1380
          %v1382 = vrot.slane %v1374, %v1381
          %v1384 = vunpack.c.l.s4 1966171168
          %v1385 = vunpack.c.0.s8 %v1384
          %v1386 = vlaneseq
          %v1387 = vshrl.u32 %v1386, 7
          %v1388 = vsub.s32 %v1385, %v1387
          %v1389 = vrot.slane %v1375, %v1388
          %v1390 = vcombine.low %v1382, %v1389
          %1392 = vst [vmem:[#allocation2] sm:$0xff] %v1390
        $region88: #{pointnet_dense_cls_forward.3} parent=71 // pred_fallthru
          _
        %p1393 = scmp.gt.s32.totalorder %s31, 0
        // Predicated region
        $region89: #{pointnet_dense_cls_forward.3} parent=71 // pred_check
          %p1394 = pneg %p1393
        $region90: #{pointnet_dense_cls_forward.3} parent=71 // pred_check_branch
          %1396 = sbr.rel (%p1394) target = $region92
        $region91: #{pointnet_dense_cls_forward.3} parent=71 // pred_region
          %v1397 = vld [vmem:[#allocation2] sm:$0xff]
          %v1406 = vcombine.low %v1280, %v1287
          %v1407 = vcombine.low %v1294, %v1301
          %v1408 = vcombine.low %v1308, %v1315
          %v1409 = vcombine.low %v1322, %v1329
          %v1411 = vunpack.c.l.s4 1966171168
          %v1412 = vunpack.c.0.s8 %v1411
          %v1413 = vlaneseq
          %v1414 = vshrl.u32 %v1413, 7
          %v1415 = vsub.s32 %v1412, %v1414
          %v1416 = vrot.slane %v1406, %v1415
          %v1418 = vunpack.c.l.s4 1966171168
          %v1419 = vunpack.c.0.s8 %v1418
          %v1420 = vlaneseq
          %v1421 = vshrl.u32 %v1420, 7
          %v1422 = vsub.s32 %v1419, %v1421
          %v1423 = vrot.slane %v1407, %v1422
          %v1425 = vunpack.c.l.s4 1966171168
          %v1426 = vunpack.c.0.s8 %v1425
          %v1427 = vlaneseq
          %v1428 = vshrl.u32 %v1427, 7
          %v1429 = vsub.s32 %v1426, %v1428
          %v1430 = vrot.slane %v1408, %v1429
          %v1432 = vunpack.c.l.s4 1966171168
          %v1433 = vunpack.c.0.s8 %v1432
          %v1434 = vlaneseq
          %v1435 = vshrl.u32 %v1434, 7
          %v1436 = vsub.s32 %v1433, %v1435
          %v1437 = vrot.slane %v1409, %v1436
          %v1438 = vcombine.low %v1416, %v1423
          %v1439 = vcombine.low %v1430, %v1437
          %v1441 = vunpack.c.l.s4 1966171168
          %v1442 = vunpack.c.0.s8 %v1441
          %v1443 = vlaneseq
          %v1444 = vshrl.u32 %v1443, 7
          %v1445 = vsub.s32 %v1442, %v1444
          %v1446 = vrot.slane %v1438, %v1445
          %v1448 = vunpack.c.l.s4 1966171168
          %v1449 = vunpack.c.0.s8 %v1448
          %v1450 = vlaneseq
          %v1451 = vshrl.u32 %v1450, 7
          %v1452 = vsub.s32 %v1449, %v1451
          %v1453 = vrot.slane %v1439, %v1452
          %v1454 = vcombine.low %v1446, %v1453
          %v1456 = vmax.f32 %v1397, %v1454
          %1457 = vst [vmem:[#allocation2] sm:$0xff] %v1456
        $region92: #{pointnet_dense_cls_forward.3} parent=71 // pred_fallthru
          _
        // Predicated region
        $region93: #{pointnet_dense_cls_forward.3} parent=71 // pred_check
          %p1458 = pneg %p1330
        $region94: #{pointnet_dense_cls_forward.3} parent=71 // pred_check_branch
          %1460 = sbr.rel (%p1458) target = $region96
        $region95: #{pointnet_dense_cls_forward.3} parent=71 // pred_region
          %v1461 = vld [vmem:[#allocation2] sm:$0xff]
          %v1463 = vlaneseq
          %v1464 = vshrl.u32 %v1463, 7
          %v1465 = vsub.s32 0, %v1464
          %v1466 = vrot.slane %v1461, %v1465
          %v1467 = vlaneseq
          %v1468 = vshrl.u32 %v1467, 7
          %v1469 = vsub.s32 1, %v1468
          %v1470 = vrot.slane %v1461, %v1469
          %v1471 = vlaneseq
          %v1472 = vshrl.u32 %v1471, 7
          %v1473 = vsub.s32 2, %v1472
          %v1474 = vrot.slane %v1461, %v1473
          %v1475 = vlaneseq
          %v1476 = vshrl.u32 %v1475, 7
          %v1477 = vsub.s32 3, %v1476
          %v1478 = vrot.slane %v1461, %v1477
          %v1479 = vlaneseq
          %v1480 = vshrl.u32 %v1479, 7
          %v1481 = vsub.s32 4, %v1480
          %v1482 = vrot.slane %v1461, %v1481
          %v1483 = vlaneseq
          %v1484 = vshrl.u32 %v1483, 7
          %v1485 = vsub.s32 5, %v1484
          %v1486 = vrot.slane %v1461, %v1485
          %v1487 = vlaneseq
          %v1488 = vshrl.u32 %v1487, 7
          %v1489 = vsub.s32 6, %v1488
          %v1490 = vrot.slane %v1461, %v1489
          %v1491 = vlaneseq
          %v1492 = vshrl.u32 %v1491, 7
          %v1493 = vsub.s32 7, %v1492
          %v1494 = vrot.slane %v1461, %v1493
          %v1503 = vpack.c.bf16 %v1466, %v1466
          %v1504 = vpack.c.bf16 %v1470, %v1470
          %v1505 = vpack.c.bf16 %v1474, %v1474
          %v1506 = vpack.c.bf16 %v1478, %v1478
          %v1507 = vpack.c.bf16 %v1482, %v1482
          %v1508 = vpack.c.bf16 %v1486, %v1486
          %v1509 = vpack.c.bf16 %v1490, %v1490
          %v1510 = vpack.c.bf16 %v1494, %v1494
          %v1511 = vld [vmem:[#allocation5] sm:$0xff]
          %v1512 = vld [vmem:[#allocation5 + $0x8] sm:$0xff]
          %v1513 = vld [vmem:[#allocation5 + $0x10] sm:$0xff]
          %v1514 = vld [vmem:[#allocation5 + $0x18] sm:$0xff]
          %v1515 = vld [vmem:[#allocation5 + $0x20] sm:$0xff]
          %v1516 = vld [vmem:[#allocation5 + $0x28] sm:$0xff]
          %v1517 = vld [vmem:[#allocation5 + $0x30] sm:$0xff]
          %v1518 = vld [vmem:[#allocation5 + $0x38] sm:$0xff]
          %v1519 = vld [vmem:[#allocation5 + $0x40] sm:$0xff]
          %v1520 = vld [vmem:[#allocation5 + $0x48] sm:$0xff]
          %v1521 = vld [vmem:[#allocation5 + $0x50] sm:$0xff]
          %v1522 = vld [vmem:[#allocation5 + $0x58] sm:$0xff]
          %v1523 = vld [vmem:[#allocation5 + $0x60] sm:$0xff]
          %v1524 = vld [vmem:[#allocation5 + $0x68] sm:$0xff]
          %v1525 = vld [vmem:[#allocation5 + $0x70] sm:$0xff]
          %v1526 = vld [vmem:[#allocation5 + $0x78] sm:$0xff]
          %v1527 = vld [vmem:[#allocation5 + $0x80] sm:$0xff]
          %v1528 = vld [vmem:[#allocation5 + $0x88] sm:$0xff]
          %v1529 = vld [vmem:[#allocation5 + $0x90] sm:$0xff]
          %v1530 = vld [vmem:[#allocation5 + $0x98] sm:$0xff]
          %v1531 = vld [vmem:[#allocation5 + $0xa0] sm:$0xff]
          %v1532 = vld [vmem:[#allocation5 + $0xa8] sm:$0xff]
          %v1533 = vld [vmem:[#allocation5 + $0xb0] sm:$0xff]
          %v1534 = vld [vmem:[#allocation5 + $0xb8] sm:$0xff]
          %v1535 = vld [vmem:[#allocation5 + $0xc0] sm:$0xff]
          %v1536 = vld [vmem:[#allocation5 + $0xc8] sm:$0xff]
          %v1537 = vld [vmem:[#allocation5 + $0xd0] sm:$0xff]
          %v1538 = vld [vmem:[#allocation5 + $0xd8] sm:$0xff]
          %v1539 = vld [vmem:[#allocation5 + $0xe0] sm:$0xff]
          %v1540 = vld [vmem:[#allocation5 + $0xe8] sm:$0xff]
          %v1541 = vld [vmem:[#allocation5 + $0xf0] sm:$0xff]
          %v1542 = vld [vmem:[#allocation5 + $0xf8] sm:$0xff]
          %v1543 = vld [vmem:[#allocation5 + $0x100] sm:$0xff]
          %v1544 = vld [vmem:[#allocation5 + $0x108] sm:$0xff]
          %v1545 = vld [vmem:[#allocation5 + $0x110] sm:$0xff]
          %v1546 = vld [vmem:[#allocation5 + $0x118] sm:$0xff]
          %v1547 = vld [vmem:[#allocation5 + $0x120] sm:$0xff]
          %v1548 = vld [vmem:[#allocation5 + $0x128] sm:$0xff]
          %v1549 = vld [vmem:[#allocation5 + $0x130] sm:$0xff]
          %v1550 = vld [vmem:[#allocation5 + $0x138] sm:$0xff]
          %v1551 = vld [vmem:[#allocation5 + $0x140] sm:$0xff]
          %v1552 = vld [vmem:[#allocation5 + $0x148] sm:$0xff]
          %v1553 = vld [vmem:[#allocation5 + $0x150] sm:$0xff]
          %v1554 = vld [vmem:[#allocation5 + $0x158] sm:$0xff]
          %v1555 = vld [vmem:[#allocation5 + $0x160] sm:$0xff]
          %v1556 = vld [vmem:[#allocation5 + $0x168] sm:$0xff]
          %v1557 = vld [vmem:[#allocation5 + $0x170] sm:$0xff]
          %v1558 = vld [vmem:[#allocation5 + $0x178] sm:$0xff]
          %v1559 = vld [vmem:[#allocation5 + $0x180] sm:$0xff]
          %v1560 = vld [vmem:[#allocation5 + $0x188] sm:$0xff]
          %v1561 = vld [vmem:[#allocation5 + $0x190] sm:$0xff]
          %v1562 = vld [vmem:[#allocation5 + $0x198] sm:$0xff]
          %v1563 = vld [vmem:[#allocation5 + $0x1a0] sm:$0xff]
          %v1564 = vld [vmem:[#allocation5 + $0x1a8] sm:$0xff]
          %v1565 = vld [vmem:[#allocation5 + $0x1b0] sm:$0xff]
          %v1566 = vld [vmem:[#allocation5 + $0x1b8] sm:$0xff]
          %v1567 = vld [vmem:[#allocation5 + $0x1c0] sm:$0xff]
          %v1568 = vld [vmem:[#allocation5 + $0x1c8] sm:$0xff]
          %v1569 = vld [vmem:[#allocation5 + $0x1d0] sm:$0xff]
          %v1570 = vld [vmem:[#allocation5 + $0x1d8] sm:$0xff]
          %v1571 = vld [vmem:[#allocation5 + $0x1e0] sm:$0xff]
          %v1572 = vld [vmem:[#allocation5 + $0x1e8] sm:$0xff]
          %v1573 = vld [vmem:[#allocation5 + $0x1f0] sm:$0xff]
          %v1574 = vld [vmem:[#allocation5 + $0x1f8] sm:$0xff]
          %v1575 = vld [vmem:[#allocation5 + $0x200] sm:$0xff]
          %v1576 = vld [vmem:[#allocation5 + $0x208] sm:$0xff]
          %v1577 = vld [vmem:[#allocation5 + $0x210] sm:$0xff]
          %v1578 = vld [vmem:[#allocation5 + $0x218] sm:$0xff]
          %v1579 = vld [vmem:[#allocation5 + $0x220] sm:$0xff]
          %v1580 = vld [vmem:[#allocation5 + $0x228] sm:$0xff]
          %v1581 = vld [vmem:[#allocation5 + $0x230] sm:$0xff]
          %v1582 = vld [vmem:[#allocation5 + $0x238] sm:$0xff]
          %v1583 = vld [vmem:[#allocation5 + $0x240] sm:$0xff]
          %v1584 = vld [vmem:[#allocation5 + $0x248] sm:$0xff]
          %v1585 = vld [vmem:[#allocation5 + $0x250] sm:$0xff]
          %v1586 = vld [vmem:[#allocation5 + $0x258] sm:$0xff]
          %v1587 = vld [vmem:[#allocation5 + $0x260] sm:$0xff]
          %v1588 = vld [vmem:[#allocation5 + $0x268] sm:$0xff]
          %v1589 = vld [vmem:[#allocation5 + $0x270] sm:$0xff]
          %v1590 = vld [vmem:[#allocation5 + $0x278] sm:$0xff]
          %v1591 = vld [vmem:[#allocation5 + $0x280] sm:$0xff]
          %v1592 = vld [vmem:[#allocation5 + $0x288] sm:$0xff]
          %v1593 = vld [vmem:[#allocation5 + $0x290] sm:$0xff]
          %v1594 = vld [vmem:[#allocation5 + $0x298] sm:$0xff]
          %v1595 = vld [vmem:[#allocation5 + $0x2a0] sm:$0xff]
          %v1596 = vld [vmem:[#allocation5 + $0x2a8] sm:$0xff]
          %v1597 = vld [vmem:[#allocation5 + $0x2b0] sm:$0xff]
          %v1598 = vld [vmem:[#allocation5 + $0x2b8] sm:$0xff]
          %v1599 = vld [vmem:[#allocation5 + $0x2c0] sm:$0xff]
          %v1600 = vld [vmem:[#allocation5 + $0x2c8] sm:$0xff]
          %v1601 = vld [vmem:[#allocation5 + $0x2d0] sm:$0xff]
          %v1602 = vld [vmem:[#allocation5 + $0x2d8] sm:$0xff]
          %v1603 = vld [vmem:[#allocation5 + $0x2e0] sm:$0xff]
          %v1604 = vld [vmem:[#allocation5 + $0x2e8] sm:$0xff]
          %v1605 = vld [vmem:[#allocation5 + $0x2f0] sm:$0xff]
          %v1606 = vld [vmem:[#allocation5 + $0x2f8] sm:$0xff]
          %v1607 = vld [vmem:[#allocation5 + $0x300] sm:$0xff]
          %v1608 = vld [vmem:[#allocation5 + $0x308] sm:$0xff]
          %v1609 = vld [vmem:[#allocation5 + $0x310] sm:$0xff]
          %v1610 = vld [vmem:[#allocation5 + $0x318] sm:$0xff]
          %v1611 = vld [vmem:[#allocation5 + $0x320] sm:$0xff]
          %v1612 = vld [vmem:[#allocation5 + $0x328] sm:$0xff]
          %v1613 = vld [vmem:[#allocation5 + $0x330] sm:$0xff]
          %v1614 = vld [vmem:[#allocation5 + $0x338] sm:$0xff]
          %v1615 = vld [vmem:[#allocation5 + $0x340] sm:$0xff]
          %v1616 = vld [vmem:[#allocation5 + $0x348] sm:$0xff]
          %v1617 = vld [vmem:[#allocation5 + $0x350] sm:$0xff]
          %v1618 = vld [vmem:[#allocation5 + $0x358] sm:$0xff]
          %v1619 = vld [vmem:[#allocation5 + $0x360] sm:$0xff]
          %v1620 = vld [vmem:[#allocation5 + $0x368] sm:$0xff]
          %v1621 = vld [vmem:[#allocation5 + $0x370] sm:$0xff]
          %v1622 = vld [vmem:[#allocation5 + $0x378] sm:$0xff]
          %v1623 = vld [vmem:[#allocation5 + $0x380] sm:$0xff]
          %v1624 = vld [vmem:[#allocation5 + $0x388] sm:$0xff]
          %v1625 = vld [vmem:[#allocation5 + $0x390] sm:$0xff]
          %v1626 = vld [vmem:[#allocation5 + $0x398] sm:$0xff]
          %v1627 = vld [vmem:[#allocation5 + $0x3a0] sm:$0xff]
          %v1628 = vld [vmem:[#allocation5 + $0x3a8] sm:$0xff]
          %v1629 = vld [vmem:[#allocation5 + $0x3b0] sm:$0xff]
          %v1630 = vld [vmem:[#allocation5 + $0x3b8] sm:$0xff]
          %v1631 = vld [vmem:[#allocation5 + $0x3c0] sm:$0xff]
          %v1632 = vld [vmem:[#allocation5 + $0x3c8] sm:$0xff]
          %v1633 = vld [vmem:[#allocation5 + $0x3d0] sm:$0xff]
          %v1634 = vld [vmem:[#allocation5 + $0x3d8] sm:$0xff]
          %v1635 = vld [vmem:[#allocation5 + $0x3e0] sm:$0xff]
          %v1636 = vld [vmem:[#allocation5 + $0x3e8] sm:$0xff]
          %v1637 = vld [vmem:[#allocation5 + $0x3f0] sm:$0xff]
          %v1638 = vld [vmem:[#allocation5 + $0x3f8] sm:$0xff]
          %v1639 = vld [vmem:[#allocation5 + $0x400] sm:$0xff]
          %v1640 = vld [vmem:[#allocation5 + $0x408] sm:$0xff]
          %v1641 = vld [vmem:[#allocation5 + $0x410] sm:$0xff]
          %v1642 = vld [vmem:[#allocation5 + $0x418] sm:$0xff]
          %v1643 = vld [vmem:[#allocation5 + $0x420] sm:$0xff]
          %v1644 = vld [vmem:[#allocation5 + $0x428] sm:$0xff]
          %v1645 = vld [vmem:[#allocation5 + $0x430] sm:$0xff]
          %v1646 = vld [vmem:[#allocation5 + $0x438] sm:$0xff]
          %v1647 = vld [vmem:[#allocation5 + $0x440] sm:$0xff]
          %v1648 = vld [vmem:[#allocation5 + $0x448] sm:$0xff]
          %v1649 = vld [vmem:[#allocation5 + $0x450] sm:$0xff]
          %v1650 = vld [vmem:[#allocation5 + $0x458] sm:$0xff]
          %v1651 = vld [vmem:[#allocation5 + $0x460] sm:$0xff]
          %v1652 = vld [vmem:[#allocation5 + $0x468] sm:$0xff]
          %v1653 = vld [vmem:[#allocation5 + $0x470] sm:$0xff]
          %v1654 = vld [vmem:[#allocation5 + $0x478] sm:$0xff]
          %v1655 = vld [vmem:[#allocation5 + $0x480] sm:$0xff]
          %v1656 = vld [vmem:[#allocation5 + $0x488] sm:$0xff]
          %v1657 = vld [vmem:[#allocation5 + $0x490] sm:$0xff]
          %v1658 = vld [vmem:[#allocation5 + $0x498] sm:$0xff]
          %v1659 = vld [vmem:[#allocation5 + $0x4a0] sm:$0xff]
          %v1660 = vld [vmem:[#allocation5 + $0x4a8] sm:$0xff]
          %v1661 = vld [vmem:[#allocation5 + $0x4b0] sm:$0xff]
          %v1662 = vld [vmem:[#allocation5 + $0x4b8] sm:$0xff]
          %v1663 = vld [vmem:[#allocation5 + $0x4c0] sm:$0xff]
          %v1664 = vld [vmem:[#allocation5 + $0x4c8] sm:$0xff]
          %v1665 = vld [vmem:[#allocation5 + $0x4d0] sm:$0xff]
          %v1666 = vld [vmem:[#allocation5 + $0x4d8] sm:$0xff]
          %v1667 = vld [vmem:[#allocation5 + $0x4e0] sm:$0xff]
          %v1668 = vld [vmem:[#allocation5 + $0x4e8] sm:$0xff]
          %v1669 = vld [vmem:[#allocation5 + $0x4f0] sm:$0xff]
          %v1670 = vld [vmem:[#allocation5 + $0x4f8] sm:$0xff]
          %v1671 = vld [vmem:[#allocation5 + $0x500] sm:$0xff]
          %v1672 = vld [vmem:[#allocation5 + $0x508] sm:$0xff]
          %v1673 = vld [vmem:[#allocation5 + $0x510] sm:$0xff]
          %v1674 = vld [vmem:[#allocation5 + $0x518] sm:$0xff]
          %v1675 = vld [vmem:[#allocation5 + $0x520] sm:$0xff]
          %v1676 = vld [vmem:[#allocation5 + $0x528] sm:$0xff]
          %v1677 = vld [vmem:[#allocation5 + $0x530] sm:$0xff]
          %v1678 = vld [vmem:[#allocation5 + $0x538] sm:$0xff]
          %v1679 = vld [vmem:[#allocation5 + $0x540] sm:$0xff]
          %v1680 = vld [vmem:[#allocation5 + $0x548] sm:$0xff]
          %v1681 = vld [vmem:[#allocation5 + $0x550] sm:$0xff]
          %v1682 = vld [vmem:[#allocation5 + $0x558] sm:$0xff]
          %v1683 = vld [vmem:[#allocation5 + $0x560] sm:$0xff]
          %v1684 = vld [vmem:[#allocation5 + $0x568] sm:$0xff]
          %v1685 = vld [vmem:[#allocation5 + $0x570] sm:$0xff]
          %v1686 = vld [vmem:[#allocation5 + $0x578] sm:$0xff]
          %v1687 = vld [vmem:[#allocation5 + $0x580] sm:$0xff]
          %v1688 = vld [vmem:[#allocation5 + $0x588] sm:$0xff]
          %v1689 = vld [vmem:[#allocation5 + $0x590] sm:$0xff]
          %v1690 = vld [vmem:[#allocation5 + $0x598] sm:$0xff]
          %v1691 = vld [vmem:[#allocation5 + $0x5a0] sm:$0xff]
          %v1692 = vld [vmem:[#allocation5 + $0x5a8] sm:$0xff]
          %v1693 = vld [vmem:[#allocation5 + $0x5b0] sm:$0xff]
          %v1694 = vld [vmem:[#allocation5 + $0x5b8] sm:$0xff]
          %v1695 = vld [vmem:[#allocation5 + $0x5c0] sm:$0xff]
          %v1696 = vld [vmem:[#allocation5 + $0x5c8] sm:$0xff]
          %v1697 = vld [vmem:[#allocation5 + $0x5d0] sm:$0xff]
          %v1698 = vld [vmem:[#allocation5 + $0x5d8] sm:$0xff]
          %v1699 = vld [vmem:[#allocation5 + $0x5e0] sm:$0xff]
          %v1700 = vld [vmem:[#allocation5 + $0x5e8] sm:$0xff]
          %v1701 = vld [vmem:[#allocation5 + $0x5f0] sm:$0xff]
          %v1702 = vld [vmem:[#allocation5 + $0x5f8] sm:$0xff]
          %v1703 = vld [vmem:[#allocation5 + $0x600] sm:$0xff]
          %v1704 = vld [vmem:[#allocation5 + $0x608] sm:$0xff]
          %v1705 = vld [vmem:[#allocation5 + $0x610] sm:$0xff]
          %v1706 = vld [vmem:[#allocation5 + $0x618] sm:$0xff]
          %v1707 = vld [vmem:[#allocation5 + $0x620] sm:$0xff]
          %v1708 = vld [vmem:[#allocation5 + $0x628] sm:$0xff]
          %v1709 = vld [vmem:[#allocation5 + $0x630] sm:$0xff]
          %v1710 = vld [vmem:[#allocation5 + $0x638] sm:$0xff]
          %v1711 = vld [vmem:[#allocation5 + $0x640] sm:$0xff]
          %v1712 = vld [vmem:[#allocation5 + $0x648] sm:$0xff]
          %v1713 = vld [vmem:[#allocation5 + $0x650] sm:$0xff]
          %v1714 = vld [vmem:[#allocation5 + $0x658] sm:$0xff]
          %v1715 = vld [vmem:[#allocation5 + $0x660] sm:$0xff]
          %v1716 = vld [vmem:[#allocation5 + $0x668] sm:$0xff]
          %v1717 = vld [vmem:[#allocation5 + $0x670] sm:$0xff]
          %v1718 = vld [vmem:[#allocation5 + $0x678] sm:$0xff]
          %v1719 = vld [vmem:[#allocation5 + $0x680] sm:$0xff]
          %v1720 = vld [vmem:[#allocation5 + $0x688] sm:$0xff]
          %v1721 = vld [vmem:[#allocation5 + $0x690] sm:$0xff]
          %v1722 = vld [vmem:[#allocation5 + $0x698] sm:$0xff]
          %v1723 = vld [vmem:[#allocation5 + $0x6a0] sm:$0xff]
          %v1724 = vld [vmem:[#allocation5 + $0x6a8] sm:$0xff]
          %v1725 = vld [vmem:[#allocation5 + $0x6b0] sm:$0xff]
          %v1726 = vld [vmem:[#allocation5 + $0x6b8] sm:$0xff]
          %v1727 = vld [vmem:[#allocation5 + $0x6c0] sm:$0xff]
          %v1728 = vld [vmem:[#allocation5 + $0x6c8] sm:$0xff]
          %v1729 = vld [vmem:[#allocation5 + $0x6d0] sm:$0xff]
          %v1730 = vld [vmem:[#allocation5 + $0x6d8] sm:$0xff]
          %v1731 = vld [vmem:[#allocation5 + $0x6e0] sm:$0xff]
          %v1732 = vld [vmem:[#allocation5 + $0x6e8] sm:$0xff]
          %v1733 = vld [vmem:[#allocation5 + $0x6f0] sm:$0xff]
          %v1734 = vld [vmem:[#allocation5 + $0x6f8] sm:$0xff]
          %v1735 = vld [vmem:[#allocation5 + $0x700] sm:$0xff]
          %v1736 = vld [vmem:[#allocation5 + $0x708] sm:$0xff]
          %v1737 = vld [vmem:[#allocation5 + $0x710] sm:$0xff]
          %v1738 = vld [vmem:[#allocation5 + $0x718] sm:$0xff]
          %v1739 = vld [vmem:[#allocation5 + $0x720] sm:$0xff]
          %v1740 = vld [vmem:[#allocation5 + $0x728] sm:$0xff]
          %v1741 = vld [vmem:[#allocation5 + $0x730] sm:$0xff]
          %v1742 = vld [vmem:[#allocation5 + $0x738] sm:$0xff]
          %v1743 = vld [vmem:[#allocation5 + $0x740] sm:$0xff]
          %v1744 = vld [vmem:[#allocation5 + $0x748] sm:$0xff]
          %v1745 = vld [vmem:[#allocation5 + $0x750] sm:$0xff]
          %v1746 = vld [vmem:[#allocation5 + $0x758] sm:$0xff]
          %v1747 = vld [vmem:[#allocation5 + $0x760] sm:$0xff]
          %v1748 = vld [vmem:[#allocation5 + $0x768] sm:$0xff]
          %v1749 = vld [vmem:[#allocation5 + $0x770] sm:$0xff]
          %v1750 = vld [vmem:[#allocation5 + $0x778] sm:$0xff]
          %v1751 = vld [vmem:[#allocation5 + $0x780] sm:$0xff]
          %v1752 = vld [vmem:[#allocation5 + $0x788] sm:$0xff]
          %v1753 = vld [vmem:[#allocation5 + $0x790] sm:$0xff]
          %v1754 = vld [vmem:[#allocation5 + $0x798] sm:$0xff]
          %v1755 = vld [vmem:[#allocation5 + $0x7a0] sm:$0xff]
          %v1756 = vld [vmem:[#allocation5 + $0x7a8] sm:$0xff]
          %v1757 = vld [vmem:[#allocation5 + $0x7b0] sm:$0xff]
          %v1758 = vld [vmem:[#allocation5 + $0x7b8] sm:$0xff]
          %v1759 = vld [vmem:[#allocation5 + $0x7c0] sm:$0xff]
          %v1760 = vld [vmem:[#allocation5 + $0x7c8] sm:$0xff]
          %v1761 = vld [vmem:[#allocation5 + $0x7d0] sm:$0xff]
          %v1762 = vld [vmem:[#allocation5 + $0x7d8] sm:$0xff]
          %v1763 = vld [vmem:[#allocation5 + $0x7e0] sm:$0xff]
          %v1764 = vld [vmem:[#allocation5 + $0x7e8] sm:$0xff]
          %v1765 = vld [vmem:[#allocation5 + $0x7f0] sm:$0xff]
          %v1766 = vld [vmem:[#allocation5 + $0x7f8] sm:$0xff]
          %v1767 = vld [vmem:[%s8] sm:$0xf]
          %v2024 = vunpack.c.l.b16 %v1511
          %v2025 = vunpack.c.h.b16 %v1511
          %v2026 = vunpack.c.l.b16 %v1512
          %v2027 = vunpack.c.h.b16 %v1512
          %v2028 = vunpack.c.l.b16 %v1513
          %v2029 = vunpack.c.h.b16 %v1513
          %v2030 = vunpack.c.l.b16 %v1514
          %v2031 = vunpack.c.h.b16 %v1514
          %v2032 = vunpack.c.l.b16 %v1515
          %v2033 = vunpack.c.h.b16 %v1515
          %v2034 = vunpack.c.l.b16 %v1516
          %v2035 = vunpack.c.h.b16 %v1516
          %v2036 = vunpack.c.l.b16 %v1517
          %v2037 = vunpack.c.h.b16 %v1517
          %v2038 = vunpack.c.l.b16 %v1518
          %v2039 = vunpack.c.h.b16 %v1518
          %v2040 = vunpack.c.l.b16 %v1519
          %v2041 = vunpack.c.h.b16 %v1519
          %v2042 = vunpack.c.l.b16 %v1520
          %v2043 = vunpack.c.h.b16 %v1520
          %v2044 = vunpack.c.l.b16 %v1521
          %v2045 = vunpack.c.h.b16 %v1521
          %v2046 = vunpack.c.l.b16 %v1522
          %v2047 = vunpack.c.h.b16 %v1522
          %v2048 = vunpack.c.l.b16 %v1523
          %v2049 = vunpack.c.h.b16 %v1523
          %v2050 = vunpack.c.l.b16 %v1524
          %v2051 = vunpack.c.h.b16 %v1524
          %v2052 = vunpack.c.l.b16 %v1525
          %v2053 = vunpack.c.h.b16 %v1525
          %v2054 = vunpack.c.l.b16 %v1526
          %v2055 = vunpack.c.h.b16 %v1526
          %v2056 = vunpack.c.l.b16 %v1527
          %v2057 = vunpack.c.h.b16 %v1527
          %v2058 = vunpack.c.l.b16 %v1528
          %v2059 = vunpack.c.h.b16 %v1528
          %v2060 = vunpack.c.l.b16 %v1529
          %v2061 = vunpack.c.h.b16 %v1529
          %v2062 = vunpack.c.l.b16 %v1530
          %v2063 = vunpack.c.h.b16 %v1530
          %v2064 = vunpack.c.l.b16 %v1531
          %v2065 = vunpack.c.h.b16 %v1531
          %v2066 = vunpack.c.l.b16 %v1532
          %v2067 = vunpack.c.h.b16 %v1532
          %v2068 = vunpack.c.l.b16 %v1533
          %v2069 = vunpack.c.h.b16 %v1533
          %v2070 = vunpack.c.l.b16 %v1534
          %v2071 = vunpack.c.h.b16 %v1534
          %v2072 = vunpack.c.l.b16 %v1535
          %v2073 = vunpack.c.h.b16 %v1535
          %v2074 = vunpack.c.l.b16 %v1536
          %v2075 = vunpack.c.h.b16 %v1536
          %v2076 = vunpack.c.l.b16 %v1537
          %v2077 = vunpack.c.h.b16 %v1537
          %v2078 = vunpack.c.l.b16 %v1538
          %v2079 = vunpack.c.h.b16 %v1538
          %v2080 = vunpack.c.l.b16 %v1539
          %v2081 = vunpack.c.h.b16 %v1539
          %v2082 = vunpack.c.l.b16 %v1540
          %v2083 = vunpack.c.h.b16 %v1540
          %v2084 = vunpack.c.l.b16 %v1541
          %v2085 = vunpack.c.h.b16 %v1541
          %v2086 = vunpack.c.l.b16 %v1542
          %v2087 = vunpack.c.h.b16 %v1542
          %v2088 = vunpack.c.l.b16 %v1543
          %v2089 = vunpack.c.h.b16 %v1543
          %v2090 = vunpack.c.l.b16 %v1544
          %v2091 = vunpack.c.h.b16 %v1544
          %v2092 = vunpack.c.l.b16 %v1545
          %v2093 = vunpack.c.h.b16 %v1545
          %v2094 = vunpack.c.l.b16 %v1546
          %v2095 = vunpack.c.h.b16 %v1546
          %v2096 = vunpack.c.l.b16 %v1547
          %v2097 = vunpack.c.h.b16 %v1547
          %v2098 = vunpack.c.l.b16 %v1548
          %v2099 = vunpack.c.h.b16 %v1548
          %v2100 = vunpack.c.l.b16 %v1549
          %v2101 = vunpack.c.h.b16 %v1549
          %v2102 = vunpack.c.l.b16 %v1550
          %v2103 = vunpack.c.h.b16 %v1550
          %v2104 = vunpack.c.l.b16 %v1551
          %v2105 = vunpack.c.h.b16 %v1551
          %v2106 = vunpack.c.l.b16 %v1552
          %v2107 = vunpack.c.h.b16 %v1552
          %v2108 = vunpack.c.l.b16 %v1553
          %v2109 = vunpack.c.h.b16 %v1553
          %v2110 = vunpack.c.l.b16 %v1554
          %v2111 = vunpack.c.h.b16 %v1554
          %v2112 = vunpack.c.l.b16 %v1555
          %v2113 = vunpack.c.h.b16 %v1555
          %v2114 = vunpack.c.l.b16 %v1556
          %v2115 = vunpack.c.h.b16 %v1556
          %v2116 = vunpack.c.l.b16 %v1557
          %v2117 = vunpack.c.h.b16 %v1557
          %v2118 = vunpack.c.l.b16 %v1558
          %v2119 = vunpack.c.h.b16 %v1558
          %v2120 = vunpack.c.l.b16 %v1559
          %v2121 = vunpack.c.h.b16 %v1559
          %v2122 = vunpack.c.l.b16 %v1560
          %v2123 = vunpack.c.h.b16 %v1560
          %v2124 = vunpack.c.l.b16 %v1561
          %v2125 = vunpack.c.h.b16 %v1561
          %v2126 = vunpack.c.l.b16 %v1562
          %v2127 = vunpack.c.h.b16 %v1562
          %v2128 = vunpack.c.l.b16 %v1563
          %v2129 = vunpack.c.h.b16 %v1563
          %v2130 = vunpack.c.l.b16 %v1564
          %v2131 = vunpack.c.h.b16 %v1564
          %v2132 = vunpack.c.l.b16 %v1565
          %v2133 = vunpack.c.h.b16 %v1565
          %v2134 = vunpack.c.l.b16 %v1566
          %v2135 = vunpack.c.h.b16 %v1566
          %v2136 = vunpack.c.l.b16 %v1567
          %v2137 = vunpack.c.h.b16 %v1567
          %v2138 = vunpack.c.l.b16 %v1568
          %v2139 = vunpack.c.h.b16 %v1568
          %v2140 = vunpack.c.l.b16 %v1569
          %v2141 = vunpack.c.h.b16 %v1569
          %v2142 = vunpack.c.l.b16 %v1570
          %v2143 = vunpack.c.h.b16 %v1570
          %v2144 = vunpack.c.l.b16 %v1571
          %v2145 = vunpack.c.h.b16 %v1571
          %v2146 = vunpack.c.l.b16 %v1572
          %v2147 = vunpack.c.h.b16 %v1572
          %v2148 = vunpack.c.l.b16 %v1573
          %v2149 = vunpack.c.h.b16 %v1573
          %v2150 = vunpack.c.l.b16 %v1574
          %v2151 = vunpack.c.h.b16 %v1574
          %v2152 = vunpack.c.l.b16 %v1575
          %v2153 = vunpack.c.h.b16 %v1575
          %v2154 = vunpack.c.l.b16 %v1576
          %v2155 = vunpack.c.h.b16 %v1576
          %v2156 = vunpack.c.l.b16 %v1577
          %v2157 = vunpack.c.h.b16 %v1577
          %v2158 = vunpack.c.l.b16 %v1578
          %v2159 = vunpack.c.h.b16 %v1578
          %v2160 = vunpack.c.l.b16 %v1579
          %v2161 = vunpack.c.h.b16 %v1579
          %v2162 = vunpack.c.l.b16 %v1580
          %v2163 = vunpack.c.h.b16 %v1580
          %v2164 = vunpack.c.l.b16 %v1581
          %v2165 = vunpack.c.h.b16 %v1581
          %v2166 = vunpack.c.l.b16 %v1582
          %v2167 = vunpack.c.h.b16 %v1582
          %v2168 = vunpack.c.l.b16 %v1583
          %v2169 = vunpack.c.h.b16 %v1583
          %v2170 = vunpack.c.l.b16 %v1584
          %v2171 = vunpack.c.h.b16 %v1584
          %v2172 = vunpack.c.l.b16 %v1585
          %v2173 = vunpack.c.h.b16 %v1585
          %v2174 = vunpack.c.l.b16 %v1586
          %v2175 = vunpack.c.h.b16 %v1586
          %v2176 = vunpack.c.l.b16 %v1587
          %v2177 = vunpack.c.h.b16 %v1587
          %v2178 = vunpack.c.l.b16 %v1588
          %v2179 = vunpack.c.h.b16 %v1588
          %v2180 = vunpack.c.l.b16 %v1589
          %v2181 = vunpack.c.h.b16 %v1589
          %v2182 = vunpack.c.l.b16 %v1590
          %v2183 = vunpack.c.h.b16 %v1590
          %v2184 = vunpack.c.l.b16 %v1591
          %v2185 = vunpack.c.h.b16 %v1591
          %v2186 = vunpack.c.l.b16 %v1592
          %v2187 = vunpack.c.h.b16 %v1592
          %v2188 = vunpack.c.l.b16 %v1593
          %v2189 = vunpack.c.h.b16 %v1593
          %v2190 = vunpack.c.l.b16 %v1594
          %v2191 = vunpack.c.h.b16 %v1594
          %v2192 = vunpack.c.l.b16 %v1595
          %v2193 = vunpack.c.h.b16 %v1595
          %v2194 = vunpack.c.l.b16 %v1596
          %v2195 = vunpack.c.h.b16 %v1596
          %v2196 = vunpack.c.l.b16 %v1597
          %v2197 = vunpack.c.h.b16 %v1597
          %v2198 = vunpack.c.l.b16 %v1598
          %v2199 = vunpack.c.h.b16 %v1598
          %v2200 = vunpack.c.l.b16 %v1599
          %v2201 = vunpack.c.h.b16 %v1599
          %v2202 = vunpack.c.l.b16 %v1600
          %v2203 = vunpack.c.h.b16 %v1600
          %v2204 = vunpack.c.l.b16 %v1601
          %v2205 = vunpack.c.h.b16 %v1601
          %v2206 = vunpack.c.l.b16 %v1602
          %v2207 = vunpack.c.h.b16 %v1602
          %v2208 = vunpack.c.l.b16 %v1603
          %v2209 = vunpack.c.h.b16 %v1603
          %v2210 = vunpack.c.l.b16 %v1604
          %v2211 = vunpack.c.h.b16 %v1604
          %v2212 = vunpack.c.l.b16 %v1605
          %v2213 = vunpack.c.h.b16 %v1605
          %v2214 = vunpack.c.l.b16 %v1606
          %v2215 = vunpack.c.h.b16 %v1606
          %v2216 = vunpack.c.l.b16 %v1607
          %v2217 = vunpack.c.h.b16 %v1607
          %v2218 = vunpack.c.l.b16 %v1608
          %v2219 = vunpack.c.h.b16 %v1608
          %v2220 = vunpack.c.l.b16 %v1609
          %v2221 = vunpack.c.h.b16 %v1609
          %v2222 = vunpack.c.l.b16 %v1610
          %v2223 = vunpack.c.h.b16 %v1610
          %v2224 = vunpack.c.l.b16 %v1611
          %v2225 = vunpack.c.h.b16 %v1611
          %v2226 = vunpack.c.l.b16 %v1612
          %v2227 = vunpack.c.h.b16 %v1612
          %v2228 = vunpack.c.l.b16 %v1613
          %v2229 = vunpack.c.h.b16 %v1613
          %v2230 = vunpack.c.l.b16 %v1614
          %v2231 = vunpack.c.h.b16 %v1614
          %v2232 = vunpack.c.l.b16 %v1615
          %v2233 = vunpack.c.h.b16 %v1615
          %v2234 = vunpack.c.l.b16 %v1616
          %v2235 = vunpack.c.h.b16 %v1616
          %v2236 = vunpack.c.l.b16 %v1617
          %v2237 = vunpack.c.h.b16 %v1617
          %v2238 = vunpack.c.l.b16 %v1618
          %v2239 = vunpack.c.h.b16 %v1618
          %v2240 = vunpack.c.l.b16 %v1619
          %v2241 = vunpack.c.h.b16 %v1619
          %v2242 = vunpack.c.l.b16 %v1620
          %v2243 = vunpack.c.h.b16 %v1620
          %v2244 = vunpack.c.l.b16 %v1621
          %v2245 = vunpack.c.h.b16 %v1621
          %v2246 = vunpack.c.l.b16 %v1622
          %v2247 = vunpack.c.h.b16 %v1622
          %v2248 = vunpack.c.l.b16 %v1623
          %v2249 = vunpack.c.h.b16 %v1623
          %v2250 = vunpack.c.l.b16 %v1624
          %v2251 = vunpack.c.h.b16 %v1624
          %v2252 = vunpack.c.l.b16 %v1625
          %v2253 = vunpack.c.h.b16 %v1625
          %v2254 = vunpack.c.l.b16 %v1626
          %v2255 = vunpack.c.h.b16 %v1626
          %v2256 = vunpack.c.l.b16 %v1627
          %v2257 = vunpack.c.h.b16 %v1627
          %v2258 = vunpack.c.l.b16 %v1628
          %v2259 = vunpack.c.h.b16 %v1628
          %v2260 = vunpack.c.l.b16 %v1629
          %v2261 = vunpack.c.h.b16 %v1629
          %v2262 = vunpack.c.l.b16 %v1630
          %v2263 = vunpack.c.h.b16 %v1630
          %v2264 = vunpack.c.l.b16 %v1631
          %v2265 = vunpack.c.h.b16 %v1631
          %v2266 = vunpack.c.l.b16 %v1632
          %v2267 = vunpack.c.h.b16 %v1632
          %v2268 = vunpack.c.l.b16 %v1633
          %v2269 = vunpack.c.h.b16 %v1633
          %v2270 = vunpack.c.l.b16 %v1634
          %v2271 = vunpack.c.h.b16 %v1634
          %v2272 = vunpack.c.l.b16 %v1635
          %v2273 = vunpack.c.h.b16 %v1635
          %v2274 = vunpack.c.l.b16 %v1636
          %v2275 = vunpack.c.h.b16 %v1636
          %v2276 = vunpack.c.l.b16 %v1637
          %v2277 = vunpack.c.h.b16 %v1637
          %v2278 = vunpack.c.l.b16 %v1638
          %v2279 = vunpack.c.h.b16 %v1638
          %v2280 = vunpack.c.l.b16 %v1639
          %v2281 = vunpack.c.h.b16 %v1639
          %v2282 = vunpack.c.l.b16 %v1640
          %v2283 = vunpack.c.h.b16 %v1640
          %v2284 = vunpack.c.l.b16 %v1641
          %v2285 = vunpack.c.h.b16 %v1641
          %v2286 = vunpack.c.l.b16 %v1642
          %v2287 = vunpack.c.h.b16 %v1642
          %v2288 = vunpack.c.l.b16 %v1643
          %v2289 = vunpack.c.h.b16 %v1643
          %v2290 = vunpack.c.l.b16 %v1644
          %v2291 = vunpack.c.h.b16 %v1644
          %v2292 = vunpack.c.l.b16 %v1645
          %v2293 = vunpack.c.h.b16 %v1645
          %v2294 = vunpack.c.l.b16 %v1646
          %v2295 = vunpack.c.h.b16 %v1646
          %v2296 = vunpack.c.l.b16 %v1647
          %v2297 = vunpack.c.h.b16 %v1647
          %v2298 = vunpack.c.l.b16 %v1648
          %v2299 = vunpack.c.h.b16 %v1648
          %v2300 = vunpack.c.l.b16 %v1649
          %v2301 = vunpack.c.h.b16 %v1649
          %v2302 = vunpack.c.l.b16 %v1650
          %v2303 = vunpack.c.h.b16 %v1650
          %v2304 = vunpack.c.l.b16 %v1651
          %v2305 = vunpack.c.h.b16 %v1651
          %v2306 = vunpack.c.l.b16 %v1652
          %v2307 = vunpack.c.h.b16 %v1652
          %v2308 = vunpack.c.l.b16 %v1653
          %v2309 = vunpack.c.h.b16 %v1653
          %v2310 = vunpack.c.l.b16 %v1654
          %v2311 = vunpack.c.h.b16 %v1654
          %v2312 = vunpack.c.l.b16 %v1655
          %v2313 = vunpack.c.h.b16 %v1655
          %v2314 = vunpack.c.l.b16 %v1656
          %v2315 = vunpack.c.h.b16 %v1656
          %v2316 = vunpack.c.l.b16 %v1657
          %v2317 = vunpack.c.h.b16 %v1657
          %v2318 = vunpack.c.l.b16 %v1658
          %v2319 = vunpack.c.h.b16 %v1658
          %v2320 = vunpack.c.l.b16 %v1659
          %v2321 = vunpack.c.h.b16 %v1659
          %v2322 = vunpack.c.l.b16 %v1660
          %v2323 = vunpack.c.h.b16 %v1660
          %v2324 = vunpack.c.l.b16 %v1661
          %v2325 = vunpack.c.h.b16 %v1661
          %v2326 = vunpack.c.l.b16 %v1662
          %v2327 = vunpack.c.h.b16 %v1662
          %v2328 = vunpack.c.l.b16 %v1663
          %v2329 = vunpack.c.h.b16 %v1663
          %v2330 = vunpack.c.l.b16 %v1664
          %v2331 = vunpack.c.h.b16 %v1664
          %v2332 = vunpack.c.l.b16 %v1665
          %v2333 = vunpack.c.h.b16 %v1665
          %v2334 = vunpack.c.l.b16 %v1666
          %v2335 = vunpack.c.h.b16 %v1666
          %v2336 = vunpack.c.l.b16 %v1667
          %v2337 = vunpack.c.h.b16 %v1667
          %v2338 = vunpack.c.l.b16 %v1668
          %v2339 = vunpack.c.h.b16 %v1668
          %v2340 = vunpack.c.l.b16 %v1669
          %v2341 = vunpack.c.h.b16 %v1669
          %v2342 = vunpack.c.l.b16 %v1670
          %v2343 = vunpack.c.h.b16 %v1670
          %v2344 = vunpack.c.l.b16 %v1671
          %v2345 = vunpack.c.h.b16 %v1671
          %v2346 = vunpack.c.l.b16 %v1672
          %v2347 = vunpack.c.h.b16 %v1672
          %v2348 = vunpack.c.l.b16 %v1673
          %v2349 = vunpack.c.h.b16 %v1673
          %v2350 = vunpack.c.l.b16 %v1674
          %v2351 = vunpack.c.h.b16 %v1674
          %v2352 = vunpack.c.l.b16 %v1675
          %v2353 = vunpack.c.h.b16 %v1675
          %v2354 = vunpack.c.l.b16 %v1676
          %v2355 = vunpack.c.h.b16 %v1676
          %v2356 = vunpack.c.l.b16 %v1677
          %v2357 = vunpack.c.h.b16 %v1677
          %v2358 = vunpack.c.l.b16 %v1678
          %v2359 = vunpack.c.h.b16 %v1678
          %v2360 = vunpack.c.l.b16 %v1679
          %v2361 = vunpack.c.h.b16 %v1679
          %v2362 = vunpack.c.l.b16 %v1680
          %v2363 = vunpack.c.h.b16 %v1680
          %v2364 = vunpack.c.l.b16 %v1681
          %v2365 = vunpack.c.h.b16 %v1681
          %v2366 = vunpack.c.l.b16 %v1682
          %v2367 = vunpack.c.h.b16 %v1682
          %v2368 = vunpack.c.l.b16 %v1683
          %v2369 = vunpack.c.h.b16 %v1683
          %v2370 = vunpack.c.l.b16 %v1684
          %v2371 = vunpack.c.h.b16 %v1684
          %v2372 = vunpack.c.l.b16 %v1685
          %v2373 = vunpack.c.h.b16 %v1685
          %v2374 = vunpack.c.l.b16 %v1686
          %v2375 = vunpack.c.h.b16 %v1686
          %v2376 = vunpack.c.l.b16 %v1687
          %v2377 = vunpack.c.h.b16 %v1687
          %v2378 = vunpack.c.l.b16 %v1688
          %v2379 = vunpack.c.h.b16 %v1688
          %v2380 = vunpack.c.l.b16 %v1689
          %v2381 = vunpack.c.h.b16 %v1689
          %v2382 = vunpack.c.l.b16 %v1690
          %v2383 = vunpack.c.h.b16 %v1690
          %v2384 = vunpack.c.l.b16 %v1691
          %v2385 = vunpack.c.h.b16 %v1691
          %v2386 = vunpack.c.l.b16 %v1692
          %v2387 = vunpack.c.h.b16 %v1692
          %v2388 = vunpack.c.l.b16 %v1693
          %v2389 = vunpack.c.h.b16 %v1693
          %v2390 = vunpack.c.l.b16 %v1694
          %v2391 = vunpack.c.h.b16 %v1694
          %v2392 = vunpack.c.l.b16 %v1695
          %v2393 = vunpack.c.h.b16 %v1695
          %v2394 = vunpack.c.l.b16 %v1696
          %v2395 = vunpack.c.h.b16 %v1696
          %v2396 = vunpack.c.l.b16 %v1697
          %v2397 = vunpack.c.h.b16 %v1697
          %v2398 = vunpack.c.l.b16 %v1698
          %v2399 = vunpack.c.h.b16 %v1698
          %v2400 = vunpack.c.l.b16 %v1699
          %v2401 = vunpack.c.h.b16 %v1699
          %v2402 = vunpack.c.l.b16 %v1700
          %v2403 = vunpack.c.h.b16 %v1700
          %v2404 = vunpack.c.l.b16 %v1701
          %v2405 = vunpack.c.h.b16 %v1701
          %v2406 = vunpack.c.l.b16 %v1702
          %v2407 = vunpack.c.h.b16 %v1702
          %v2408 = vunpack.c.l.b16 %v1703
          %v2409 = vunpack.c.h.b16 %v1703
          %v2410 = vunpack.c.l.b16 %v1704
          %v2411 = vunpack.c.h.b16 %v1704
          %v2412 = vunpack.c.l.b16 %v1705
          %v2413 = vunpack.c.h.b16 %v1705
          %v2414 = vunpack.c.l.b16 %v1706
          %v2415 = vunpack.c.h.b16 %v1706
          %v2416 = vunpack.c.l.b16 %v1707
          %v2417 = vunpack.c.h.b16 %v1707
          %v2418 = vunpack.c.l.b16 %v1708
          %v2419 = vunpack.c.h.b16 %v1708
          %v2420 = vunpack.c.l.b16 %v1709
          %v2421 = vunpack.c.h.b16 %v1709
          %v2422 = vunpack.c.l.b16 %v1710
          %v2423 = vunpack.c.h.b16 %v1710
          %v2424 = vunpack.c.l.b16 %v1711
          %v2425 = vunpack.c.h.b16 %v1711
          %v2426 = vunpack.c.l.b16 %v1712
          %v2427 = vunpack.c.h.b16 %v1712
          %v2428 = vunpack.c.l.b16 %v1713
          %v2429 = vunpack.c.h.b16 %v1713
          %v2430 = vunpack.c.l.b16 %v1714
          %v2431 = vunpack.c.h.b16 %v1714
          %v2432 = vunpack.c.l.b16 %v1715
          %v2433 = vunpack.c.h.b16 %v1715
          %v2434 = vunpack.c.l.b16 %v1716
          %v2435 = vunpack.c.h.b16 %v1716
          %v2436 = vunpack.c.l.b16 %v1717
          %v2437 = vunpack.c.h.b16 %v1717
          %v2438 = vunpack.c.l.b16 %v1718
          %v2439 = vunpack.c.h.b16 %v1718
          %v2440 = vunpack.c.l.b16 %v1719
          %v2441 = vunpack.c.h.b16 %v1719
          %v2442 = vunpack.c.l.b16 %v1720
          %v2443 = vunpack.c.h.b16 %v1720
          %v2444 = vunpack.c.l.b16 %v1721
          %v2445 = vunpack.c.h.b16 %v1721
          %v2446 = vunpack.c.l.b16 %v1722
          %v2447 = vunpack.c.h.b16 %v1722
          %v2448 = vunpack.c.l.b16 %v1723
          %v2449 = vunpack.c.h.b16 %v1723
          %v2450 = vunpack.c.l.b16 %v1724
          %v2451 = vunpack.c.h.b16 %v1724
          %v2452 = vunpack.c.l.b16 %v1725
          %v2453 = vunpack.c.h.b16 %v1725
          %v2454 = vunpack.c.l.b16 %v1726
          %v2455 = vunpack.c.h.b16 %v1726
          %v2456 = vunpack.c.l.b16 %v1727
          %v2457 = vunpack.c.h.b16 %v1727
          %v2458 = vunpack.c.l.b16 %v1728
          %v2459 = vunpack.c.h.b16 %v1728
          %v2460 = vunpack.c.l.b16 %v1729
          %v2461 = vunpack.c.h.b16 %v1729
          %v2462 = vunpack.c.l.b16 %v1730
          %v2463 = vunpack.c.h.b16 %v1730
          %v2464 = vunpack.c.l.b16 %v1731
          %v2465 = vunpack.c.h.b16 %v1731
          %v2466 = vunpack.c.l.b16 %v1732
          %v2467 = vunpack.c.h.b16 %v1732
          %v2468 = vunpack.c.l.b16 %v1733
          %v2469 = vunpack.c.h.b16 %v1733
          %v2470 = vunpack.c.l.b16 %v1734
          %v2471 = vunpack.c.h.b16 %v1734
          %v2472 = vunpack.c.l.b16 %v1735
          %v2473 = vunpack.c.h.b16 %v1735
          %v2474 = vunpack.c.l.b16 %v1736
          %v2475 = vunpack.c.h.b16 %v1736
          %v2476 = vunpack.c.l.b16 %v1737
          %v2477 = vunpack.c.h.b16 %v1737
          %v2478 = vunpack.c.l.b16 %v1738
          %v2479 = vunpack.c.h.b16 %v1738
          %v2480 = vunpack.c.l.b16 %v1739
          %v2481 = vunpack.c.h.b16 %v1739
          %v2482 = vunpack.c.l.b16 %v1740
          %v2483 = vunpack.c.h.b16 %v1740
          %v2484 = vunpack.c.l.b16 %v1741
          %v2485 = vunpack.c.h.b16 %v1741
          %v2486 = vunpack.c.l.b16 %v1742
          %v2487 = vunpack.c.h.b16 %v1742
          %v2488 = vunpack.c.l.b16 %v1743
          %v2489 = vunpack.c.h.b16 %v1743
          %v2490 = vunpack.c.l.b16 %v1744
          %v2491 = vunpack.c.h.b16 %v1744
          %v2492 = vunpack.c.l.b16 %v1745
          %v2493 = vunpack.c.h.b16 %v1745
          %v2494 = vunpack.c.l.b16 %v1746
          %v2495 = vunpack.c.h.b16 %v1746
          %v2496 = vunpack.c.l.b16 %v1747
          %v2497 = vunpack.c.h.b16 %v1747
          %v2498 = vunpack.c.l.b16 %v1748
          %v2499 = vunpack.c.h.b16 %v1748
          %v2500 = vunpack.c.l.b16 %v1749
          %v2501 = vunpack.c.h.b16 %v1749
          %v2502 = vunpack.c.l.b16 %v1750
          %v2503 = vunpack.c.h.b16 %v1750
          %v2504 = vunpack.c.l.b16 %v1751
          %v2505 = vunpack.c.h.b16 %v1751
          %v2506 = vunpack.c.l.b16 %v1752
          %v2507 = vunpack.c.h.b16 %v1752
          %v2508 = vunpack.c.l.b16 %v1753
          %v2509 = vunpack.c.h.b16 %v1753
          %v2510 = vunpack.c.l.b16 %v1754
          %v2511 = vunpack.c.h.b16 %v1754
          %v2512 = vunpack.c.l.b16 %v1755
          %v2513 = vunpack.c.h.b16 %v1755
          %v2514 = vunpack.c.l.b16 %v1756
          %v2515 = vunpack.c.h.b16 %v1756
          %v2516 = vunpack.c.l.b16 %v1757
          %v2517 = vunpack.c.h.b16 %v1757
          %v2518 = vunpack.c.l.b16 %v1758
          %v2519 = vunpack.c.h.b16 %v1758
          %v2520 = vunpack.c.l.b16 %v1759
          %v2521 = vunpack.c.h.b16 %v1759
          %v2522 = vunpack.c.l.b16 %v1760
          %v2523 = vunpack.c.h.b16 %v1760
          %v2524 = vunpack.c.l.b16 %v1761
          %v2525 = vunpack.c.h.b16 %v1761
          %v2526 = vunpack.c.l.b16 %v1762
          %v2527 = vunpack.c.h.b16 %v1762
          %v2528 = vunpack.c.l.b16 %v1763
          %v2529 = vunpack.c.h.b16 %v1763
          %v2530 = vunpack.c.l.b16 %v1764
          %v2531 = vunpack.c.h.b16 %v1764
          %v2532 = vunpack.c.l.b16 %v1765
          %v2533 = vunpack.c.h.b16 %v1765
          %v2534 = vunpack.c.l.b16 %v1766
          %v2535 = vunpack.c.h.b16 %v1766
          %v2536 = vpack.c.b16 %v2028, %v2024
          %v2537 = vpack.c.b16 %v2029, %v2025
          %v2538 = vpack.c.b16 %v2030, %v2026
          %v2539 = vpack.c.b16 %v2031, %v2027
          %v2540 = vpack.c.b16 %v2036, %v2032
          %v2541 = vpack.c.b16 %v2037, %v2033
          %v2542 = vpack.c.b16 %v2038, %v2034
          %v2543 = vpack.c.b16 %v2039, %v2035
          %v2544 = vpack.c.b16 %v2044, %v2040
          %v2545 = vpack.c.b16 %v2045, %v2041
          %v2546 = vpack.c.b16 %v2046, %v2042
          %v2547 = vpack.c.b16 %v2047, %v2043
          %v2548 = vpack.c.b16 %v2052, %v2048
          %v2549 = vpack.c.b16 %v2053, %v2049
          %v2550 = vpack.c.b16 %v2054, %v2050
          %v2551 = vpack.c.b16 %v2055, %v2051
          %v2552 = vpack.c.b16 %v2060, %v2056
          %v2553 = vpack.c.b16 %v2061, %v2057
          %v2554 = vpack.c.b16 %v2062, %v2058
          %v2555 = vpack.c.b16 %v2063, %v2059
          %v2556 = vpack.c.b16 %v2068, %v2064
          %v2557 = vpack.c.b16 %v2069, %v2065
          %v2558 = vpack.c.b16 %v2070, %v2066
          %v2559 = vpack.c.b16 %v2071, %v2067
          %v2560 = vpack.c.b16 %v2076, %v2072
          %v2561 = vpack.c.b16 %v2077, %v2073
          %v2562 = vpack.c.b16 %v2078, %v2074
          %v2563 = vpack.c.b16 %v2079, %v2075
          %v2564 = vpack.c.b16 %v2084, %v2080
          %v2565 = vpack.c.b16 %v2085, %v2081
          %v2566 = vpack.c.b16 %v2086, %v2082
          %v2567 = vpack.c.b16 %v2087, %v2083
          %v2568 = vpack.c.b16 %v2092, %v2088
          %v2569 = vpack.c.b16 %v2093, %v2089
          %v2570 = vpack.c.b16 %v2094, %v2090
          %v2571 = vpack.c.b16 %v2095, %v2091
          %v2572 = vpack.c.b16 %v2100, %v2096
          %v2573 = vpack.c.b16 %v2101, %v2097
          %v2574 = vpack.c.b16 %v2102, %v2098
          %v2575 = vpack.c.b16 %v2103, %v2099
          %v2576 = vpack.c.b16 %v2108, %v2104
          %v2577 = vpack.c.b16 %v2109, %v2105
          %v2578 = vpack.c.b16 %v2110, %v2106
          %v2579 = vpack.c.b16 %v2111, %v2107
          %v2580 = vpack.c.b16 %v2116, %v2112
          %v2581 = vpack.c.b16 %v2117, %v2113
          %v2582 = vpack.c.b16 %v2118, %v2114
          %v2583 = vpack.c.b16 %v2119, %v2115
          %v2584 = vpack.c.b16 %v2124, %v2120
          %v2585 = vpack.c.b16 %v2125, %v2121
          %v2586 = vpack.c.b16 %v2126, %v2122
          %v2587 = vpack.c.b16 %v2127, %v2123
          %v2588 = vpack.c.b16 %v2132, %v2128
          %v2589 = vpack.c.b16 %v2133, %v2129
          %v2590 = vpack.c.b16 %v2134, %v2130
          %v2591 = vpack.c.b16 %v2135, %v2131
          %v2592 = vpack.c.b16 %v2140, %v2136
          %v2593 = vpack.c.b16 %v2141, %v2137
          %v2594 = vpack.c.b16 %v2142, %v2138
          %v2595 = vpack.c.b16 %v2143, %v2139
          %v2596 = vpack.c.b16 %v2148, %v2144
          %v2597 = vpack.c.b16 %v2149, %v2145
          %v2598 = vpack.c.b16 %v2150, %v2146
          %v2599 = vpack.c.b16 %v2151, %v2147
          %v2600 = vpack.c.b16 %v2156, %v2152
          %v2601 = vpack.c.b16 %v2157, %v2153
          %v2602 = vpack.c.b16 %v2158, %v2154
          %v2603 = vpack.c.b16 %v2159, %v2155
          %v2604 = vpack.c.b16 %v2164, %v2160
          %v2605 = vpack.c.b16 %v2165, %v2161
          %v2606 = vpack.c.b16 %v2166, %v2162
          %v2607 = vpack.c.b16 %v2167, %v2163
          %v2608 = vpack.c.b16 %v2172, %v2168
          %v2609 = vpack.c.b16 %v2173, %v2169
          %v2610 = vpack.c.b16 %v2174, %v2170
          %v2611 = vpack.c.b16 %v2175, %v2171
          %v2612 = vpack.c.b16 %v2180, %v2176
          %v2613 = vpack.c.b16 %v2181, %v2177
          %v2614 = vpack.c.b16 %v2182, %v2178
          %v2615 = vpack.c.b16 %v2183, %v2179
          %v2616 = vpack.c.b16 %v2188, %v2184
          %v2617 = vpack.c.b16 %v2189, %v2185
          %v2618 = vpack.c.b16 %v2190, %v2186
          %v2619 = vpack.c.b16 %v2191, %v2187
          %v2620 = vpack.c.b16 %v2196, %v2192
          %v2621 = vpack.c.b16 %v2197, %v2193
          %v2622 = vpack.c.b16 %v2198, %v2194
          %v2623 = vpack.c.b16 %v2199, %v2195
          %v2624 = vpack.c.b16 %v2204, %v2200
          %v2625 = vpack.c.b16 %v2205, %v2201
          %v2626 = vpack.c.b16 %v2206, %v2202
          %v2627 = vpack.c.b16 %v2207, %v2203
          %v2628 = vpack.c.b16 %v2212, %v2208
          %v2629 = vpack.c.b16 %v2213, %v2209
          %v2630 = vpack.c.b16 %v2214, %v2210
          %v2631 = vpack.c.b16 %v2215, %v2211
          %v2632 = vpack.c.b16 %v2220, %v2216
          %v2633 = vpack.c.b16 %v2221, %v2217
          %v2634 = vpack.c.b16 %v2222, %v2218
          %v2635 = vpack.c.b16 %v2223, %v2219
          %v2636 = vpack.c.b16 %v2228, %v2224
          %v2637 = vpack.c.b16 %v2229, %v2225
          %v2638 = vpack.c.b16 %v2230, %v2226
          %v2639 = vpack.c.b16 %v2231, %v2227
          %v2640 = vpack.c.b16 %v2236, %v2232
          %v2641 = vpack.c.b16 %v2237, %v2233
          %v2642 = vpack.c.b16 %v2238, %v2234
          %v2643 = vpack.c.b16 %v2239, %v2235
          %v2644 = vpack.c.b16 %v2244, %v2240
          %v2645 = vpack.c.b16 %v2245, %v2241
          %v2646 = vpack.c.b16 %v2246, %v2242
          %v2647 = vpack.c.b16 %v2247, %v2243
          %v2648 = vpack.c.b16 %v2252, %v2248
          %v2649 = vpack.c.b16 %v2253, %v2249
          %v2650 = vpack.c.b16 %v2254, %v2250
          %v2651 = vpack.c.b16 %v2255, %v2251
          %v2652 = vpack.c.b16 %v2260, %v2256
          %v2653 = vpack.c.b16 %v2261, %v2257
          %v2654 = vpack.c.b16 %v2262, %v2258
          %v2655 = vpack.c.b16 %v2263, %v2259
          %v2656 = vpack.c.b16 %v2268, %v2264
          %v2657 = vpack.c.b16 %v2269, %v2265
          %v2658 = vpack.c.b16 %v2270, %v2266
          %v2659 = vpack.c.b16 %v2271, %v2267
          %v2660 = vpack.c.b16 %v2276, %v2272
          %v2661 = vpack.c.b16 %v2277, %v2273
          %v2662 = vpack.c.b16 %v2278, %v2274
          %v2663 = vpack.c.b16 %v2279, %v2275
          %v2664 = vpack.c.b16 %v2284, %v2280
          %v2665 = vpack.c.b16 %v2285, %v2281
          %v2666 = vpack.c.b16 %v2286, %v2282
          %v2667 = vpack.c.b16 %v2287, %v2283
          %v2668 = vpack.c.b16 %v2292, %v2288
          %v2669 = vpack.c.b16 %v2293, %v2289
          %v2670 = vpack.c.b16 %v2294, %v2290
          %v2671 = vpack.c.b16 %v2295, %v2291
          %v2672 = vpack.c.b16 %v2300, %v2296
          %v2673 = vpack.c.b16 %v2301, %v2297
          %v2674 = vpack.c.b16 %v2302, %v2298
          %v2675 = vpack.c.b16 %v2303, %v2299
          %v2676 = vpack.c.b16 %v2308, %v2304
          %v2677 = vpack.c.b16 %v2309, %v2305
          %v2678 = vpack.c.b16 %v2310, %v2306
          %v2679 = vpack.c.b16 %v2311, %v2307
          %v2680 = vpack.c.b16 %v2316, %v2312
          %v2681 = vpack.c.b16 %v2317, %v2313
          %v2682 = vpack.c.b16 %v2318, %v2314
          %v2683 = vpack.c.b16 %v2319, %v2315
          %v2684 = vpack.c.b16 %v2324, %v2320
          %v2685 = vpack.c.b16 %v2325, %v2321
          %v2686 = vpack.c.b16 %v2326, %v2322
          %v2687 = vpack.c.b16 %v2327, %v2323
          %v2688 = vpack.c.b16 %v2332, %v2328
          %v2689 = vpack.c.b16 %v2333, %v2329
          %v2690 = vpack.c.b16 %v2334, %v2330
          %v2691 = vpack.c.b16 %v2335, %v2331
          %v2692 = vpack.c.b16 %v2340, %v2336
          %v2693 = vpack.c.b16 %v2341, %v2337
          %v2694 = vpack.c.b16 %v2342, %v2338
          %v2695 = vpack.c.b16 %v2343, %v2339
          %v2696 = vpack.c.b16 %v2348, %v2344
          %v2697 = vpack.c.b16 %v2349, %v2345
          %v2698 = vpack.c.b16 %v2350, %v2346
          %v2699 = vpack.c.b16 %v2351, %v2347
          %v2700 = vpack.c.b16 %v2356, %v2352
          %v2701 = vpack.c.b16 %v2357, %v2353
          %v2702 = vpack.c.b16 %v2358, %v2354
          %v2703 = vpack.c.b16 %v2359, %v2355
          %v2704 = vpack.c.b16 %v2364, %v2360
          %v2705 = vpack.c.b16 %v2365, %v2361
          %v2706 = vpack.c.b16 %v2366, %v2362
          %v2707 = vpack.c.b16 %v2367, %v2363
          %v2708 = vpack.c.b16 %v2372, %v2368
          %v2709 = vpack.c.b16 %v2373, %v2369
          %v2710 = vpack.c.b16 %v2374, %v2370
          %v2711 = vpack.c.b16 %v2375, %v2371
          %v2712 = vpack.c.b16 %v2380, %v2376
          %v2713 = vpack.c.b16 %v2381, %v2377
          %v2714 = vpack.c.b16 %v2382, %v2378
          %v2715 = vpack.c.b16 %v2383, %v2379
          %v2716 = vpack.c.b16 %v2388, %v2384
          %v2717 = vpack.c.b16 %v2389, %v2385
          %v2718 = vpack.c.b16 %v2390, %v2386
          %v2719 = vpack.c.b16 %v2391, %v2387
          %v2720 = vpack.c.b16 %v2396, %v2392
          %v2721 = vpack.c.b16 %v2397, %v2393
          %v2722 = vpack.c.b16 %v2398, %v2394
          %v2723 = vpack.c.b16 %v2399, %v2395
          %v2724 = vpack.c.b16 %v2404, %v2400
          %v2725 = vpack.c.b16 %v2405, %v2401
          %v2726 = vpack.c.b16 %v2406, %v2402
          %v2727 = vpack.c.b16 %v2407, %v2403
          %v2728 = vpack.c.b16 %v2412, %v2408
          %v2729 = vpack.c.b16 %v2413, %v2409
          %v2730 = vpack.c.b16 %v2414, %v2410
          %v2731 = vpack.c.b16 %v2415, %v2411
          %v2732 = vpack.c.b16 %v2420, %v2416
          %v2733 = vpack.c.b16 %v2421, %v2417
          %v2734 = vpack.c.b16 %v2422, %v2418
          %v2735 = vpack.c.b16 %v2423, %v2419
          %v2736 = vpack.c.b16 %v2428, %v2424
          %v2737 = vpack.c.b16 %v2429, %v2425
          %v2738 = vpack.c.b16 %v2430, %v2426
          %v2739 = vpack.c.b16 %v2431, %v2427
          %v2740 = vpack.c.b16 %v2436, %v2432
          %v2741 = vpack.c.b16 %v2437, %v2433
          %v2742 = vpack.c.b16 %v2438, %v2434
          %v2743 = vpack.c.b16 %v2439, %v2435
          %v2744 = vpack.c.b16 %v2444, %v2440
          %v2745 = vpack.c.b16 %v2445, %v2441
          %v2746 = vpack.c.b16 %v2446, %v2442
          %v2747 = vpack.c.b16 %v2447, %v2443
          %v2748 = vpack.c.b16 %v2452, %v2448
          %v2749 = vpack.c.b16 %v2453, %v2449
          %v2750 = vpack.c.b16 %v2454, %v2450
          %v2751 = vpack.c.b16 %v2455, %v2451
          %v2752 = vpack.c.b16 %v2460, %v2456
          %v2753 = vpack.c.b16 %v2461, %v2457
          %v2754 = vpack.c.b16 %v2462, %v2458
          %v2755 = vpack.c.b16 %v2463, %v2459
          %v2756 = vpack.c.b16 %v2468, %v2464
          %v2757 = vpack.c.b16 %v2469, %v2465
          %v2758 = vpack.c.b16 %v2470, %v2466
          %v2759 = vpack.c.b16 %v2471, %v2467
          %v2760 = vpack.c.b16 %v2476, %v2472
          %v2761 = vpack.c.b16 %v2477, %v2473
          %v2762 = vpack.c.b16 %v2478, %v2474
          %v2763 = vpack.c.b16 %v2479, %v2475
          %v2764 = vpack.c.b16 %v2484, %v2480
          %v2765 = vpack.c.b16 %v2485, %v2481
          %v2766 = vpack.c.b16 %v2486, %v2482
          %v2767 = vpack.c.b16 %v2487, %v2483
          %v2768 = vpack.c.b16 %v2492, %v2488
          %v2769 = vpack.c.b16 %v2493, %v2489
          %v2770 = vpack.c.b16 %v2494, %v2490
          %v2771 = vpack.c.b16 %v2495, %v2491
          %v2772 = vpack.c.b16 %v2500, %v2496
          %v2773 = vpack.c.b16 %v2501, %v2497
          %v2774 = vpack.c.b16 %v2502, %v2498
          %v2775 = vpack.c.b16 %v2503, %v2499
          %v2776 = vpack.c.b16 %v2508, %v2504
          %v2777 = vpack.c.b16 %v2509, %v2505
          %v2778 = vpack.c.b16 %v2510, %v2506
          %v2779 = vpack.c.b16 %v2511, %v2507
          %v2780 = vpack.c.b16 %v2516, %v2512
          %v2781 = vpack.c.b16 %v2517, %v2513
          %v2782 = vpack.c.b16 %v2518, %v2514
          %v2783 = vpack.c.b16 %v2519, %v2515
          %v2784 = vpack.c.b16 %v2524, %v2520
          %v2785 = vpack.c.b16 %v2525, %v2521
          %v2786 = vpack.c.b16 %v2526, %v2522
          %v2787 = vpack.c.b16 %v2527, %v2523
          %v2788 = vpack.c.b16 %v2532, %v2528
          %v2789 = vpack.c.b16 %v2533, %v2529
          %v2790 = vpack.c.b16 %v2534, %v2530
          %v2791 = vpack.c.b16 %v2535, %v2531
          %v3049 = vlaneseq
          %v3050 = vshrl.u32 %v3049, 7
          %v3051 = vsub.s32 0, %v3050
          %v3052 = vrot.slane %v1767, %v3051
          %v3053 = vlaneseq
          %v3054 = vshrl.u32 %v3053, 7
          %v3055 = vsub.s32 1, %v3054
          %v3056 = vrot.slane %v1767, %v3055
          %v3057 = vlaneseq
          %v3058 = vshrl.u32 %v3057, 7
          %v3059 = vsub.s32 2, %v3058
          %v3060 = vrot.slane %v1767, %v3059
          %v3061 = vlaneseq
          %v3062 = vshrl.u32 %v3061, 7
          %v3063 = vsub.s32 3, %v3062
          %v3064 = vrot.slane %v1767, %v3063
          %3069 = vmatprep.subr.bf16.mxu0 %v2537
          %3070 = vmatpush1.bf16.msra.mxu0 %v2536
          %3071 = vmatprep.subr.bf16.mxu0 %v2541
          %3072 = vmatpush1.bf16.msra.mxu0 %v2540
          %3073 = vmatprep.subr.bf16.mxu0 %v2545
          %3074 = vmatpush1.bf16.msra.mxu0 %v2544
          %3075 = vmatprep.subr.bf16.mxu0 %v2549
          %3076 = vmatpush1.bf16.msra.mxu0 %v2548
          %3077 = vmatprep.subr.bf16.mxu0 %v2553
          %3078 = vmatpush1.bf16.msra.mxu0 %v2552
          %3079 = vmatprep.subr.bf16.mxu0 %v2557
          %3080 = vmatpush1.bf16.msra.mxu0 %v2556
          %3081 = vmatprep.subr.bf16.mxu0 %v2561
          %3082 = vmatpush1.bf16.msra.mxu0 %v2560
          %3083 = vmatprep.subr.bf16.mxu0 %v2565
          %3084 = vmatpush1.bf16.msra.mxu0 %v2564
          %3085 = vmatprep.subr.bf16.mxu0 %v2569
          %3086 = vmatpush1.bf16.msra.mxu0 %v2568
          %3087 = vmatprep.subr.bf16.mxu0 %v2573
          %3088 = vmatpush1.bf16.msra.mxu0 %v2572
          %3089 = vmatprep.subr.bf16.mxu0 %v2577
          %3090 = vmatpush1.bf16.msra.mxu0 %v2576
          %3091 = vmatprep.subr.bf16.mxu0 %v2581
          %3092 = vmatpush1.bf16.msra.mxu0 %v2580
          %3093 = vmatprep.subr.bf16.mxu0 %v2585
          %3094 = vmatpush1.bf16.msra.mxu0 %v2584
          %3095 = vmatprep.subr.bf16.mxu0 %v2589
          %3096 = vmatpush1.bf16.msra.mxu0 %v2588
          %3097 = vmatprep.subr.bf16.mxu0 %v2593
          %3098 = vmatpush1.bf16.msra.mxu0 %v2592
          %3099 = vmatprep.subr.bf16.mxu0 %v2597
          %3100 = vmatpush1.bf16.msra.mxu0 %v2596
          %3101 = vmatprep.mubr.bf16.mxu0 %v1504
          %3102 = vmatmul.mubr.bf16.gmra.mrb[0].mxu0 %v1503
          %v3103 = vpop.f32.mrb[0].mxu0
          %v3104 = vadd.f32 %v3052, %v3103
          %v3105 = vpop.f32.mrb[0].mxu0
          %v3106 = vadd.f32 %v3056, %v3105
          %v3107 = vpop.f32.mrb[0].mxu0
          %v3108 = vpop.f32.mrb[0].mxu0
          %3109 = vdwg.mxu0
          %3110 = vmatprep.subr.bf16.mxu0 %v2601
          %3111 = vmatpush1.bf16.msra.mxu0 %v2600
          %3112 = vmatprep.subr.bf16.mxu0 %v2605
          %3113 = vmatpush1.bf16.msra.mxu0 %v2604
          %3114 = vmatprep.subr.bf16.mxu0 %v2609
          %3115 = vmatpush1.bf16.msra.mxu0 %v2608
          %3116 = vmatprep.subr.bf16.mxu0 %v2613
          %3117 = vmatpush1.bf16.msra.mxu0 %v2612
          %3118 = vmatprep.subr.bf16.mxu0 %v2617
          %3119 = vmatpush1.bf16.msra.mxu0 %v2616
          %3120 = vmatprep.subr.bf16.mxu0 %v2621
          %3121 = vmatpush1.bf16.msra.mxu0 %v2620
          %3122 = vmatprep.subr.bf16.mxu0 %v2625
          %3123 = vmatpush1.bf16.msra.mxu0 %v2624
          %3124 = vmatprep.subr.bf16.mxu0 %v2629
          %3125 = vmatpush1.bf16.msra.mxu0 %v2628
          %3126 = vmatprep.subr.bf16.mxu0 %v2633
          %3127 = vmatpush1.bf16.msra.mxu0 %v2632
          %3128 = vmatprep.subr.bf16.mxu0 %v2637
          %3129 = vmatpush1.bf16.msra.mxu0 %v2636
          %3130 = vmatprep.subr.bf16.mxu0 %v2641
          %3131 = vmatpush1.bf16.msra.mxu0 %v2640
          %3132 = vmatprep.subr.bf16.mxu0 %v2645
          %3133 = vmatpush1.bf16.msra.mxu0 %v2644
          %3134 = vmatprep.subr.bf16.mxu0 %v2649
          %3135 = vmatpush1.bf16.msra.mxu0 %v2648
          %3136 = vmatprep.subr.bf16.mxu0 %v2653
          %3137 = vmatpush1.bf16.msra.mxu0 %v2652
          %3138 = vmatprep.subr.bf16.mxu0 %v2657
          %3139 = vmatpush1.bf16.msra.mxu0 %v2656
          %3140 = vmatprep.subr.bf16.mxu0 %v2661
          %3141 = vmatpush1.bf16.msra.mxu0 %v2660
          %3142 = vmatprep.mubr.bf16.mxu0 %v1506
          %3143 = vmatmul.mubr.bf16.gmra.mrb[0].mxu0 %v1505
          %v3144 = vpop.f32.mrb[0].mxu0
          %v3145 = vadd.f32 %v3104, %v3144
          %v3146 = vpop.f32.mrb[0].mxu0
          %v3147 = vadd.f32 %v3106, %v3146
          %v3148 = vpop.f32.mrb[0].mxu0
          %v3149 = vpop.f32.mrb[0].mxu0
          %3150 = vdwg.mxu0
          %3151 = vmatprep.subr.bf16.mxu0 %v2665
          %3152 = vmatpush1.bf16.msra.mxu0 %v2664
          %3153 = vmatprep.subr.bf16.mxu0 %v2669
          %3154 = vmatpush1.bf16.msra.mxu0 %v2668
          %3155 = vmatprep.subr.bf16.mxu0 %v2673
          %3156 = vmatpush1.bf16.msra.mxu0 %v2672
          %3157 = vmatprep.subr.bf16.mxu0 %v2677
          %3158 = vmatpush1.bf16.msra.mxu0 %v2676
          %3159 = vmatprep.subr.bf16.mxu0 %v2681
          %3160 = vmatpush1.bf16.msra.mxu0 %v2680
          %3161 = vmatprep.subr.bf16.mxu0 %v2685
          %3162 = vmatpush1.bf16.msra.mxu0 %v2684
          %3163 = vmatprep.subr.bf16.mxu0 %v2689
          %3164 = vmatpush1.bf16.msra.mxu0 %v2688
          %3165 = vmatprep.subr.bf16.mxu0 %v2693
          %3166 = vmatpush1.bf16.msra.mxu0 %v2692
          %3167 = vmatprep.subr.bf16.mxu0 %v2697
          %3168 = vmatpush1.bf16.msra.mxu0 %v2696
          %3169 = vmatprep.subr.bf16.mxu0 %v2701
          %3170 = vmatpush1.bf16.msra.mxu0 %v2700
          %3171 = vmatprep.subr.bf16.mxu0 %v2705
          %3172 = vmatpush1.bf16.msra.mxu0 %v2704
          %3173 = vmatprep.subr.bf16.mxu0 %v2709
          %3174 = vmatpush1.bf16.msra.mxu0 %v2708
          %3175 = vmatprep.subr.bf16.mxu0 %v2713
          %3176 = vmatpush1.bf16.msra.mxu0 %v2712
          %3177 = vmatprep.subr.bf16.mxu0 %v2717
          %3178 = vmatpush1.bf16.msra.mxu0 %v2716
          %3179 = vmatprep.subr.bf16.mxu0 %v2721
          %3180 = vmatpush1.bf16.msra.mxu0 %v2720
          %3181 = vmatprep.subr.bf16.mxu0 %v2725
          %3182 = vmatpush1.bf16.msra.mxu0 %v2724
          %3183 = vmatprep.mubr.bf16.mxu0 %v1508
          %3184 = vmatmul.mubr.bf16.gmra.mrb[0].mxu0 %v1507
          %v3185 = vpop.f32.mrb[0].mxu0
          %v3186 = vadd.f32 %v3145, %v3185
          %v3187 = vpop.f32.mrb[0].mxu0
          %v3188 = vadd.f32 %v3147, %v3187
          %v3189 = vpop.f32.mrb[0].mxu0
          %v3190 = vpop.f32.mrb[0].mxu0
          %3191 = vdwg.mxu0
          %3192 = vmatprep.subr.bf16.mxu0 %v2729
          %3193 = vmatpush1.bf16.msra.mxu0 %v2728
          %3194 = vmatprep.subr.bf16.mxu0 %v2733
          %3195 = vmatpush1.bf16.msra.mxu0 %v2732
          %3196 = vmatprep.subr.bf16.mxu0 %v2737
          %3197 = vmatpush1.bf16.msra.mxu0 %v2736
          %3198 = vmatprep.subr.bf16.mxu0 %v2741
          %3199 = vmatpush1.bf16.msra.mxu0 %v2740
          %3200 = vmatprep.subr.bf16.mxu0 %v2745
          %3201 = vmatpush1.bf16.msra.mxu0 %v2744
          %3202 = vmatprep.subr.bf16.mxu0 %v2749
          %3203 = vmatpush1.bf16.msra.mxu0 %v2748
          %3204 = vmatprep.subr.bf16.mxu0 %v2753
          %3205 = vmatpush1.bf16.msra.mxu0 %v2752
          %3206 = vmatprep.subr.bf16.mxu0 %v2757
          %3207 = vmatpush1.bf16.msra.mxu0 %v2756
          %3208 = vmatprep.subr.bf16.mxu0 %v2761
          %3209 = vmatpush1.bf16.msra.mxu0 %v2760
          %3210 = vmatprep.subr.bf16.mxu0 %v2765
          %3211 = vmatpush1.bf16.msra.mxu0 %v2764
          %3212 = vmatprep.subr.bf16.mxu0 %v2769
          %3213 = vmatpush1.bf16.msra.mxu0 %v2768
          %3214 = vmatprep.subr.bf16.mxu0 %v2773
          %3215 = vmatpush1.bf16.msra.mxu0 %v2772
          %3216 = vmatprep.subr.bf16.mxu0 %v2777
          %3217 = vmatpush1.bf16.msra.mxu0 %v2776
          %3218 = vmatprep.subr.bf16.mxu0 %v2781
          %3219 = vmatpush1.bf16.msra.mxu0 %v2780
          %3220 = vmatprep.subr.bf16.mxu0 %v2785
          %3221 = vmatpush1.bf16.msra.mxu0 %v2784
          %3222 = vmatprep.subr.bf16.mxu0 %v2789
          %3223 = vmatpush1.bf16.msra.mxu0 %v2788
          %3224 = vmatprep.mubr.bf16.mxu0 %v1510
          %3225 = vmatmul.mubr.bf16.gmra.mrb[0].mxu0 %v1509
          %v3226 = vpop.f32.mrb[0].mxu0
          %v3227 = vadd.f32 %v3186, %v3226
          %v3228 = vpop.f32.mrb[0].mxu0
          %v3229 = vadd.f32 %v3188, %v3228
          %v3230 = vpop.f32.mrb[0].mxu0
          %v3231 = vpop.f32.mrb[0].mxu0
          %3232 = vdwg.mxu0
          %3233 = vmatprep.subr.bf16.mxu0 %v2539
          %3234 = vmatpush1.bf16.msra.mxu0 %v2538
          %3235 = vmatprep.subr.bf16.mxu0 %v2543
          %3236 = vmatpush1.bf16.msra.mxu0 %v2542
          %3237 = vmatprep.subr.bf16.mxu0 %v2547
          %3238 = vmatpush1.bf16.msra.mxu0 %v2546
          %3239 = vmatprep.subr.bf16.mxu0 %v2551
          %3240 = vmatpush1.bf16.msra.mxu0 %v2550
          %3241 = vmatprep.subr.bf16.mxu0 %v2555
          %3242 = vmatpush1.bf16.msra.mxu0 %v2554
          %3243 = vmatprep.subr.bf16.mxu0 %v2559
          %3244 = vmatpush1.bf16.msra.mxu0 %v2558
          %3245 = vmatprep.subr.bf16.mxu0 %v2563
          %3246 = vmatpush1.bf16.msra.mxu0 %v2562
          %3247 = vmatprep.subr.bf16.mxu0 %v2567
          %3248 = vmatpush1.bf16.msra.mxu0 %v2566
          %3249 = vmatprep.subr.bf16.mxu0 %v2571
          %3250 = vmatpush1.bf16.msra.mxu0 %v2570
          %3251 = vmatprep.subr.bf16.mxu0 %v2575
          %3252 = vmatpush1.bf16.msra.mxu0 %v2574
          %3253 = vmatprep.subr.bf16.mxu0 %v2579
          %3254 = vmatpush1.bf16.msra.mxu0 %v2578
          %3255 = vmatprep.subr.bf16.mxu0 %v2583
          %3256 = vmatpush1.bf16.msra.mxu0 %v2582
          %3257 = vmatprep.subr.bf16.mxu0 %v2587
          %3258 = vmatpush1.bf16.msra.mxu0 %v2586
          %3259 = vmatprep.subr.bf16.mxu0 %v2591
          %3260 = vmatpush1.bf16.msra.mxu0 %v2590
          %3261 = vmatprep.subr.bf16.mxu0 %v2595
          %3262 = vmatpush1.bf16.msra.mxu0 %v2594
          %3263 = vmatprep.subr.bf16.mxu0 %v2599
          %3264 = vmatpush1.bf16.msra.mxu0 %v2598
          %3265 = vmatprep.mubr.bf16.mxu0 %v1504
          %3266 = vmatmul.mubr.bf16.gmra.mrb[0].mxu0 %v1503
          %v3267 = vpop.f32.mrb[0].mxu0
          %v3268 = vadd.f32 %v3060, %v3267
          %v3269 = vpop.f32.mrb[0].mxu0
          %v3270 = vadd.f32 %v3064, %v3269
          %v3271 = vpop.f32.mrb[0].mxu0
          %v3272 = vpop.f32.mrb[0].mxu0
          %3273 = vdwg.mxu0
          %3274 = vmatprep.subr.bf16.mxu0 %v2603
          %3275 = vmatpush1.bf16.msra.mxu0 %v2602
          %3276 = vmatprep.subr.bf16.mxu0 %v2607
          %3277 = vmatpush1.bf16.msra.mxu0 %v2606
          %3278 = vmatprep.subr.bf16.mxu0 %v2611
          %3279 = vmatpush1.bf16.msra.mxu0 %v2610
          %3280 = vmatprep.subr.bf16.mxu0 %v2615
          %3281 = vmatpush1.bf16.msra.mxu0 %v2614
          %3282 = vmatprep.subr.bf16.mxu0 %v2619
          %3283 = vmatpush1.bf16.msra.mxu0 %v2618
          %3284 = vmatprep.subr.bf16.mxu0 %v2623
          %3285 = vmatpush1.bf16.msra.mxu0 %v2622
          %3286 = vmatprep.subr.bf16.mxu0 %v2627
          %3287 = vmatpush1.bf16.msra.mxu0 %v2626
          %3288 = vmatprep.subr.bf16.mxu0 %v2631
          %3289 = vmatpush1.bf16.msra.mxu0 %v2630
          %3290 = vmatprep.subr.bf16.mxu0 %v2635
          %3291 = vmatpush1.bf16.msra.mxu0 %v2634
          %3292 = vmatprep.subr.bf16.mxu0 %v2639
          %3293 = vmatpush1.bf16.msra.mxu0 %v2638
          %3294 = vmatprep.subr.bf16.mxu0 %v2643
          %3295 = vmatpush1.bf16.msra.mxu0 %v2642
          %3296 = vmatprep.subr.bf16.mxu0 %v2647
          %3297 = vmatpush1.bf16.msra.mxu0 %v2646
          %3298 = vmatprep.subr.bf16.mxu0 %v2651
          %3299 = vmatpush1.bf16.msra.mxu0 %v2650
          %3300 = vmatprep.subr.bf16.mxu0 %v2655
          %3301 = vmatpush1.bf16.msra.mxu0 %v2654
          %3302 = vmatprep.subr.bf16.mxu0 %v2659
          %3303 = vmatpush1.bf16.msra.mxu0 %v2658
          %3304 = vmatprep.subr.bf16.mxu0 %v2663
          %3305 = vmatpush1.bf16.msra.mxu0 %v2662
          %3306 = vmatprep.mubr.bf16.mxu0 %v1506
          %3307 = vmatmul.mubr.bf16.gmra.mrb[0].mxu0 %v1505
          %v3308 = vpop.f32.mrb[0].mxu0
          %v3309 = vadd.f32 %v3268, %v3308
          %v3310 = vpop.f32.mrb[0].mxu0
          %v3311 = vadd.f32 %v3270, %v3310
          %v3312 = vpop.f32.mrb[0].mxu0
          %v3313 = vpop.f32.mrb[0].mxu0
          %3314 = vdwg.mxu0
          %3315 = vmatprep.subr.bf16.mxu0 %v2667
          %3316 = vmatpush1.bf16.msra.mxu0 %v2666
          %3317 = vmatprep.subr.bf16.mxu0 %v2671
          %3318 = vmatpush1.bf16.msra.mxu0 %v2670
          %3319 = vmatprep.subr.bf16.mxu0 %v2675
          %3320 = vmatpush1.bf16.msra.mxu0 %v2674
          %3321 = vmatprep.subr.bf16.mxu0 %v2679
          %3322 = vmatpush1.bf16.msra.mxu0 %v2678
          %3323 = vmatprep.subr.bf16.mxu0 %v2683
          %3324 = vmatpush1.bf16.msra.mxu0 %v2682
          %3325 = vmatprep.subr.bf16.mxu0 %v2687
          %3326 = vmatpush1.bf16.msra.mxu0 %v2686
          %3327 = vmatprep.subr.bf16.mxu0 %v2691
          %3328 = vmatpush1.bf16.msra.mxu0 %v2690
          %3329 = vmatprep.subr.bf16.mxu0 %v2695
          %3330 = vmatpush1.bf16.msra.mxu0 %v2694
          %3331 = vmatprep.subr.bf16.mxu0 %v2699
          %3332 = vmatpush1.bf16.msra.mxu0 %v2698
          %3333 = vmatprep.subr.bf16.mxu0 %v2703
          %3334 = vmatpush1.bf16.msra.mxu0 %v2702
          %3335 = vmatprep.subr.bf16.mxu0 %v2707
          %3336 = vmatpush1.bf16.msra.mxu0 %v2706
          %3337 = vmatprep.subr.bf16.mxu0 %v2711
          %3338 = vmatpush1.bf16.msra.mxu0 %v2710
          %3339 = vmatprep.subr.bf16.mxu0 %v2715
          %3340 = vmatpush1.bf16.msra.mxu0 %v2714
          %3341 = vmatprep.subr.bf16.mxu0 %v2719
          %3342 = vmatpush1.bf16.msra.mxu0 %v2718
          %3343 = vmatprep.subr.bf16.mxu0 %v2723
          %3344 = vmatpush1.bf16.msra.mxu0 %v2722
          %3345 = vmatprep.subr.bf16.mxu0 %v2727
          %3346 = vmatpush1.bf16.msra.mxu0 %v2726
          %3347 = vmatprep.mubr.bf16.mxu0 %v1508
          %3348 = vmatmul.mubr.bf16.gmra.mrb[0].mxu0 %v1507
          %v3349 = vpop.f32.mrb[0].mxu0
          %v3350 = vadd.f32 %v3309, %v3349
          %v3351 = vpop.f32.mrb[0].mxu0
          %v3352 = vadd.f32 %v3311, %v3351
          %v3353 = vpop.f32.mrb[0].mxu0
          %v3354 = vpop.f32.mrb[0].mxu0
          %3355 = vdwg.mxu0
          %3356 = vmatprep.subr.bf16.mxu0 %v2731
          %3357 = vmatpush1.bf16.msra.mxu0 %v2730
          %3358 = vmatprep.subr.bf16.mxu0 %v2735
          %3359 = vmatpush1.bf16.msra.mxu0 %v2734
          %3360 = vmatprep.subr.bf16.mxu0 %v2739
          %3361 = vmatpush1.bf16.msra.mxu0 %v2738
          %3362 = vmatprep.subr.bf16.mxu0 %v2743
          %3363 = vmatpush1.bf16.msra.mxu0 %v2742
          %3364 = vmatprep.subr.bf16.mxu0 %v2747
          %3365 = vmatpush1.bf16.msra.mxu0 %v2746
          %3366 = vmatprep.subr.bf16.mxu0 %v2751
          %3367 = vmatpush1.bf16.msra.mxu0 %v2750
          %3368 = vmatprep.subr.bf16.mxu0 %v2755
          %3369 = vmatpush1.bf16.msra.mxu0 %v2754
          %3370 = vmatprep.subr.bf16.mxu0 %v2759
          %3371 = vmatpush1.bf16.msra.mxu0 %v2758
          %3372 = vmatprep.subr.bf16.mxu0 %v2763
          %3373 = vmatpush1.bf16.msra.mxu0 %v2762
          %3374 = vmatprep.subr.bf16.mxu0 %v2767
          %3375 = vmatpush1.bf16.msra.mxu0 %v2766
          %3376 = vmatprep.subr.bf16.mxu0 %v2771
          %3377 = vmatpush1.bf16.msra.mxu0 %v2770
          %3378 = vmatprep.subr.bf16.mxu0 %v2775
          %3379 = vmatpush1.bf16.msra.mxu0 %v2774
          %3380 = vmatprep.subr.bf16.mxu0 %v2779
          %3381 = vmatpush1.bf16.msra.mxu0 %v2778
          %3382 = vmatprep.subr.bf16.mxu0 %v2783
          %3383 = vmatpush1.bf16.msra.mxu0 %v2782
          %3384 = vmatprep.subr.bf16.mxu0 %v2787
          %3385 = vmatpush1.bf16.msra.mxu0 %v2786
          %3386 = vmatprep.subr.bf16.mxu0 %v2791
          %3387 = vmatpush1.bf16.msra.mxu0 %v2790
          %3388 = vmatprep.mubr.bf16.mxu0 %v1510
          %3389 = vmatmul.mubr.bf16.gmra.mrb[0].mxu0 %v1509
          %v3390 = vpop.f32.mrb[0].mxu0
          %v3391 = vadd.f32 %v3350, %v3390
          %v3392 = vpop.f32.mrb[0].mxu0
          %v3393 = vadd.f32 %v3352, %v3392
          %v3394 = vpop.f32.mrb[0].mxu0
          %v3395 = vpop.f32.mrb[0].mxu0
          %3396 = vdwg.mxu0
          %v3397 = vmax.f32 %v3227, 0.0
          %v3398 = vmax.f32 %v3229, 0.0
          %v3399 = vmax.f32 %v3391, 0.0
          %v3400 = vmax.f32 %v3393, 0.0
          %v3401 = vpack.c.bf16 %v3397, %v3397
          %v3402 = vpack.c.bf16 %v3398, %v3398
          %v3403 = vpack.c.bf16 %v3399, %v3399
          %v3404 = vpack.c.bf16 %v3400, %v3400
          %v3405 = vld [vmem:[#allocation7] sm:$0xff]
          %v3406 = vld [vmem:[#allocation7 + $0x8] sm:$0xff]
          %v3407 = vld [vmem:[#allocation7 + $0x10] sm:$0xff]
          %v3408 = vld [vmem:[#allocation7 + $0x18] sm:$0xff]
          %v3409 = vld [vmem:[#allocation7 + $0x20] sm:$0xff]
          %v3410 = vld [vmem:[#allocation7 + $0x28] sm:$0xff]
          %v3411 = vld [vmem:[#allocation7 + $0x30] sm:$0xff]
          %v3412 = vld [vmem:[#allocation7 + $0x38] sm:$0xff]
          %v3413 = vld [vmem:[#allocation7 + $0x40] sm:$0xff]
          %v3414 = vld [vmem:[#allocation7 + $0x48] sm:$0xff]
          %v3415 = vld [vmem:[#allocation7 + $0x50] sm:$0xff]
          %v3416 = vld [vmem:[#allocation7 + $0x58] sm:$0xff]
          %v3417 = vld [vmem:[#allocation7 + $0x60] sm:$0xff]
          %v3418 = vld [vmem:[#allocation7 + $0x68] sm:$0xff]
          %v3419 = vld [vmem:[#allocation7 + $0x70] sm:$0xff]
          %v3420 = vld [vmem:[#allocation7 + $0x78] sm:$0xff]
          %v3421 = vld [vmem:[#allocation7 + $0x80] sm:$0xff]
          %v3422 = vld [vmem:[#allocation7 + $0x88] sm:$0xff]
          %v3423 = vld [vmem:[#allocation7 + $0x90] sm:$0xff]
          %v3424 = vld [vmem:[#allocation7 + $0x98] sm:$0xff]
          %v3425 = vld [vmem:[#allocation7 + $0xa0] sm:$0xff]
          %v3426 = vld [vmem:[#allocation7 + $0xa8] sm:$0xff]
          %v3427 = vld [vmem:[#allocation7 + $0xb0] sm:$0xff]
          %v3428 = vld [vmem:[#allocation7 + $0xb8] sm:$0xff]
          %v3429 = vld [vmem:[#allocation7 + $0xc0] sm:$0xff]
          %v3430 = vld [vmem:[#allocation7 + $0xc8] sm:$0xff]
          %v3431 = vld [vmem:[#allocation7 + $0xd0] sm:$0xff]
          %v3432 = vld [vmem:[#allocation7 + $0xd8] sm:$0xff]
          %v3433 = vld [vmem:[#allocation7 + $0xe0] sm:$0xff]
          %v3434 = vld [vmem:[#allocation7 + $0xe8] sm:$0xff]
          %v3435 = vld [vmem:[#allocation7 + $0xf0] sm:$0xff]
          %v3436 = vld [vmem:[#allocation7 + $0xf8] sm:$0xff]
          %v3437 = vld [vmem:[#allocation7 + $0x100] sm:$0xff]
          %v3438 = vld [vmem:[#allocation7 + $0x108] sm:$0xff]
          %v3439 = vld [vmem:[#allocation7 + $0x110] sm:$0xff]
          %v3440 = vld [vmem:[#allocation7 + $0x118] sm:$0xff]
          %v3441 = vld [vmem:[#allocation7 + $0x120] sm:$0xff]
          %v3442 = vld [vmem:[#allocation7 + $0x128] sm:$0xff]
          %v3443 = vld [vmem:[#allocation7 + $0x130] sm:$0xff]
          %v3444 = vld [vmem:[#allocation7 + $0x138] sm:$0xff]
          %v3445 = vld [vmem:[#allocation7 + $0x140] sm:$0xff]
          %v3446 = vld [vmem:[#allocation7 + $0x148] sm:$0xff]
          %v3447 = vld [vmem:[#allocation7 + $0x150] sm:$0xff]
          %v3448 = vld [vmem:[#allocation7 + $0x158] sm:$0xff]
          %v3449 = vld [vmem:[#allocation7 + $0x160] sm:$0xff]
          %v3450 = vld [vmem:[#allocation7 + $0x168] sm:$0xff]
          %v3451 = vld [vmem:[#allocation7 + $0x170] sm:$0xff]
          %v3452 = vld [vmem:[#allocation7 + $0x178] sm:$0xff]
          %v3453 = vld [vmem:[#allocation7 + $0x180] sm:$0xff]
          %v3454 = vld [vmem:[#allocation7 + $0x188] sm:$0xff]
          %v3455 = vld [vmem:[#allocation7 + $0x190] sm:$0xff]
          %v3456 = vld [vmem:[#allocation7 + $0x198] sm:$0xff]
          %v3457 = vld [vmem:[#allocation7 + $0x1a0] sm:$0xff]
          %v3458 = vld [vmem:[#allocation7 + $0x1a8] sm:$0xff]
          %v3459 = vld [vmem:[#allocation7 + $0x1b0] sm:$0xff]
          %v3460 = vld [vmem:[#allocation7 + $0x1b8] sm:$0xff]
          %v3461 = vld [vmem:[#allocation7 + $0x1c0] sm:$0xff]
          %v3462 = vld [vmem:[#allocation7 + $0x1c8] sm:$0xff]
          %v3463 = vld [vmem:[#allocation7 + $0x1d0] sm:$0xff]
          %v3464 = vld [vmem:[#allocation7 + $0x1d8] sm:$0xff]
          %v3465 = vld [vmem:[#allocation7 + $0x1e0] sm:$0xff]
          %v3466 = vld [vmem:[#allocation7 + $0x1e8] sm:$0xff]
          %v3467 = vld [vmem:[#allocation7 + $0x1f0] sm:$0xff]
          %v3468 = vld [vmem:[#allocation7 + $0x1f8] sm:$0xff]
          %v3469 = vld [vmem:[%s10] sm:$0x3]
          %v3534 = vunpack.c.l.b16 %v3405
          %v3535 = vunpack.c.h.b16 %v3405
          %v3536 = vunpack.c.l.b16 %v3406
          %v3537 = vunpack.c.h.b16 %v3406
          %v3538 = vunpack.c.l.b16 %v3407
          %v3539 = vunpack.c.h.b16 %v3407
          %v3540 = vunpack.c.l.b16 %v3408
          %v3541 = vunpack.c.h.b16 %v3408
          %v3542 = vunpack.c.l.b16 %v3409
          %v3543 = vunpack.c.h.b16 %v3409
          %v3544 = vunpack.c.l.b16 %v3410
          %v3545 = vunpack.c.h.b16 %v3410
          %v3546 = vunpack.c.l.b16 %v3411
          %v3547 = vunpack.c.h.b16 %v3411
          %v3548 = vunpack.c.l.b16 %v3412
          %v3549 = vunpack.c.h.b16 %v3412
          %v3550 = vunpack.c.l.b16 %v3413
          %v3551 = vunpack.c.h.b16 %v3413
          %v3552 = vunpack.c.l.b16 %v3414
          %v3553 = vunpack.c.h.b16 %v3414
          %v3554 = vunpack.c.l.b16 %v3415
          %v3555 = vunpack.c.h.b16 %v3415
          %v3556 = vunpack.c.l.b16 %v3416
          %v3557 = vunpack.c.h.b16 %v3416
          %v3558 = vunpack.c.l.b16 %v3417
          %v3559 = vunpack.c.h.b16 %v3417
          %v3560 = vunpack.c.l.b16 %v3418
          %v3561 = vunpack.c.h.b16 %v3418
          %v3562 = vunpack.c.l.b16 %v3419
          %v3563 = vunpack.c.h.b16 %v3419
          %v3564 = vunpack.c.l.b16 %v3420
          %v3565 = vunpack.c.h.b16 %v3420
          %v3566 = vunpack.c.l.b16 %v3421
          %v3567 = vunpack.c.h.b16 %v3421
          %v3568 = vunpack.c.l.b16 %v3422
          %v3569 = vunpack.c.h.b16 %v3422
          %v3570 = vunpack.c.l.b16 %v3423
          %v3571 = vunpack.c.h.b16 %v3423
          %v3572 = vunpack.c.l.b16 %v3424
          %v3573 = vunpack.c.h.b16 %v3424
          %v3574 = vunpack.c.l.b16 %v3425
          %v3575 = vunpack.c.h.b16 %v3425
          %v3576 = vunpack.c.l.b16 %v3426
          %v3577 = vunpack.c.h.b16 %v3426
          %v3578 = vunpack.c.l.b16 %v3427
          %v3579 = vunpack.c.h.b16 %v3427
          %v3580 = vunpack.c.l.b16 %v3428
          %v3581 = vunpack.c.h.b16 %v3428
          %v3582 = vunpack.c.l.b16 %v3429
          %v3583 = vunpack.c.h.b16 %v3429
          %v3584 = vunpack.c.l.b16 %v3430
          %v3585 = vunpack.c.h.b16 %v3430
          %v3586 = vunpack.c.l.b16 %v3431
          %v3587 = vunpack.c.h.b16 %v3431
          %v3588 = vunpack.c.l.b16 %v3432
          %v3589 = vunpack.c.h.b16 %v3432
          %v3590 = vunpack.c.l.b16 %v3433
          %v3591 = vunpack.c.h.b16 %v3433
          %v3592 = vunpack.c.l.b16 %v3434
          %v3593 = vunpack.c.h.b16 %v3434
          %v3594 = vunpack.c.l.b16 %v3435
          %v3595 = vunpack.c.h.b16 %v3435
          %v3596 = vunpack.c.l.b16 %v3436
          %v3597 = vunpack.c.h.b16 %v3436
          %v3598 = vunpack.c.l.b16 %v3437
          %v3599 = vunpack.c.h.b16 %v3437
          %v3600 = vunpack.c.l.b16 %v3438
          %v3601 = vunpack.c.h.b16 %v3438
          %v3602 = vunpack.c.l.b16 %v3439
          %v3603 = vunpack.c.h.b16 %v3439
          %v3604 = vunpack.c.l.b16 %v3440
          %v3605 = vunpack.c.h.b16 %v3440
          %v3606 = vunpack.c.l.b16 %v3441
          %v3607 = vunpack.c.h.b16 %v3441
          %v3608 = vunpack.c.l.b16 %v3442
          %v3609 = vunpack.c.h.b16 %v3442
          %v3610 = vunpack.c.l.b16 %v3443
          %v3611 = vunpack.c.h.b16 %v3443
          %v3612 = vunpack.c.l.b16 %v3444
          %v3613 = vunpack.c.h.b16 %v3444
          %v3614 = vunpack.c.l.b16 %v3445
          %v3615 = vunpack.c.h.b16 %v3445
          %v3616 = vunpack.c.l.b16 %v3446
          %v3617 = vunpack.c.h.b16 %v3446
          %v3618 = vunpack.c.l.b16 %v3447
          %v3619 = vunpack.c.h.b16 %v3447
          %v3620 = vunpack.c.l.b16 %v3448
          %v3621 = vunpack.c.h.b16 %v3448
          %v3622 = vunpack.c.l.b16 %v3449
          %v3623 = vunpack.c.h.b16 %v3449
          %v3624 = vunpack.c.l.b16 %v3450
          %v3625 = vunpack.c.h.b16 %v3450
          %v3626 = vunpack.c.l.b16 %v3451
          %v3627 = vunpack.c.h.b16 %v3451
          %v3628 = vunpack.c.l.b16 %v3452
          %v3629 = vunpack.c.h.b16 %v3452
          %v3630 = vunpack.c.l.b16 %v3453
          %v3631 = vunpack.c.h.b16 %v3453
          %v3632 = vunpack.c.l.b16 %v3454
          %v3633 = vunpack.c.h.b16 %v3454
          %v3634 = vunpack.c.l.b16 %v3455
          %v3635 = vunpack.c.h.b16 %v3455
          %v3636 = vunpack.c.l.b16 %v3456
          %v3637 = vunpack.c.h.b16 %v3456
          %v3638 = vunpack.c.l.b16 %v3457
          %v3639 = vunpack.c.h.b16 %v3457
          %v3640 = vunpack.c.l.b16 %v3458
          %v3641 = vunpack.c.h.b16 %v3458
          %v3642 = vunpack.c.l.b16 %v3459
          %v3643 = vunpack.c.h.b16 %v3459
          %v3644 = vunpack.c.l.b16 %v3460
          %v3645 = vunpack.c.h.b16 %v3460
          %v3646 = vunpack.c.l.b16 %v3461
          %v3647 = vunpack.c.h.b16 %v3461
          %v3648 = vunpack.c.l.b16 %v3462
          %v3649 = vunpack.c.h.b16 %v3462
          %v3650 = vunpack.c.l.b16 %v3463
          %v3651 = vunpack.c.h.b16 %v3463
          %v3652 = vunpack.c.l.b16 %v3464
          %v3653 = vunpack.c.h.b16 %v3464
          %v3654 = vunpack.c.l.b16 %v3465
          %v3655 = vunpack.c.h.b16 %v3465
          %v3656 = vunpack.c.l.b16 %v3466
          %v3657 = vunpack.c.h.b16 %v3466
          %v3658 = vunpack.c.l.b16 %v3467
          %v3659 = vunpack.c.h.b16 %v3467
          %v3660 = vunpack.c.l.b16 %v3468
          %v3661 = vunpack.c.h.b16 %v3468
          %v3662 = vpack.c.b16 %v3536, %v3534
          %v3663 = vpack.c.b16 %v3537, %v3535
          %v3664 = vpack.c.b16 %v3540, %v3538
          %v3665 = vpack.c.b16 %v3541, %v3539
          %v3666 = vpack.c.b16 %v3544, %v3542
          %v3667 = vpack.c.b16 %v3545, %v3543
          %v3668 = vpack.c.b16 %v3548, %v3546
          %v3669 = vpack.c.b16 %v3549, %v3547
          %v3670 = vpack.c.b16 %v3552, %v3550
          %v3671 = vpack.c.b16 %v3553, %v3551
          %v3672 = vpack.c.b16 %v3556, %v3554
          %v3673 = vpack.c.b16 %v3557, %v3555
          %v3674 = vpack.c.b16 %v3560, %v3558
          %v3675 = vpack.c.b16 %v3561, %v3559
          %v3676 = vpack.c.b16 %v3564, %v3562
          %v3677 = vpack.c.b16 %v3565, %v3563
          %v3678 = vpack.c.b16 %v3568, %v3566
          %v3679 = vpack.c.b16 %v3569, %v3567
          %v3680 = vpack.c.b16 %v3572, %v3570
          %v3681 = vpack.c.b16 %v3573, %v3571
          %v3682 = vpack.c.b16 %v3576, %v3574
          %v3683 = vpack.c.b16 %v3577, %v3575
          %v3684 = vpack.c.b16 %v3580, %v3578
          %v3685 = vpack.c.b16 %v3581, %v3579
          %v3686 = vpack.c.b16 %v3584, %v3582
          %v3687 = vpack.c.b16 %v3585, %v3583
          %v3688 = vpack.c.b16 %v3588, %v3586
          %v3689 = vpack.c.b16 %v3589, %v3587
          %v3690 = vpack.c.b16 %v3592, %v3590
          %v3691 = vpack.c.b16 %v3593, %v3591
          %v3692 = vpack.c.b16 %v3596, %v3594
          %v3693 = vpack.c.b16 %v3597, %v3595
          %v3694 = vpack.c.b16 %v3600, %v3598
          %v3695 = vpack.c.b16 %v3601, %v3599
          %v3696 = vpack.c.b16 %v3604, %v3602
          %v3697 = vpack.c.b16 %v3605, %v3603
          %v3698 = vpack.c.b16 %v3608, %v3606
          %v3699 = vpack.c.b16 %v3609, %v3607
          %v3700 = vpack.c.b16 %v3612, %v3610
          %v3701 = vpack.c.b16 %v3613, %v3611
          %v3702 = vpack.c.b16 %v3616, %v3614
          %v3703 = vpack.c.b16 %v3617, %v3615
          %v3704 = vpack.c.b16 %v3620, %v3618
          %v3705 = vpack.c.b16 %v3621, %v3619
          %v3706 = vpack.c.b16 %v3624, %v3622
          %v3707 = vpack.c.b16 %v3625, %v3623
          %v3708 = vpack.c.b16 %v3628, %v3626
          %v3709 = vpack.c.b16 %v3629, %v3627
          %v3710 = vpack.c.b16 %v3632, %v3630
          %v3711 = vpack.c.b16 %v3633, %v3631
          %v3712 = vpack.c.b16 %v3636, %v3634
          %v3713 = vpack.c.b16 %v3637, %v3635
          %v3714 = vpack.c.b16 %v3640, %v3638
          %v3715 = vpack.c.b16 %v3641, %v3639
          %v3716 = vpack.c.b16 %v3644, %v3642
          %v3717 = vpack.c.b16 %v3645, %v3643
          %v3718 = vpack.c.b16 %v3648, %v3646
          %v3719 = vpack.c.b16 %v3649, %v3647
          %v3720 = vpack.c.b16 %v3652, %v3650
          %v3721 = vpack.c.b16 %v3653, %v3651
          %v3722 = vpack.c.b16 %v3656, %v3654
          %v3723 = vpack.c.b16 %v3657, %v3655
          %v3724 = vpack.c.b16 %v3660, %v3658
          %v3725 = vpack.c.b16 %v3661, %v3659
          %v3791 = vlaneseq
          %v3792 = vshrl.u32 %v3791, 7
          %v3793 = vsub.s32 0, %v3792
          %v3794 = vrot.slane %v3469, %v3793
          %v3795 = vlaneseq
          %v3796 = vshrl.u32 %v3795, 7
          %v3797 = vsub.s32 1, %v3796
          %v3798 = vrot.slane %v3469, %v3797
          %3801 = vmatprep.subr.bf16.mxu0 %v3663
          %3802 = vmatpush1.bf16.msra.mxu0 %v3662
          %3803 = vmatprep.subr.bf16.mxu0 %v3665
          %3804 = vmatpush1.bf16.msra.mxu0 %v3664
          %3805 = vmatprep.subr.bf16.mxu0 %v3667
          %3806 = vmatpush1.bf16.msra.mxu0 %v3666
          %3807 = vmatprep.subr.bf16.mxu0 %v3669
          %3808 = vmatpush1.bf16.msra.mxu0 %v3668
          %3809 = vmatprep.subr.bf16.mxu0 %v3671
          %3810 = vmatpush1.bf16.msra.mxu0 %v3670
          %3811 = vmatprep.subr.bf16.mxu0 %v3673
          %3812 = vmatpush1.bf16.msra.mxu0 %v3672
          %3813 = vmatprep.subr.bf16.mxu0 %v3675
          %3814 = vmatpush1.bf16.msra.mxu0 %v3674
          %3815 = vmatprep.subr.bf16.mxu0 %v3677
          %3816 = vmatpush1.bf16.msra.mxu0 %v3676
          %3817 = vmatprep.subr.bf16.mxu0 %v3679
          %3818 = vmatpush1.bf16.msra.mxu0 %v3678
          %3819 = vmatprep.subr.bf16.mxu0 %v3681
          %3820 = vmatpush1.bf16.msra.mxu0 %v3680
          %3821 = vmatprep.subr.bf16.mxu0 %v3683
          %3822 = vmatpush1.bf16.msra.mxu0 %v3682
          %3823 = vmatprep.subr.bf16.mxu0 %v3685
          %3824 = vmatpush1.bf16.msra.mxu0 %v3684
          %3825 = vmatprep.subr.bf16.mxu0 %v3687
          %3826 = vmatpush1.bf16.msra.mxu0 %v3686
          %3827 = vmatprep.subr.bf16.mxu0 %v3689
          %3828 = vmatpush1.bf16.msra.mxu0 %v3688
          %3829 = vmatprep.subr.bf16.mxu0 %v3691
          %3830 = vmatpush1.bf16.msra.mxu0 %v3690
          %3831 = vmatprep.subr.bf16.mxu0 %v3693
          %3832 = vmatpush1.bf16.msra.mxu0 %v3692
          %3833 = vmatprep.mubr.bf16.mxu0 %v3402
          %3834 = vmatmul.mubr.bf16.gmra.mrb[0].mxu0 %v3401
          %v3835 = vpop.f32.mrb[0].mxu0
          %v3836 = vadd.f32 %v3794, %v3835
          %v3837 = vpop.f32.mrb[0].mxu0
          %v3838 = vadd.f32 %v3798, %v3837
          %v3839 = vpop.f32.mrb[0].mxu0
          %v3840 = vpop.f32.mrb[0].mxu0
          %3841 = vdwg.mxu0
          %3842 = vmatprep.subr.bf16.mxu0 %v3695
          %3843 = vmatpush1.bf16.msra.mxu0 %v3694
          %3844 = vmatprep.subr.bf16.mxu0 %v3697
          %3845 = vmatpush1.bf16.msra.mxu0 %v3696
          %3846 = vmatprep.subr.bf16.mxu0 %v3699
          %3847 = vmatpush1.bf16.msra.mxu0 %v3698
          %3848 = vmatprep.subr.bf16.mxu0 %v3701
          %3849 = vmatpush1.bf16.msra.mxu0 %v3700
          %3850 = vmatprep.subr.bf16.mxu0 %v3703
          %3851 = vmatpush1.bf16.msra.mxu0 %v3702
          %3852 = vmatprep.subr.bf16.mxu0 %v3705
          %3853 = vmatpush1.bf16.msra.mxu0 %v3704
          %3854 = vmatprep.subr.bf16.mxu0 %v3707
          %3855 = vmatpush1.bf16.msra.mxu0 %v3706
          %3856 = vmatprep.subr.bf16.mxu0 %v3709
          %3857 = vmatpush1.bf16.msra.mxu0 %v3708
          %3858 = vmatprep.subr.bf16.mxu0 %v3711
          %3859 = vmatpush1.bf16.msra.mxu0 %v3710
          %3860 = vmatprep.subr.bf16.mxu0 %v3713
          %3861 = vmatpush1.bf16.msra.mxu0 %v3712
          %3862 = vmatprep.subr.bf16.mxu0 %v3715
          %3863 = vmatpush1.bf16.msra.mxu0 %v3714
          %3864 = vmatprep.subr.bf16.mxu0 %v3717
          %3865 = vmatpush1.bf16.msra.mxu0 %v3716
          %3866 = vmatprep.subr.bf16.mxu0 %v3719
          %3867 = vmatpush1.bf16.msra.mxu0 %v3718
          %3868 = vmatprep.subr.bf16.mxu0 %v3721
          %3869 = vmatpush1.bf16.msra.mxu0 %v3720
          %3870 = vmatprep.subr.bf16.mxu0 %v3723
          %3871 = vmatpush1.bf16.msra.mxu0 %v3722
          %3872 = vmatprep.subr.bf16.mxu0 %v3725
          %3873 = vmatpush1.bf16.msra.mxu0 %v3724
          %3874 = vmatprep.mubr.bf16.mxu0 %v3404
          %3875 = vmatmul.mubr.bf16.gmra.mrb[0].mxu0 %v3403
          %v3876 = vpop.f32.mrb[0].mxu0
          %v3877 = vadd.f32 %v3836, %v3876
          %v3878 = vpop.f32.mrb[0].mxu0
          %v3879 = vadd.f32 %v3838, %v3878
          %v3880 = vpop.f32.mrb[0].mxu0
          %v3881 = vpop.f32.mrb[0].mxu0
          %3882 = vdwg.mxu0
          %v3883 = vmax.f32 %v3877, 0.0
          %v3884 = vmax.f32 %v3879, 0.0
          %v3885 = vpack.c.bf16 %v3883, %v3883
          %v3886 = vpack.c.bf16 %v3884, %v3884
          %v3887 = vld [vmem:[%s11] sm:$0xf]
          %v3888 = vld [vmem:[%s11 + $0x4] sm:$0xf]
          %v3889 = vld [vmem:[%s11 + $0x8] sm:$0xf]
          %v3890 = vld [vmem:[%s11 + $0xc] sm:$0xf]
          %v3891 = vld [vmem:[%s11 + $0x10] sm:$0xf]
          %v3892 = vld [vmem:[%s11 + $0x14] sm:$0xf]
          %v3893 = vld [vmem:[%s11 + $0x18] sm:$0xf]
          %v3894 = vld [vmem:[%s11 + $0x1c] sm:$0xf]
          %v3895 = vld [vmem:[%s11 + $0x20] sm:$0xf]
          %v3896 = vld [vmem:[%s11 + $0x24] sm:$0xf]
          %v3897 = vld [vmem:[%s11 + $0x28] sm:$0xf]
          %v3898 = vld [vmem:[%s11 + $0x2c] sm:$0xf]
          %v3899 = vld [vmem:[%s11 + $0x30] sm:$0xf]
          %v3900 = vld [vmem:[%s11 + $0x34] sm:$0xf]
          %v3901 = vld [vmem:[%s11 + $0x38] sm:$0xf]
          %v3902 = vld [vmem:[%s11 + $0x3c] sm:$0xf]
          %v3903 = vld [vmem:[%s11 + $0x40] sm:$0xf]
          %v3904 = vld [vmem:[%s11 + $0x44] sm:$0xf]
          %v3905 = vld [vmem:[%s11 + $0x48] sm:$0xf]
          %v3906 = vld [vmem:[%s11 + $0x4c] sm:$0xf]
          %v3907 = vld [vmem:[%s11 + $0x50] sm:$0xf]
          %v3908 = vld [vmem:[%s11 + $0x54] sm:$0xf]
          %v3909 = vld [vmem:[%s11 + $0x58] sm:$0xf]
          %v3910 = vld [vmem:[%s11 + $0x5c] sm:$0xf]
          %v3911 = vld [vmem:[%s11 + $0x60] sm:$0xf]
          %v3912 = vld [vmem:[%s11 + $0x64] sm:$0xf]
          %v3913 = vld [vmem:[%s11 + $0x68] sm:$0xf]
          %v3914 = vld [vmem:[%s11 + $0x6c] sm:$0xf]
          %v3915 = vld [vmem:[%s11 + $0x70] sm:$0xf]
          %v3916 = vld [vmem:[%s11 + $0x74] sm:$0xf]
          %v3917 = vld [vmem:[%s11 + $0x78] sm:$0xf]
          %v3918 = vld [vmem:[%s11 + $0x7c] sm:$0xf]
          %v3919 = vld [vmem:[%s12] sm:$0x1]
          %v3952 = vunpack.c.l.b16 %v3887
          %v3953 = vunpack.c.l.b16 %v3888
          %v3954 = vunpack.c.l.b16 %v3889
          %v3955 = vunpack.c.l.b16 %v3890
          %v3956 = vunpack.c.l.b16 %v3891
          %v3957 = vunpack.c.l.b16 %v3892
          %v3958 = vunpack.c.l.b16 %v3893
          %v3959 = vunpack.c.l.b16 %v3894
          %v3960 = vunpack.c.l.b16 %v3895
          %v3961 = vunpack.c.l.b16 %v3896
          %v3962 = vunpack.c.l.b16 %v3897
          %v3963 = vunpack.c.l.b16 %v3898
          %v3964 = vunpack.c.l.b16 %v3899
          %v3965 = vunpack.c.l.b16 %v3900
          %v3966 = vunpack.c.l.b16 %v3901
          %v3967 = vunpack.c.l.b16 %v3902
          %v3968 = vunpack.c.l.b16 %v3903
          %v3969 = vunpack.c.l.b16 %v3904
          %v3970 = vunpack.c.l.b16 %v3905
          %v3971 = vunpack.c.l.b16 %v3906
          %v3972 = vunpack.c.l.b16 %v3907
          %v3973 = vunpack.c.l.b16 %v3908
          %v3974 = vunpack.c.l.b16 %v3909
          %v3975 = vunpack.c.l.b16 %v3910
          %v3976 = vunpack.c.l.b16 %v3911
          %v3977 = vunpack.c.l.b16 %v3912
          %v3978 = vunpack.c.l.b16 %v3913
          %v3979 = vunpack.c.l.b16 %v3914
          %v3980 = vunpack.c.l.b16 %v3915
          %v3981 = vunpack.c.l.b16 %v3916
          %v3982 = vunpack.c.l.b16 %v3917
          %v3983 = vunpack.c.l.b16 %v3918
          %v3984 = vpack.c.b16 %v3953, %v3952
          %v3985 = vpack.c.b16 %v3955, %v3954
          %v3986 = vpack.c.b16 %v3957, %v3956
          %v3987 = vpack.c.b16 %v3959, %v3958
          %v3988 = vpack.c.b16 %v3961, %v3960
          %v3989 = vpack.c.b16 %v3963, %v3962
          %v3990 = vpack.c.b16 %v3965, %v3964
          %v3991 = vpack.c.b16 %v3967, %v3966
          %v3992 = vpack.c.b16 %v3969, %v3968
          %v3993 = vpack.c.b16 %v3971, %v3970
          %v3994 = vpack.c.b16 %v3973, %v3972
          %v3995 = vpack.c.b16 %v3975, %v3974
          %v3996 = vpack.c.b16 %v3977, %v3976
          %v3997 = vpack.c.b16 %v3979, %v3978
          %v3998 = vpack.c.b16 %v3981, %v3980
          %v3999 = vpack.c.b16 %v3983, %v3982
          %4016 = vmatprep.subr.bf16.mxu0 0
          %4017 = vmatpush1.bf16.msra.mxu0 %v3984
          %4018 = vmatprep.subr.bf16.mxu0 0
          %4019 = vmatpush1.bf16.msra.mxu0 %v3985
          %4020 = vmatprep.subr.bf16.mxu0 0
          %4021 = vmatpush1.bf16.msra.mxu0 %v3986
          %4022 = vmatprep.subr.bf16.mxu0 0
          %4023 = vmatpush1.bf16.msra.mxu0 %v3987
          %4024 = vmatprep.subr.bf16.mxu0 0
          %4025 = vmatpush1.bf16.msra.mxu0 %v3988
          %4026 = vmatprep.subr.bf16.mxu0 0
          %4027 = vmatpush1.bf16.msra.mxu0 %v3989
          %4028 = vmatprep.subr.bf16.mxu0 0
          %4029 = vmatpush1.bf16.msra.mxu0 %v3990
          %4030 = vmatprep.subr.bf16.mxu0 0
          %4031 = vmatpush1.bf16.msra.mxu0 %v3991
          %4032 = vmatprep.subr.bf16.mxu0 0
          %4033 = vmatpush1.bf16.msra.mxu0 %v3992
          %4034 = vmatprep.subr.bf16.mxu0 0
          %4035 = vmatpush1.bf16.msra.mxu0 %v3993
          %4036 = vmatprep.subr.bf16.mxu0 0
          %4037 = vmatpush1.bf16.msra.mxu0 %v3994
          %4038 = vmatprep.subr.bf16.mxu0 0
          %4039 = vmatpush1.bf16.msra.mxu0 %v3995
          %4040 = vmatprep.subr.bf16.mxu0 0
          %4041 = vmatpush1.bf16.msra.mxu0 %v3996
          %4042 = vmatprep.subr.bf16.mxu0 0
          %4043 = vmatpush1.bf16.msra.mxu0 %v3997
          %4044 = vmatprep.subr.bf16.mxu0 0
          %4045 = vmatpush1.bf16.msra.mxu0 %v3998
          %4046 = vmatprep.subr.bf16.mxu0 0
          %4047 = vmatpush1.bf16.msra.mxu0 %v3999
          %4048 = vmatprep.mubr.bf16.mxu0 %v3886
          %4049 = vmatmul.mubr.bf16.gmra.mrb[0].mxu0 %v3885
          %v4050 = vpop.f32.mrb[0].mxu0
          %v4051 = vadd.f32 %v3919, %v4050
          %v4052 = vpop.f32.mrb[0].mxu0
          %v4053 = vpop.f32.mrb[0].mxu0
          %v4054 = vpop.f32.mrb[0].mxu0
          %4055 = vdwg.mxu0
          %vm4056 = vcmask 122880
          %4057 = vst.msk [vmem:[%s508] sm:$0x1] %vm4056, %v4051
        $region96: #{pointnet_dense_cls_forward.3} parent=71 // pred_fallthru
          _
        %p4058 = scmp.lt.s32.totalorder %s30, 1
        %s4059 = scalar_select %p4058, %s30, 1
        %s4060 = scalar_lea.vmem %s13, %s4059
        // Predicated region
        $region97: #{pointnet_dense_cls_forward.3} parent=71 // pred_check
          %p4061 = pneg %p336
        $region98: #{pointnet_dense_cls_forward.3} parent=71 // pred_check_branch
          %4063 = sbr.rel (%p4061) target = $region100
        $region99: #{pointnet_dense_cls_forward.3} parent=71 // pred_region
          _
        $region100: #{pointnet_dense_cls_forward.3} parent=71 // pred_fallthru
          _
      $region72: #{pointnet_dense_cls_forward.3} parent=5 // pred_fallthru
        _
      %p4064 = scmp.le.s32.totalorder 2, %s21
      // Predicated region
      $region101: #{pointnet_dense_cls_forward.3} parent=5 // pred_check
        %p4065 = pneg %p4064
      $region102: #{pointnet_dense_cls_forward.3} parent=5 // pred_check_branch
        %4067 = sbr.rel (%p4065) target = $region104
      $region103: #{pointnet_dense_cls_forward.3} parent=5 // pred_region
        %s4068 = ssub.s32 %s21, 2
        // Predicated region
        $region105: #{pointnet_dense_cls_forward.3} parent=103 // pred_check
          %p4069 = pneg %p342
        $region106: #{pointnet_dense_cls_forward.3} parent=103 // pred_check_branch
          %4071 = sbr.rel (%p4069) target = $region108
        $region107: #{pointnet_dense_cls_forward.3} parent=103 // pred_region
          %p4072 = scmp.lt.s32.totalorder %s32, 1
          %s4073 = scalar_select %p4072, %s32, 1
          %s4074 = scalar_lea.vmem %s13, %s4073
        $region108: #{pointnet_dense_cls_forward.3} parent=103 // pred_fallthru
          _
      $region104: #{pointnet_dense_cls_forward.3} parent=5 // pred_fallthru
        _
    $region6: #{pointnet_dense_cls_forward.3} parent=1 // loop_footer
      %s25 = sadd.s32 1, %s21
    $region7: #{pointnet_dense_cls_forward.3} parent=1 // loop_footer_branch
      %20 = sbr.rel target = $region3
    $region8: #{pointnet_dense_cls_forward.3} parent=1 // loop_exit
      _
    %4075 = vsyncpa [#allocation4], 1
    %s4076 = scalar_lea.sflag [#allocation4], 1
    %4077 = vsyncpa %s4076, 1
    %4078 = vsyncpa [#allocation6], 1

// kernel: pointnet_dense_cls_forward.5
$region0: #{pointnet_dense_cls_forward.5}
  #allocation0 [shape = 'u32[]', space=smem, size = 0x4, offset = 0x4, fixed_abs, tag = 'smem constant byte address 0x4 - core index']
  #allocation1 [shape = 'u32[144,128]{1,0:T(1,128)}', space=vmem, size = 0x12000, scoped, tag = 'internal scratch']
  %s0 = inlined_call_operand.vmem [shape: f32[2,16,4], index: 0, kind: input, shape index: {}]
  %s1 = inlined_call_operand.vmem [shape: bf16[2,4,64], index: 1, kind: input, shape index: {}]
  %s2 = inlined_call_operand.vmem [shape: f32[2,1,512], index: 2, kind: input, shape index: {}]
  %s3 = inlined_call_operand.vmem [shape: f32[1,64], index: 3, kind: input, shape index: {}]
  %s4 = inlined_call_operand.vmem [shape: bf16[64,512], index: 4, kind: input, shape index: {}]
  %s5 = inlined_call_operand.vmem [shape: f32[1,512], index: 5, kind: input, shape index: {}]
  %s6 = inlined_call_operand.vmem [shape: bf16[512,512], index: 6, kind: input, shape index: {}]
  %s7 = inlined_call_operand.vmem [shape: f32[1,512], index: 7, kind: input, shape index: {}]
  %s8 = inlined_call_operand.vmem [shape: bf16[256,384], index: 8, kind: input, shape index: {}]
  %s9 = inlined_call_operand.vmem [shape: f32[1,384], index: 9, kind: input, shape index: {}]
  %s10 = inlined_call_operand.vmem [shape: bf16[128,258], index: 10, kind: input, shape index: {}]
  %s11 = inlined_call_operand.vmem [shape: f32[1,258], index: 11, kind: input, shape index: {}]
  %s12 = inlined_call_operand.vmem [shape: bf16[256,512], index: 12, kind: input, shape index: {}]
  %s13 = inlined_call_operand.vmem [shape: f32[1,512], index: 13, kind: input, shape index: {}]
  %s14 = inlined_call_operand.vmem [shape: f32[2,16,2], index: 14, kind: output, shape index: {0}]
  %s15 = inlined_call_operand.vmem [shape: bf16[2,16,512], index: 15, kind: output, shape index: {1}]
  %16 = xla_tuple %s14, %s15
  %s17 = sld [smem:[#allocation0]]
  $region97: #{pointnet_dense_cls_forward.5} parent=0
    _
  %s19 = ssub.s32 1, %s17
  %s20 = scalar_select 0, %s19, %s17
  loop: start=0, step=1, limit=4
  $region2: #{pointnet_dense_cls_forward.5} parent=0 // loop_pre_header
    _
  $region3: #{pointnet_dense_cls_forward.5} parent=0 // loop_header
    %s22 = sphi 0, %s26
    %p23 = scmp.ge.s32.totalorder %s22, 4
    %s29 = sphi 0, %s41
    %s30 = sphi 0, %s37
    %s31 = sphi 0, %s29
    %s32 = sphi 0, %s30
    %s33 = sphi 0, %s31
    %s34 = sphi 0, %s32
    %s46 = sphi 0, %s48
    %s49 = sphi 0, %s46
    %s50 = sphi 0, %s49
    %s66 = sphi 0, %s50
    %s72 = sphi 0, %s74
    %s75 = sphi 0, %s72
    %s76 = sphi 0, %s75
    %s92 = sphi 0, %s76
    %s98 = sphi 0, %s100
    %s101 = sphi 0, %s98
    %s102 = sphi 0, %s101
    %s118 = sphi 0, %s102
    %s122 = sphi 0, %s122
    %s124 = sphi 0, %s122
    %s125 = sphi 0, %s124
    %s139 = sphi 0, %s125
    %s143 = sphi 0, %s143
    %s145 = sphi 0, %s143
    %s146 = sphi 0, %s145
    %s160 = sphi 0, %s146
    %s164 = sphi 0, %s164
    %s166 = sphi 0, %s164
    %s167 = sphi 0, %s166
    %s181 = sphi 0, %s167
    %s185 = sphi 0, %s185
    %s187 = sphi 0, %s185
    %s188 = sphi 0, %s187
    %s202 = sphi 0, %s188
    %s206 = sphi 0, %s206
    %s208 = sphi 0, %s206
    %s209 = sphi 0, %s208
    %s223 = sphi 0, %s209
    %s227 = sphi 0, %s227
    %s229 = sphi 0, %s227
    %s230 = sphi 0, %s229
    %s244 = sphi 0, %s230
    %s248 = sphi 0, %s248
    %s250 = sphi 0, %s248
    %s251 = sphi 0, %s250
    %s265 = sphi 0, %s251
    %s269 = sphi 0, %s269
    %s271 = sphi 0, %s269
    %s272 = sphi 0, %s271
    %s286 = sphi 0, %s272
    %s290 = sphi 0, %s290
    %s292 = sphi 0, %s290
    %s293 = sphi 0, %s292
    %s307 = sphi 0, %s293
    %s311 = sphi 0, %s311
    %s313 = sphi 0, %s311
    %s314 = sphi 0, %s313
    %s328 = sphi 0, %s314
    %s332 = sphi 0, %s332
    %s334 = sphi 0, %s332
    %s335 = sphi 0, %s334
    %s349 = sphi 0, %s335
    %s357 = sphi 0, %s359
    %s360 = sphi 0, %s357
    %s361 = sphi 0, %s360
    %s377 = sphi 0, %s361
    %s385 = sphi 0, %s387
    %s388 = sphi 0, %s385
    %s389 = sphi 0, %s388
    %s405 = sphi 0, %s389
  $region4: #{pointnet_dense_cls_forward.5} parent=0 // loop_header_branch
    %25 = sbr.rel (%p23) target = $region8
  $region5: #{pointnet_dense_cls_forward.5} parent=0 // loop_body
    %s27 = ssub.s32 %s22, 1
    %s28 = ssub.s32 %s22, 2
    %s35 = sadd.s32 1, %s30
    %p36 = scmp.ge.s32.totalorder %s35, 1
    %s37 = scalar_select %p36, 0, %s35
    %s38 = sadd.s32 1, %s29
    %s39 = scalar_select %p36, %s38, %s29
    %p40 = scmp.ge.s32.totalorder %s39, 2
    %s41 = scalar_select %p40, 0, %s39
    %s42 = ssub.s32 %s29, %s41
    %s43 = ssub.s32 %s30, %s37
    %s44 = sor.u32 %s42, %s43
    %p45 = scmp.eq.s32.totalorder %s44, 0
    %s47 = sadd.s32 %s46, 1
    %s48 = scalar_select %p45, %s46, %s47
    %p51 = pneg %p45
    %p52 = scmp.eq.s32.totalorder %s22, 1
    %p53 = por %p51, %p52
    %p54 = scmp.ne.s32.totalorder %s46, %s49
    %p55 = scmp.eq.s32.totalorder %s22, 0
    %p56 = por %p54, %p55
    %p57 = scmp.ne.s32.totalorder %s46, %s49
    %p58 = scmp.eq.s32.totalorder %s27, 1
    %p59 = por %p57, %p58
    %p60 = scmp.ne.s32.totalorder %s49, %s50
    %p61 = scmp.eq.s32.totalorder %s27, 0
    %p62 = por %p60, %p61
    %p63 = scmp.ne.s32.totalorder %s49, %s50
    %p64 = scmp.eq.s32.totalorder %s28, 1
    %p65 = por %p63, %p64
    %p67 = scmp.ne.s32.totalorder %s50, %s66
    %p68 = scmp.eq.s32.totalorder %s28, 0
    %p69 = por %p67, %p68
    %s70 = ssub.s32 %s29, %s41
    %p71 = scmp.eq.s32.totalorder %s70, 0
    %s73 = sadd.s32 %s72, 1
    %s74 = scalar_select %p71, %s72, %s73
    %p77 = pneg %p71
    %p78 = scmp.eq.s32.totalorder %s22, 1
    %p79 = por %p77, %p78
    %p80 = scmp.ne.s32.totalorder %s72, %s75
    %p81 = scmp.eq.s32.totalorder %s22, 0
    %p82 = por %p80, %p81
    %p83 = scmp.ne.s32.totalorder %s72, %s75
    %p84 = scmp.eq.s32.totalorder %s27, 1
    %p85 = por %p83, %p84
    %p86 = scmp.ne.s32.totalorder %s75, %s76
    %p87 = scmp.eq.s32.totalorder %s27, 0
    %p88 = por %p86, %p87
    %p89 = scmp.ne.s32.totalorder %s75, %s76
    %p90 = scmp.eq.s32.totalorder %s28, 1
    %p91 = por %p89, %p90
    %p93 = scmp.ne.s32.totalorder %s76, %s92
    %p94 = scmp.eq.s32.totalorder %s28, 0
    %p95 = por %p93, %p94
    %s96 = ssub.s32 %s29, %s41
    %p97 = scmp.eq.s32.totalorder %s96, 0
    %s99 = sadd.s32 %s98, 1
    %s100 = scalar_select %p97, %s98, %s99
    %p103 = pneg %p97
    %p104 = scmp.eq.s32.totalorder %s22, 1
    %p105 = por %p103, %p104
    %p106 = scmp.ne.s32.totalorder %s98, %s101
    %p107 = scmp.eq.s32.totalorder %s22, 0
    %p108 = por %p106, %p107
    %p109 = scmp.ne.s32.totalorder %s98, %s101
    %p110 = scmp.eq.s32.totalorder %s27, 1
    %p111 = por %p109, %p110
    %p112 = scmp.ne.s32.totalorder %s101, %s102
    %p113 = scmp.eq.s32.totalorder %s27, 0
    %p114 = por %p112, %p113
    %p115 = scmp.ne.s32.totalorder %s101, %s102
    %p116 = scmp.eq.s32.totalorder %s28, 1
    %p117 = por %p115, %p116
    %p119 = scmp.ne.s32.totalorder %s102, %s118
    %p120 = scmp.eq.s32.totalorder %s28, 0
    %p121 = por %p119, %p120
    %s123 = sadd.s32 %s122, 1
    %p126 = scmp.eq.s32.totalorder %s22, 1
    %p127 = scmp.ne.s32.totalorder %s122, %s124
    %p128 = scmp.eq.s32.totalorder %s22, 0
    %p129 = por %p127, %p128
    %p130 = scmp.ne.s32.totalorder %s122, %s124
    %p131 = scmp.eq.s32.totalorder %s27, 1
    %p132 = por %p130, %p131
    %p133 = scmp.ne.s32.totalorder %s124, %s125
    %p134 = scmp.eq.s32.totalorder %s27, 0
    %p135 = por %p133, %p134
    %p136 = scmp.ne.s32.totalorder %s124, %s125
    %p137 = scmp.eq.s32.totalorder %s28, 1
    %p138 = por %p136, %p137
    %p140 = scmp.ne.s32.totalorder %s125, %s139
    %p141 = scmp.eq.s32.totalorder %s28, 0
    %p142 = por %p140, %p141
    %s144 = sadd.s32 %s143, 1
    %p147 = scmp.eq.s32.totalorder %s22, 1
    %p148 = scmp.ne.s32.totalorder %s143, %s145
    %p149 = scmp.eq.s32.totalorder %s22, 0
    %p150 = por %p148, %p149
    %p151 = scmp.ne.s32.totalorder %s143, %s145
    %p152 = scmp.eq.s32.totalorder %s27, 1
    %p153 = por %p151, %p152
    %p154 = scmp.ne.s32.totalorder %s145, %s146
    %p155 = scmp.eq.s32.totalorder %s27, 0
    %p156 = por %p154, %p155
    %p157 = scmp.ne.s32.totalorder %s145, %s146
    %p158 = scmp.eq.s32.totalorder %s28, 1
    %p159 = por %p157, %p158
    %p161 = scmp.ne.s32.totalorder %s146, %s160
    %p162 = scmp.eq.s32.totalorder %s28, 0
    %p163 = por %p161, %p162
    %s165 = sadd.s32 %s164, 1
    %p168 = scmp.eq.s32.totalorder %s22, 1
    %p169 = scmp.ne.s32.totalorder %s164, %s166
    %p170 = scmp.eq.s32.totalorder %s22, 0
    %p171 = por %p169, %p170
    %p172 = scmp.ne.s32.totalorder %s164, %s166
    %p173 = scmp.eq.s32.totalorder %s27, 1
    %p174 = por %p172, %p173
    %p175 = scmp.ne.s32.totalorder %s166, %s167
    %p176 = scmp.eq.s32.totalorder %s27, 0
    %p177 = por %p175, %p176
    %p178 = scmp.ne.s32.totalorder %s166, %s167
    %p179 = scmp.eq.s32.totalorder %s28, 1
    %p180 = por %p178, %p179
    %p182 = scmp.ne.s32.totalorder %s167, %s181
    %p183 = scmp.eq.s32.totalorder %s28, 0
    %p184 = por %p182, %p183
    %s186 = sadd.s32 %s185, 1
    %p189 = scmp.eq.s32.totalorder %s22, 1
    %p190 = scmp.ne.s32.totalorder %s185, %s187
    %p191 = scmp.eq.s32.totalorder %s22, 0
    %p192 = por %p190, %p191
    %p193 = scmp.ne.s32.totalorder %s185, %s187
    %p194 = scmp.eq.s32.totalorder %s27, 1
    %p195 = por %p193, %p194
    %p196 = scmp.ne.s32.totalorder %s187, %s188
    %p197 = scmp.eq.s32.totalorder %s27, 0
    %p198 = por %p196, %p197
    %p199 = scmp.ne.s32.totalorder %s187, %s188
    %p200 = scmp.eq.s32.totalorder %s28, 1
    %p201 = por %p199, %p200
    %p203 = scmp.ne.s32.totalorder %s188, %s202
    %p204 = scmp.eq.s32.totalorder %s28, 0
    %p205 = por %p203, %p204
    %s207 = sadd.s32 %s206, 1
    %p210 = scmp.eq.s32.totalorder %s22, 1
    %p211 = scmp.ne.s32.totalorder %s206, %s208
    %p212 = scmp.eq.s32.totalorder %s22, 0
    %p213 = por %p211, %p212
    %p214 = scmp.ne.s32.totalorder %s206, %s208
    %p215 = scmp.eq.s32.totalorder %s27, 1
    %p216 = por %p214, %p215
    %p217 = scmp.ne.s32.totalorder %s208, %s209
    %p218 = scmp.eq.s32.totalorder %s27, 0
    %p219 = por %p217, %p218
    %p220 = scmp.ne.s32.totalorder %s208, %s209
    %p221 = scmp.eq.s32.totalorder %s28, 1
    %p222 = por %p220, %p221
    %p224 = scmp.ne.s32.totalorder %s209, %s223
    %p225 = scmp.eq.s32.totalorder %s28, 0
    %p226 = por %p224, %p225
    %s228 = sadd.s32 %s227, 1
    %p231 = scmp.eq.s32.totalorder %s22, 1
    %p232 = scmp.ne.s32.totalorder %s227, %s229
    %p233 = scmp.eq.s32.totalorder %s22, 0
    %p234 = por %p232, %p233
    %p235 = scmp.ne.s32.totalorder %s227, %s229
    %p236 = scmp.eq.s32.totalorder %s27, 1
    %p237 = por %p235, %p236
    %p238 = scmp.ne.s32.totalorder %s229, %s230
    %p239 = scmp.eq.s32.totalorder %s27, 0
    %p240 = por %p238, %p239
    %p241 = scmp.ne.s32.totalorder %s229, %s230
    %p242 = scmp.eq.s32.totalorder %s28, 1
    %p243 = por %p241, %p242
    %p245 = scmp.ne.s32.totalorder %s230, %s244
    %p246 = scmp.eq.s32.totalorder %s28, 0
    %p247 = por %p245, %p246
    %s249 = sadd.s32 %s248, 1
    %p252 = scmp.eq.s32.totalorder %s22, 1
    %p253 = scmp.ne.s32.totalorder %s248, %s250
    %p254 = scmp.eq.s32.totalorder %s22, 0
    %p255 = por %p253, %p254
    %p256 = scmp.ne.s32.totalorder %s248, %s250
    %p257 = scmp.eq.s32.totalorder %s27, 1
    %p258 = por %p256, %p257
    %p259 = scmp.ne.s32.totalorder %s250, %s251
    %p260 = scmp.eq.s32.totalorder %s27, 0
    %p261 = por %p259, %p260
    %p262 = scmp.ne.s32.totalorder %s250, %s251
    %p263 = scmp.eq.s32.totalorder %s28, 1
    %p264 = por %p262, %p263
    %p266 = scmp.ne.s32.totalorder %s251, %s265
    %p267 = scmp.eq.s32.totalorder %s28, 0
    %p268 = por %p266, %p267
    %s270 = sadd.s32 %s269, 1
    %p273 = scmp.eq.s32.totalorder %s22, 1
    %p274 = scmp.ne.s32.totalorder %s269, %s271
    %p275 = scmp.eq.s32.totalorder %s22, 0
    %p276 = por %p274, %p275
    %p277 = scmp.ne.s32.totalorder %s269, %s271
    %p278 = scmp.eq.s32.totalorder %s27, 1
    %p279 = por %p277, %p278
    %p280 = scmp.ne.s32.totalorder %s271, %s272
    %p281 = scmp.eq.s32.totalorder %s27, 0
    %p282 = por %p280, %p281
    %p283 = scmp.ne.s32.totalorder %s271, %s272
    %p284 = scmp.eq.s32.totalorder %s28, 1
    %p285 = por %p283, %p284
    %p287 = scmp.ne.s32.totalorder %s272, %s286
    %p288 = scmp.eq.s32.totalorder %s28, 0
    %p289 = por %p287, %p288
    %s291 = sadd.s32 %s290, 1
    %p294 = scmp.eq.s32.totalorder %s22, 1
    %p295 = scmp.ne.s32.totalorder %s290, %s292
    %p296 = scmp.eq.s32.totalorder %s22, 0
    %p297 = por %p295, %p296
    %p298 = scmp.ne.s32.totalorder %s290, %s292
    %p299 = scmp.eq.s32.totalorder %s27, 1
    %p300 = por %p298, %p299
    %p301 = scmp.ne.s32.totalorder %s292, %s293
    %p302 = scmp.eq.s32.totalorder %s27, 0
    %p303 = por %p301, %p302
    %p304 = scmp.ne.s32.totalorder %s292, %s293
    %p305 = scmp.eq.s32.totalorder %s28, 1
    %p306 = por %p304, %p305
    %p308 = scmp.ne.s32.totalorder %s293, %s307
    %p309 = scmp.eq.s32.totalorder %s28, 0
    %p310 = por %p308, %p309
    %s312 = sadd.s32 %s311, 1
    %p315 = scmp.eq.s32.totalorder %s22, 1
    %p316 = scmp.ne.s32.totalorder %s311, %s313
    %p317 = scmp.eq.s32.totalorder %s22, 0
    %p318 = por %p316, %p317
    %p319 = scmp.ne.s32.totalorder %s311, %s313
    %p320 = scmp.eq.s32.totalorder %s27, 1
    %p321 = por %p319, %p320
    %p322 = scmp.ne.s32.totalorder %s313, %s314
    %p323 = scmp.eq.s32.totalorder %s27, 0
    %p324 = por %p322, %p323
    %p325 = scmp.ne.s32.totalorder %s313, %s314
    %p326 = scmp.eq.s32.totalorder %s28, 1
    %p327 = por %p325, %p326
    %p329 = scmp.ne.s32.totalorder %s314, %s328
    %p330 = scmp.eq.s32.totalorder %s28, 0
    %p331 = por %p329, %p330
    %s333 = sadd.s32 %s332, 1
    %p336 = scmp.eq.s32.totalorder %s22, 1
    %p337 = scmp.ne.s32.totalorder %s332, %s334
    %p338 = scmp.eq.s32.totalorder %s22, 0
    %p339 = por %p337, %p338
    %p340 = scmp.ne.s32.totalorder %s332, %s334
    %p341 = scmp.eq.s32.totalorder %s27, 1
    %p342 = por %p340, %p341
    %p343 = scmp.ne.s32.totalorder %s334, %s335
    %p344 = scmp.eq.s32.totalorder %s27, 0
    %p345 = por %p343, %p344
    %p346 = scmp.ne.s32.totalorder %s334, %s335
    %p347 = scmp.eq.s32.totalorder %s28, 1
    %p348 = por %p346, %p347
    %p350 = scmp.ne.s32.totalorder %s335, %s349
    %p351 = scmp.eq.s32.totalorder %s28, 0
    %p352 = por %p350, %p351
    %s353 = ssub.s32 %s29, %s41
    %s354 = ssub.s32 %s30, %s37
    %s355 = sor.u32 %s353, %s354
    %p356 = scmp.eq.s32.totalorder %s355, 0
    %s358 = sadd.s32 %s357, 1
    %s359 = scalar_select %p356, %s357, %s358
    %p362 = pneg %p356
    %p363 = scmp.eq.s32.totalorder %s22, 1
    %p364 = por %p362, %p363
    %p365 = scmp.ne.s32.totalorder %s357, %s360
    %p366 = scmp.eq.s32.totalorder %s22, 0
    %p367 = por %p365, %p366
    %p368 = scmp.ne.s32.totalorder %s357, %s360
    %p369 = scmp.eq.s32.totalorder %s27, 1
    %p370 = por %p368, %p369
    %p371 = scmp.ne.s32.totalorder %s360, %s361
    %p372 = scmp.eq.s32.totalorder %s27, 0
    %p373 = por %p371, %p372
    %p374 = scmp.ne.s32.totalorder %s360, %s361
    %p375 = scmp.eq.s32.totalorder %s28, 1
    %p376 = por %p374, %p375
    %p378 = scmp.ne.s32.totalorder %s361, %s377
    %p379 = scmp.eq.s32.totalorder %s28, 0
    %p380 = por %p378, %p379
    %s381 = ssub.s32 %s29, %s41
    %s382 = ssub.s32 %s30, %s37
    %s383 = sor.u32 %s381, %s382
    %p384 = scmp.eq.s32.totalorder %s383, 0
    %s386 = sadd.s32 %s385, 1
    %s387 = scalar_select %p384, %s385, %s386
    %p390 = pneg %p384
    %p391 = scmp.eq.s32.totalorder %s22, 1
    %p392 = por %p390, %p391
    %p393 = scmp.ne.s32.totalorder %s385, %s388
    %p394 = scmp.eq.s32.totalorder %s22, 0
    %p395 = por %p393, %p394
    %p396 = scmp.ne.s32.totalorder %s385, %s388
    %p397 = scmp.eq.s32.totalorder %s27, 1
    %p398 = por %p396, %p397
    %p399 = scmp.ne.s32.totalorder %s388, %s389
    %p400 = scmp.eq.s32.totalorder %s27, 0
    %p401 = por %p399, %p400
    %p402 = scmp.ne.s32.totalorder %s388, %s389
    %p403 = scmp.eq.s32.totalorder %s28, 1
    %p404 = por %p402, %p403
    %p406 = scmp.ne.s32.totalorder %s389, %s405
    %p407 = scmp.eq.s32.totalorder %s28, 0
    %p408 = por %p406, %p407
    %p409 = scmp.le.s32.totalorder 1, %s22
    %p410 = scmp.lt.s32.totalorder %s22, 3
    %p411 = pnand %p409, %p410
    %p412 = pneg %p411
    // Predicated region
    $region9: #{pointnet_dense_cls_forward.5} parent=5 // pred_check
      _
    $region10: #{pointnet_dense_cls_forward.5} parent=5 // pred_check_branch
      %414 = sbr.rel (%p411) target = $region12
    $region11: #{pointnet_dense_cls_forward.5} parent=5 // pred_region
      %s415 = ssub.s32 %s22, 1
      // Predicated region
      $region13: #{pointnet_dense_cls_forward.5} parent=11 // pred_check
        %p416 = pneg %p135
      $region14: #{pointnet_dense_cls_forward.5} parent=11 // pred_check_branch
        %418 = sbr.rel (%p416) target = $region16
      $region15: #{pointnet_dense_cls_forward.5} parent=11 // pred_region
        _
      $region16: #{pointnet_dense_cls_forward.5} parent=11 // pred_fallthru
        _
      // Predicated region
      $region17: #{pointnet_dense_cls_forward.5} parent=11 // pred_check
        %p419 = pneg %p156
      $region18: #{pointnet_dense_cls_forward.5} parent=11 // pred_check_branch
        %421 = sbr.rel (%p419) target = $region20
      $region19: #{pointnet_dense_cls_forward.5} parent=11 // pred_region
        _
      $region20: #{pointnet_dense_cls_forward.5} parent=11 // pred_fallthru
        _
      // Predicated region
      $region21: #{pointnet_dense_cls_forward.5} parent=11 // pred_check
        %p422 = pneg %p177
      $region22: #{pointnet_dense_cls_forward.5} parent=11 // pred_check_branch
        %424 = sbr.rel (%p422) target = $region24
      $region23: #{pointnet_dense_cls_forward.5} parent=11 // pred_region
        _
      $region24: #{pointnet_dense_cls_forward.5} parent=11 // pred_fallthru
        _
      // Predicated region
      $region25: #{pointnet_dense_cls_forward.5} parent=11 // pred_check
        %p425 = pneg %p198
      $region26: #{pointnet_dense_cls_forward.5} parent=11 // pred_check_branch
        %427 = sbr.rel (%p425) target = $region28
      $region27: #{pointnet_dense_cls_forward.5} parent=11 // pred_region
        _
      $region28: #{pointnet_dense_cls_forward.5} parent=11 // pred_fallthru
        _
      // Predicated region
      $region29: #{pointnet_dense_cls_forward.5} parent=11 // pred_check
        %p428 = pneg %p219
      $region30: #{pointnet_dense_cls_forward.5} parent=11 // pred_check_branch
        %430 = sbr.rel (%p428) target = $region32
      $region31: #{pointnet_dense_cls_forward.5} parent=11 // pred_region
        _
      $region32: #{pointnet_dense_cls_forward.5} parent=11 // pred_fallthru
        _
      // Predicated region
      $region33: #{pointnet_dense_cls_forward.5} parent=11 // pred_check
        %p431 = pneg %p240
      $region34: #{pointnet_dense_cls_forward.5} parent=11 // pred_check_branch
        %433 = sbr.rel (%p431) target = $region36
      $region35: #{pointnet_dense_cls_forward.5} parent=11 // pred_region
        _
      $region36: #{pointnet_dense_cls_forward.5} parent=11 // pred_fallthru
        _
      // Predicated region
      $region37: #{pointnet_dense_cls_forward.5} parent=11 // pred_check
        %p434 = pneg %p261
      $region38: #{pointnet_dense_cls_forward.5} parent=11 // pred_check_branch
        %436 = sbr.rel (%p434) target = $region40
      $region39: #{pointnet_dense_cls_forward.5} parent=11 // pred_region
        _
      $region40: #{pointnet_dense_cls_forward.5} parent=11 // pred_fallthru
        _
      // Predicated region
      $region41: #{pointnet_dense_cls_forward.5} parent=11 // pred_check
        %p437 = pneg %p282
      $region42: #{pointnet_dense_cls_forward.5} parent=11 // pred_check_branch
        %439 = sbr.rel (%p437) target = $region44
      $region43: #{pointnet_dense_cls_forward.5} parent=11 // pred_region
        _
      $region44: #{pointnet_dense_cls_forward.5} parent=11 // pred_fallthru
        _
      // Predicated region
      $region45: #{pointnet_dense_cls_forward.5} parent=11 // pred_check
        %p440 = pneg %p303
      $region46: #{pointnet_dense_cls_forward.5} parent=11 // pred_check_branch
        %442 = sbr.rel (%p440) target = $region48
      $region47: #{pointnet_dense_cls_forward.5} parent=11 // pred_region
        _
      $region48: #{pointnet_dense_cls_forward.5} parent=11 // pred_fallthru
        _
      // Predicated region
      $region49: #{pointnet_dense_cls_forward.5} parent=11 // pred_check
        %p443 = pneg %p324
      $region50: #{pointnet_dense_cls_forward.5} parent=11 // pred_check_branch
        %445 = sbr.rel (%p443) target = $region52
      $region51: #{pointnet_dense_cls_forward.5} parent=11 // pred_region
        _
      $region52: #{pointnet_dense_cls_forward.5} parent=11 // pred_fallthru
        _
      // Predicated region
      $region53: #{pointnet_dense_cls_forward.5} parent=11 // pred_check
        %p446 = pneg %p345
      $region54: #{pointnet_dense_cls_forward.5} parent=11 // pred_check_branch
        %448 = sbr.rel (%p446) target = $region56
      $region55: #{pointnet_dense_cls_forward.5} parent=11 // pred_region
        _
      $region56: #{pointnet_dense_cls_forward.5} parent=11 // pred_fallthru
        _
    $region12: #{pointnet_dense_cls_forward.5} parent=5 // pred_fallthru
      _
    %p449 = scmp.lt.s32.totalorder %s22, 2
    // Predicated region
    $region57: #{pointnet_dense_cls_forward.5} parent=5 // pred_check
      %p450 = pneg %p449
    $region58: #{pointnet_dense_cls_forward.5} parent=5 // pred_check_branch
      %452 = sbr.rel (%p450) target = $region60
    $region59: #{pointnet_dense_cls_forward.5} parent=5 // pred_region
      // Predicated region
      $region61: #{pointnet_dense_cls_forward.5} parent=59 // pred_check
        %p453 = pneg %p56
      $region62: #{pointnet_dense_cls_forward.5} parent=59 // pred_check_branch
        %455 = sbr.rel (%p453) target = $region64
      $region63: #{pointnet_dense_cls_forward.5} parent=59 // pred_region
        %s456 = smul.u32 2, %s30
        %p457 = scmp.lt.s32.totalorder %s29, 1
        %s458 = scalar_select %p457, %s29, 1
        %p459 = scmp.lt.s32.totalorder %s456, 1
        %s460 = scalar_select %p459, %s456, 1
        %s461 = smul.addr %s458, 2
        %s462 = sadd.s32 %s460, %s461
        %s463 = smul.addr %s462, 8
        %s464 = scalar_lea.vmem %s0, %s463
        %s465 = smul.u32 2, %s30
      $region64: #{pointnet_dense_cls_forward.5} parent=59 // pred_fallthru
        _
      // Predicated region
      $region65: #{pointnet_dense_cls_forward.5} parent=59 // pred_check
        %p466 = pneg %p82
      $region66: #{pointnet_dense_cls_forward.5} parent=59 // pred_check_branch
        %468 = sbr.rel (%p466) target = $region68
      $region67: #{pointnet_dense_cls_forward.5} parent=59 // pred_region
        %p469 = scmp.lt.s32.totalorder %s29, 1
        %s470 = scalar_select %p469, %s29, 1
        %s471 = smul.addr %s470, 2
        %s472 = scalar_lea.vmem %s1, %s471
      $region68: #{pointnet_dense_cls_forward.5} parent=59 // pred_fallthru
        _
      // Predicated region
      $region69: #{pointnet_dense_cls_forward.5} parent=59 // pred_check
        %p473 = pneg %p108
      $region70: #{pointnet_dense_cls_forward.5} parent=59 // pred_check_branch
        %475 = sbr.rel (%p473) target = $region72
      $region71: #{pointnet_dense_cls_forward.5} parent=59 // pred_region
        %p476 = scmp.lt.s32.totalorder %s29, 1
        %s477 = scalar_select %p476, %s29, 1
        %s478 = smul.addr %s477, 4
        %s479 = scalar_lea.vmem %s2, %s478
      $region72: #{pointnet_dense_cls_forward.5} parent=59 // pred_fallthru
        _
    $region60: #{pointnet_dense_cls_forward.5} parent=5 // pred_fallthru
      _
    %p480 = scmp.le.s32.totalorder 1, %s22
    %p481 = scmp.lt.s32.totalorder %s22, 3
    %p482 = pnand %p480, %p481
    %p483 = pneg %p482
    // Predicated region
    $region73: #{pointnet_dense_cls_forward.5} parent=5 // pred_check
      _
    $region74: #{pointnet_dense_cls_forward.5} parent=5 // pred_check_branch
      %485 = sbr.rel (%p482) target = $region76
    $region75: #{pointnet_dense_cls_forward.5} parent=5 // pred_region
      %s486 = ssub.s32 %s22, 1
      %s487 = smul.u32 2, %s32
      %p488 = scmp.lt.s32.totalorder %s31, 1
      %s489 = scalar_select %p488, %s31, 1
      %p490 = scmp.lt.s32.totalorder %s487, 1
      %s491 = scalar_select %p490, %s487, 1
      %s492 = smul.addr %s489, 2
      %s493 = sadd.s32 %s491, %s492
      %s494 = smul.addr %s493, 8
      %s495 = scalar_lea.vmem %s0, %s494
      %p496 = pneg %p62
      %p497 = pneg %p59
      %p498 = scmp.lt.s32.totalorder %s31, 1
      %s499 = scalar_select %p498, %s31, 1
      %s500 = smul.addr %s499, 2
      %s501 = scalar_lea.vmem %s1, %s500
      %p502 = pneg %p88
      %p503 = pneg %p85
      %p504 = scmp.lt.s32.totalorder %s31, 1
      %s505 = scalar_select %p504, %s31, 1
      %s506 = smul.addr %s505, 4
      %s507 = scalar_lea.vmem %s2, %s506
      %p508 = pneg %p114
      %p509 = pneg %p111
      %p510 = pneg %p135
      %p511 = pneg %p132
      %p512 = pneg %p156
      %p513 = pneg %p153
      %p514 = pneg %p177
      %p515 = pneg %p174
      %p516 = pneg %p198
      %p517 = pneg %p195
      %p518 = pneg %p219
      %p519 = pneg %p216
      %p520 = pneg %p240
      %p521 = pneg %p237
      %p522 = pneg %p261
      %p523 = pneg %p258
      %p524 = pneg %p282
      %p525 = pneg %p279
      %p526 = pneg %p303
      %p527 = pneg %p300
      %p528 = pneg %p324
      %p529 = pneg %p321
      %p530 = pneg %p345
      %p531 = pneg %p342
      %p532 = pneg %p373
      %p533 = pneg %p370
      %s534 = smul.u32 2, %s32
      %p535 = scmp.lt.s32.totalorder %s31, 1
      %s536 = scalar_select %p535, %s31, 1
      %p537 = scmp.lt.s32.totalorder %s534, 1
      %s538 = scalar_select %p537, %s534, 1
      %s539 = smul.addr %s536, 2
      %s540 = sadd.s32 %s538, %s539
      %s541 = smul.addr %s540, 8
      %s542 = scalar_lea.vmem %s14, %s541
      %p543 = pneg %p401
      %p544 = pneg %p398
      %s545 = smul.u32 2, %s32
      %p546 = scmp.lt.s32.totalorder %s31, 1
      %s547 = scalar_select %p546, %s31, 1
      %p548 = scmp.lt.s32.totalorder %s545, 1
      %s549 = scalar_select %p548, %s545, 1
      %s550 = smul.addr %s549, 4
      %s551 = smul.addr %s547, 8
      %s552 = sadd.s32 %s550, %s551
      %s553 = smul.addr %s552, 4
      %s554 = scalar_lea.vmem %s15, %s553
      %s555 = smul.u32 2, %s32
      %p556 = scmp.lt.s32.totalorder %s31, 1
      %s557 = scalar_select %p556, %s31, 1
      %p558 = scmp.lt.s32.totalorder %s555, 1
      %s559 = scalar_select %p558, %s555, 1
      %s560 = smul.addr %s557, 2
      %s561 = sadd.s32 %s559, %s560
      %s562 = smul.addr %s561, 8
      %s563 = scalar_lea.vmem %s0, %s562
      %s564 = smul.u32 2, %s32
      %p565 = scmp.lt.s32.totalorder %s31, 1
      %s566 = scalar_select %p565, %s31, 1
      %s567 = smul.addr %s566, 2
      %s568 = scalar_lea.vmem %s1, %s567
      %p569 = scmp.lt.s32.totalorder %s31, 1
      %s570 = scalar_select %p569, %s31, 1
      %s571 = smul.addr %s570, 4
      %s572 = scalar_lea.vmem %s2, %s571
      %s573 = smul.u32 2, %s32
      %p574 = scmp.lt.s32.totalorder %s31, 1
      %s575 = scalar_select %p574, %s31, 1
      %p576 = scmp.lt.s32.totalorder %s573, 1
      %s577 = scalar_select %p576, %s573, 1
      %s578 = smul.addr %s575, 2
      %s579 = sadd.s32 %s577, %s578
      %s580 = smul.addr %s579, 8
      %s581 = scalar_lea.vmem %s14, %s580
      %s582 = smul.u32 2, %s32
      %s583 = smul.u32 2, %s32
      %p584 = scmp.lt.s32.totalorder %s31, 1
      %s585 = scalar_select %p584, %s31, 1
      %p586 = scmp.lt.s32.totalorder %s583, 1
      %s587 = scalar_select %p586, %s583, 1
      %s588 = smul.addr %s587, 4
      %s589 = smul.addr %s585, 8
      %s590 = sadd.s32 %s588, %s589
      %s591 = smul.addr %s590, 4
      %s592 = scalar_lea.vmem %s15, %s591
      %s593 = smul.u32 2, %s32
      %v595 = vld [vmem:[%s563] sm:$0xff]
      %v596 = vld [vmem:[%s563 + $0x8] sm:$0xff]
      %v597 = vpack.c.bf16 %v596, %v595
      %v598 = vld [vmem:[%s568] sm:$0x3]
      %v599 = vld [vmem:[%s3] sm:$0x1]
      %v601 = vlaneseq
      %v602 = vshrl.u32 %v601, 7
      %v603 = vsub.s32 0, %v602
      %v604 = vrot.slane %v599, %v603
      %vm606 = vcmask 31744
      %v608 = vsel %vm606, %v597, 0
      %vm610 = vcmask 1041408
      %v612 = vsel %vm610, %v598, 0
      %614 = vmatprep.subr.bf16.mxu0 0
      %615 = vmatpush1.bf16.msra.mxu0 %v612
      %616 = vmatprep.subr.bf16.mxu0 0
      %617 = vmatpush1.bf16.msra.mxu0 0
      %618 = vmatprep.subr.bf16.mxu0 0
      %619 = vmatpush1.bf16.msra.mxu0 0
      %620 = vmatprep.subr.bf16.mxu0 0
      %621 = vmatpush1.bf16.msra.mxu0 0
      %622 = vmatprep.subr.bf16.mxu0 0
      %623 = vmatpush1.bf16.msra.mxu0 0
      %624 = vmatprep.subr.bf16.mxu0 0
      %625 = vmatpush1.bf16.msra.mxu0 0
      %626 = vmatprep.subr.bf16.mxu0 0
      %627 = vmatpush1.bf16.msra.mxu0 0
      %628 = vmatprep.subr.bf16.mxu0 0
      %629 = vmatpush1.bf16.msra.mxu0 0
      %630 = vmatprep.subr.bf16.mxu0 0
      %631 = vmatpush1.bf16.msra.mxu0 0
      %632 = vmatprep.subr.bf16.mxu0 0
      %633 = vmatpush1.bf16.msra.mxu0 0
      %634 = vmatprep.subr.bf16.mxu0 0
      %635 = vmatpush1.bf16.msra.mxu0 0
      %636 = vmatprep.subr.bf16.mxu0 0
      %637 = vmatpush1.bf16.msra.mxu0 0
      %638 = vmatprep.subr.bf16.mxu0 0
      %639 = vmatpush1.bf16.msra.mxu0 0
      %640 = vmatprep.subr.bf16.mxu0 0
      %641 = vmatpush1.bf16.msra.mxu0 0
      %642 = vmatprep.subr.bf16.mxu0 0
      %643 = vmatpush1.bf16.msra.mxu0 0
      %644 = vmatprep.subr.bf16.mxu0 0
      %645 = vmatpush1.bf16.msra.mxu0 0
      %646 = vmatprep.mubr.bf16.mxu0 0
      %647 = vmatmul.mubr.bf16.gmra.mrb[0].mxu0 %v608
      %v648 = vpop.f32.mrb[0].mxu0
      %v649 = vadd.f32 %v604, %v648
      %v650 = vpop.f32.mrb[0].mxu0
      %v651 = vpop.f32.mrb[0].mxu0
      %v652 = vadd.f32 %v604, %v651
      %v653 = vpop.f32.mrb[0].mxu0
      %654 = vdwg.mxu0
      %v655 = vmax.f32 %v649, 0.0
      %v656 = vmax.f32 %v652, 0.0
      %v657 = vpack.c.bf16 %v656, %v655
      %v658 = vld [vmem:[%s4] sm:$0xff]
      %v659 = vld [vmem:[%s4 + $0x8] sm:$0xff]
      %v660 = vld [vmem:[%s4 + $0x10] sm:$0xff]
      %v661 = vld [vmem:[%s4 + $0x18] sm:$0xff]
      %v662 = vld [vmem:[%s4 + $0x20] sm:$0xff]
      %v663 = vld [vmem:[%s4 + $0x28] sm:$0xff]
      %v664 = vld [vmem:[%s4 + $0x30] sm:$0xff]
      %v665 = vld [vmem:[%s4 + $0x38] sm:$0xff]
      %v666 = vld [vmem:[%s4 + $0x40] sm:$0xff]
      %v667 = vld [vmem:[%s4 + $0x48] sm:$0xff]
      %v668 = vld [vmem:[%s4 + $0x50] sm:$0xff]
      %v669 = vld [vmem:[%s4 + $0x58] sm:$0xff]
      %v670 = vld [vmem:[%s4 + $0x60] sm:$0xff]
      %v671 = vld [vmem:[%s4 + $0x68] sm:$0xff]
      %v672 = vld [vmem:[%s4 + $0x70] sm:$0xff]
      %v673 = vld [vmem:[%s4 + $0x78] sm:$0xff]
      %v674 = vld [vmem:[%s572] sm:$0xf]
      %v676 = vlaneseq
      %v677 = vshrl.u32 %v676, 7
      %v678 = vsub.s32 0, %v677
      %v679 = vrot.slane %v674, %v678
      %v680 = vlaneseq
      %v681 = vshrl.u32 %v680, 7
      %v682 = vsub.s32 1, %v681
      %v683 = vrot.slane %v674, %v682
      %v684 = vlaneseq
      %v685 = vshrl.u32 %v684, 7
      %v686 = vsub.s32 2, %v685
      %v687 = vrot.slane %v674, %v686
      %v688 = vlaneseq
      %v689 = vshrl.u32 %v688, 7
      %v690 = vsub.s32 3, %v689
      %v691 = vrot.slane %v674, %v690
      %v712 = vunpack.c.l.b16 %v658
      %v713 = vunpack.c.h.b16 %v658
      %v714 = vunpack.c.l.b16 %v659
      %v715 = vunpack.c.h.b16 %v659
      %v716 = vunpack.c.l.b16 %v660
      %v717 = vunpack.c.h.b16 %v660
      %v718 = vunpack.c.l.b16 %v661
      %v719 = vunpack.c.h.b16 %v661
      %v720 = vunpack.c.l.b16 %v662
      %v721 = vunpack.c.h.b16 %v662
      %v722 = vunpack.c.l.b16 %v663
      %v723 = vunpack.c.h.b16 %v663
      %v724 = vunpack.c.l.b16 %v664
      %v725 = vunpack.c.h.b16 %v664
      %v726 = vunpack.c.l.b16 %v665
      %v727 = vunpack.c.h.b16 %v665
      %v728 = vunpack.c.l.b16 %v666
      %v729 = vunpack.c.h.b16 %v666
      %v730 = vunpack.c.l.b16 %v667
      %v731 = vunpack.c.h.b16 %v667
      %v732 = vunpack.c.l.b16 %v668
      %v733 = vunpack.c.h.b16 %v668
      %v734 = vunpack.c.l.b16 %v669
      %v735 = vunpack.c.h.b16 %v669
      %v736 = vunpack.c.l.b16 %v670
      %v737 = vunpack.c.h.b16 %v670
      %v738 = vunpack.c.l.b16 %v671
      %v739 = vunpack.c.h.b16 %v671
      %v740 = vunpack.c.l.b16 %v672
      %v741 = vunpack.c.h.b16 %v672
      %v742 = vunpack.c.l.b16 %v673
      %v743 = vunpack.c.h.b16 %v673
      %v744 = vpack.c.b16 %v716, %v712
      %v745 = vpack.c.b16 %v717, %v713
      %v746 = vpack.c.b16 %v718, %v714
      %v747 = vpack.c.b16 %v719, %v715
      %v748 = vpack.c.b16 %v724, %v720
      %v749 = vpack.c.b16 %v725, %v721
      %v750 = vpack.c.b16 %v726, %v722
      %v751 = vpack.c.b16 %v727, %v723
      %v752 = vpack.c.b16 %v732, %v728
      %v753 = vpack.c.b16 %v733, %v729
      %v754 = vpack.c.b16 %v734, %v730
      %v755 = vpack.c.b16 %v735, %v731
      %v756 = vpack.c.b16 %v740, %v736
      %v757 = vpack.c.b16 %v741, %v737
      %v758 = vpack.c.b16 %v742, %v738
      %v759 = vpack.c.b16 %v743, %v739
      %vm776 = vcmask 523264
      %v778 = vsel %vm776, %v657, 0
      %780 = vmatprep.subr.bf16.mxu0 %v745
      %781 = vmatpush1.bf16.msra.mxu0 %v744
      %782 = vmatprep.subr.bf16.mxu0 %v749
      %783 = vmatpush1.bf16.msra.mxu0 %v748
      %784 = vmatprep.subr.bf16.mxu0 %v753
      %785 = vmatpush1.bf16.msra.mxu0 %v752
      %786 = vmatprep.subr.bf16.mxu0 %v757
      %787 = vmatpush1.bf16.msra.mxu0 %v756
      %788 = vmatprep.subr.bf16.mxu0 0
      %789 = vmatpush1.bf16.msra.mxu0 0
      %790 = vmatprep.subr.bf16.mxu0 0
      %791 = vmatpush1.bf16.msra.mxu0 0
      %792 = vmatprep.subr.bf16.mxu0 0
      %793 = vmatpush1.bf16.msra.mxu0 0
      %794 = vmatprep.subr.bf16.mxu0 0
      %795 = vmatpush1.bf16.msra.mxu0 0
      %796 = vmatprep.subr.bf16.mxu0 0
      %797 = vmatpush1.bf16.msra.mxu0 0
      %798 = vmatprep.subr.bf16.mxu0 0
      %799 = vmatpush1.bf16.msra.mxu0 0
      %800 = vmatprep.subr.bf16.mxu0 0
      %801 = vmatpush1.bf16.msra.mxu0 0
      %802 = vmatprep.subr.bf16.mxu0 0
      %803 = vmatpush1.bf16.msra.mxu0 0
      %804 = vmatprep.subr.bf16.mxu0 0
      %805 = vmatpush1.bf16.msra.mxu0 0
      %806 = vmatprep.subr.bf16.mxu0 0
      %807 = vmatpush1.bf16.msra.mxu0 0
      %808 = vmatprep.subr.bf16.mxu0 0
      %809 = vmatpush1.bf16.msra.mxu0 0
      %810 = vmatprep.subr.bf16.mxu0 0
      %811 = vmatpush1.bf16.msra.mxu0 0
      %812 = vmatprep.mubr.bf16.mxu0 0
      %813 = vmatmul.mubr.bf16.gmra.mrb[0].mxu0 %v778
      %v814 = vpop.f32.mrb[0].mxu0
      %v815 = vadd.f32 %v679, %v814
      %v816 = vpop.f32.mrb[0].mxu0
      %v817 = vadd.f32 %v683, %v816
      %v818 = vpop.f32.mrb[0].mxu0
      %v819 = vadd.f32 %v679, %v818
      %v820 = vpop.f32.mrb[0].mxu0
      %v821 = vadd.f32 %v683, %v820
      %822 = vdwg.mxu0
      %823 = vmatprep.subr.bf16.mxu0 %v747
      %824 = vmatpush1.bf16.msra.mxu0 %v746
      %825 = vmatprep.subr.bf16.mxu0 %v751
      %826 = vmatpush1.bf16.msra.mxu0 %v750
      %827 = vmatprep.subr.bf16.mxu0 %v755
      %828 = vmatpush1.bf16.msra.mxu0 %v754
      %829 = vmatprep.subr.bf16.mxu0 %v759
      %830 = vmatpush1.bf16.msra.mxu0 %v758
      %831 = vmatprep.subr.bf16.mxu0 0
      %832 = vmatpush1.bf16.msra.mxu0 0
      %833 = vmatprep.subr.bf16.mxu0 0
      %834 = vmatpush1.bf16.msra.mxu0 0
      %835 = vmatprep.subr.bf16.mxu0 0
      %836 = vmatpush1.bf16.msra.mxu0 0
      %837 = vmatprep.subr.bf16.mxu0 0
      %838 = vmatpush1.bf16.msra.mxu0 0
      %839 = vmatprep.subr.bf16.mxu0 0
      %840 = vmatpush1.bf16.msra.mxu0 0
      %841 = vmatprep.subr.bf16.mxu0 0
      %842 = vmatpush1.bf16.msra.mxu0 0
      %843 = vmatprep.subr.bf16.mxu0 0
      %844 = vmatpush1.bf16.msra.mxu0 0
      %845 = vmatprep.subr.bf16.mxu0 0
      %846 = vmatpush1.bf16.msra.mxu0 0
      %847 = vmatprep.subr.bf16.mxu0 0
      %848 = vmatpush1.bf16.msra.mxu0 0
      %849 = vmatprep.subr.bf16.mxu0 0
      %850 = vmatpush1.bf16.msra.mxu0 0
      %851 = vmatprep.subr.bf16.mxu0 0
      %852 = vmatpush1.bf16.msra.mxu0 0
      %853 = vmatprep.subr.bf16.mxu0 0
      %854 = vmatpush1.bf16.msra.mxu0 0
      %855 = vmatprep.mubr.bf16.mxu0 0
      %856 = vmatmul.mubr.bf16.gmra.mrb[0].mxu0 %v778
      %v857 = vpop.f32.mrb[0].mxu0
      %v858 = vadd.f32 %v687, %v857
      %v859 = vpop.f32.mrb[0].mxu0
      %v860 = vadd.f32 %v691, %v859
      %v861 = vpop.f32.mrb[0].mxu0
      %v862 = vadd.f32 %v687, %v861
      %v863 = vpop.f32.mrb[0].mxu0
      %v864 = vadd.f32 %v691, %v863
      %865 = vdwg.mxu0
      %v866 = vld [vmem:[%s5] sm:$0xf]
      %v868 = vlaneseq
      %v869 = vshrl.u32 %v868, 7
      %v870 = vsub.s32 0, %v869
      %v871 = vrot.slane %v866, %v870
      %v872 = vlaneseq
      %v873 = vshrl.u32 %v872, 7
      %v874 = vsub.s32 1, %v873
      %v875 = vrot.slane %v866, %v874
      %v876 = vlaneseq
      %v877 = vshrl.u32 %v876, 7
      %v878 = vsub.s32 2, %v877
      %v879 = vrot.slane %v866, %v878
      %v880 = vlaneseq
      %v881 = vshrl.u32 %v880, 7
      %v882 = vsub.s32 3, %v881
      %v883 = vrot.slane %v866, %v882
      %v888 = vadd.f32 %v815, %v871
      %v889 = vadd.f32 %v817, %v875
      %v890 = vadd.f32 %v858, %v879
      %v891 = vadd.f32 %v860, %v883
      %v892 = vadd.f32 %v819, %v871
      %v893 = vadd.f32 %v821, %v875
      %v894 = vadd.f32 %v862, %v879
      %v895 = vadd.f32 %v864, %v883
      %v896 = vmax.f32 %v888, 0.0
      %v897 = vmax.f32 %v889, 0.0
      %v898 = vmax.f32 %v890, 0.0
      %v899 = vmax.f32 %v891, 0.0
      %v900 = vmax.f32 %v892, 0.0
      %v901 = vmax.f32 %v893, 0.0
      %v902 = vmax.f32 %v894, 0.0
      %v903 = vmax.f32 %v895, 0.0
      %v904 = vpack.c.bf16 %v900, %v896
      %v905 = vpack.c.bf16 %v901, %v897
      %v906 = vpack.c.bf16 %v902, %v898
      %v907 = vpack.c.bf16 %v903, %v899
      %v908 = vld [vmem:[%s6] sm:$0xff]
      %v909 = vld [vmem:[%s6 + $0x8] sm:$0xff]
      %v910 = vld [vmem:[%s6 + $0x10] sm:$0xff]
      %v911 = vld [vmem:[%s6 + $0x18] sm:$0xff]
      %v912 = vld [vmem:[%s6 + $0x20] sm:$0xff]
      %v913 = vld [vmem:[%s6 + $0x28] sm:$0xff]
      %v914 = vld [vmem:[%s6 + $0x30] sm:$0xff]
      %v915 = vld [vmem:[%s6 + $0x38] sm:$0xff]
      %v916 = vld [vmem:[%s6 + $0x40] sm:$0xff]
      %v917 = vld [vmem:[%s6 + $0x48] sm:$0xff]
      %v918 = vld [vmem:[%s6 + $0x50] sm:$0xff]
      %v919 = vld [vmem:[%s6 + $0x58] sm:$0xff]
      %v920 = vld [vmem:[%s6 + $0x60] sm:$0xff]
      %v921 = vld [vmem:[%s6 + $0x68] sm:$0xff]
      %v922 = vld [vmem:[%s6 + $0x70] sm:$0xff]
      %v923 = vld [vmem:[%s6 + $0x78] sm:$0xff]
      %v924 = vld [vmem:[%s6 + $0x80] sm:$0xff]
      %v925 = vld [vmem:[%s6 + $0x88] sm:$0xff]
      %v926 = vld [vmem:[%s6 + $0x90] sm:$0xff]
      %v927 = vld [vmem:[%s6 + $0x98] sm:$0xff]
      %v928 = vld [vmem:[%s6 + $0xa0] sm:$0xff]
      %v929 = vld [vmem:[%s6 + $0xa8] sm:$0xff]
      %v930 = vld [vmem:[%s6 + $0xb0] sm:$0xff]
      %v931 = vld [vmem:[%s6 + $0xb8] sm:$0xff]
      %v932 = vld [vmem:[%s6 + $0xc0] sm:$0xff]
      %v933 = vld [vmem:[%s6 + $0xc8] sm:$0xff]
      %v934 = vld [vmem:[%s6 + $0xd0] sm:$0xff]
      %v935 = vld [vmem:[%s6 + $0xd8] sm:$0xff]
      %v936 = vld [vmem:[%s6 + $0xe0] sm:$0xff]
      %v937 = vld [vmem:[%s6 + $0xe8] sm:$0xff]
      %v938 = vld [vmem:[%s6 + $0xf0] sm:$0xff]
      %v939 = vld [vmem:[%s6 + $0xf8] sm:$0xff]
      %v940 = vld [vmem:[%s6 + $0x100] sm:$0xff]
      %v941 = vld [vmem:[%s6 + $0x108] sm:$0xff]
      %v942 = vld [vmem:[%s6 + $0x110] sm:$0xff]
      %v943 = vld [vmem:[%s6 + $0x118] sm:$0xff]
      %v944 = vld [vmem:[%s6 + $0x120] sm:$0xff]
      %v945 = vld [vmem:[%s6 + $0x128] sm:$0xff]
      %v946 = vld [vmem:[%s6 + $0x130] sm:$0xff]
      %v947 = vld [vmem:[%s6 + $0x138] sm:$0xff]
      %v948 = vld [vmem:[%s6 + $0x140] sm:$0xff]
      %v949 = vld [vmem:[%s6 + $0x148] sm:$0xff]
      %v950 = vld [vmem:[%s6 + $0x150] sm:$0xff]
      %v951 = vld [vmem:[%s6 + $0x158] sm:$0xff]
      %v952 = vld [vmem:[%s6 + $0x160] sm:$0xff]
      %v953 = vld [vmem:[%s6 + $0x168] sm:$0xff]
      %v954 = vld [vmem:[%s6 + $0x170] sm:$0xff]
      %v955 = vld [vmem:[%s6 + $0x178] sm:$0xff]
      %v956 = vld [vmem:[%s6 + $0x180] sm:$0xff]
      %v957 = vld [vmem:[%s6 + $0x188] sm:$0xff]
      %v958 = vld [vmem:[%s6 + $0x190] sm:$0xff]
      %v959 = vld [vmem:[%s6 + $0x198] sm:$0xff]
      %v960 = vld [vmem:[%s6 + $0x1a0] sm:$0xff]
      %v961 = vld [vmem:[%s6 + $0x1a8] sm:$0xff]
      %v962 = vld [vmem:[%s6 + $0x1b0] sm:$0xff]
      %v963 = vld [vmem:[%s6 + $0x1b8] sm:$0xff]
      %v964 = vld [vmem:[%s6 + $0x1c0] sm:$0xff]
      %v965 = vld [vmem:[%s6 + $0x1c8] sm:$0xff]
      %v966 = vld [vmem:[%s6 + $0x1d0] sm:$0xff]
      %v967 = vld [vmem:[%s6 + $0x1d8] sm:$0xff]
      %v968 = vld [vmem:[%s6 + $0x1e0] sm:$0xff]
      %v969 = vld [vmem:[%s6 + $0x1e8] sm:$0xff]
      %v970 = vld [vmem:[%s6 + $0x1f0] sm:$0xff]
      %v971 = vld [vmem:[%s6 + $0x1f8] sm:$0xff]
      %v972 = vld [vmem:[%s6 + $0x200] sm:$0xff]
      %v973 = vld [vmem:[%s6 + $0x208] sm:$0xff]
      %v974 = vld [vmem:[%s6 + $0x210] sm:$0xff]
      %v975 = vld [vmem:[%s6 + $0x218] sm:$0xff]
      %v976 = vld [vmem:[%s6 + $0x220] sm:$0xff]
      %v977 = vld [vmem:[%s6 + $0x228] sm:$0xff]
      %v978 = vld [vmem:[%s6 + $0x230] sm:$0xff]
      %v979 = vld [vmem:[%s6 + $0x238] sm:$0xff]
      %v980 = vld [vmem:[%s6 + $0x240] sm:$0xff]
      %v981 = vld [vmem:[%s6 + $0x248] sm:$0xff]
      %v982 = vld [vmem:[%s6 + $0x250] sm:$0xff]
      %v983 = vld [vmem:[%s6 + $0x258] sm:$0xff]
      %v984 = vld [vmem:[%s6 + $0x260] sm:$0xff]
      %v985 = vld [vmem:[%s6 + $0x268] sm:$0xff]
      %v986 = vld [vmem:[%s6 + $0x270] sm:$0xff]
      %v987 = vld [vmem:[%s6 + $0x278] sm:$0xff]
      %v988 = vld [vmem:[%s6 + $0x280] sm:$0xff]
      %v989 = vld [vmem:[%s6 + $0x288] sm:$0xff]
      %v990 = vld [vmem:[%s6 + $0x290] sm:$0xff]
      %v991 = vld [vmem:[%s6 + $0x298] sm:$0xff]
      %v992 = vld [vmem:[%s6 + $0x2a0] sm:$0xff]
      %v993 = vld [vmem:[%s6 + $0x2a8] sm:$0xff]
      %v994 = vld [vmem:[%s6 + $0x2b0] sm:$0xff]
      %v995 = vld [vmem:[%s6 + $0x2b8] sm:$0xff]
      %v996 = vld [vmem:[%s6 + $0x2c0] sm:$0xff]
      %v997 = vld [vmem:[%s6 + $0x2c8] sm:$0xff]
      %v998 = vld [vmem:[%s6 + $0x2d0] sm:$0xff]
      %v999 = vld [vmem:[%s6 + $0x2d8] sm:$0xff]
      %v1000 = vld [vmem:[%s6 + $0x2e0] sm:$0xff]
      %v1001 = vld [vmem:[%s6 + $0x2e8] sm:$0xff]
      %v1002 = vld [vmem:[%s6 + $0x2f0] sm:$0xff]
      %v1003 = vld [vmem:[%s6 + $0x2f8] sm:$0xff]
      %v1004 = vld [vmem:[%s6 + $0x300] sm:$0xff]
      %v1005 = vld [vmem:[%s6 + $0x308] sm:$0xff]
      %v1006 = vld [vmem:[%s6 + $0x310] sm:$0xff]
      %v1007 = vld [vmem:[%s6 + $0x318] sm:$0xff]
      %v1008 = vld [vmem:[%s6 + $0x320] sm:$0xff]
      %v1009 = vld [vmem:[%s6 + $0x328] sm:$0xff]
      %v1010 = vld [vmem:[%s6 + $0x330] sm:$0xff]
      %v1011 = vld [vmem:[%s6 + $0x338] sm:$0xff]
      %v1012 = vld [vmem:[%s6 + $0x340] sm:$0xff]
      %v1013 = vld [vmem:[%s6 + $0x348] sm:$0xff]
      %v1014 = vld [vmem:[%s6 + $0x350] sm:$0xff]
      %v1015 = vld [vmem:[%s6 + $0x358] sm:$0xff]
      %v1016 = vld [vmem:[%s6 + $0x360] sm:$0xff]
      %v1017 = vld [vmem:[%s6 + $0x368] sm:$0xff]
      %v1018 = vld [vmem:[%s6 + $0x370] sm:$0xff]
      %v1019 = vld [vmem:[%s6 + $0x378] sm:$0xff]
      %v1020 = vld [vmem:[%s6 + $0x380] sm:$0xff]
      %v1021 = vld [vmem:[%s6 + $0x388] sm:$0xff]
      %v1022 = vld [vmem:[%s6 + $0x390] sm:$0xff]
      %v1023 = vld [vmem:[%s6 + $0x398] sm:$0xff]
      %v1024 = vld [vmem:[%s6 + $0x3a0] sm:$0xff]
      %v1025 = vld [vmem:[%s6 + $0x3a8] sm:$0xff]
      %v1026 = vld [vmem:[%s6 + $0x3b0] sm:$0xff]
      %v1027 = vld [vmem:[%s6 + $0x3b8] sm:$0xff]
      %v1028 = vld [vmem:[%s6 + $0x3c0] sm:$0xff]
      %v1029 = vld [vmem:[%s6 + $0x3c8] sm:$0xff]
      %v1030 = vld [vmem:[%s6 + $0x3d0] sm:$0xff]
      %v1031 = vld [vmem:[%s6 + $0x3d8] sm:$0xff]
      %v1032 = vld [vmem:[%s6 + $0x3e0] sm:$0xff]
      %v1033 = vld [vmem:[%s6 + $0x3e8] sm:$0xff]
      %v1034 = vld [vmem:[%s6 + $0x3f0] sm:$0xff]
      %v1035 = vld [vmem:[%s6 + $0x3f8] sm:$0xff]
      %v1036 = vld [vmem:[%s7] sm:$0xf]
      %v1038 = vlaneseq
      %v1039 = vshrl.u32 %v1038, 7
      %v1040 = vsub.s32 0, %v1039
      %v1041 = vrot.slane %v1036, %v1040
      %v1042 = vlaneseq
      %v1043 = vshrl.u32 %v1042, 7
      %v1044 = vsub.s32 1, %v1043
      %v1045 = vrot.slane %v1036, %v1044
      %v1046 = vlaneseq
      %v1047 = vshrl.u32 %v1046, 7
      %v1048 = vsub.s32 2, %v1047
      %v1049 = vrot.slane %v1036, %v1048
      %v1050 = vlaneseq
      %v1051 = vshrl.u32 %v1050, 7
      %v1052 = vsub.s32 3, %v1051
      %v1053 = vrot.slane %v1036, %v1052
      %v1186 = vunpack.c.l.b16 %v908
      %v1187 = vunpack.c.h.b16 %v908
      %v1188 = vunpack.c.l.b16 %v909
      %v1189 = vunpack.c.h.b16 %v909
      %v1190 = vunpack.c.l.b16 %v910
      %v1191 = vunpack.c.h.b16 %v910
      %v1192 = vunpack.c.l.b16 %v911
      %v1193 = vunpack.c.h.b16 %v911
      %v1194 = vunpack.c.l.b16 %v912
      %v1195 = vunpack.c.h.b16 %v912
      %v1196 = vunpack.c.l.b16 %v913
      %v1197 = vunpack.c.h.b16 %v913
      %v1198 = vunpack.c.l.b16 %v914
      %v1199 = vunpack.c.h.b16 %v914
      %v1200 = vunpack.c.l.b16 %v915
      %v1201 = vunpack.c.h.b16 %v915
      %v1202 = vunpack.c.l.b16 %v916
      %v1203 = vunpack.c.h.b16 %v916
      %v1204 = vunpack.c.l.b16 %v917
      %v1205 = vunpack.c.h.b16 %v917
      %v1206 = vunpack.c.l.b16 %v918
      %v1207 = vunpack.c.h.b16 %v918
      %v1208 = vunpack.c.l.b16 %v919
      %v1209 = vunpack.c.h.b16 %v919
      %v1210 = vunpack.c.l.b16 %v920
      %v1211 = vunpack.c.h.b16 %v920
      %v1212 = vunpack.c.l.b16 %v921
      %v1213 = vunpack.c.h.b16 %v921
      %v1214 = vunpack.c.l.b16 %v922
      %v1215 = vunpack.c.h.b16 %v922
      %v1216 = vunpack.c.l.b16 %v923
      %v1217 = vunpack.c.h.b16 %v923
      %v1218 = vunpack.c.l.b16 %v924
      %v1219 = vunpack.c.h.b16 %v924
      %v1220 = vunpack.c.l.b16 %v925
      %v1221 = vunpack.c.h.b16 %v925
      %v1222 = vunpack.c.l.b16 %v926
      %v1223 = vunpack.c.h.b16 %v926
      %v1224 = vunpack.c.l.b16 %v927
      %v1225 = vunpack.c.h.b16 %v927
      %v1226 = vunpack.c.l.b16 %v928
      %v1227 = vunpack.c.h.b16 %v928
      %v1228 = vunpack.c.l.b16 %v929
      %v1229 = vunpack.c.h.b16 %v929
      %v1230 = vunpack.c.l.b16 %v930
      %v1231 = vunpack.c.h.b16 %v930
      %v1232 = vunpack.c.l.b16 %v931
      %v1233 = vunpack.c.h.b16 %v931
      %v1234 = vunpack.c.l.b16 %v932
      %v1235 = vunpack.c.h.b16 %v932
      %v1236 = vunpack.c.l.b16 %v933
      %v1237 = vunpack.c.h.b16 %v933
      %v1238 = vunpack.c.l.b16 %v934
      %v1239 = vunpack.c.h.b16 %v934
      %v1240 = vunpack.c.l.b16 %v935
      %v1241 = vunpack.c.h.b16 %v935
      %v1242 = vunpack.c.l.b16 %v936
      %v1243 = vunpack.c.h.b16 %v936
      %v1244 = vunpack.c.l.b16 %v937
      %v1245 = vunpack.c.h.b16 %v937
      %v1246 = vunpack.c.l.b16 %v938
      %v1247 = vunpack.c.h.b16 %v938
      %v1248 = vunpack.c.l.b16 %v939
      %v1249 = vunpack.c.h.b16 %v939
      %v1250 = vunpack.c.l.b16 %v940
      %v1251 = vunpack.c.h.b16 %v940
      %v1252 = vunpack.c.l.b16 %v941
      %v1253 = vunpack.c.h.b16 %v941
      %v1254 = vunpack.c.l.b16 %v942
      %v1255 = vunpack.c.h.b16 %v942
      %v1256 = vunpack.c.l.b16 %v943
      %v1257 = vunpack.c.h.b16 %v943
      %v1258 = vunpack.c.l.b16 %v944
      %v1259 = vunpack.c.h.b16 %v944
      %v1260 = vunpack.c.l.b16 %v945
      %v1261 = vunpack.c.h.b16 %v945
      %v1262 = vunpack.c.l.b16 %v946
      %v1263 = vunpack.c.h.b16 %v946
      %v1264 = vunpack.c.l.b16 %v947
      %v1265 = vunpack.c.h.b16 %v947
      %v1266 = vunpack.c.l.b16 %v948
      %v1267 = vunpack.c.h.b16 %v948
      %v1268 = vunpack.c.l.b16 %v949
      %v1269 = vunpack.c.h.b16 %v949
      %v1270 = vunpack.c.l.b16 %v950
      %v1271 = vunpack.c.h.b16 %v950
      %v1272 = vunpack.c.l.b16 %v951
      %v1273 = vunpack.c.h.b16 %v951
      %v1274 = vunpack.c.l.b16 %v952
      %v1275 = vunpack.c.h.b16 %v952
      %v1276 = vunpack.c.l.b16 %v953
      %v1277 = vunpack.c.h.b16 %v953
      %v1278 = vunpack.c.l.b16 %v954
      %v1279 = vunpack.c.h.b16 %v954
      %v1280 = vunpack.c.l.b16 %v955
      %v1281 = vunpack.c.h.b16 %v955
      %v1282 = vunpack.c.l.b16 %v956
      %v1283 = vunpack.c.h.b16 %v956
      %v1284 = vunpack.c.l.b16 %v957
      %v1285 = vunpack.c.h.b16 %v957
      %v1286 = vunpack.c.l.b16 %v958
      %v1287 = vunpack.c.h.b16 %v958
      %v1288 = vunpack.c.l.b16 %v959
      %v1289 = vunpack.c.h.b16 %v959
      %v1290 = vunpack.c.l.b16 %v960
      %v1291 = vunpack.c.h.b16 %v960
      %v1292 = vunpack.c.l.b16 %v961
      %v1293 = vunpack.c.h.b16 %v961
      %v1294 = vunpack.c.l.b16 %v962
      %v1295 = vunpack.c.h.b16 %v962
      %v1296 = vunpack.c.l.b16 %v963
      %v1297 = vunpack.c.h.b16 %v963
      %v1298 = vunpack.c.l.b16 %v964
      %v1299 = vunpack.c.h.b16 %v964
      %v1300 = vunpack.c.l.b16 %v965
      %v1301 = vunpack.c.h.b16 %v965
      %v1302 = vunpack.c.l.b16 %v966
      %v1303 = vunpack.c.h.b16 %v966
      %v1304 = vunpack.c.l.b16 %v967
      %v1305 = vunpack.c.h.b16 %v967
      %v1306 = vunpack.c.l.b16 %v968
      %v1307 = vunpack.c.h.b16 %v968
      %v1308 = vunpack.c.l.b16 %v969
      %v1309 = vunpack.c.h.b16 %v969
      %v1310 = vunpack.c.l.b16 %v970
      %v1311 = vunpack.c.h.b16 %v970
      %v1312 = vunpack.c.l.b16 %v971
      %v1313 = vunpack.c.h.b16 %v971
      %v1314 = vunpack.c.l.b16 %v972
      %v1315 = vunpack.c.h.b16 %v972
      %v1316 = vunpack.c.l.b16 %v973
      %v1317 = vunpack.c.h.b16 %v973
      %v1318 = vunpack.c.l.b16 %v974
      %v1319 = vunpack.c.h.b16 %v974
      %v1320 = vunpack.c.l.b16 %v975
      %v1321 = vunpack.c.h.b16 %v975
      %v1322 = vunpack.c.l.b16 %v976
      %v1323 = vunpack.c.h.b16 %v976
      %v1324 = vunpack.c.l.b16 %v977
      %v1325 = vunpack.c.h.b16 %v977
      %v1326 = vunpack.c.l.b16 %v978
      %v1327 = vunpack.c.h.b16 %v978
      %v1328 = vunpack.c.l.b16 %v979
      %v1329 = vunpack.c.h.b16 %v979
      %v1330 = vunpack.c.l.b16 %v980
      %v1331 = vunpack.c.h.b16 %v980
      %v1332 = vunpack.c.l.b16 %v981
      %v1333 = vunpack.c.h.b16 %v981
      %v1334 = vunpack.c.l.b16 %v982
      %v1335 = vunpack.c.h.b16 %v982
      %v1336 = vunpack.c.l.b16 %v983
      %v1337 = vunpack.c.h.b16 %v983
      %v1338 = vunpack.c.l.b16 %v984
      %v1339 = vunpack.c.h.b16 %v984
      %v1340 = vunpack.c.l.b16 %v985
      %v1341 = vunpack.c.h.b16 %v985
      %v1342 = vunpack.c.l.b16 %v986
      %v1343 = vunpack.c.h.b16 %v986
      %v1344 = vunpack.c.l.b16 %v987
      %v1345 = vunpack.c.h.b16 %v987
      %v1346 = vunpack.c.l.b16 %v988
      %v1347 = vunpack.c.h.b16 %v988
      %v1348 = vunpack.c.l.b16 %v989
      %v1349 = vunpack.c.h.b16 %v989
      %v1350 = vunpack.c.l.b16 %v990
      %v1351 = vunpack.c.h.b16 %v990
      %v1352 = vunpack.c.l.b16 %v991
      %v1353 = vunpack.c.h.b16 %v991
      %v1354 = vunpack.c.l.b16 %v992
      %v1355 = vunpack.c.h.b16 %v992
      %v1356 = vunpack.c.l.b16 %v993
      %v1357 = vunpack.c.h.b16 %v993
      %v1358 = vunpack.c.l.b16 %v994
      %v1359 = vunpack.c.h.b16 %v994
      %v1360 = vunpack.c.l.b16 %v995
      %v1361 = vunpack.c.h.b16 %v995
      %v1362 = vunpack.c.l.b16 %v996
      %v1363 = vunpack.c.h.b16 %v996
      %v1364 = vunpack.c.l.b16 %v997
      %v1365 = vunpack.c.h.b16 %v997
      %v1366 = vunpack.c.l.b16 %v998
      %v1367 = vunpack.c.h.b16 %v998
      %v1368 = vunpack.c.l.b16 %v999
      %v1369 = vunpack.c.h.b16 %v999
      %v1370 = vunpack.c.l.b16 %v1000
      %v1371 = vunpack.c.h.b16 %v1000
      %v1372 = vunpack.c.l.b16 %v1001
      %v1373 = vunpack.c.h.b16 %v1001
      %v1374 = vunpack.c.l.b16 %v1002
      %v1375 = vunpack.c.h.b16 %v1002
      %v1376 = vunpack.c.l.b16 %v1003
      %v1377 = vunpack.c.h.b16 %v1003
      %v1378 = vunpack.c.l.b16 %v1004
      %v1379 = vunpack.c.h.b16 %v1004
      %v1380 = vunpack.c.l.b16 %v1005
      %v1381 = vunpack.c.h.b16 %v1005
      %v1382 = vunpack.c.l.b16 %v1006
      %v1383 = vunpack.c.h.b16 %v1006
      %v1384 = vunpack.c.l.b16 %v1007
      %v1385 = vunpack.c.h.b16 %v1007
      %v1386 = vunpack.c.l.b16 %v1008
      %v1387 = vunpack.c.h.b16 %v1008
      %v1388 = vunpack.c.l.b16 %v1009
      %v1389 = vunpack.c.h.b16 %v1009
      %v1390 = vunpack.c.l.b16 %v1010
      %v1391 = vunpack.c.h.b16 %v1010
      %v1392 = vunpack.c.l.b16 %v1011
      %v1393 = vunpack.c.h.b16 %v1011
      %v1394 = vunpack.c.l.b16 %v1012
      %v1395 = vunpack.c.h.b16 %v1012
      %v1396 = vunpack.c.l.b16 %v1013
      %v1397 = vunpack.c.h.b16 %v1013
      %v1398 = vunpack.c.l.b16 %v1014
      %v1399 = vunpack.c.h.b16 %v1014
      %v1400 = vunpack.c.l.b16 %v1015
      %v1401 = vunpack.c.h.b16 %v1015
      %v1402 = vunpack.c.l.b16 %v1016
      %v1403 = vunpack.c.h.b16 %v1016
      %v1404 = vunpack.c.l.b16 %v1017
      %v1405 = vunpack.c.h.b16 %v1017
      %v1406 = vunpack.c.l.b16 %v1018
      %v1407 = vunpack.c.h.b16 %v1018
      %v1408 = vunpack.c.l.b16 %v1019
      %v1409 = vunpack.c.h.b16 %v1019
      %v1410 = vunpack.c.l.b16 %v1020
      %v1411 = vunpack.c.h.b16 %v1020
      %v1412 = vunpack.c.l.b16 %v1021
      %v1413 = vunpack.c.h.b16 %v1021
      %v1414 = vunpack.c.l.b16 %v1022
      %v1415 = vunpack.c.h.b16 %v1022
      %v1416 = vunpack.c.l.b16 %v1023
      %v1417 = vunpack.c.h.b16 %v1023
      %v1418 = vunpack.c.l.b16 %v1024
      %v1419 = vunpack.c.h.b16 %v1024
      %v1420 = vunpack.c.l.b16 %v1025
      %v1421 = vunpack.c.h.b16 %v1025
      %v1422 = vunpack.c.l.b16 %v1026
      %v1423 = vunpack.c.h.b16 %v1026
      %v1424 = vunpack.c.l.b16 %v1027
      %v1425 = vunpack.c.h.b16 %v1027
      %v1426 = vunpack.c.l.b16 %v1028
      %v1427 = vunpack.c.h.b16 %v1028
      %v1428 = vunpack.c.l.b16 %v1029
      %v1429 = vunpack.c.h.b16 %v1029
      %v1430 = vunpack.c.l.b16 %v1030
      %v1431 = vunpack.c.h.b16 %v1030
      %v1432 = vunpack.c.l.b16 %v1031
      %v1433 = vunpack.c.h.b16 %v1031
      %v1434 = vunpack.c.l.b16 %v1032
      %v1435 = vunpack.c.h.b16 %v1032
      %v1436 = vunpack.c.l.b16 %v1033
      %v1437 = vunpack.c.h.b16 %v1033
      %v1438 = vunpack.c.l.b16 %v1034
      %v1439 = vunpack.c.h.b16 %v1034
      %v1440 = vunpack.c.l.b16 %v1035
      %v1441 = vunpack.c.h.b16 %v1035
      %v1442 = vpack.c.b16 %v1190, %v1186
      %v1443 = vpack.c.b16 %v1191, %v1187
      %v1444 = vpack.c.b16 %v1192, %v1188
      %v1445 = vpack.c.b16 %v1193, %v1189
      %v1446 = vpack.c.b16 %v1198, %v1194
      %v1447 = vpack.c.b16 %v1199, %v1195
      %v1448 = vpack.c.b16 %v1200, %v1196
      %v1449 = vpack.c.b16 %v1201, %v1197
      %v1450 = vpack.c.b16 %v1206, %v1202
      %v1451 = vpack.c.b16 %v1207, %v1203
      %v1452 = vpack.c.b16 %v1208, %v1204
      %v1453 = vpack.c.b16 %v1209, %v1205
      %v1454 = vpack.c.b16 %v1214, %v1210
      %v1455 = vpack.c.b16 %v1215, %v1211
      %v1456 = vpack.c.b16 %v1216, %v1212
      %v1457 = vpack.c.b16 %v1217, %v1213
      %v1458 = vpack.c.b16 %v1222, %v1218
      %v1459 = vpack.c.b16 %v1223, %v1219
      %v1460 = vpack.c.b16 %v1224, %v1220
      %v1461 = vpack.c.b16 %v1225, %v1221
      %v1462 = vpack.c.b16 %v1230, %v1226
      %v1463 = vpack.c.b16 %v1231, %v1227
      %v1464 = vpack.c.b16 %v1232, %v1228
      %v1465 = vpack.c.b16 %v1233, %v1229
      %v1466 = vpack.c.b16 %v1238, %v1234
      %v1467 = vpack.c.b16 %v1239, %v1235
      %v1468 = vpack.c.b16 %v1240, %v1236
      %v1469 = vpack.c.b16 %v1241, %v1237
      %v1470 = vpack.c.b16 %v1246, %v1242
      %v1471 = vpack.c.b16 %v1247, %v1243
      %v1472 = vpack.c.b16 %v1248, %v1244
      %v1473 = vpack.c.b16 %v1249, %v1245
      %v1474 = vpack.c.b16 %v1254, %v1250
      %v1475 = vpack.c.b16 %v1255, %v1251
      %v1476 = vpack.c.b16 %v1256, %v1252
      %v1477 = vpack.c.b16 %v1257, %v1253
      %v1478 = vpack.c.b16 %v1262, %v1258
      %v1479 = vpack.c.b16 %v1263, %v1259
      %v1480 = vpack.c.b16 %v1264, %v1260
      %v1481 = vpack.c.b16 %v1265, %v1261
      %v1482 = vpack.c.b16 %v1270, %v1266
      %v1483 = vpack.c.b16 %v1271, %v1267
      %v1484 = vpack.c.b16 %v1272, %v1268
      %v1485 = vpack.c.b16 %v1273, %v1269
      %v1486 = vpack.c.b16 %v1278, %v1274
      %v1487 = vpack.c.b16 %v1279, %v1275
      %v1488 = vpack.c.b16 %v1280, %v1276
      %v1489 = vpack.c.b16 %v1281, %v1277
      %v1490 = vpack.c.b16 %v1286, %v1282
      %v1491 = vpack.c.b16 %v1287, %v1283
      %v1492 = vpack.c.b16 %v1288, %v1284
      %v1493 = vpack.c.b16 %v1289, %v1285
      %v1494 = vpack.c.b16 %v1294, %v1290
      %v1495 = vpack.c.b16 %v1295, %v1291
      %v1496 = vpack.c.b16 %v1296, %v1292
      %v1497 = vpack.c.b16 %v1297, %v1293
      %v1498 = vpack.c.b16 %v1302, %v1298
      %v1499 = vpack.c.b16 %v1303, %v1299
      %v1500 = vpack.c.b16 %v1304, %v1300
      %v1501 = vpack.c.b16 %v1305, %v1301
      %v1502 = vpack.c.b16 %v1310, %v1306
      %v1503 = vpack.c.b16 %v1311, %v1307
      %v1504 = vpack.c.b16 %v1312, %v1308
      %v1505 = vpack.c.b16 %v1313, %v1309
      %v1506 = vpack.c.b16 %v1318, %v1314
      %v1507 = vpack.c.b16 %v1319, %v1315
      %v1508 = vpack.c.b16 %v1320, %v1316
      %v1509 = vpack.c.b16 %v1321, %v1317
      %v1510 = vpack.c.b16 %v1326, %v1322
      %v1511 = vpack.c.b16 %v1327, %v1323
      %v1512 = vpack.c.b16 %v1328, %v1324
      %v1513 = vpack.c.b16 %v1329, %v1325
      %v1514 = vpack.c.b16 %v1334, %v1330
      %v1515 = vpack.c.b16 %v1335, %v1331
      %v1516 = vpack.c.b16 %v1336, %v1332
      %v1517 = vpack.c.b16 %v1337, %v1333
      %v1518 = vpack.c.b16 %v1342, %v1338
      %v1519 = vpack.c.b16 %v1343, %v1339
      %v1520 = vpack.c.b16 %v1344, %v1340
      %v1521 = vpack.c.b16 %v1345, %v1341
      %v1522 = vpack.c.b16 %v1350, %v1346
      %v1523 = vpack.c.b16 %v1351, %v1347
      %v1524 = vpack.c.b16 %v1352, %v1348
      %v1525 = vpack.c.b16 %v1353, %v1349
      %v1526 = vpack.c.b16 %v1358, %v1354
      %v1527 = vpack.c.b16 %v1359, %v1355
      %v1528 = vpack.c.b16 %v1360, %v1356
      %v1529 = vpack.c.b16 %v1361, %v1357
      %v1530 = vpack.c.b16 %v1366, %v1362
      %v1531 = vpack.c.b16 %v1367, %v1363
      %v1532 = vpack.c.b16 %v1368, %v1364
      %v1533 = vpack.c.b16 %v1369, %v1365
      %v1534 = vpack.c.b16 %v1374, %v1370
      %v1535 = vpack.c.b16 %v1375, %v1371
      %v1536 = vpack.c.b16 %v1376, %v1372
      %v1537 = vpack.c.b16 %v1377, %v1373
      %v1538 = vpack.c.b16 %v1382, %v1378
      %v1539 = vpack.c.b16 %v1383, %v1379
      %v1540 = vpack.c.b16 %v1384, %v1380
      %v1541 = vpack.c.b16 %v1385, %v1381
      %v1542 = vpack.c.b16 %v1390, %v1386
      %v1543 = vpack.c.b16 %v1391, %v1387
      %v1544 = vpack.c.b16 %v1392, %v1388
      %v1545 = vpack.c.b16 %v1393, %v1389
      %v1546 = vpack.c.b16 %v1398, %v1394
      %v1547 = vpack.c.b16 %v1399, %v1395
      %v1548 = vpack.c.b16 %v1400, %v1396
      %v1549 = vpack.c.b16 %v1401, %v1397
      %v1550 = vpack.c.b16 %v1406, %v1402
      %v1551 = vpack.c.b16 %v1407, %v1403
      %v1552 = vpack.c.b16 %v1408, %v1404
      %v1553 = vpack.c.b16 %v1409, %v1405
      %v1554 = vpack.c.b16 %v1414, %v1410
      %v1555 = vpack.c.b16 %v1415, %v1411
      %v1556 = vpack.c.b16 %v1416, %v1412
      %v1557 = vpack.c.b16 %v1417, %v1413
      %v1558 = vpack.c.b16 %v1422, %v1418
      %v1559 = vpack.c.b16 %v1423, %v1419
      %v1560 = vpack.c.b16 %v1424, %v1420
      %v1561 = vpack.c.b16 %v1425, %v1421
      %v1562 = vpack.c.b16 %v1430, %v1426
      %v1563 = vpack.c.b16 %v1431, %v1427
      %v1564 = vpack.c.b16 %v1432, %v1428
      %v1565 = vpack.c.b16 %v1433, %v1429
      %v1566 = vpack.c.b16 %v1438, %v1434
      %v1567 = vpack.c.b16 %v1439, %v1435
      %v1568 = vpack.c.b16 %v1440, %v1436
      %v1569 = vpack.c.b16 %v1441, %v1437
      %1698 = vmatprep.subr.bf16.mxu0 %v1443
      %1699 = vmatpush1.bf16.msra.mxu0 %v1442
      %1700 = vmatprep.subr.bf16.mxu0 %v1447
      %1701 = vmatpush1.bf16.msra.mxu0 %v1446
      %1702 = vmatprep.subr.bf16.mxu0 %v1451
      %1703 = vmatpush1.bf16.msra.mxu0 %v1450
      %1704 = vmatprep.subr.bf16.mxu0 %v1455
      %1705 = vmatpush1.bf16.msra.mxu0 %v1454
      %1706 = vmatprep.subr.bf16.mxu0 %v1459
      %1707 = vmatpush1.bf16.msra.mxu0 %v1458
      %1708 = vmatprep.subr.bf16.mxu0 %v1463
      %1709 = vmatpush1.bf16.msra.mxu0 %v1462
      %1710 = vmatprep.subr.bf16.mxu0 %v1467
      %1711 = vmatpush1.bf16.msra.mxu0 %v1466
      %1712 = vmatprep.subr.bf16.mxu0 %v1471
      %1713 = vmatpush1.bf16.msra.mxu0 %v1470
      %1714 = vmatprep.subr.bf16.mxu0 %v1475
      %1715 = vmatpush1.bf16.msra.mxu0 %v1474
      %1716 = vmatprep.subr.bf16.mxu0 %v1479
      %1717 = vmatpush1.bf16.msra.mxu0 %v1478
      %1718 = vmatprep.subr.bf16.mxu0 %v1483
      %1719 = vmatpush1.bf16.msra.mxu0 %v1482
      %1720 = vmatprep.subr.bf16.mxu0 %v1487
      %1721 = vmatpush1.bf16.msra.mxu0 %v1486
      %1722 = vmatprep.subr.bf16.mxu0 %v1491
      %1723 = vmatpush1.bf16.msra.mxu0 %v1490
      %1724 = vmatprep.subr.bf16.mxu0 %v1495
      %1725 = vmatpush1.bf16.msra.mxu0 %v1494
      %1726 = vmatprep.subr.bf16.mxu0 %v1499
      %1727 = vmatpush1.bf16.msra.mxu0 %v1498
      %1728 = vmatprep.subr.bf16.mxu0 %v1503
      %1729 = vmatpush1.bf16.msra.mxu0 %v1502
      %1730 = vmatprep.mubr.bf16.mxu0 %v905
      %1731 = vmatmul.mubr.bf16.gmra.mrb[0].mxu0 %v904
      %v1732 = vpop.f32.mrb[0].mxu0
      %v1733 = vadd.f32 %v1041, %v1732
      %v1734 = vpop.f32.mrb[0].mxu0
      %v1735 = vadd.f32 %v1045, %v1734
      %v1736 = vpop.f32.mrb[0].mxu0
      %v1737 = vadd.f32 %v1041, %v1736
      %v1738 = vpop.f32.mrb[0].mxu0
      %v1739 = vadd.f32 %v1045, %v1738
      %1740 = vdwg.mxu0
      %1741 = vmatprep.subr.bf16.mxu0 %v1507
      %1742 = vmatpush1.bf16.msra.mxu0 %v1506
      %1743 = vmatprep.subr.bf16.mxu0 %v1511
      %1744 = vmatpush1.bf16.msra.mxu0 %v1510
      %1745 = vmatprep.subr.bf16.mxu0 %v1515
      %1746 = vmatpush1.bf16.msra.mxu0 %v1514
      %1747 = vmatprep.subr.bf16.mxu0 %v1519
      %1748 = vmatpush1.bf16.msra.mxu0 %v1518
      %1749 = vmatprep.subr.bf16.mxu0 %v1523
      %1750 = vmatpush1.bf16.msra.mxu0 %v1522
      %1751 = vmatprep.subr.bf16.mxu0 %v1527
      %1752 = vmatpush1.bf16.msra.mxu0 %v1526
      %1753 = vmatprep.subr.bf16.mxu0 %v1531
      %1754 = vmatpush1.bf16.msra.mxu0 %v1530
      %1755 = vmatprep.subr.bf16.mxu0 %v1535
      %1756 = vmatpush1.bf16.msra.mxu0 %v1534
      %1757 = vmatprep.subr.bf16.mxu0 %v1539
      %1758 = vmatpush1.bf16.msra.mxu0 %v1538
      %1759 = vmatprep.subr.bf16.mxu0 %v1543
      %1760 = vmatpush1.bf16.msra.mxu0 %v1542
      %1761 = vmatprep.subr.bf16.mxu0 %v1547
      %1762 = vmatpush1.bf16.msra.mxu0 %v1546
      %1763 = vmatprep.subr.bf16.mxu0 %v1551
      %1764 = vmatpush1.bf16.msra.mxu0 %v1550
      %1765 = vmatprep.subr.bf16.mxu0 %v1555
      %1766 = vmatpush1.bf16.msra.mxu0 %v1554
      %1767 = vmatprep.subr.bf16.mxu0 %v1559
      %1768 = vmatpush1.bf16.msra.mxu0 %v1558
      %1769 = vmatprep.subr.bf16.mxu0 %v1563
      %1770 = vmatpush1.bf16.msra.mxu0 %v1562
      %1771 = vmatprep.subr.bf16.mxu0 %v1567
      %1772 = vmatpush1.bf16.msra.mxu0 %v1566
      %1773 = vmatprep.mubr.bf16.mxu0 %v907
      %1774 = vmatmul.mubr.bf16.gmra.mrb[0].mxu0 %v906
      %v1775 = vpop.f32.mrb[0].mxu0
      %v1776 = vadd.f32 %v1733, %v1775
      %v1777 = vpop.f32.mrb[0].mxu0
      %v1778 = vadd.f32 %v1735, %v1777
      %v1779 = vpop.f32.mrb[0].mxu0
      %v1780 = vadd.f32 %v1737, %v1779
      %v1781 = vpop.f32.mrb[0].mxu0
      %v1782 = vadd.f32 %v1739, %v1781
      %1783 = vdwg.mxu0
      %1784 = vmatprep.subr.bf16.mxu0 %v1445
      %1785 = vmatpush1.bf16.msra.mxu0 %v1444
      %1786 = vmatprep.subr.bf16.mxu0 %v1449
      %1787 = vmatpush1.bf16.msra.mxu0 %v1448
      %1788 = vmatprep.subr.bf16.mxu0 %v1453
      %1789 = vmatpush1.bf16.msra.mxu0 %v1452
      %1790 = vmatprep.subr.bf16.mxu0 %v1457
      %1791 = vmatpush1.bf16.msra.mxu0 %v1456
      %1792 = vmatprep.subr.bf16.mxu0 %v1461
      %1793 = vmatpush1.bf16.msra.mxu0 %v1460
      %1794 = vmatprep.subr.bf16.mxu0 %v1465
      %1795 = vmatpush1.bf16.msra.mxu0 %v1464
      %1796 = vmatprep.subr.bf16.mxu0 %v1469
      %1797 = vmatpush1.bf16.msra.mxu0 %v1468
      %1798 = vmatprep.subr.bf16.mxu0 %v1473
      %1799 = vmatpush1.bf16.msra.mxu0 %v1472
      %1800 = vmatprep.subr.bf16.mxu0 %v1477
      %1801 = vmatpush1.bf16.msra.mxu0 %v1476
      %1802 = vmatprep.subr.bf16.mxu0 %v1481
      %1803 = vmatpush1.bf16.msra.mxu0 %v1480
      %1804 = vmatprep.subr.bf16.mxu0 %v1485
      %1805 = vmatpush1.bf16.msra.mxu0 %v1484
      %1806 = vmatprep.subr.bf16.mxu0 %v1489
      %1807 = vmatpush1.bf16.msra.mxu0 %v1488
      %1808 = vmatprep.subr.bf16.mxu0 %v1493
      %1809 = vmatpush1.bf16.msra.mxu0 %v1492
      %1810 = vmatprep.subr.bf16.mxu0 %v1497
      %1811 = vmatpush1.bf16.msra.mxu0 %v1496
      %1812 = vmatprep.subr.bf16.mxu0 %v1501
      %1813 = vmatpush1.bf16.msra.mxu0 %v1500
      %1814 = vmatprep.subr.bf16.mxu0 %v1505
      %1815 = vmatpush1.bf16.msra.mxu0 %v1504
      %1816 = vmatprep.mubr.bf16.mxu0 %v905
      %1817 = vmatmul.mubr.bf16.gmra.mrb[0].mxu0 %v904
      %v1818 = vpop.f32.mrb[0].mxu0
      %v1819 = vadd.f32 %v1049, %v1818
      %v1820 = vpop.f32.mrb[0].mxu0
      %v1821 = vadd.f32 %v1053, %v1820
      %v1822 = vpop.f32.mrb[0].mxu0
      %v1823 = vadd.f32 %v1049, %v1822
      %v1824 = vpop.f32.mrb[0].mxu0
      %v1825 = vadd.f32 %v1053, %v1824
      %1826 = vdwg.mxu0
      %1827 = vmatprep.subr.bf16.mxu0 %v1509
      %1828 = vmatpush1.bf16.msra.mxu0 %v1508
      %1829 = vmatprep.subr.bf16.mxu0 %v1513
      %1830 = vmatpush1.bf16.msra.mxu0 %v1512
      %1831 = vmatprep.subr.bf16.mxu0 %v1517
      %1832 = vmatpush1.bf16.msra.mxu0 %v1516
      %1833 = vmatprep.subr.bf16.mxu0 %v1521
      %1834 = vmatpush1.bf16.msra.mxu0 %v1520
      %1835 = vmatprep.subr.bf16.mxu0 %v1525
      %1836 = vmatpush1.bf16.msra.mxu0 %v1524
      %1837 = vmatprep.subr.bf16.mxu0 %v1529
      %1838 = vmatpush1.bf16.msra.mxu0 %v1528
      %1839 = vmatprep.subr.bf16.mxu0 %v1533
      %1840 = vmatpush1.bf16.msra.mxu0 %v1532
      %1841 = vmatprep.subr.bf16.mxu0 %v1537
      %1842 = vmatpush1.bf16.msra.mxu0 %v1536
      %1843 = vmatprep.subr.bf16.mxu0 %v1541
      %1844 = vmatpush1.bf16.msra.mxu0 %v1540
      %1845 = vmatprep.subr.bf16.mxu0 %v1545
      %1846 = vmatpush1.bf16.msra.mxu0 %v1544
      %1847 = vmatprep.subr.bf16.mxu0 %v1549
      %1848 = vmatpush1.bf16.msra.mxu0 %v1548
      %1849 = vmatprep.subr.bf16.mxu0 %v1553
      %1850 = vmatpush1.bf16.msra.mxu0 %v1552
      %1851 = vmatprep.subr.bf16.mxu0 %v1557
      %1852 = vmatpush1.bf16.msra.mxu0 %v1556
      %1853 = vmatprep.subr.bf16.mxu0 %v1561
      %1854 = vmatpush1.bf16.msra.mxu0 %v1560
      %1855 = vmatprep.subr.bf16.mxu0 %v1565
      %1856 = vmatpush1.bf16.msra.mxu0 %v1564
      %1857 = vmatprep.subr.bf16.mxu0 %v1569
      %1858 = vmatpush1.bf16.msra.mxu0 %v1568
      %1859 = vmatprep.mubr.bf16.mxu0 %v907
      %1860 = vmatmul.mubr.bf16.gmra.mrb[0].mxu0 %v906
      %v1861 = vpop.f32.mrb[0].mxu0
      %v1862 = vadd.f32 %v1819, %v1861
      %v1863 = vpop.f32.mrb[0].mxu0
      %v1864 = vadd.f32 %v1821, %v1863
      %v1865 = vpop.f32.mrb[0].mxu0
      %v1866 = vadd.f32 %v1823, %v1865
      %v1867 = vpop.f32.mrb[0].mxu0
      %v1868 = vadd.f32 %v1825, %v1867
      %1869 = vdwg.mxu0
      %v1870 = vmax.f32 %v1776, 0.0
      %v1871 = vmax.f32 %v1778, 0.0
      %v1872 = vmax.f32 %v1862, 0.0
      %v1873 = vmax.f32 %v1864, 0.0
      %v1874 = vmax.f32 %v1780, 0.0
      %v1875 = vmax.f32 %v1782, 0.0
      %v1876 = vmax.f32 %v1866, 0.0
      %v1877 = vmax.f32 %v1868, 0.0
      %v1878 = vpack.c.bf16 %v1876, %v1872
      %v1879 = vpack.c.bf16 %v1877, %v1873
      %v1880 = vld [vmem:[%s8] sm:$0xff]
      %v1881 = vld [vmem:[%s8 + $0x8] sm:$0xf]
      %v1882 = vld [vmem:[%s8 + $0xc] sm:$0xff]
      %v1883 = vld [vmem:[%s8 + $0x14] sm:$0xf]
      %v1884 = vld [vmem:[%s8 + $0x18] sm:$0xff]
      %v1885 = vld [vmem:[%s8 + $0x20] sm:$0xf]
      %v1886 = vld [vmem:[%s8 + $0x24] sm:$0xff]
      %v1887 = vld [vmem:[%s8 + $0x2c] sm:$0xf]
      %v1888 = vld [vmem:[%s8 + $0x30] sm:$0xff]
      %v1889 = vld [vmem:[%s8 + $0x38] sm:$0xf]
      %v1890 = vld [vmem:[%s8 + $0x3c] sm:$0xff]
      %v1891 = vld [vmem:[%s8 + $0x44] sm:$0xf]
      %v1892 = vld [vmem:[%s8 + $0x48] sm:$0xff]
      %v1893 = vld [vmem:[%s8 + $0x50] sm:$0xf]
      %v1894 = vld [vmem:[%s8 + $0x54] sm:$0xff]
      %v1895 = vld [vmem:[%s8 + $0x5c] sm:$0xf]
      %v1896 = vld [vmem:[%s8 + $0x60] sm:$0xff]
      %v1897 = vld [vmem:[%s8 + $0x68] sm:$0xf]
      %v1898 = vld [vmem:[%s8 + $0x6c] sm:$0xff]
      %v1899 = vld [vmem:[%s8 + $0x74] sm:$0xf]
      %v1900 = vld [vmem:[%s8 + $0x78] sm:$0xff]
      %v1901 = vld [vmem:[%s8 + $0x80] sm:$0xf]
      %v1902 = vld [vmem:[%s8 + $0x84] sm:$0xff]
      %v1903 = vld [vmem:[%s8 + $0x8c] sm:$0xf]
      %v1904 = vld [vmem:[%s8 + $0x90] sm:$0xff]
      %v1905 = vld [vmem:[%s8 + $0x98] sm:$0xf]
      %v1906 = vld [vmem:[%s8 + $0x9c] sm:$0xff]
      %v1907 = vld [vmem:[%s8 + $0xa4] sm:$0xf]
      %v1908 = vld [vmem:[%s8 + $0xa8] sm:$0xff]
      %v1909 = vld [vmem:[%s8 + $0xb0] sm:$0xf]
      %v1910 = vld [vmem:[%s8 + $0xb4] sm:$0xff]
      %v1911 = vld [vmem:[%s8 + $0xbc] sm:$0xf]
      %v1912 = vld [vmem:[%s8 + $0xc0] sm:$0xff]
      %v1913 = vld [vmem:[%s8 + $0xc8] sm:$0xf]
      %v1914 = vld [vmem:[%s8 + $0xcc] sm:$0xff]
      %v1915 = vld [vmem:[%s8 + $0xd4] sm:$0xf]
      %v1916 = vld [vmem:[%s8 + $0xd8] sm:$0xff]
      %v1917 = vld [vmem:[%s8 + $0xe0] sm:$0xf]
      %v1918 = vld [vmem:[%s8 + $0xe4] sm:$0xff]
      %v1919 = vld [vmem:[%s8 + $0xec] sm:$0xf]
      %v1920 = vld [vmem:[%s8 + $0xf0] sm:$0xff]
      %v1921 = vld [vmem:[%s8 + $0xf8] sm:$0xf]
      %v1922 = vld [vmem:[%s8 + $0xfc] sm:$0xff]
      %v1923 = vld [vmem:[%s8 + $0x104] sm:$0xf]
      %v1924 = vld [vmem:[%s8 + $0x108] sm:$0xff]
      %v1925 = vld [vmem:[%s8 + $0x110] sm:$0xf]
      %v1926 = vld [vmem:[%s8 + $0x114] sm:$0xff]
      %v1927 = vld [vmem:[%s8 + $0x11c] sm:$0xf]
      %v1928 = vld [vmem:[%s8 + $0x120] sm:$0xff]
      %v1929 = vld [vmem:[%s8 + $0x128] sm:$0xf]
      %v1930 = vld [vmem:[%s8 + $0x12c] sm:$0xff]
      %v1931 = vld [vmem:[%s8 + $0x134] sm:$0xf]
      %v1932 = vld [vmem:[%s8 + $0x138] sm:$0xff]
      %v1933 = vld [vmem:[%s8 + $0x140] sm:$0xf]
      %v1934 = vld [vmem:[%s8 + $0x144] sm:$0xff]
      %v1935 = vld [vmem:[%s8 + $0x14c] sm:$0xf]
      %v1936 = vld [vmem:[%s8 + $0x150] sm:$0xff]
      %v1937 = vld [vmem:[%s8 + $0x158] sm:$0xf]
      %v1938 = vld [vmem:[%s8 + $0x15c] sm:$0xff]
      %v1939 = vld [vmem:[%s8 + $0x164] sm:$0xf]
      %v1940 = vld [vmem:[%s8 + $0x168] sm:$0xff]
      %v1941 = vld [vmem:[%s8 + $0x170] sm:$0xf]
      %v1942 = vld [vmem:[%s8 + $0x174] sm:$0xff]
      %v1943 = vld [vmem:[%s8 + $0x17c] sm:$0xf]
      %v1944 = vld [vmem:[%s9] sm:$0x7]
      %v1946 = vlaneseq
      %v1947 = vshrl.u32 %v1946, 7
      %v1948 = vsub.s32 0, %v1947
      %v1949 = vrot.slane %v1944, %v1948
      %v1950 = vlaneseq
      %v1951 = vshrl.u32 %v1950, 7
      %v1952 = vsub.s32 1, %v1951
      %v1953 = vrot.slane %v1944, %v1952
      %v1954 = vlaneseq
      %v1955 = vshrl.u32 %v1954, 7
      %v1956 = vsub.s32 2, %v1955
      %v1957 = vrot.slane %v1944, %v1956
      %v2025 = vunpack.c.l.b16 %v1880
      %v2026 = vunpack.c.h.b16 %v1880
      %v2027 = vunpack.c.l.b16 %v1881
      %v2028 = vunpack.c.l.b16 %v1882
      %v2029 = vunpack.c.h.b16 %v1882
      %v2030 = vunpack.c.l.b16 %v1883
      %v2031 = vunpack.c.l.b16 %v1884
      %v2032 = vunpack.c.h.b16 %v1884
      %v2033 = vunpack.c.l.b16 %v1885
      %v2034 = vunpack.c.l.b16 %v1886
      %v2035 = vunpack.c.h.b16 %v1886
      %v2036 = vunpack.c.l.b16 %v1887
      %v2037 = vunpack.c.l.b16 %v1888
      %v2038 = vunpack.c.h.b16 %v1888
      %v2039 = vunpack.c.l.b16 %v1889
      %v2040 = vunpack.c.l.b16 %v1890
      %v2041 = vunpack.c.h.b16 %v1890
      %v2042 = vunpack.c.l.b16 %v1891
      %v2043 = vunpack.c.l.b16 %v1892
      %v2044 = vunpack.c.h.b16 %v1892
      %v2045 = vunpack.c.l.b16 %v1893
      %v2046 = vunpack.c.l.b16 %v1894
      %v2047 = vunpack.c.h.b16 %v1894
      %v2048 = vunpack.c.l.b16 %v1895
      %v2049 = vunpack.c.l.b16 %v1896
      %v2050 = vunpack.c.h.b16 %v1896
      %v2051 = vunpack.c.l.b16 %v1897
      %v2052 = vunpack.c.l.b16 %v1898
      %v2053 = vunpack.c.h.b16 %v1898
      %v2054 = vunpack.c.l.b16 %v1899
      %v2055 = vunpack.c.l.b16 %v1900
      %v2056 = vunpack.c.h.b16 %v1900
      %v2057 = vunpack.c.l.b16 %v1901
      %v2058 = vunpack.c.l.b16 %v1902
      %v2059 = vunpack.c.h.b16 %v1902
      %v2060 = vunpack.c.l.b16 %v1903
      %v2061 = vunpack.c.l.b16 %v1904
      %v2062 = vunpack.c.h.b16 %v1904
      %v2063 = vunpack.c.l.b16 %v1905
      %v2064 = vunpack.c.l.b16 %v1906
      %v2065 = vunpack.c.h.b16 %v1906
      %v2066 = vunpack.c.l.b16 %v1907
      %v2067 = vunpack.c.l.b16 %v1908
      %v2068 = vunpack.c.h.b16 %v1908
      %v2069 = vunpack.c.l.b16 %v1909
      %v2070 = vunpack.c.l.b16 %v1910
      %v2071 = vunpack.c.h.b16 %v1910
      %v2072 = vunpack.c.l.b16 %v1911
      %v2073 = vunpack.c.l.b16 %v1912
      %v2074 = vunpack.c.h.b16 %v1912
      %v2075 = vunpack.c.l.b16 %v1913
      %v2076 = vunpack.c.l.b16 %v1914
      %v2077 = vunpack.c.h.b16 %v1914
      %v2078 = vunpack.c.l.b16 %v1915
      %v2079 = vunpack.c.l.b16 %v1916
      %v2080 = vunpack.c.h.b16 %v1916
      %v2081 = vunpack.c.l.b16 %v1917
      %v2082 = vunpack.c.l.b16 %v1918
      %v2083 = vunpack.c.h.b16 %v1918
      %v2084 = vunpack.c.l.b16 %v1919
      %v2085 = vunpack.c.l.b16 %v1920
      %v2086 = vunpack.c.h.b16 %v1920
      %v2087 = vunpack.c.l.b16 %v1921
      %v2088 = vunpack.c.l.b16 %v1922
      %v2089 = vunpack.c.h.b16 %v1922
      %v2090 = vunpack.c.l.b16 %v1923
      %v2091 = vunpack.c.l.b16 %v1924
      %v2092 = vunpack.c.h.b16 %v1924
      %v2093 = vunpack.c.l.b16 %v1925
      %v2094 = vunpack.c.l.b16 %v1926
      %v2095 = vunpack.c.h.b16 %v1926
      %v2096 = vunpack.c.l.b16 %v1927
      %v2097 = vunpack.c.l.b16 %v1928
      %v2098 = vunpack.c.h.b16 %v1928
      %v2099 = vunpack.c.l.b16 %v1929
      %v2100 = vunpack.c.l.b16 %v1930
      %v2101 = vunpack.c.h.b16 %v1930
      %v2102 = vunpack.c.l.b16 %v1931
      %v2103 = vunpack.c.l.b16 %v1932
      %v2104 = vunpack.c.h.b16 %v1932
      %v2105 = vunpack.c.l.b16 %v1933
      %v2106 = vunpack.c.l.b16 %v1934
      %v2107 = vunpack.c.h.b16 %v1934
      %v2108 = vunpack.c.l.b16 %v1935
      %v2109 = vunpack.c.l.b16 %v1936
      %v2110 = vunpack.c.h.b16 %v1936
      %v2111 = vunpack.c.l.b16 %v1937
      %v2112 = vunpack.c.l.b16 %v1938
      %v2113 = vunpack.c.h.b16 %v1938
      %v2114 = vunpack.c.l.b16 %v1939
      %v2115 = vunpack.c.l.b16 %v1940
      %v2116 = vunpack.c.h.b16 %v1940
      %v2117 = vunpack.c.l.b16 %v1941
      %v2118 = vunpack.c.l.b16 %v1942
      %v2119 = vunpack.c.h.b16 %v1942
      %v2120 = vunpack.c.l.b16 %v1943
      %v2121 = vpack.c.b16 %v2028, %v2025
      %v2122 = vpack.c.b16 %v2029, %v2026
      %v2123 = vpack.c.b16 %v2030, %v2027
      %v2124 = vpack.c.b16 %v2034, %v2031
      %v2125 = vpack.c.b16 %v2035, %v2032
      %v2126 = vpack.c.b16 %v2036, %v2033
      %v2127 = vpack.c.b16 %v2040, %v2037
      %v2128 = vpack.c.b16 %v2041, %v2038
      %v2129 = vpack.c.b16 %v2042, %v2039
      %v2130 = vpack.c.b16 %v2046, %v2043
      %v2131 = vpack.c.b16 %v2047, %v2044
      %v2132 = vpack.c.b16 %v2048, %v2045
      %v2133 = vpack.c.b16 %v2052, %v2049
      %v2134 = vpack.c.b16 %v2053, %v2050
      %v2135 = vpack.c.b16 %v2054, %v2051
      %v2136 = vpack.c.b16 %v2058, %v2055
      %v2137 = vpack.c.b16 %v2059, %v2056
      %v2138 = vpack.c.b16 %v2060, %v2057
      %v2139 = vpack.c.b16 %v2064, %v2061
      %v2140 = vpack.c.b16 %v2065, %v2062
      %v2141 = vpack.c.b16 %v2066, %v2063
      %v2142 = vpack.c.b16 %v2070, %v2067
      %v2143 = vpack.c.b16 %v2071, %v2068
      %v2144 = vpack.c.b16 %v2072, %v2069
      %v2145 = vpack.c.b16 %v2076, %v2073
      %v2146 = vpack.c.b16 %v2077, %v2074
      %v2147 = vpack.c.b16 %v2078, %v2075
      %v2148 = vpack.c.b16 %v2082, %v2079
      %v2149 = vpack.c.b16 %v2083, %v2080
      %v2150 = vpack.c.b16 %v2084, %v2081
      %v2151 = vpack.c.b16 %v2088, %v2085
      %v2152 = vpack.c.b16 %v2089, %v2086
      %v2153 = vpack.c.b16 %v2090, %v2087
      %v2154 = vpack.c.b16 %v2094, %v2091
      %v2155 = vpack.c.b16 %v2095, %v2092
      %v2156 = vpack.c.b16 %v2096, %v2093
      %v2157 = vpack.c.b16 %v2100, %v2097
      %v2158 = vpack.c.b16 %v2101, %v2098
      %v2159 = vpack.c.b16 %v2102, %v2099
      %v2160 = vpack.c.b16 %v2106, %v2103
      %v2161 = vpack.c.b16 %v2107, %v2104
      %v2162 = vpack.c.b16 %v2108, %v2105
      %v2163 = vpack.c.b16 %v2112, %v2109
      %v2164 = vpack.c.b16 %v2113, %v2110
      %v2165 = vpack.c.b16 %v2114, %v2111
      %v2166 = vpack.c.b16 %v2118, %v2115
      %v2167 = vpack.c.b16 %v2119, %v2116
      %v2168 = vpack.c.b16 %v2120, %v2117
      %2217 = vmatprep.subr.bf16.mxu0 %v2122
      %2218 = vmatpush1.bf16.msra.mxu0 %v2121
      %2219 = vmatprep.subr.bf16.mxu0 %v2125
      %2220 = vmatpush1.bf16.msra.mxu0 %v2124
      %2221 = vmatprep.subr.bf16.mxu0 %v2128
      %2222 = vmatpush1.bf16.msra.mxu0 %v2127
      %2223 = vmatprep.subr.bf16.mxu0 %v2131
      %2224 = vmatpush1.bf16.msra.mxu0 %v2130
      %2225 = vmatprep.subr.bf16.mxu0 %v2134
      %2226 = vmatpush1.bf16.msra.mxu0 %v2133
      %2227 = vmatprep.subr.bf16.mxu0 %v2137
      %2228 = vmatpush1.bf16.msra.mxu0 %v2136
      %2229 = vmatprep.subr.bf16.mxu0 %v2140
      %2230 = vmatpush1.bf16.msra.mxu0 %v2139
      %2231 = vmatprep.subr.bf16.mxu0 %v2143
      %2232 = vmatpush1.bf16.msra.mxu0 %v2142
      %2233 = vmatprep.subr.bf16.mxu0 %v2146
      %2234 = vmatpush1.bf16.msra.mxu0 %v2145
      %2235 = vmatprep.subr.bf16.mxu0 %v2149
      %2236 = vmatpush1.bf16.msra.mxu0 %v2148
      %2237 = vmatprep.subr.bf16.mxu0 %v2152
      %2238 = vmatpush1.bf16.msra.mxu0 %v2151
      %2239 = vmatprep.subr.bf16.mxu0 %v2155
      %2240 = vmatpush1.bf16.msra.mxu0 %v2154
      %2241 = vmatprep.subr.bf16.mxu0 %v2158
      %2242 = vmatpush1.bf16.msra.mxu0 %v2157
      %2243 = vmatprep.subr.bf16.mxu0 %v2161
      %2244 = vmatpush1.bf16.msra.mxu0 %v2160
      %2245 = vmatprep.subr.bf16.mxu0 %v2164
      %2246 = vmatpush1.bf16.msra.mxu0 %v2163
      %2247 = vmatprep.subr.bf16.mxu0 %v2167
      %2248 = vmatpush1.bf16.msra.mxu0 %v2166
      %2249 = vmatprep.mubr.bf16.mxu0 %v1879
      %2250 = vmatmul.mubr.bf16.gmra.mrb[0].mxu0 %v1878
      %v2251 = vpop.f32.mrb[0].mxu0
      %v2252 = vadd.f32 %v1949, %v2251
      %v2253 = vpop.f32.mrb[0].mxu0
      %v2254 = vadd.f32 %v1953, %v2253
      %v2255 = vpop.f32.mrb[0].mxu0
      %v2256 = vadd.f32 %v1949, %v2255
      %v2257 = vpop.f32.mrb[0].mxu0
      %v2258 = vadd.f32 %v1953, %v2257
      %2259 = vdwg.mxu0
      %2260 = vmatprep.subr.bf16.mxu0 0
      %2261 = vmatpush1.bf16.msra.mxu0 %v2123
      %2262 = vmatprep.subr.bf16.mxu0 0
      %2263 = vmatpush1.bf16.msra.mxu0 %v2126
      %2264 = vmatprep.subr.bf16.mxu0 0
      %2265 = vmatpush1.bf16.msra.mxu0 %v2129
      %2266 = vmatprep.subr.bf16.mxu0 0
      %2267 = vmatpush1.bf16.msra.mxu0 %v2132
      %2268 = vmatprep.subr.bf16.mxu0 0
      %2269 = vmatpush1.bf16.msra.mxu0 %v2135
      %2270 = vmatprep.subr.bf16.mxu0 0
      %2271 = vmatpush1.bf16.msra.mxu0 %v2138
      %2272 = vmatprep.subr.bf16.mxu0 0
      %2273 = vmatpush1.bf16.msra.mxu0 %v2141
      %2274 = vmatprep.subr.bf16.mxu0 0
      %2275 = vmatpush1.bf16.msra.mxu0 %v2144
      %2276 = vmatprep.subr.bf16.mxu0 0
      %2277 = vmatpush1.bf16.msra.mxu0 %v2147
      %2278 = vmatprep.subr.bf16.mxu0 0
      %2279 = vmatpush1.bf16.msra.mxu0 %v2150
      %2280 = vmatprep.subr.bf16.mxu0 0
      %2281 = vmatpush1.bf16.msra.mxu0 %v2153
      %2282 = vmatprep.subr.bf16.mxu0 0
      %2283 = vmatpush1.bf16.msra.mxu0 %v2156
      %2284 = vmatprep.subr.bf16.mxu0 0
      %2285 = vmatpush1.bf16.msra.mxu0 %v2159
      %2286 = vmatprep.subr.bf16.mxu0 0
      %2287 = vmatpush1.bf16.msra.mxu0 %v2162
      %2288 = vmatprep.subr.bf16.mxu0 0
      %2289 = vmatpush1.bf16.msra.mxu0 %v2165
      %2290 = vmatprep.subr.bf16.mxu0 0
      %2291 = vmatpush1.bf16.msra.mxu0 %v2168
      %2292 = vmatprep.mubr.bf16.mxu0 %v1879
      %2293 = vmatmul.mubr.bf16.gmra.mrb[0].mxu0 %v1878
      %v2294 = vpop.f32.mrb[0].mxu0
      %v2295 = vadd.f32 %v1957, %v2294
      %v2296 = vpop.f32.mrb[0].mxu0
      %v2297 = vpop.f32.mrb[0].mxu0
      %v2298 = vadd.f32 %v1957, %v2297
      %v2299 = vpop.f32.mrb[0].mxu0
      %2300 = vdwg.mxu0
      %v2301 = vmax.f32 %v2252, 0.0
      %v2302 = vmax.f32 %v2254, 0.0
      %v2303 = vmax.f32 %v2295, 0.0
      %v2304 = vmax.f32 %v2256, 0.0
      %v2305 = vmax.f32 %v2258, 0.0
      %v2306 = vmax.f32 %v2298, 0.0
      %v2307 = vadd.f32 %v1870, %v2301
      %v2308 = vadd.f32 %v1871, %v2302
      %v2309 = vadd.f32 %v1874, %v2304
      %v2310 = vadd.f32 %v1875, %v2305
      %v2311 = vpack.c.bf16 %v2306, %v2303
      %v2312 = vld [vmem:[%s10] sm:$0xff]
      %v2313 = vld [vmem:[%s10 + $0x8] sm:$0xf]
      %v2314 = vld [vmem:[%s10 + $0xc] sm:$0xff]
      %v2315 = vld [vmem:[%s10 + $0x14] sm:$0xf]
      %v2316 = vld [vmem:[%s10 + $0x18] sm:$0xff]
      %v2317 = vld [vmem:[%s10 + $0x20] sm:$0xf]
      %v2318 = vld [vmem:[%s10 + $0x24] sm:$0xff]
      %v2319 = vld [vmem:[%s10 + $0x2c] sm:$0xf]
      %v2320 = vld [vmem:[%s10 + $0x30] sm:$0xff]
      %v2321 = vld [vmem:[%s10 + $0x38] sm:$0xf]
      %v2322 = vld [vmem:[%s10 + $0x3c] sm:$0xff]
      %v2323 = vld [vmem:[%s10 + $0x44] sm:$0xf]
      %v2324 = vld [vmem:[%s10 + $0x48] sm:$0xff]
      %v2325 = vld [vmem:[%s10 + $0x50] sm:$0xf]
      %v2326 = vld [vmem:[%s10 + $0x54] sm:$0xff]
      %v2327 = vld [vmem:[%s10 + $0x5c] sm:$0xf]
      %v2328 = vld [vmem:[%s10 + $0x60] sm:$0xff]
      %v2329 = vld [vmem:[%s10 + $0x68] sm:$0xf]
      %v2330 = vld [vmem:[%s10 + $0x6c] sm:$0xff]
      %v2331 = vld [vmem:[%s10 + $0x74] sm:$0xf]
      %v2332 = vld [vmem:[%s10 + $0x78] sm:$0xff]
      %v2333 = vld [vmem:[%s10 + $0x80] sm:$0xf]
      %v2334 = vld [vmem:[%s10 + $0x84] sm:$0xff]
      %v2335 = vld [vmem:[%s10 + $0x8c] sm:$0xf]
      %v2336 = vld [vmem:[%s10 + $0x90] sm:$0xff]
      %v2337 = vld [vmem:[%s10 + $0x98] sm:$0xf]
      %v2338 = vld [vmem:[%s10 + $0x9c] sm:$0xff]
      %v2339 = vld [vmem:[%s10 + $0xa4] sm:$0xf]
      %v2340 = vld [vmem:[%s10 + $0xa8] sm:$0xff]
      %v2341 = vld [vmem:[%s10 + $0xb0] sm:$0xf]
      %v2342 = vld [vmem:[%s10 + $0xb4] sm:$0xff]
      %v2343 = vld [vmem:[%s10 + $0xbc] sm:$0xf]
      %v2344 = vld [vmem:[%s11] sm:$0x7]
      %v2346 = vlaneseq
      %v2347 = vshrl.u32 %v2346, 7
      %v2348 = vsub.s32 0, %v2347
      %v2349 = vrot.slane %v2344, %v2348
      %v2350 = vlaneseq
      %v2351 = vshrl.u32 %v2350, 7
      %v2352 = vsub.s32 1, %v2351
      %v2353 = vrot.slane %v2344, %v2352
      %v2354 = vlaneseq
      %v2355 = vshrl.u32 %v2354, 7
      %v2356 = vsub.s32 2, %v2355
      %v2357 = vrot.slane %v2344, %v2356
      %v2393 = vunpack.c.l.b16 %v2312
      %v2394 = vunpack.c.h.b16 %v2312
      %v2395 = vunpack.c.l.b16 %v2313
      %v2396 = vunpack.c.l.b16 %v2314
      %v2397 = vunpack.c.h.b16 %v2314
      %v2398 = vunpack.c.l.b16 %v2315
      %v2399 = vunpack.c.l.b16 %v2316
      %v2400 = vunpack.c.h.b16 %v2316
      %v2401 = vunpack.c.l.b16 %v2317
      %v2402 = vunpack.c.l.b16 %v2318
      %v2403 = vunpack.c.h.b16 %v2318
      %v2404 = vunpack.c.l.b16 %v2319
      %v2405 = vunpack.c.l.b16 %v2320
      %v2406 = vunpack.c.h.b16 %v2320
      %v2407 = vunpack.c.l.b16 %v2321
      %v2408 = vunpack.c.l.b16 %v2322
      %v2409 = vunpack.c.h.b16 %v2322
      %v2410 = vunpack.c.l.b16 %v2323
      %v2411 = vunpack.c.l.b16 %v2324
      %v2412 = vunpack.c.h.b16 %v2324
      %v2413 = vunpack.c.l.b16 %v2325
      %v2414 = vunpack.c.l.b16 %v2326
      %v2415 = vunpack.c.h.b16 %v2326
      %v2416 = vunpack.c.l.b16 %v2327
      %v2417 = vunpack.c.l.b16 %v2328
      %v2418 = vunpack.c.h.b16 %v2328
      %v2419 = vunpack.c.l.b16 %v2329
      %v2420 = vunpack.c.l.b16 %v2330
      %v2421 = vunpack.c.h.b16 %v2330
      %v2422 = vunpack.c.l.b16 %v2331
      %v2423 = vunpack.c.l.b16 %v2332
      %v2424 = vunpack.c.h.b16 %v2332
      %v2425 = vunpack.c.l.b16 %v2333
      %v2426 = vunpack.c.l.b16 %v2334
      %v2427 = vunpack.c.h.b16 %v2334
      %v2428 = vunpack.c.l.b16 %v2335
      %v2429 = vunpack.c.l.b16 %v2336
      %v2430 = vunpack.c.h.b16 %v2336
      %v2431 = vunpack.c.l.b16 %v2337
      %v2432 = vunpack.c.l.b16 %v2338
      %v2433 = vunpack.c.h.b16 %v2338
      %v2434 = vunpack.c.l.b16 %v2339
      %v2435 = vunpack.c.l.b16 %v2340
      %v2436 = vunpack.c.h.b16 %v2340
      %v2437 = vunpack.c.l.b16 %v2341
      %v2438 = vunpack.c.l.b16 %v2342
      %v2439 = vunpack.c.h.b16 %v2342
      %v2440 = vunpack.c.l.b16 %v2343
      %v2441 = vpack.c.b16 %v2396, %v2393
      %v2442 = vpack.c.b16 %v2397, %v2394
      %v2443 = vpack.c.b16 %v2398, %v2395
      %v2444 = vpack.c.b16 %v2402, %v2399
      %v2445 = vpack.c.b16 %v2403, %v2400
      %v2446 = vpack.c.b16 %v2404, %v2401
      %v2447 = vpack.c.b16 %v2408, %v2405
      %v2448 = vpack.c.b16 %v2409, %v2406
      %v2449 = vpack.c.b16 %v2410, %v2407
      %v2450 = vpack.c.b16 %v2414, %v2411
      %v2451 = vpack.c.b16 %v2415, %v2412
      %v2452 = vpack.c.b16 %v2416, %v2413
      %v2453 = vpack.c.b16 %v2420, %v2417
      %v2454 = vpack.c.b16 %v2421, %v2418
      %v2455 = vpack.c.b16 %v2422, %v2419
      %v2456 = vpack.c.b16 %v2426, %v2423
      %v2457 = vpack.c.b16 %v2427, %v2424
      %v2458 = vpack.c.b16 %v2428, %v2425
      %v2459 = vpack.c.b16 %v2432, %v2429
      %v2460 = vpack.c.b16 %v2433, %v2430
      %v2461 = vpack.c.b16 %v2434, %v2431
      %v2462 = vpack.c.b16 %v2438, %v2435
      %v2463 = vpack.c.b16 %v2439, %v2436
      %v2464 = vpack.c.b16 %v2440, %v2437
      %2489 = vmatprep.subr.bf16.mxu0 %v2442
      %2490 = vmatpush1.bf16.msra.mxu0 %v2441
      %2491 = vmatprep.subr.bf16.mxu0 %v2445
      %2492 = vmatpush1.bf16.msra.mxu0 %v2444
      %2493 = vmatprep.subr.bf16.mxu0 %v2448
      %2494 = vmatpush1.bf16.msra.mxu0 %v2447
      %2495 = vmatprep.subr.bf16.mxu0 %v2451
      %2496 = vmatpush1.bf16.msra.mxu0 %v2450
      %2497 = vmatprep.subr.bf16.mxu0 %v2454
      %2498 = vmatpush1.bf16.msra.mxu0 %v2453
      %2499 = vmatprep.subr.bf16.mxu0 %v2457
      %2500 = vmatpush1.bf16.msra.mxu0 %v2456
      %2501 = vmatprep.subr.bf16.mxu0 %v2460
      %2502 = vmatpush1.bf16.msra.mxu0 %v2459
      %2503 = vmatprep.subr.bf16.mxu0 %v2463
      %2504 = vmatpush1.bf16.msra.mxu0 %v2462
      %2505 = vmatprep.subr.bf16.mxu0 0
      %2506 = vmatpush1.bf16.msra.mxu0 0
      %2507 = vmatprep.subr.bf16.mxu0 0
      %2508 = vmatpush1.bf16.msra.mxu0 0
      %2509 = vmatprep.subr.bf16.mxu0 0
      %2510 = vmatpush1.bf16.msra.mxu0 0
      %2511 = vmatprep.subr.bf16.mxu0 0
      %2512 = vmatpush1.bf16.msra.mxu0 0
      %2513 = vmatprep.subr.bf16.mxu0 0
      %2514 = vmatpush1.bf16.msra.mxu0 0
      %2515 = vmatprep.subr.bf16.mxu0 0
      %2516 = vmatpush1.bf16.msra.mxu0 0
      %2517 = vmatprep.subr.bf16.mxu0 0
      %2518 = vmatpush1.bf16.msra.mxu0 0
      %2519 = vmatprep.subr.bf16.mxu0 0
      %2520 = vmatpush1.bf16.msra.mxu0 0
      %2521 = vmatprep.mubr.bf16.mxu0 0
      %2522 = vmatmul.mubr.bf16.gmra.mrb[0].mxu0 %v2311
      %v2523 = vpop.f32.mrb[0].mxu0
      %v2524 = vadd.f32 %v2349, %v2523
      %v2525 = vpop.f32.mrb[0].mxu0
      %v2526 = vadd.f32 %v2353, %v2525
      %v2527 = vpop.f32.mrb[0].mxu0
      %v2528 = vadd.f32 %v2349, %v2527
      %v2529 = vpop.f32.mrb[0].mxu0
      %v2530 = vadd.f32 %v2353, %v2529
      %2531 = vdwg.mxu0
      %2532 = vmatprep.subr.bf16.mxu0 0
      %2533 = vmatpush1.bf16.msra.mxu0 %v2443
      %2534 = vmatprep.subr.bf16.mxu0 0
      %2535 = vmatpush1.bf16.msra.mxu0 %v2446
      %2536 = vmatprep.subr.bf16.mxu0 0
      %2537 = vmatpush1.bf16.msra.mxu0 %v2449
      %2538 = vmatprep.subr.bf16.mxu0 0
      %2539 = vmatpush1.bf16.msra.mxu0 %v2452
      %2540 = vmatprep.subr.bf16.mxu0 0
      %2541 = vmatpush1.bf16.msra.mxu0 %v2455
      %2542 = vmatprep.subr.bf16.mxu0 0
      %2543 = vmatpush1.bf16.msra.mxu0 %v2458
      %2544 = vmatprep.subr.bf16.mxu0 0
      %2545 = vmatpush1.bf16.msra.mxu0 %v2461
      %2546 = vmatprep.subr.bf16.mxu0 0
      %2547 = vmatpush1.bf16.msra.mxu0 %v2464
      %2548 = vmatprep.subr.bf16.mxu0 0
      %2549 = vmatpush1.bf16.msra.mxu0 0
      %2550 = vmatprep.subr.bf16.mxu0 0
      %2551 = vmatpush1.bf16.msra.mxu0 0
      %2552 = vmatprep.subr.bf16.mxu0 0
      %2553 = vmatpush1.bf16.msra.mxu0 0
      %2554 = vmatprep.subr.bf16.mxu0 0
      %2555 = vmatpush1.bf16.msra.mxu0 0
      %2556 = vmatprep.subr.bf16.mxu0 0
      %2557 = vmatpush1.bf16.msra.mxu0 0
      %2558 = vmatprep.subr.bf16.mxu0 0
      %2559 = vmatpush1.bf16.msra.mxu0 0
      %2560 = vmatprep.subr.bf16.mxu0 0
      %2561 = vmatpush1.bf16.msra.mxu0 0
      %2562 = vmatprep.subr.bf16.mxu0 0
      %2563 = vmatpush1.bf16.msra.mxu0 0
      %2564 = vmatprep.mubr.bf16.mxu0 0
      %2565 = vmatmul.mubr.bf16.gmra.mrb[0].mxu0 %v2311
      %v2566 = vpop.f32.mrb[0].mxu0
      %v2567 = vadd.f32 %v2357, %v2566
      %v2568 = vpop.f32.mrb[0].mxu0
      %v2569 = vpop.f32.mrb[0].mxu0
      %v2570 = vadd.f32 %v2357, %v2569
      %v2571 = vpop.f32.mrb[0].mxu0
      %2572 = vdwg.mxu0
      %v2573 = vmax.f32 %v2524, 0.0
      %v2574 = vmax.f32 %v2526, 0.0
      %v2575 = vmax.f32 %v2528, 0.0
      %v2576 = vmax.f32 %v2530, 0.0
      %v2577 = vadd.f32 %v2307, %v2573
      %v2578 = vadd.f32 %v2308, %v2574
      %v2579 = vadd.f32 %v2309, %v2575
      %v2580 = vadd.f32 %v2310, %v2576
      %v2581 = vpack.c.bf16 %v2579, %v2577
      %v2582 = vpack.c.bf16 %v2580, %v2578
      %v2583 = vld [vmem:[%s12] sm:$0xff]
      %v2584 = vld [vmem:[%s12 + $0x8] sm:$0xff]
      %v2585 = vld [vmem:[%s12 + $0x10] sm:$0xff]
      %v2586 = vld [vmem:[%s12 + $0x18] sm:$0xff]
      %v2587 = vld [vmem:[%s12 + $0x20] sm:$0xff]
      %v2588 = vld [vmem:[%s12 + $0x28] sm:$0xff]
      %v2589 = vld [vmem:[%s12 + $0x30] sm:$0xff]
      %v2590 = vld [vmem:[%s12 + $0x38] sm:$0xff]
      %v2591 = vld [vmem:[%s12 + $0x40] sm:$0xff]
      %v2592 = vld [vmem:[%s12 + $0x48] sm:$0xff]
      %v2593 = vld [vmem:[%s12 + $0x50] sm:$0xff]
      %v2594 = vld [vmem:[%s12 + $0x58] sm:$0xff]
      %v2595 = vld [vmem:[%s12 + $0x60] sm:$0xff]
      %v2596 = vld [vmem:[%s12 + $0x68] sm:$0xff]
      %v2597 = vld [vmem:[%s12 + $0x70] sm:$0xff]
      %v2598 = vld [vmem:[%s12 + $0x78] sm:$0xff]
      %v2599 = vld [vmem:[%s12 + $0x80] sm:$0xff]
      %v2600 = vld [vmem:[%s12 + $0x88] sm:$0xff]
      %v2601 = vld [vmem:[%s12 + $0x90] sm:$0xff]
      %v2602 = vld [vmem:[%s12 + $0x98] sm:$0xff]
      %v2603 = vld [vmem:[%s12 + $0xa0] sm:$0xff]
      %v2604 = vld [vmem:[%s12 + $0xa8] sm:$0xff]
      %v2605 = vld [vmem:[%s12 + $0xb0] sm:$0xff]
      %v2606 = vld [vmem:[%s12 + $0xb8] sm:$0xff]
      %v2607 = vld [vmem:[%s12 + $0xc0] sm:$0xff]
      %v2608 = vld [vmem:[%s12 + $0xc8] sm:$0xff]
      %v2609 = vld [vmem:[%s12 + $0xd0] sm:$0xff]
      %v2610 = vld [vmem:[%s12 + $0xd8] sm:$0xff]
      %v2611 = vld [vmem:[%s12 + $0xe0] sm:$0xff]
      %v2612 = vld [vmem:[%s12 + $0xe8] sm:$0xff]
      %v2613 = vld [vmem:[%s12 + $0xf0] sm:$0xff]
      %v2614 = vld [vmem:[%s12 + $0xf8] sm:$0xff]
      %v2615 = vld [vmem:[%s12 + $0x100] sm:$0xff]
      %v2616 = vld [vmem:[%s12 + $0x108] sm:$0xff]
      %v2617 = vld [vmem:[%s12 + $0x110] sm:$0xff]
      %v2618 = vld [vmem:[%s12 + $0x118] sm:$0xff]
      %v2619 = vld [vmem:[%s12 + $0x120] sm:$0xff]
      %v2620 = vld [vmem:[%s12 + $0x128] sm:$0xff]
      %v2621 = vld [vmem:[%s12 + $0x130] sm:$0xff]
      %v2622 = vld [vmem:[%s12 + $0x138] sm:$0xff]
      %v2623 = vld [vmem:[%s12 + $0x140] sm:$0xff]
      %v2624 = vld [vmem:[%s12 + $0x148] sm:$0xff]
      %v2625 = vld [vmem:[%s12 + $0x150] sm:$0xff]
      %v2626 = vld [vmem:[%s12 + $0x158] sm:$0xff]
      %v2627 = vld [vmem:[%s12 + $0x160] sm:$0xff]
      %v2628 = vld [vmem:[%s12 + $0x168] sm:$0xff]
      %v2629 = vld [vmem:[%s12 + $0x170] sm:$0xff]
      %v2630 = vld [vmem:[%s12 + $0x178] sm:$0xff]
      %v2631 = vld [vmem:[%s12 + $0x180] sm:$0xff]
      %v2632 = vld [vmem:[%s12 + $0x188] sm:$0xff]
      %v2633 = vld [vmem:[%s12 + $0x190] sm:$0xff]
      %v2634 = vld [vmem:[%s12 + $0x198] sm:$0xff]
      %v2635 = vld [vmem:[%s12 + $0x1a0] sm:$0xff]
      %v2636 = vld [vmem:[%s12 + $0x1a8] sm:$0xff]
      %v2637 = vld [vmem:[%s12 + $0x1b0] sm:$0xff]
      %v2638 = vld [vmem:[%s12 + $0x1b8] sm:$0xff]
      %v2639 = vld [vmem:[%s12 + $0x1c0] sm:$0xff]
      %v2640 = vld [vmem:[%s12 + $0x1c8] sm:$0xff]
      %v2641 = vld [vmem:[%s12 + $0x1d0] sm:$0xff]
      %v2642 = vld [vmem:[%s12 + $0x1d8] sm:$0xff]
      %v2643 = vld [vmem:[%s12 + $0x1e0] sm:$0xff]
      %v2644 = vld [vmem:[%s12 + $0x1e8] sm:$0xff]
      %v2645 = vld [vmem:[%s12 + $0x1f0] sm:$0xff]
      %v2646 = vld [vmem:[%s12 + $0x1f8] sm:$0xff]
      %v2647 = vld [vmem:[%s13] sm:$0xf]
      %v2649 = vlaneseq
      %v2650 = vshrl.u32 %v2649, 7
      %v2651 = vsub.s32 0, %v2650
      %v2652 = vrot.slane %v2647, %v2651
      %v2653 = vlaneseq
      %v2654 = vshrl.u32 %v2653, 7
      %v2655 = vsub.s32 1, %v2654
      %v2656 = vrot.slane %v2647, %v2655
      %v2657 = vlaneseq
      %v2658 = vshrl.u32 %v2657, 7
      %v2659 = vsub.s32 2, %v2658
      %v2660 = vrot.slane %v2647, %v2659
      %v2661 = vlaneseq
      %v2662 = vshrl.u32 %v2661, 7
      %v2663 = vsub.s32 3, %v2662
      %v2664 = vrot.slane %v2647, %v2663
      %v2733 = vunpack.c.l.b16 %v2583
      %v2734 = vunpack.c.h.b16 %v2583
      %v2735 = vunpack.c.l.b16 %v2584
      %v2736 = vunpack.c.h.b16 %v2584
      %v2737 = vunpack.c.l.b16 %v2585
      %v2738 = vunpack.c.h.b16 %v2585
      %v2739 = vunpack.c.l.b16 %v2586
      %v2740 = vunpack.c.h.b16 %v2586
      %v2741 = vunpack.c.l.b16 %v2587
      %v2742 = vunpack.c.h.b16 %v2587
      %v2743 = vunpack.c.l.b16 %v2588
      %v2744 = vunpack.c.h.b16 %v2588
      %v2745 = vunpack.c.l.b16 %v2589
      %v2746 = vunpack.c.h.b16 %v2589
      %v2747 = vunpack.c.l.b16 %v2590
      %v2748 = vunpack.c.h.b16 %v2590
      %v2749 = vunpack.c.l.b16 %v2591
      %v2750 = vunpack.c.h.b16 %v2591
      %v2751 = vunpack.c.l.b16 %v2592
      %v2752 = vunpack.c.h.b16 %v2592
      %v2753 = vunpack.c.l.b16 %v2593
      %v2754 = vunpack.c.h.b16 %v2593
      %v2755 = vunpack.c.l.b16 %v2594
      %v2756 = vunpack.c.h.b16 %v2594
      %v2757 = vunpack.c.l.b16 %v2595
      %v2758 = vunpack.c.h.b16 %v2595
      %v2759 = vunpack.c.l.b16 %v2596
      %v2760 = vunpack.c.h.b16 %v2596
      %v2761 = vunpack.c.l.b16 %v2597
      %v2762 = vunpack.c.h.b16 %v2597
      %v2763 = vunpack.c.l.b16 %v2598
      %v2764 = vunpack.c.h.b16 %v2598
      %v2765 = vunpack.c.l.b16 %v2599
      %v2766 = vunpack.c.h.b16 %v2599
      %v2767 = vunpack.c.l.b16 %v2600
      %v2768 = vunpack.c.h.b16 %v2600
      %v2769 = vunpack.c.l.b16 %v2601
      %v2770 = vunpack.c.h.b16 %v2601
      %v2771 = vunpack.c.l.b16 %v2602
      %v2772 = vunpack.c.h.b16 %v2602
      %v2773 = vunpack.c.l.b16 %v2603
      %v2774 = vunpack.c.h.b16 %v2603
      %v2775 = vunpack.c.l.b16 %v2604
      %v2776 = vunpack.c.h.b16 %v2604
      %v2777 = vunpack.c.l.b16 %v2605
      %v2778 = vunpack.c.h.b16 %v2605
      %v2779 = vunpack.c.l.b16 %v2606
      %v2780 = vunpack.c.h.b16 %v2606
      %v2781 = vunpack.c.l.b16 %v2607
      %v2782 = vunpack.c.h.b16 %v2607
      %v2783 = vunpack.c.l.b16 %v2608
      %v2784 = vunpack.c.h.b16 %v2608
      %v2785 = vunpack.c.l.b16 %v2609
      %v2786 = vunpack.c.h.b16 %v2609
      %v2787 = vunpack.c.l.b16 %v2610
      %v2788 = vunpack.c.h.b16 %v2610
      %v2789 = vunpack.c.l.b16 %v2611
      %v2790 = vunpack.c.h.b16 %v2611
      %v2791 = vunpack.c.l.b16 %v2612
      %v2792 = vunpack.c.h.b16 %v2612
      %v2793 = vunpack.c.l.b16 %v2613
      %v2794 = vunpack.c.h.b16 %v2613
      %v2795 = vunpack.c.l.b16 %v2614
      %v2796 = vunpack.c.h.b16 %v2614
      %v2797 = vunpack.c.l.b16 %v2615
      %v2798 = vunpack.c.h.b16 %v2615
      %v2799 = vunpack.c.l.b16 %v2616
      %v2800 = vunpack.c.h.b16 %v2616
      %v2801 = vunpack.c.l.b16 %v2617
      %v2802 = vunpack.c.h.b16 %v2617
      %v2803 = vunpack.c.l.b16 %v2618
      %v2804 = vunpack.c.h.b16 %v2618
      %v2805 = vunpack.c.l.b16 %v2619
      %v2806 = vunpack.c.h.b16 %v2619
      %v2807 = vunpack.c.l.b16 %v2620
      %v2808 = vunpack.c.h.b16 %v2620
      %v2809 = vunpack.c.l.b16 %v2621
      %v2810 = vunpack.c.h.b16 %v2621
      %v2811 = vunpack.c.l.b16 %v2622
      %v2812 = vunpack.c.h.b16 %v2622
      %v2813 = vunpack.c.l.b16 %v2623
      %v2814 = vunpack.c.h.b16 %v2623
      %v2815 = vunpack.c.l.b16 %v2624
      %v2816 = vunpack.c.h.b16 %v2624
      %v2817 = vunpack.c.l.b16 %v2625
      %v2818 = vunpack.c.h.b16 %v2625
      %v2819 = vunpack.c.l.b16 %v2626
      %v2820 = vunpack.c.h.b16 %v2626
      %v2821 = vunpack.c.l.b16 %v2627
      %v2822 = vunpack.c.h.b16 %v2627
      %v2823 = vunpack.c.l.b16 %v2628
      %v2824 = vunpack.c.h.b16 %v2628
      %v2825 = vunpack.c.l.b16 %v2629
      %v2826 = vunpack.c.h.b16 %v2629
      %v2827 = vunpack.c.l.b16 %v2630
      %v2828 = vunpack.c.h.b16 %v2630
      %v2829 = vunpack.c.l.b16 %v2631
      %v2830 = vunpack.c.h.b16 %v2631
      %v2831 = vunpack.c.l.b16 %v2632
      %v2832 = vunpack.c.h.b16 %v2632
      %v2833 = vunpack.c.l.b16 %v2633
      %v2834 = vunpack.c.h.b16 %v2633
      %v2835 = vunpack.c.l.b16 %v2634
      %v2836 = vunpack.c.h.b16 %v2634
      %v2837 = vunpack.c.l.b16 %v2635
      %v2838 = vunpack.c.h.b16 %v2635
      %v2839 = vunpack.c.l.b16 %v2636
      %v2840 = vunpack.c.h.b16 %v2636
      %v2841 = vunpack.c.l.b16 %v2637
      %v2842 = vunpack.c.h.b16 %v2637
      %v2843 = vunpack.c.l.b16 %v2638
      %v2844 = vunpack.c.h.b16 %v2638
      %v2845 = vunpack.c.l.b16 %v2639
      %v2846 = vunpack.c.h.b16 %v2639
      %v2847 = vunpack.c.l.b16 %v2640
      %v2848 = vunpack.c.h.b16 %v2640
      %v2849 = vunpack.c.l.b16 %v2641
      %v2850 = vunpack.c.h.b16 %v2641
      %v2851 = vunpack.c.l.b16 %v2642
      %v2852 = vunpack.c.h.b16 %v2642
      %v2853 = vunpack.c.l.b16 %v2643
      %v2854 = vunpack.c.h.b16 %v2643
      %v2855 = vunpack.c.l.b16 %v2644
      %v2856 = vunpack.c.h.b16 %v2644
      %v2857 = vunpack.c.l.b16 %v2645
      %v2858 = vunpack.c.h.b16 %v2645
      %v2859 = vunpack.c.l.b16 %v2646
      %v2860 = vunpack.c.h.b16 %v2646
      %v2861 = vpack.c.b16 %v2737, %v2733
      %v2862 = vpack.c.b16 %v2738, %v2734
      %v2863 = vpack.c.b16 %v2739, %v2735
      %v2864 = vpack.c.b16 %v2740, %v2736
      %v2865 = vpack.c.b16 %v2745, %v2741
      %v2866 = vpack.c.b16 %v2746, %v2742
      %v2867 = vpack.c.b16 %v2747, %v2743
      %v2868 = vpack.c.b16 %v2748, %v2744
      %v2869 = vpack.c.b16 %v2753, %v2749
      %v2870 = vpack.c.b16 %v2754, %v2750
      %v2871 = vpack.c.b16 %v2755, %v2751
      %v2872 = vpack.c.b16 %v2756, %v2752
      %v2873 = vpack.c.b16 %v2761, %v2757
      %v2874 = vpack.c.b16 %v2762, %v2758
      %v2875 = vpack.c.b16 %v2763, %v2759
      %v2876 = vpack.c.b16 %v2764, %v2760
      %v2877 = vpack.c.b16 %v2769, %v2765
      %v2878 = vpack.c.b16 %v2770, %v2766
      %v2879 = vpack.c.b16 %v2771, %v2767
      %v2880 = vpack.c.b16 %v2772, %v2768
      %v2881 = vpack.c.b16 %v2777, %v2773
      %v2882 = vpack.c.b16 %v2778, %v2774
      %v2883 = vpack.c.b16 %v2779, %v2775
      %v2884 = vpack.c.b16 %v2780, %v2776
      %v2885 = vpack.c.b16 %v2785, %v2781
      %v2886 = vpack.c.b16 %v2786, %v2782
      %v2887 = vpack.c.b16 %v2787, %v2783
      %v2888 = vpack.c.b16 %v2788, %v2784
      %v2889 = vpack.c.b16 %v2793, %v2789
      %v2890 = vpack.c.b16 %v2794, %v2790
      %v2891 = vpack.c.b16 %v2795, %v2791
      %v2892 = vpack.c.b16 %v2796, %v2792
      %v2893 = vpack.c.b16 %v2801, %v2797
      %v2894 = vpack.c.b16 %v2802, %v2798
      %v2895 = vpack.c.b16 %v2803, %v2799
      %v2896 = vpack.c.b16 %v2804, %v2800
      %v2897 = vpack.c.b16 %v2809, %v2805
      %v2898 = vpack.c.b16 %v2810, %v2806
      %v2899 = vpack.c.b16 %v2811, %v2807
      %v2900 = vpack.c.b16 %v2812, %v2808
      %v2901 = vpack.c.b16 %v2817, %v2813
      %v2902 = vpack.c.b16 %v2818, %v2814
      %v2903 = vpack.c.b16 %v2819, %v2815
      %v2904 = vpack.c.b16 %v2820, %v2816
      %v2905 = vpack.c.b16 %v2825, %v2821
      %v2906 = vpack.c.b16 %v2826, %v2822
      %v2907 = vpack.c.b16 %v2827, %v2823
      %v2908 = vpack.c.b16 %v2828, %v2824
      %v2909 = vpack.c.b16 %v2833, %v2829
      %v2910 = vpack.c.b16 %v2834, %v2830
      %v2911 = vpack.c.b16 %v2835, %v2831
      %v2912 = vpack.c.b16 %v2836, %v2832
      %v2913 = vpack.c.b16 %v2841, %v2837
      %v2914 = vpack.c.b16 %v2842, %v2838
      %v2915 = vpack.c.b16 %v2843, %v2839
      %v2916 = vpack.c.b16 %v2844, %v2840
      %v2917 = vpack.c.b16 %v2849, %v2845
      %v2918 = vpack.c.b16 %v2850, %v2846
      %v2919 = vpack.c.b16 %v2851, %v2847
      %v2920 = vpack.c.b16 %v2852, %v2848
      %v2921 = vpack.c.b16 %v2857, %v2853
      %v2922 = vpack.c.b16 %v2858, %v2854
      %v2923 = vpack.c.b16 %v2859, %v2855
      %v2924 = vpack.c.b16 %v2860, %v2856
      %2989 = vmatprep.subr.bf16.mxu0 %v2862
      %2990 = vmatpush1.bf16.msra.mxu0 %v2861
      %2991 = vmatprep.subr.bf16.mxu0 %v2866
      %2992 = vmatpush1.bf16.msra.mxu0 %v2865
      %2993 = vmatprep.subr.bf16.mxu0 %v2870
      %2994 = vmatpush1.bf16.msra.mxu0 %v2869
      %2995 = vmatprep.subr.bf16.mxu0 %v2874
      %2996 = vmatpush1.bf16.msra.mxu0 %v2873
      %2997 = vmatprep.subr.bf16.mxu0 %v2878
      %2998 = vmatpush1.bf16.msra.mxu0 %v2877
      %2999 = vmatprep.subr.bf16.mxu0 %v2882
      %3000 = vmatpush1.bf16.msra.mxu0 %v2881
      %3001 = vmatprep.subr.bf16.mxu0 %v2886
      %3002 = vmatpush1.bf16.msra.mxu0 %v2885
      %3003 = vmatprep.subr.bf16.mxu0 %v2890
      %3004 = vmatpush1.bf16.msra.mxu0 %v2889
      %3005 = vmatprep.subr.bf16.mxu0 %v2894
      %3006 = vmatpush1.bf16.msra.mxu0 %v2893
      %3007 = vmatprep.subr.bf16.mxu0 %v2898
      %3008 = vmatpush1.bf16.msra.mxu0 %v2897
      %3009 = vmatprep.subr.bf16.mxu0 %v2902
      %3010 = vmatpush1.bf16.msra.mxu0 %v2901
      %3011 = vmatprep.subr.bf16.mxu0 %v2906
      %3012 = vmatpush1.bf16.msra.mxu0 %v2905
      %3013 = vmatprep.subr.bf16.mxu0 %v2910
      %3014 = vmatpush1.bf16.msra.mxu0 %v2909
      %3015 = vmatprep.subr.bf16.mxu0 %v2914
      %3016 = vmatpush1.bf16.msra.mxu0 %v2913
      %3017 = vmatprep.subr.bf16.mxu0 %v2918
      %3018 = vmatpush1.bf16.msra.mxu0 %v2917
      %3019 = vmatprep.subr.bf16.mxu0 %v2922
      %3020 = vmatpush1.bf16.msra.mxu0 %v2921
      %3021 = vmatprep.mubr.bf16.mxu0 %v2582
      %3022 = vmatmul.mubr.bf16.gmra.mrb[0].mxu0 %v2581
      %v3023 = vpop.f32.mrb[0].mxu0
      %v3024 = vadd.f32 %v2652, %v3023
      %v3025 = vpop.f32.mrb[0].mxu0
      %v3026 = vadd.f32 %v2656, %v3025
      %v3027 = vpop.f32.mrb[0].mxu0
      %v3028 = vadd.f32 %v2652, %v3027
      %v3029 = vpop.f32.mrb[0].mxu0
      %v3030 = vadd.f32 %v2656, %v3029
      %3031 = vdwg.mxu0
      %3032 = vmatprep.subr.bf16.mxu0 %v2864
      %3033 = vmatpush1.bf16.msra.mxu0 %v2863
      %3034 = vmatprep.subr.bf16.mxu0 %v2868
      %3035 = vmatpush1.bf16.msra.mxu0 %v2867
      %3036 = vmatprep.subr.bf16.mxu0 %v2872
      %3037 = vmatpush1.bf16.msra.mxu0 %v2871
      %3038 = vmatprep.subr.bf16.mxu0 %v2876
      %3039 = vmatpush1.bf16.msra.mxu0 %v2875
      %3040 = vmatprep.subr.bf16.mxu0 %v2880
      %3041 = vmatpush1.bf16.msra.mxu0 %v2879
      %3042 = vmatprep.subr.bf16.mxu0 %v2884
      %3043 = vmatpush1.bf16.msra.mxu0 %v2883
      %3044 = vmatprep.subr.bf16.mxu0 %v2888
      %3045 = vmatpush1.bf16.msra.mxu0 %v2887
      %3046 = vmatprep.subr.bf16.mxu0 %v2892
      %3047 = vmatpush1.bf16.msra.mxu0 %v2891
      %3048 = vmatprep.subr.bf16.mxu0 %v2896
      %3049 = vmatpush1.bf16.msra.mxu0 %v2895
      %3050 = vmatprep.subr.bf16.mxu0 %v2900
      %3051 = vmatpush1.bf16.msra.mxu0 %v2899
      %3052 = vmatprep.subr.bf16.mxu0 %v2904
      %3053 = vmatpush1.bf16.msra.mxu0 %v2903
      %3054 = vmatprep.subr.bf16.mxu0 %v2908
      %3055 = vmatpush1.bf16.msra.mxu0 %v2907
      %3056 = vmatprep.subr.bf16.mxu0 %v2912
      %3057 = vmatpush1.bf16.msra.mxu0 %v2911
      %3058 = vmatprep.subr.bf16.mxu0 %v2916
      %3059 = vmatpush1.bf16.msra.mxu0 %v2915
      %3060 = vmatprep.subr.bf16.mxu0 %v2920
      %3061 = vmatpush1.bf16.msra.mxu0 %v2919
      %3062 = vmatprep.subr.bf16.mxu0 %v2924
      %3063 = vmatpush1.bf16.msra.mxu0 %v2923
      %3064 = vmatprep.mubr.bf16.mxu0 %v2582
      %3065 = vmatmul.mubr.bf16.gmra.mrb[0].mxu0 %v2581
      %v3066 = vpop.f32.mrb[0].mxu0
      %v3067 = vadd.f32 %v2660, %v3066
      %v3068 = vpop.f32.mrb[0].mxu0
      %v3069 = vadd.f32 %v2664, %v3068
      %v3070 = vpop.f32.mrb[0].mxu0
      %v3071 = vadd.f32 %v2660, %v3070
      %v3072 = vpop.f32.mrb[0].mxu0
      %v3073 = vadd.f32 %v2664, %v3072
      %3074 = vdwg.mxu0
      %v3075 = vmax.f32 %v3024, 0.0
      %v3076 = vmax.f32 %v3026, 0.0
      %v3077 = vmax.f32 %v3067, 0.0
      %v3078 = vmax.f32 %v3069, 0.0
      %v3079 = vmax.f32 %v3028, 0.0
      %v3080 = vmax.f32 %v3030, 0.0
      %v3081 = vmax.f32 %v3071, 0.0
      %v3082 = vmax.f32 %v3073, 0.0
      %v3083 = vpack.c.bf16 %v3079, %v3075
      %v3084 = vpack.c.bf16 %v3080, %v3076
      %v3085 = vpack.c.bf16 %v3081, %v3077
      %v3086 = vpack.c.bf16 %v3082, %v3078
      %v3091 = vunpack.c.l.b16 %v3083
      %v3092 = vunpack.c.l.b16 %v3084
      %v3093 = vunpack.c.l.b16 %v3085
      %v3094 = vunpack.c.l.b16 %v3086
      %v3095 = vunpack.c.h.b16 %v3083
      %v3096 = vunpack.c.h.b16 %v3084
      %v3097 = vunpack.c.h.b16 %v3085
      %v3098 = vunpack.c.h.b16 %v3086
      %v3099 = vpack.c.b16 %v3092, %v3091
      %v3100 = vpack.c.b16 %v3094, %v3093
      %v3101 = vpack.c.b16 %v3096, %v3095
      %v3102 = vpack.c.b16 %v3098, %v3097
      %3107 = vst [vmem:[%s592] sm:$0xff] %v3099
      %3108 = vst [vmem:[%s592 + $0x8] sm:$0xff] %v3100
      %3109 = vst [vmem:[%s592 + $0x10] sm:$0xff] %v3101
      %3110 = vst [vmem:[%s592 + $0x18] sm:$0xff] %v3102
      %vm3111 = vcmask 15360
      %v3112 = vsel %vm3111, %v2567, -inf
      %3113 = vmax.xlane.f32.xlu0 %v3112
      %v3114 = vpop.xlane.xlu0 %3113
      %v3115 = vsel %vm3111, %v2570, -inf
      %3116 = vmax.xlane.f32.xlu0 %v3115
      %v3117 = vpop.xlane.xlu0 %3116
      %v3118 = vsub.f32 %v2567, %v3114
      %v3119 = vsub.f32 %v2570, %v3117
      %v3120 = vmul.f32 %v3118, 1.442695
      %v3121 = vpow.pop %v3120
      %v3122 = vmul.f32 %v3119, 1.442695
      %v3123 = vpow.pop %v3122
      %v3124 = vsel %vm3111, %v3121, 0.0
      %3125 = vadd.xlane.f32.xlu0 %v3124
      %v3126 = vpop.xlane.xlu0 %3125
      %v3127 = vsel %vm3111, %v3123, 0.0
      %3128 = vadd.xlane.f32.xlu0 %v3127
      %v3129 = vpop.xlane.xlu0 %3128
      %v3130 = vlog2.pop %v3126
      %v3131 = vmul.f32 %v3130, 0.6931472
      %v3132 = vlog2.pop %v3129
      %v3133 = vmul.f32 %v3132, 0.6931472
      %v3134 = vsub.f32 %v3118, %v3131
      %v3135 = vsub.f32 %v3119, %v3133
      %3136 = vst.msk [vmem:[%s581] sm:$0xff] %vm3111, %v3134
      %3137 = vst.msk [vmem:[%s581 + $0x8] sm:$0xff] %vm3111, %v3135
      %s3138 = smul.u32 2, %s32
      %p3139 = scmp.lt.s32.totalorder %s31, 1
      %s3140 = scalar_select %p3139, %s31, 1
      %p3141 = scmp.lt.s32.totalorder %s3138, 1
      %s3142 = scalar_select %p3141, %s3138, 1
      %s3143 = smul.addr %s3140, 2
      %s3144 = sadd.s32 %s3142, %s3143
      %s3145 = smul.addr %s3144, 8
      %s3146 = scalar_lea.vmem %s14, %s3145
      %s3147 = smul.u32 2, %s32
      %p3148 = scmp.lt.s32.totalorder %s31, 1
      %s3149 = scalar_select %p3148, %s31, 1
      %p3150 = scmp.lt.s32.totalorder %s3147, 1
      %s3151 = scalar_select %p3150, %s3147, 1
      %s3152 = smul.addr %s3151, 4
      %s3153 = smul.addr %s3149, 8
      %s3154 = sadd.s32 %s3152, %s3153
      %s3155 = smul.addr %s3154, 4
      %s3156 = scalar_lea.vmem %s15, %s3155
      // Predicated region
      $region77: #{pointnet_dense_cls_forward.5} parent=75 // pred_check
        %p3157 = pneg %p370
      $region78: #{pointnet_dense_cls_forward.5} parent=75 // pred_check_branch
        %3159 = sbr.rel (%p3157) target = $region80
      $region79: #{pointnet_dense_cls_forward.5} parent=75 // pred_region
        %s3160 = smul.u32 2, %s32
      $region80: #{pointnet_dense_cls_forward.5} parent=75 // pred_fallthru
        _
      // Predicated region
      $region81: #{pointnet_dense_cls_forward.5} parent=75 // pred_check
        %p3161 = pneg %p398
      $region82: #{pointnet_dense_cls_forward.5} parent=75 // pred_check_branch
        %3163 = sbr.rel (%p3161) target = $region84
      $region83: #{pointnet_dense_cls_forward.5} parent=75 // pred_region
        %s3164 = smul.u32 2, %s32
      $region84: #{pointnet_dense_cls_forward.5} parent=75 // pred_fallthru
        _
    $region76: #{pointnet_dense_cls_forward.5} parent=5 // pred_fallthru
      _
    %p3165 = scmp.le.s32.totalorder 2, %s22
    // Predicated region
    $region85: #{pointnet_dense_cls_forward.5} parent=5 // pred_check
      %p3166 = pneg %p3165
    $region86: #{pointnet_dense_cls_forward.5} parent=5 // pred_check_branch
      %3168 = sbr.rel (%p3166) target = $region88
    $region87: #{pointnet_dense_cls_forward.5} parent=5 // pred_region
      %s3169 = ssub.s32 %s22, 2
      // Predicated region
      $region89: #{pointnet_dense_cls_forward.5} parent=87 // pred_check
        %p3170 = pneg %p376
      $region90: #{pointnet_dense_cls_forward.5} parent=87 // pred_check_branch
        %3172 = sbr.rel (%p3170) target = $region92
      $region91: #{pointnet_dense_cls_forward.5} parent=87 // pred_region
        %s3173 = smul.u32 2, %s34
        %p3174 = scmp.lt.s32.totalorder %s33, 1
        %s3175 = scalar_select %p3174, %s33, 1
        %p3176 = scmp.lt.s32.totalorder %s3173, 1
        %s3177 = scalar_select %p3176, %s3173, 1
        %s3178 = smul.addr %s3175, 2
        %s3179 = sadd.s32 %s3177, %s3178
        %s3180 = smul.addr %s3179, 8
        %s3181 = scalar_lea.vmem %s14, %s3180
      $region92: #{pointnet_dense_cls_forward.5} parent=87 // pred_fallthru
        _
      // Predicated region
      $region93: #{pointnet_dense_cls_forward.5} parent=87 // pred_check
        %p3182 = pneg %p404
      $region94: #{pointnet_dense_cls_forward.5} parent=87 // pred_check_branch
        %3184 = sbr.rel (%p3182) target = $region96
      $region95: #{pointnet_dense_cls_forward.5} parent=87 // pred_region
        %s3185 = smul.u32 2, %s34
        %p3186 = scmp.lt.s32.totalorder %s33, 1
        %s3187 = scalar_select %p3186, %s33, 1
        %p3188 = scmp.lt.s32.totalorder %s3185, 1
        %s3189 = scalar_select %p3188, %s3185, 1
        %s3190 = smul.addr %s3189, 4
        %s3191 = smul.addr %s3187, 8
        %s3192 = sadd.s32 %s3190, %s3191
        %s3193 = smul.addr %s3192, 4
        %s3194 = scalar_lea.vmem %s15, %s3193
      $region96: #{pointnet_dense_cls_forward.5} parent=87 // pred_fallthru
        _
    $region88: #{pointnet_dense_cls_forward.5} parent=5 // pred_fallthru
      _
  $region6: #{pointnet_dense_cls_forward.5} parent=0 // loop_footer
    %s26 = sadd.s32 1, %s22
  $region7: #{pointnet_dense_cls_forward.5} parent=0 // loop_footer_branch
    %21 = sbr.rel target = $region3
  $region8: #{pointnet_dense_cls_forward.5} parent=0 // loop_exit
    _

</llo_original>
